<compile_context>
chip_gen: v6e
topology: v6e:2x2x1
jax: 0.10.0
libtpu: 0.0.40
codegen_flags: <defaults>
</compile_context>

<pallas_src>
import math

import jax
import jax.numpy as jnp
import numpy as np
from jax import lax
from jax.experimental import pallas as pl
from jax.experimental.pallas import tpu as pltpu

_LEAKY_SLOPE = 0.2

# (cin, cout, kernel, stride, pad); cin of layer 0 is in_channels * 2.
_LAYER_SPECS = [
    (2,   64,  3, 2, 1),
    (64,  128, 3, 2, 1),
    (128, 256, 3, 2, 1),
    (256, 512, 3, 2, 1),
    (512, 1,   1, 4, 0),
]


# ---------------------------------------------------------------------------
# Parameters
# ---------------------------------------------------------------------------
def init_params(key, in_channels=1):
    specs = list(_LAYER_SPECS)
    specs[0] = (in_channels * 2,) + specs[0][1:]
    params = []
    for (cin, cout, k, _, _) in specs:
        key, wk, bk = jax.random.split(key, 3)
        fan_in = cin * k * k
        bound = 1.0 / math.sqrt(fan_in)
        w = jax.random.uniform(wk, (k, k, cin, cout), jnp.float32, -bound, bound)
        b = jax.random.uniform(bk, (cout,), jnp.float32, -bound, bound)
        params.append((w, b))
    return params


def _gather_mats(h_in, w_in):
    """0/1 matrices G[k] (k = ky*3+kx) of shape (HoWo, HW) implementing the
    zero-padded, stride-2, 3x3 im2col gather of a (h_in, w_in) feature map.
    Applied on the MXU inside the kernel, one per kernel offset."""
    ho, wo = h_in // 2, w_in // 2
    g = np.zeros((9, ho * wo, h_in * w_in), np.float32)
    for ky in range(3):
        for kx in range(3):
            k = ky * 3 + kx
            for a in range(ho):
                h = 2 * a + ky - 1
                if h < 0 or h >= h_in:
                    continue
                for b in range(wo):
                    w = 2 * b + kx - 1
                    if w < 0 or w >= w_in:
                        continue
                    g[k, a * wo + b, h * w_in + w] = 1.0
    return jnp.asarray(g).astype(jnp.bfloat16)   # 0/1 exact in bf16


def pack_params(params, height, width):
    """One-time prep: flat bf16 weight matrices, f32 bias rows, bf16 gather
    matrices sized for the given input resolution."""
    assert height % 16 == 0 and width % 16 == 0, "spatial dims must be /16"
    h1, w1_ = height // 2, width // 2
    h2, w2_ = h1 // 2, w1_ // 2
    h3, w3_ = h2 // 2, w2_ // 2
    h4, w4_ = h3 // 2, w3_ // 2
    # The folded final conv (1x1 stride 4) samples only position (0,0).
    # TODO(synk): generalize the epilogue fold for layer-4 maps larger than 4x4.
    assert (h4 - 1) // 4 == 0 and (w4_ - 1) // 4 == 0

    def wmat(w):
        kh, kw, ci, co = w.shape
        return w.reshape(kh * kw * ci, co).astype(jnp.bfloat16)

    def brow(b):
        return b.reshape(1, -1).astype(jnp.float32)

    (wa, ba), (wb, bb), (wc, bc), (wd, bd), (we, be) = params
    return dict(
        w1=wmat(wa), b1=brow(ba),
        w2=wmat(wb), b2=brow(bb),
        w3=wmat(wc), b3=brow(bc),
        w4=wmat(wd), b4=brow(bd),
        w5=we.reshape(1, -1).astype(jnp.float32),   # (1, 512)
        b5=be.reshape(1, 1).astype(jnp.float32),    # (1, 1)
        g2=_gather_mats(h1, w1_),                   # (9, h2*w2, h1*w1)
        g3=_gather_mats(h2, w2_),                   # (9, h3*w3, h2*w2)
        g4=_gather_mats(h3, w3_),                   # (9, h4*w4, h3*w3)
    )


# ---------------------------------------------------------------------------
# Layer-1 im2col (XLA, on the tiny raw input only)
# ---------------------------------------------------------------------------
def _im2col_l1(x):
    """im2col for the first 3x3/s2/p1 conv. x: (N, H, W, C) ->
    (N, Ho*Wo, 9*C) with columns ordered (ky, kx, c)."""
    n, h, w, c = x.shape
    ho, wo = h // 2, w // 2
    xp = jnp.pad(x, ((0, 0), (1, 1), (1, 1), (0, 0)))
    cols = []
    for ky in range(3):
        for kx in range(3):
            cols.append(xp[:, ky:ky + 2 * ho - 1:2, kx:kx + 2 * wo - 1:2, :])
    col = jnp.concatenate(cols, axis=-1)
    return col.reshape(n, ho * wo, 9 * c)


# ---------------------------------------------------------------------------
# Fused Pallas kernel: whole discriminator for one batch element
# ---------------------------------------------------------------------------
def _discriminator_kernel(col1_ref,
                          w1_ref, b1_ref, w2_ref, b2_ref, w3_ref, b3_ref,
                          w4_ref, b4_ref, w5_ref, b5_ref,
                          g2_ref, g3_ref, g4_ref,
                          out_ref):
    def conv_head(cols_f32, w_ref, b_ref):
        # bf16 MXU operands, f32 accumulate; bias + LeakyReLU in f32.
        y = jnp.dot(cols_f32.astype(jnp.bfloat16), w_ref[...],
                    preferred_element_type=jnp.float32)
        y = y + b_ref[...]
        return jnp.where(y >= 0.0, y, _LEAKY_SLOPE * y)

    # Layer 1 (im2col prepared outside on the raw input): (S1, 18) @ (18, 64).
    y = conv_head(col1_ref[0], w1_ref, b1_ref)

    # Layers 2-4: in-VMEM im2col via MXU gather matrices, then conv matmul.
    for g_ref, w_ref, b_ref in ((g2_ref, w2_ref, b2_ref),
                                (g3_ref, w3_ref, b3_ref),
                                (g4_ref, w4_ref, b4_ref)):
        y_bf = y.astype(jnp.bfloat16)
        patches = jnp.concatenate(
            [jnp.dot(g_ref[k], y_bf, preferred_element_type=jnp.float32)
             for k in range(9)],
            axis=1)                                   # (S_out, 9*C_in)
        y = conv_head(patches, w_ref, b_ref)

    # Layer 5 folded into the epilogue: Conv2d(512, 1, 1, stride=4) only reads
    # spatial position (0, 0) == row 0 of y.  VPU multiply + lane reduction.
    val = jnp.sum(y[0:1, :] * w5_ref[...], axis=1, keepdims=True) + b5_ref[...]
    out_ref[...] = jnp.broadcast_to(val.reshape(1, 1, 1), out_ref.shape)


def _estimate_cost(col1, packed):
    n = col1.shape[0]
    flops = 2 * col1.shape[1] * col1.shape[2] * packed["w1"].shape[1]
    for g_name, w_name in (("g2", "w2"), ("g3", "w3"), ("g4", "w4")):
        g, w = packed[g_name], packed[w_name]
        c_in = w.shape[0] // 9
        flops += 9 * 2 * g.shape[1] * g.shape[2] * c_in     # gather matmuls
        flops += 2 * g.shape[1] * w.shape[0] * w.shape[1]   # conv matmul
    flops += 2 * packed["w5"].shape[1]
    flops *= n
    bytes_accessed = col1.size * col1.dtype.itemsize + n * 128 * 4
    for a in packed.values():
        bytes_accessed += a.size * a.dtype.itemsize
    return int(flops), int(bytes_accessed)


# ---------------------------------------------------------------------------
# Forward (single fused pallas_call)
# ---------------------------------------------------------------------------
@jax.jit
def discriminator_forward(packed, img_A, img_B):
    # img_A, img_B: NCHW float32 (like PyTorch). Output: NCHW (N, 1, 1, 1).
    x = jnp.concatenate([img_A, img_B], axis=1)     # (N, 2C, H, W)
    x = jnp.transpose(x, (0, 2, 3, 1))              # NHWC
    n = x.shape[0]
    col1 = _im2col_l1(x)                            # (N, S1, 9*2C) f32

    operands = (col1,
                packed["w1"], packed["b1"], packed["w2"], packed["b2"],
                packed["w3"], packed["b3"], packed["w4"], packed["b4"],
                packed["w5"], packed["b5"],
                packed["g2"], packed["g3"], packed["g4"])

    def full_spec(a):
        nd = a.ndim
        return pl.BlockSpec(a.shape, lambda i: (0,) * nd)

    in_specs = [pl.BlockSpec((1,) + col1.shape[1:], lambda i: (i, 0, 0))]
    in_specs += [full_spec(a) for a in operands[1:]]

    flops, bytes_acc = _estimate_cost(col1, packed)

    out = pl.pallas_call(
        _discriminator_kernel,
        out_shape=jax.ShapeDtypeStruct((n, 1, 128), jnp.float32),
        grid=(n,),
        in_specs=in_specs,
        out_specs=pl.BlockSpec((1, 1, 128), lambda i: (i, 0, 0)),
        compiler_params=pltpu.CompilerParams(
            dimension_semantics=("parallel",),
            vmem_limit_bytes=32 * 1024 * 1024),
        cost_estimate=pl.CostEstimate(flops=flops, transcendentals=0,
                                      bytes_accessed=bytes_acc),
    )(*operands)

    return out[:, 0, 0].reshape(n, 1, 1, 1)


# ---------------------------------------------------------------------------
# Pure-JAX f32 reference (lax conv) for the correctness check
# ---------------------------------------------------------------------------
def discriminator_ref(params, img_A, img_B):
    x = jnp.concatenate([img_A, img_B], axis=1)
    x = jnp.transpose(x, (0, 2, 3, 1))
    strides_pads = [(2, 1), (2, 1), (2, 1), (2, 1), (4, 0)]
    for idx, ((w, b), (stride, pad)) in enumerate(zip(params, strides_pads)):
        x = lax.conv_general_dilated(
            x, w, window_strides=(stride, stride),
            padding=[(pad, pad), (pad, pad)],
            dimension_numbers=("NHWC", "HWIO", "NHWC"))
        x = x + b.reshape(1, 1, 1, -1)
        if idx < 4:
            x = jnp.where(x >= 0, x, _LEAKY_SLOPE * x)
    return jnp.transpose(x, (0, 3, 1, 2))


if __name__ == "__main__":
    key = jax.random.PRNGKey(0)
    pkey, akey, bkey = jax.random.split(key, 3)

    batch, in_channels, height, width = 2, 1, 32, 32
    params = init_params(pkey, in_channels=in_channels)
    packed = pack_params(params, height, width)

    img_A = jax.random.normal(akey, (batch, in_channels, height, width),
                              jnp.float32)
    img_B = jax.random.normal(bkey, (batch, in_channels, height, width),
                              jnp.float32)

    out = jax.block_until_ready(discriminator_forward(packed, img_A, img_B))
    ref = jax.block_until_ready(discriminator_ref(params, img_A, img_B))

    assert out.shape == ref.shape == (batch, 1, 1, 1), out.shape
    # bf16 MXU operands (f32 accumulate) -> relaxed tolerance vs f32 reference.
    np.testing.assert_allclose(np.asarray(out), np.asarray(ref),
                               rtol=2e-2, atol=2e-2)
    print("KERNEL_OK")
</pallas_src>

<mosaic_0001>
module attributes {stable_mosaic.version = 11 : i64} {
  func.func @_discriminator_kernel(%arg0: i32, %arg1: memref<1x256x18xf32, #tpu.memory_space<vmem>>, %arg2: memref<18x64xbf16, #tpu.memory_space<vmem>>, %arg3: memref<1x64xf32, #tpu.memory_space<vmem>>, %arg4: memref<576x128xbf16, #tpu.memory_space<vmem>>, %arg5: memref<1x128xf32, #tpu.memory_space<vmem>>, %arg6: memref<1152x256xbf16, #tpu.memory_space<vmem>>, %arg7: memref<1x256xf32, #tpu.memory_space<vmem>>, %arg8: memref<2304x512xbf16, #tpu.memory_space<vmem>>, %arg9: memref<1x512xf32, #tpu.memory_space<vmem>>, %arg10: memref<1x512xf32, #tpu.memory_space<vmem>>, %arg11: memref<1x1xf32, #tpu.memory_space<vmem>>, %arg12: memref<9x64x256xbf16, #tpu.memory_space<vmem>>, %arg13: memref<9x16x64xbf16, #tpu.memory_space<vmem>>, %arg14: memref<9x4x16xbf16, #tpu.memory_space<vmem>>, %arg15: memref<1x1x128xf32, #tpu.memory_space<vmem>>) attributes {dimension_semantics = [#tpu.dimension_semantics<parallel>], iteration_bounds = array<i64: 2>, scalar_prefetch = 0 : i64, scratch_operands = 0 : i64, tpu.core_type = #tpu.core_type<tc>, window_params = [{transform_indices = @transform_0, window_bounds = array<i64: 1, 256, 18>}, {pipeline_mode = #tpu.pipeline_mode<synchronous>, transform_indices = @transform_1, window_bounds = array<i64: 18, 64>}, {pipeline_mode = #tpu.pipeline_mode<synchronous>, transform_indices = @transform_2, window_bounds = array<i64: 1, 64>}, {pipeline_mode = #tpu.pipeline_mode<synchronous>, transform_indices = @transform_3, window_bounds = array<i64: 576, 128>}, {pipeline_mode = #tpu.pipeline_mode<synchronous>, transform_indices = @transform_4, window_bounds = array<i64: 1, 128>}, {pipeline_mode = #tpu.pipeline_mode<synchronous>, transform_indices = @transform_5, window_bounds = array<i64: 1152, 256>}, {pipeline_mode = #tpu.pipeline_mode<synchronous>, transform_indices = @transform_6, window_bounds = array<i64: 1, 256>}, {pipeline_mode = #tpu.pipeline_mode<synchronous>, transform_indices = @transform_7, window_bounds = array<i64: 2304, 512>}, {pipeline_mode = #tpu.pipeline_mode<synchronous>, transform_indices = @transform_8, window_bounds = array<i64: 1, 512>}, {pipeline_mode = #tpu.pipeline_mode<synchronous>, transform_indices = @transform_9, window_bounds = array<i64: 1, 512>}, {pipeline_mode = #tpu.pipeline_mode<synchronous>, transform_indices = @transform_10, window_bounds = array<i64: 1, 1>}, {pipeline_mode = #tpu.pipeline_mode<synchronous>, transform_indices = @transform_11, window_bounds = array<i64: 9, 64, 256>}, {pipeline_mode = #tpu.pipeline_mode<synchronous>, transform_indices = @transform_12, window_bounds = array<i64: 9, 16, 64>}, {pipeline_mode = #tpu.pipeline_mode<synchronous>, transform_indices = @transform_13, window_bounds = array<i64: 9, 4, 16>}, {transform_indices = @transform_14, window_bounds = array<i64: 1, 1, 128>}]} {
    %c0 = arith.constant 0 : index
    %c0_0 = arith.constant 0 : index
    %c0_1 = arith.constant 0 : index
    %0 = vector.load %arg1[%c0, %c0_0, %c0_1] : memref<1x256x18xf32, #tpu.memory_space<vmem>>, vector<1x256x18xf32>
    %1 = vector.shape_cast %0 : vector<1x256x18xf32> to vector<256x18xf32>
    %2 = arith.truncf %1 : vector<256x18xf32> to vector<256x18xbf16>
    %c0_2 = arith.constant 0 : index
    %c0_3 = arith.constant 0 : index
    %3 = vector.load %arg2[%c0_2, %c0_3] : memref<18x64xbf16, #tpu.memory_space<vmem>>, vector<18x64xbf16>
    %cst = arith.constant dense<0.000000e+00> : vector<256x64xf32>
    %4 = tpu.matmul %2, %3, %cst {dimension_numbers = #tpu.dot_dimension_numbers<[1], [0], [0], [1], [0, 0, 1, 1], [], []>} : vector<256x18xbf16>, vector<18x64xbf16>, vector<256x64xf32> -> vector<256x64xf32>
    %c0_4 = arith.constant 0 : index
    %c0_5 = arith.constant 0 : index
    %5 = vector.load %arg3[%c0_4, %c0_5] : memref<1x64xf32, #tpu.memory_space<vmem>>, vector<1x64xf32>
    %6 = vector.broadcast %5 : vector<1x64xf32> to vector<256x64xf32>
    %7 = arith.addf %4, %6 : vector<256x64xf32>
    %cst_6 = arith.constant 0.000000e+00 : f32
    %8 = vector.broadcast %cst_6 : f32 to vector<256x64xf32>
    %9 = arith.cmpf oge, %7, %8 : vector<256x64xf32>
    %cst_7 = arith.constant 2.000000e-01 : f32
    %10 = vector.broadcast %cst_7 : f32 to vector<256x64xf32>
    %11 = arith.mulf %10, %7 : vector<256x64xf32>
    %12 = arith.select %9, %7, %11 : vector<256x64xi1>, vector<256x64xf32>
    %13 = arith.truncf %12 : vector<256x64xf32> to vector<256x64xbf16>
    %c0_8 = arith.constant 0 : index
    %c0_9 = arith.constant 0 : index
    %c0_10 = arith.constant 0 : index
    %14 = vector.load %arg12[%c0_8, %c0_9, %c0_10] : memref<9x64x256xbf16, #tpu.memory_space<vmem>>, vector<1x64x256xbf16>
    %15 = vector.shape_cast %14 : vector<1x64x256xbf16> to vector<64x256xbf16>
    %cst_11 = arith.constant dense<0.000000e+00> : vector<64x64xf32>
    %16 = tpu.matmul %15, %13, %cst_11 {dimension_numbers = #tpu.dot_dimension_numbers<[1], [0], [0], [1], [0, 0, 1, 1], [], []>} : vector<64x256xbf16>, vector<256x64xbf16>, vector<64x64xf32> -> vector<64x64xf32>
    %c1 = arith.constant 1 : index
    %c0_12 = arith.constant 0 : index
    %c0_13 = arith.constant 0 : index
    %17 = vector.load %arg12[%c1, %c0_12, %c0_13] : memref<9x64x256xbf16, #tpu.memory_space<vmem>>, vector<1x64x256xbf16>
    %18 = vector.shape_cast %17 : vector<1x64x256xbf16> to vector<64x256xbf16>
    %cst_14 = arith.constant dense<0.000000e+00> : vector<64x64xf32>
    %19 = tpu.matmul %18, %13, %cst_14 {dimension_numbers = #tpu.dot_dimension_numbers<[1], [0], [0], [1], [0, 0, 1, 1], [], []>} : vector<64x256xbf16>, vector<256x64xbf16>, vector<64x64xf32> -> vector<64x64xf32>
    %c2 = arith.constant 2 : index
    %c0_15 = arith.constant 0 : index
    %c0_16 = arith.constant 0 : index
    %20 = vector.load %arg12[%c2, %c0_15, %c0_16] : memref<9x64x256xbf16, #tpu.memory_space<vmem>>, vector<1x64x256xbf16>
    %21 = vector.shape_cast %20 : vector<1x64x256xbf16> to vector<64x256xbf16>
    %cst_17 = arith.constant dense<0.000000e+00> : vector<64x64xf32>
    %22 = tpu.matmul %21, %13, %cst_17 {dimension_numbers = #tpu.dot_dimension_numbers<[1], [0], [0], [1], [0, 0, 1, 1], [], []>} : vector<64x256xbf16>, vector<256x64xbf16>, vector<64x64xf32> -> vector<64x64xf32>
    %c3 = arith.constant 3 : index
    %c0_18 = arith.constant 0 : index
    %c0_19 = arith.constant 0 : index
    %23 = vector.load %arg12[%c3, %c0_18, %c0_19] : memref<9x64x256xbf16, #tpu.memory_space<vmem>>, vector<1x64x256xbf16>
    %24 = vector.shape_cast %23 : vector<1x64x256xbf16> to vector<64x256xbf16>
    %cst_20 = arith.constant dense<0.000000e+00> : vector<64x64xf32>
    %25 = tpu.matmul %24, %13, %cst_20 {dimension_numbers = #tpu.dot_dimension_numbers<[1], [0], [0], [1], [0, 0, 1, 1], [], []>} : vector<64x256xbf16>, vector<256x64xbf16>, vector<64x64xf32> -> vector<64x64xf32>
    %c4 = arith.constant 4 : index
    %c0_21 = arith.constant 0 : index
    %c0_22 = arith.constant 0 : index
    %26 = vector.load %arg12[%c4, %c0_21, %c0_22] : memref<9x64x256xbf16, #tpu.memory_space<vmem>>, vector<1x64x256xbf16>
    %27 = vector.shape_cast %26 : vector<1x64x256xbf16> to vector<64x256xbf16>
    %cst_23 = arith.constant dense<0.000000e+00> : vector<64x64xf32>
    %28 = tpu.matmul %27, %13, %cst_23 {dimension_numbers = #tpu.dot_dimension_numbers<[1], [0], [0], [1], [0, 0, 1, 1], [], []>} : vector<64x256xbf16>, vector<256x64xbf16>, vector<64x64xf32> -> vector<64x64xf32>
    %c5 = arith.constant 5 : index
    %c0_24 = arith.constant 0 : index
    %c0_25 = arith.constant 0 : index
    %29 = vector.load %arg12[%c5, %c0_24, %c0_25] : memref<9x64x256xbf16, #tpu.memory_space<vmem>>, vector<1x64x256xbf16>
    %30 = vector.shape_cast %29 : vector<1x64x256xbf16> to vector<64x256xbf16>
    %cst_26 = arith.constant dense<0.000000e+00> : vector<64x64xf32>
    %31 = tpu.matmul %30, %13, %cst_26 {dimension_numbers = #tpu.dot_dimension_numbers<[1], [0], [0], [1], [0, 0, 1, 1], [], []>} : vector<64x256xbf16>, vector<256x64xbf16>, vector<64x64xf32> -> vector<64x64xf32>
    %c6 = arith.constant 6 : index
    %c0_27 = arith.constant 0 : index
    %c0_28 = arith.constant 0 : index
    %32 = vector.load %arg12[%c6, %c0_27, %c0_28] : memref<9x64x256xbf16, #tpu.memory_space<vmem>>, vector<1x64x256xbf16>
    %33 = vector.shape_cast %32 : vector<1x64x256xbf16> to vector<64x256xbf16>
    %cst_29 = arith.constant dense<0.000000e+00> : vector<64x64xf32>
    %34 = tpu.matmul %33, %13, %cst_29 {dimension_numbers = #tpu.dot_dimension_numbers<[1], [0], [0], [1], [0, 0, 1, 1], [], []>} : vector<64x256xbf16>, vector<256x64xbf16>, vector<64x64xf32> -> vector<64x64xf32>
    %c7 = arith.constant 7 : index
    %c0_30 = arith.constant 0 : index
    %c0_31 = arith.constant 0 : index
    %35 = vector.load %arg12[%c7, %c0_30, %c0_31] : memref<9x64x256xbf16, #tpu.memory_space<vmem>>, vector<1x64x256xbf16>
    %36 = vector.shape_cast %35 : vector<1x64x256xbf16> to vector<64x256xbf16>
    %cst_32 = arith.constant dense<0.000000e+00> : vector<64x64xf32>
    %37 = tpu.matmul %36, %13, %cst_32 {dimension_numbers = #tpu.dot_dimension_numbers<[1], [0], [0], [1], [0, 0, 1, 1], [], []>} : vector<64x256xbf16>, vector<256x64xbf16>, vector<64x64xf32> -> vector<64x64xf32>
    %c8 = arith.constant 8 : index
    %c0_33 = arith.constant 0 : index
    %c0_34 = arith.constant 0 : index
    %38 = vector.load %arg12[%c8, %c0_33, %c0_34] : memref<9x64x256xbf16, #tpu.memory_space<vmem>>, vector<1x64x256xbf16>
    %39 = vector.shape_cast %38 : vector<1x64x256xbf16> to vector<64x256xbf16>
    %cst_35 = arith.constant dense<0.000000e+00> : vector<64x64xf32>
    %40 = tpu.matmul %39, %13, %cst_35 {dimension_numbers = #tpu.dot_dimension_numbers<[1], [0], [0], [1], [0, 0, 1, 1], [], []>} : vector<64x256xbf16>, vector<256x64xbf16>, vector<64x64xf32> -> vector<64x64xf32>
    %41 = tpu.concatenate %16, %19, %22, %25, %28, %31, %34, %37, %40 in 1 : vector<64x64xf32>, vector<64x64xf32>, vector<64x64xf32>, vector<64x64xf32>, vector<64x64xf32>, vector<64x64xf32>, vector<64x64xf32>, vector<64x64xf32>, vector<64x64xf32> -> vector<64x576xf32>
    %42 = arith.truncf %41 : vector<64x576xf32> to vector<64x576xbf16>
    %c0_36 = arith.constant 0 : index
    %c0_37 = arith.constant 0 : index
    %43 = vector.load %arg4[%c0_36, %c0_37] : memref<576x128xbf16, #tpu.memory_space<vmem>>, vector<576x128xbf16>
    %cst_38 = arith.constant dense<0.000000e+00> : vector<64x128xf32>
    %44 = tpu.matmul %42, %43, %cst_38 {dimension_numbers = #tpu.dot_dimension_numbers<[1], [0], [0], [1], [0, 0, 1, 1], [], []>} : vector<64x576xbf16>, vector<576x128xbf16>, vector<64x128xf32> -> vector<64x128xf32>
    %c0_39 = arith.constant 0 : index
    %c0_40 = arith.constant 0 : index
    %45 = vector.load %arg5[%c0_39, %c0_40] : memref<1x128xf32, #tpu.memory_space<vmem>>, vector<1x128xf32>
    %46 = vector.broadcast %45 : vector<1x128xf32> to vector<64x128xf32>
    %47 = arith.addf %44, %46 : vector<64x128xf32>
    %cst_41 = arith.constant 0.000000e+00 : f32
    %48 = vector.broadcast %cst_41 : f32 to vector<64x128xf32>
    %49 = arith.cmpf oge, %47, %48 : vector<64x128xf32>
    %cst_42 = arith.constant 2.000000e-01 : f32
    %50 = vector.broadcast %cst_42 : f32 to vector<64x128xf32>
    %51 = arith.mulf %50, %47 : vector<64x128xf32>
    %52 = arith.select %49, %47, %51 : vector<64x128xi1>, vector<64x128xf32>
    %53 = arith.truncf %52 : vector<64x128xf32> to vector<64x128xbf16>
    %c0_43 = arith.constant 0 : index
    %c0_44 = arith.constant 0 : index
    %c0_45 = arith.constant 0 : index
    %54 = vector.load %arg13[%c0_43, %c0_44, %c0_45] : memref<9x16x64xbf16, #tpu.memory_space<vmem>>, vector<1x16x64xbf16>
    %55 = vector.shape_cast %54 : vector<1x16x64xbf16> to vector<16x64xbf16>
    %cst_46 = arith.constant dense<0.000000e+00> : vector<16x128xf32>
    %56 = tpu.matmul %55, %53, %cst_46 {dimension_numbers = #tpu.dot_dimension_numbers<[1], [0], [0], [1], [0, 0, 1, 1], [], []>} : vector<16x64xbf16>, vector<64x128xbf16>, vector<16x128xf32> -> vector<16x128xf32>
    %c1_47 = arith.constant 1 : index
    %c0_48 = arith.constant 0 : index
    %c0_49 = arith.constant 0 : index
    %57 = vector.load %arg13[%c1_47, %c0_48, %c0_49] : memref<9x16x64xbf16, #tpu.memory_space<vmem>>, vector<1x16x64xbf16>
    %58 = vector.shape_cast %57 : vector<1x16x64xbf16> to vector<16x64xbf16>
    %cst_50 = arith.constant dense<0.000000e+00> : vector<16x128xf32>
    %59 = tpu.matmul %58, %53, %cst_50 {dimension_numbers = #tpu.dot_dimension_numbers<[1], [0], [0], [1], [0, 0, 1, 1], [], []>} : vector<16x64xbf16>, vector<64x128xbf16>, vector<16x128xf32> -> vector<16x128xf32>
    %c2_51 = arith.constant 2 : index
    %c0_52 = arith.constant 0 : index
    %c0_53 = arith.constant 0 : index
    %60 = vector.load %arg13[%c2_51, %c0_52, %c0_53] : memref<9x16x64xbf16, #tpu.memory_space<vmem>>, vector<1x16x64xbf16>
    %61 = vector.shape_cast %60 : vector<1x16x64xbf16> to vector<16x64xbf16>
    %cst_54 = arith.constant dense<0.000000e+00> : vector<16x128xf32>
    %62 = tpu.matmul %61, %53, %cst_54 {dimension_numbers = #tpu.dot_dimension_numbers<[1], [0], [0], [1], [0, 0, 1, 1], [], []>} : vector<16x64xbf16>, vector<64x128xbf16>, vector<16x128xf32> -> vector<16x128xf32>
    %c3_55 = arith.constant 3 : index
    %c0_56 = arith.constant 0 : index
    %c0_57 = arith.constant 0 : index
    %63 = vector.load %arg13[%c3_55, %c0_56, %c0_57] : memref<9x16x64xbf16, #tpu.memory_space<vmem>>, vector<1x16x64xbf16>
    %64 = vector.shape_cast %63 : vector<1x16x64xbf16> to vector<16x64xbf16>
    %cst_58 = arith.constant dense<0.000000e+00> : vector<16x128xf32>
    %65 = tpu.matmul %64, %53, %cst_58 {dimension_numbers = #tpu.dot_dimension_numbers<[1], [0], [0], [1], [0, 0, 1, 1], [], []>} : vector<16x64xbf16>, vector<64x128xbf16>, vector<16x128xf32> -> vector<16x128xf32>
    %c4_59 = arith.constant 4 : index
    %c0_60 = arith.constant 0 : index
    %c0_61 = arith.constant 0 : index
    %66 = vector.load %arg13[%c4_59, %c0_60, %c0_61] : memref<9x16x64xbf16, #tpu.memory_space<vmem>>, vector<1x16x64xbf16>
    %67 = vector.shape_cast %66 : vector<1x16x64xbf16> to vector<16x64xbf16>
    %cst_62 = arith.constant dense<0.000000e+00> : vector<16x128xf32>
    %68 = tpu.matmul %67, %53, %cst_62 {dimension_numbers = #tpu.dot_dimension_numbers<[1], [0], [0], [1], [0, 0, 1, 1], [], []>} : vector<16x64xbf16>, vector<64x128xbf16>, vector<16x128xf32> -> vector<16x128xf32>
    %c5_63 = arith.constant 5 : index
    %c0_64 = arith.constant 0 : index
    %c0_65 = arith.constant 0 : index
    %69 = vector.load %arg13[%c5_63, %c0_64, %c0_65] : memref<9x16x64xbf16, #tpu.memory_space<vmem>>, vector<1x16x64xbf16>
    %70 = vector.shape_cast %69 : vector<1x16x64xbf16> to vector<16x64xbf16>
    %cst_66 = arith.constant dense<0.000000e+00> : vector<16x128xf32>
    %71 = tpu.matmul %70, %53, %cst_66 {dimension_numbers = #tpu.dot_dimension_numbers<[1], [0], [0], [1], [0, 0, 1, 1], [], []>} : vector<16x64xbf16>, vector<64x128xbf16>, vector<16x128xf32> -> vector<16x128xf32>
    %c6_67 = arith.constant 6 : index
    %c0_68 = arith.constant 0 : index
    %c0_69 = arith.constant 0 : index
    %72 = vector.load %arg13[%c6_67, %c0_68, %c0_69] : memref<9x16x64xbf16, #tpu.memory_space<vmem>>, vector<1x16x64xbf16>
    %73 = vector.shape_cast %72 : vector<1x16x64xbf16> to vector<16x64xbf16>
    %cst_70 = arith.constant dense<0.000000e+00> : vector<16x128xf32>
    %74 = tpu.matmul %73, %53, %cst_70 {dimension_numbers = #tpu.dot_dimension_numbers<[1], [0], [0], [1], [0, 0, 1, 1], [], []>} : vector<16x64xbf16>, vector<64x128xbf16>, vector<16x128xf32> -> vector<16x128xf32>
    %c7_71 = arith.constant 7 : index
    %c0_72 = arith.constant 0 : index
    %c0_73 = arith.constant 0 : index
    %75 = vector.load %arg13[%c7_71, %c0_72, %c0_73] : memref<9x16x64xbf16, #tpu.memory_space<vmem>>, vector<1x16x64xbf16>
    %76 = vector.shape_cast %75 : vector<1x16x64xbf16> to vector<16x64xbf16>
    %cst_74 = arith.constant dense<0.000000e+00> : vector<16x128xf32>
    %77 = tpu.matmul %76, %53, %cst_74 {dimension_numbers = #tpu.dot_dimension_numbers<[1], [0], [0], [1], [0, 0, 1, 1], [], []>} : vector<16x64xbf16>, vector<64x128xbf16>, vector<16x128xf32> -> vector<16x128xf32>
    %c8_75 = arith.constant 8 : index
    %c0_76 = arith.constant 0 : index
    %c0_77 = arith.constant 0 : index
    %78 = vector.load %arg13[%c8_75, %c0_76, %c0_77] : memref<9x16x64xbf16, #tpu.memory_space<vmem>>, vector<1x16x64xbf16>
    %79 = vector.shape_cast %78 : vector<1x16x64xbf16> to vector<16x64xbf16>
    %cst_78 = arith.constant dense<0.000000e+00> : vector<16x128xf32>
    %80 = tpu.matmul %79, %53, %cst_78 {dimension_numbers = #tpu.dot_dimension_numbers<[1], [0], [0], [1], [0, 0, 1, 1], [], []>} : vector<16x64xbf16>, vector<64x128xbf16>, vector<16x128xf32> -> vector<16x128xf32>
    %81 = tpu.concatenate %56, %59, %62, %65, %68, %71, %74, %77, %80 in 1 : vector<16x128xf32>, vector<16x128xf32>, vector<16x128xf32>, vector<16x128xf32>, vector<16x128xf32>, vector<16x128xf32>, vector<16x128xf32>, vector<16x128xf32>, vector<16x128xf32> -> vector<16x1152xf32>
    %82 = arith.truncf %81 : vector<16x1152xf32> to vector<16x1152xbf16>
    %c0_79 = arith.constant 0 : index
    %c0_80 = arith.constant 0 : index
    %83 = vector.load %arg6[%c0_79, %c0_80] : memref<1152x256xbf16, #tpu.memory_space<vmem>>, vector<1152x256xbf16>
    %cst_81 = arith.constant dense<0.000000e+00> : vector<16x256xf32>
    %84 = tpu.matmul %82, %83, %cst_81 {dimension_numbers = #tpu.dot_dimension_numbers<[1], [0], [0], [1], [0, 0, 1, 1], [], []>} : vector<16x1152xbf16>, vector<1152x256xbf16>, vector<16x256xf32> -> vector<16x256xf32>
    %c0_82 = arith.constant 0 : index
    %c0_83 = arith.constant 0 : index
    %85 = vector.load %arg7[%c0_82, %c0_83] : memref<1x256xf32, #tpu.memory_space<vmem>>, vector<1x256xf32>
    %86 = vector.broadcast %85 : vector<1x256xf32> to vector<16x256xf32>
    %87 = arith.addf %84, %86 : vector<16x256xf32>
    %cst_84 = arith.constant 0.000000e+00 : f32
    %88 = vector.broadcast %cst_84 : f32 to vector<16x256xf32>
    %89 = arith.cmpf oge, %87, %88 : vector<16x256xf32>
    %cst_85 = arith.constant 2.000000e-01 : f32
    %90 = vector.broadcast %cst_85 : f32 to vector<16x256xf32>
    %91 = arith.mulf %90, %87 : vector<16x256xf32>
    %92 = arith.select %89, %87, %91 : vector<16x256xi1>, vector<16x256xf32>
    %93 = arith.truncf %92 : vector<16x256xf32> to vector<16x256xbf16>
    %c0_86 = arith.constant 0 : index
    %c0_87 = arith.constant 0 : index
    %c0_88 = arith.constant 0 : index
    %94 = vector.load %arg14[%c0_86, %c0_87, %c0_88] : memref<9x4x16xbf16, #tpu.memory_space<vmem>>, vector<1x4x16xbf16>
    %95 = vector.shape_cast %94 : vector<1x4x16xbf16> to vector<4x16xbf16>
    %cst_89 = arith.constant dense<0.000000e+00> : vector<4x256xf32>
    %96 = tpu.matmul %95, %93, %cst_89 {dimension_numbers = #tpu.dot_dimension_numbers<[1], [0], [0], [1], [0, 0, 1, 1], [], []>} : vector<4x16xbf16>, vector<16x256xbf16>, vector<4x256xf32> -> vector<4x256xf32>
    %c1_90 = arith.constant 1 : index
    %c0_91 = arith.constant 0 : index
    %c0_92 = arith.constant 0 : index
    %97 = vector.load %arg14[%c1_90, %c0_91, %c0_92] : memref<9x4x16xbf16, #tpu.memory_space<vmem>>, vector<1x4x16xbf16>
    %98 = vector.shape_cast %97 : vector<1x4x16xbf16> to vector<4x16xbf16>
    %cst_93 = arith.constant dense<0.000000e+00> : vector<4x256xf32>
    %99 = tpu.matmul %98, %93, %cst_93 {dimension_numbers = #tpu.dot_dimension_numbers<[1], [0], [0], [1], [0, 0, 1, 1], [], []>} : vector<4x16xbf16>, vector<16x256xbf16>, vector<4x256xf32> -> vector<4x256xf32>
    %c2_94 = arith.constant 2 : index
    %c0_95 = arith.constant 0 : index
    %c0_96 = arith.constant 0 : index
    %100 = vector.load %arg14[%c2_94, %c0_95, %c0_96] : memref<9x4x16xbf16, #tpu.memory_space<vmem>>, vector<1x4x16xbf16>
    %101 = vector.shape_cast %100 : vector<1x4x16xbf16> to vector<4x16xbf16>
    %cst_97 = arith.constant dense<0.000000e+00> : vector<4x256xf32>
    %102 = tpu.matmul %101, %93, %cst_97 {dimension_numbers = #tpu.dot_dimension_numbers<[1], [0], [0], [1], [0, 0, 1, 1], [], []>} : vector<4x16xbf16>, vector<16x256xbf16>, vector<4x256xf32> -> vector<4x256xf32>
    %c3_98 = arith.constant 3 : index
    %c0_99 = arith.constant 0 : index
    %c0_100 = arith.constant 0 : index
    %103 = vector.load %arg14[%c3_98, %c0_99, %c0_100] : memref<9x4x16xbf16, #tpu.memory_space<vmem>>, vector<1x4x16xbf16>
    %104 = vector.shape_cast %103 : vector<1x4x16xbf16> to vector<4x16xbf16>
    %cst_101 = arith.constant dense<0.000000e+00> : vector<4x256xf32>
    %105 = tpu.matmul %104, %93, %cst_101 {dimension_numbers = #tpu.dot_dimension_numbers<[1], [0], [0], [1], [0, 0, 1, 1], [], []>} : vector<4x16xbf16>, vector<16x256xbf16>, vector<4x256xf32> -> vector<4x256xf32>
    %c4_102 = arith.constant 4 : index
    %c0_103 = arith.constant 0 : index
    %c0_104 = arith.constant 0 : index
    %106 = vector.load %arg14[%c4_102, %c0_103, %c0_104] : memref<9x4x16xbf16, #tpu.memory_space<vmem>>, vector<1x4x16xbf16>
    %107 = vector.shape_cast %106 : vector<1x4x16xbf16> to vector<4x16xbf16>
    %cst_105 = arith.constant dense<0.000000e+00> : vector<4x256xf32>
    %108 = tpu.matmul %107, %93, %cst_105 {dimension_numbers = #tpu.dot_dimension_numbers<[1], [0], [0], [1], [0, 0, 1, 1], [], []>} : vector<4x16xbf16>, vector<16x256xbf16>, vector<4x256xf32> -> vector<4x256xf32>
    %c5_106 = arith.constant 5 : index
    %c0_107 = arith.constant 0 : index
    %c0_108 = arith.constant 0 : index
    %109 = vector.load %arg14[%c5_106, %c0_107, %c0_108] : memref<9x4x16xbf16, #tpu.memory_space<vmem>>, vector<1x4x16xbf16>
    %110 = vector.shape_cast %109 : vector<1x4x16xbf16> to vector<4x16xbf16>
    %cst_109 = arith.constant dense<0.000000e+00> : vector<4x256xf32>
    %111 = tpu.matmul %110, %93, %cst_109 {dimension_numbers = #tpu.dot_dimension_numbers<[1], [0], [0], [1], [0, 0, 1, 1], [], []>} : vector<4x16xbf16>, vector<16x256xbf16>, vector<4x256xf32> -> vector<4x256xf32>
    %c6_110 = arith.constant 6 : index
    %c0_111 = arith.constant 0 : index
    %c0_112 = arith.constant 0 : index
    %112 = vector.load %arg14[%c6_110, %c0_111, %c0_112] : memref<9x4x16xbf16, #tpu.memory_space<vmem>>, vector<1x4x16xbf16>
    %113 = vector.shape_cast %112 : vector<1x4x16xbf16> to vector<4x16xbf16>
    %cst_113 = arith.constant dense<0.000000e+00> : vector<4x256xf32>
    %114 = tpu.matmul %113, %93, %cst_113 {dimension_numbers = #tpu.dot_dimension_numbers<[1], [0], [0], [1], [0, 0, 1, 1], [], []>} : vector<4x16xbf16>, vector<16x256xbf16>, vector<4x256xf32> -> vector<4x256xf32>
    %c7_114 = arith.constant 7 : index
    %c0_115 = arith.constant 0 : index
    %c0_116 = arith.constant 0 : index
    %115 = vector.load %arg14[%c7_114, %c0_115, %c0_116] : memref<9x4x16xbf16, #tpu.memory_space<vmem>>, vector<1x4x16xbf16>
    %116 = vector.shape_cast %115 : vector<1x4x16xbf16> to vector<4x16xbf16>
    %cst_117 = arith.constant dense<0.000000e+00> : vector<4x256xf32>
    %117 = tpu.matmul %116, %93, %cst_117 {dimension_numbers = #tpu.dot_dimension_numbers<[1], [0], [0], [1], [0, 0, 1, 1], [], []>} : vector<4x16xbf16>, vector<16x256xbf16>, vector<4x256xf32> -> vector<4x256xf32>
    %c8_118 = arith.constant 8 : index
    %c0_119 = arith.constant 0 : index
    %c0_120 = arith.constant 0 : index
    %118 = vector.load %arg14[%c8_118, %c0_119, %c0_120] : memref<9x4x16xbf16, #tpu.memory_space<vmem>>, vector<1x4x16xbf16>
    %119 = vector.shape_cast %118 : vector<1x4x16xbf16> to vector<4x16xbf16>
    %cst_121 = arith.constant dense<0.000000e+00> : vector<4x256xf32>
    %120 = tpu.matmul %119, %93, %cst_121 {dimension_numbers = #tpu.dot_dimension_numbers<[1], [0], [0], [1], [0, 0, 1, 1], [], []>} : vector<4x16xbf16>, vector<16x256xbf16>, vector<4x256xf32> -> vector<4x256xf32>
    %121 = tpu.concatenate %96, %99, %102, %105, %108, %111, %114, %117, %120 in 1 : vector<4x256xf32>, vector<4x256xf32>, vector<4x256xf32>, vector<4x256xf32>, vector<4x256xf32>, vector<4x256xf32>, vector<4x256xf32>, vector<4x256xf32>, vector<4x256xf32> -> vector<4x2304xf32>
    %122 = arith.truncf %121 : vector<4x2304xf32> to vector<4x2304xbf16>
    %c0_122 = arith.constant 0 : index
    %c0_123 = arith.constant 0 : index
    %123 = vector.load %arg8[%c0_122, %c0_123] : memref<2304x512xbf16, #tpu.memory_space<vmem>>, vector<2304x512xbf16>
    %cst_124 = arith.constant dense<0.000000e+00> : vector<4x512xf32>
    %124 = tpu.matmul %122, %123, %cst_124 {dimension_numbers = #tpu.dot_dimension_numbers<[1], [0], [0], [1], [0, 0, 1, 1], [], []>} : vector<4x2304xbf16>, vector<2304x512xbf16>, vector<4x512xf32> -> vector<4x512xf32>
    %c0_125 = arith.constant 0 : index
    %c0_126 = arith.constant 0 : index
    %125 = vector.load %arg9[%c0_125, %c0_126] : memref<1x512xf32, #tpu.memory_space<vmem>>, vector<1x512xf32>
    %126 = vector.broadcast %125 : vector<1x512xf32> to vector<4x512xf32>
    %127 = arith.addf %124, %126 : vector<4x512xf32>
    %cst_127 = arith.constant 0.000000e+00 : f32
    %128 = vector.broadcast %cst_127 : f32 to vector<4x512xf32>
    %129 = arith.cmpf oge, %127, %128 : vector<4x512xf32>
    %cst_128 = arith.constant 2.000000e-01 : f32
    %130 = vector.broadcast %cst_128 : f32 to vector<4x512xf32>
    %131 = arith.mulf %130, %127 : vector<4x512xf32>
    %132 = arith.select %129, %127, %131 : vector<4x512xi1>, vector<4x512xf32>
    %133 = vector.extract_strided_slice %132 {offsets = [0, 0], sizes = [1, 512], strides = [1, 1]} : vector<4x512xf32> to vector<1x512xf32>
    %c0_129 = arith.constant 0 : index
    %c0_130 = arith.constant 0 : index
    %134 = vector.load %arg10[%c0_129, %c0_130] : memref<1x512xf32, #tpu.memory_space<vmem>>, vector<1x512xf32>
    %135 = arith.mulf %133, %134 : vector<1x512xf32>
    %cst_131 = arith.constant dense<0.000000e+00> : vector<1xf32>
    %136 = vector.multi_reduction <add>, %135, %cst_131 [1] : vector<1x512xf32> to vector<1xf32>
    %137 = vector.shape_cast %136 : vector<1xf32> to vector<1x1xf32>
    %c0_132 = arith.constant 0 : index
    %c0_133 = arith.constant 0 : index
    %138 = vector.load %arg11[%c0_132, %c0_133] : memref<1x1xf32, #tpu.memory_space<vmem>>, vector<1x1xf32>
    %139 = arith.addf %137, %138 : vector<1x1xf32>
    %140 = vector.shape_cast %139 : vector<1x1xf32> to vector<1x1x1xf32>
    %141 = vector.shape_cast %140 : vector<1x1x1xf32> to vector<1x1x1xf32>
    %142 = vector.broadcast %141 : vector<1x1x1xf32> to vector<1x1x128xf32>
    %c0_134 = arith.constant 0 : index
    %c0_135 = arith.constant 0 : index
    %c0_136 = arith.constant 0 : index
    %143 = vector.load %arg15[%c0_134, %c0_135, %c0_136] : memref<1x1x128xf32, #tpu.memory_space<vmem>>, vector<1x1x128xf32>
    tpu.vector_store %arg15[%c0_134, %c0_135, %c0_136], %142 {strides = array<i32>} : memref<1x1x128xf32, #tpu.memory_space<vmem>>, vector<1x1x128xf32>,
    return
  }
  func.func @transform_0(%arg0: i32) -> (i32, i32, i32) {
    %c0_i32 = arith.constant 0 : i32
    %c0_i32_0 = arith.constant 0 : i32
    %c0_i32_1 = arith.constant 0 : i32
    return %arg0, %c0_i32, %c0_i32_0 : i32, i32, i32
  }
  func.func @transform_1(%arg0: i32) -> (i32, i32) {
    %c0_i32 = arith.constant 0 : i32
    %c0_i32_0 = arith.constant 0 : i32
    %c0_i32_1 = arith.constant 0 : i32
    return %c0_i32, %c0_i32_0 : i32, i32
  }
  func.func @transform_2(%arg0: i32) -> (i32, i32) {
    %c0_i32 = arith.constant 0 : i32
    %c0_i32_0 = arith.constant 0 : i32
    %c0_i32_1 = arith.constant 0 : i32
    return %c0_i32, %c0_i32_0 : i32, i32
  }
  func.func @transform_3(%arg0: i32) -> (i32, i32) {
    %c0_i32 = arith.constant 0 : i32
    %c0_i32_0 = arith.constant 0 : i32
    %c0_i32_1 = arith.constant 0 : i32
    return %c0_i32, %c0_i32_0 : i32, i32
  }
  func.func @transform_4(%arg0: i32) -> (i32, i32) {
    %c0_i32 = arith.constant 0 : i32
    %c0_i32_0 = arith.constant 0 : i32
    %c0_i32_1 = arith.constant 0 : i32
    return %c0_i32, %c0_i32_0 : i32, i32
  }
  func.func @transform_5(%arg0: i32) -> (i32, i32) {
    %c0_i32 = arith.constant 0 : i32
    %c0_i32_0 = arith.constant 0 : i32
    %c0_i32_1 = arith.constant 0 : i32
    return %c0_i32, %c0_i32_0 : i32, i32
  }
  func.func @transform_6(%arg0: i32) -> (i32, i32) {
    %c0_i32 = arith.constant 0 : i32
    %c0_i32_0 = arith.constant 0 : i32
    %c0_i32_1 = arith.constant 0 : i32
    return %c0_i32, %c0_i32_0 : i32, i32
  }
  func.func @transform_7(%arg0: i32) -> (i32, i32) {
    %c0_i32 = arith.constant 0 : i32
    %c0_i32_0 = arith.constant 0 : i32
    %c0_i32_1 = arith.constant 0 : i32
    return %c0_i32, %c0_i32_0 : i32, i32
  }
  func.func @transform_8(%arg0: i32) -> (i32, i32) {
    %c0_i32 = arith.constant 0 : i32
    %c0_i32_0 = arith.constant 0 : i32
    %c0_i32_1 = arith.constant 0 : i32
    return %c0_i32, %c0_i32_0 : i32, i32
  }
  func.func @transform_9(%arg0: i32) -> (i32, i32) {
    %c0_i32 = arith.constant 0 : i32
    %c0_i32_0 = arith.constant 0 : i32
    %c0_i32_1 = arith.constant 0 : i32
    return %c0_i32, %c0_i32_0 : i32, i32
  }
  func.func @transform_10(%arg0: i32) -> (i32, i32) {
    %c0_i32 = arith.constant 0 : i32
    %c0_i32_0 = arith.constant 0 : i32
    %c0_i32_1 = arith.constant 0 : i32
    return %c0_i32, %c0_i32_0 : i32, i32
  }
  func.func @transform_11(%arg0: i32) -> (i32, i32, i32) {
    %c0_i32 = arith.constant 0 : i32
    %c0_i32_0 = arith.constant 0 : i32
    %c0_i32_1 = arith.constant 0 : i32
    %c0_i32_2 = arith.constant 0 : i32
    return %c0_i32, %c0_i32_0, %c0_i32_1 : i32, i32, i32
  }
  func.func @transform_12(%arg0: i32) -> (i32, i32, i32) {
    %c0_i32 = arith.constant 0 : i32
    %c0_i32_0 = arith.constant 0 : i32
    %c0_i32_1 = arith.constant 0 : i32
    %c0_i32_2 = arith.constant 0 : i32
    return %c0_i32, %c0_i32_0, %c0_i32_1 : i32, i32, i32
  }
  func.func @transform_13(%arg0: i32) -> (i32, i32, i32) {
    %c0_i32 = arith.constant 0 : i32
    %c0_i32_0 = arith.constant 0 : i32
    %c0_i32_1 = arith.constant 0 : i32
    %c0_i32_2 = arith.constant 0 : i32
    return %c0_i32, %c0_i32_0, %c0_i32_1 : i32, i32, i32
  }
  func.func @transform_14(%arg0: i32) -> (i32, i32, i32) {
    %c0_i32 = arith.constant 0 : i32
    %c0_i32_0 = arith.constant 0 : i32
    %c0_i32_1 = arith.constant 0 : i32
    return %arg0, %c0_i32, %c0_i32_0 : i32, i32, i32
  }
}

</mosaic_0001>

<llo_original>
// kernel: discriminator_forward.1
$region0: #{discriminator_forward.1}
  #allocation0 [shape = 'u32[]', space=smem, size = 0x4, offset = 0x4, fixed_abs, tag = 'smem constant byte address 0x4 - core index']
  #allocation1 [shape = 'u32[144,128]{1,0:T(1,128)}', space=vmem, size = 0x12000, scoped, tag = 'internal scratch']
  #allocation2 [shape = 'f32[1,1]{1,0:T(1,128)S(1)}', space=vmem, size = 0x200, scoped, tag = 'scoped memory for discriminator_forward.1']
  %s0 = inlined_call_operand.vmem [shape: f32[2,256,18], index: 0, kind: input, shape index: {}]
  %s1 = inlined_call_operand.hbm [shape: bf16[18,64], index: 1, kind: input, shape index: {}]
  %s2 = inlined_call_operand.hbm [shape: f32[1,64], index: 2, kind: input, shape index: {}]
  %s3 = inlined_call_operand.hbm [shape: bf16[576,128], index: 3, kind: input, shape index: {}]
  %s4 = inlined_call_operand.hbm [shape: f32[1,128], index: 4, kind: input, shape index: {}]
  %s5 = inlined_call_operand.vmem [shape: bf16[1152,256], index: 5, kind: input, shape index: {}]
  %s6 = inlined_call_operand.hbm [shape: f32[1,256], index: 6, kind: input, shape index: {}]
  %s7 = inlined_call_operand.hbm [shape: bf16[2304,512], index: 7, kind: input, shape index: {}]
  %s8 = inlined_call_operand.hbm [shape: f32[1,512], index: 8, kind: input, shape index: {}]
  %s9 = inlined_call_operand.hbm [shape: f32[1,512], index: 9, kind: input, shape index: {}]
  %s10 = inlined_call_operand.<no memory space> [shape: f32[1,1], index: 10, kind: input, shape index: {}]
  %s11 = inlined_call_operand.hbm [shape: bf16[9,64,256], index: 11, kind: input, shape index: {}]
  %s12 = inlined_call_operand.hbm [shape: bf16[9,16,64], index: 12, kind: input, shape index: {}]
  %s13 = inlined_call_operand.hbm [shape: bf16[9,4,16], index: 13, kind: input, shape index: {}]
  %s14 = inlined_call_operand.vmem [shape: f32[2,1,128], index: 14, kind: output, shape index: {}]
  %s15 = sld [smem:[#allocation0]]
  $region133: #{discriminator_forward.1} parent=0
    _
  %s17 = ssub.s32 1, %s15
  %s18 = scalar_select 0, %s17, %s15
  %v19 = vstv %s10
  %20 = vst [vmem:[#allocation2] sm:$0x1] %v19
  $region1: #{discriminator_forward.1} parent=0
    #allocation3 [shape = 'u8[6144]{0}', space=vmem, size = 0x1800, scoped, tag = 'input window, operand 1, single buffered']
    #allocation4 [shape = 's32[2]{0}', space=sflag, size = 0x8, scoped, tag = 'scoped memory for discriminator_forward.1']
    #allocation5 [shape = 'u8[512]{0}', space=vmem, size = 0x400, scoped, tag = 'input window, operand 2, single buffered']
    #allocation6 [shape = 's32[1]{0}', space=sflag, size = 0x4, scoped, tag = 'scoped memory for discriminator_forward.1']
    #allocation7 [shape = 'u8[147456]{0}', space=vmem, size = 0x24000, scoped, tag = 'input window, operand 3, single buffered']
    #allocation8 [shape = 'u8[512]{0}', space=vmem, size = 0x400, scoped, tag = 'input window, operand 4, single buffered']
    #allocation9 [shape = 's32[1]{0}', space=sflag, size = 0x4, scoped, tag = 'scoped memory for discriminator_forward.1']
    #allocation10 [shape = 'u8[1024]{0}', space=vmem, size = 0x400, scoped, tag = 'input window, operand 6, single buffered']
    #allocation11 [shape = 'u8[2359296]{0}', space=vmem, size = 0x240000, scoped, tag = 'input window, operand 7, single buffered']
    #allocation12 [shape = 's32[1]{0}', space=sflag, size = 0x4, scoped, tag = 'scoped memory for discriminator_forward.1']
    #allocation13 [shape = 'u8[2048]{0}', space=vmem, size = 0x800, scoped, tag = 'input window, operand 8, single buffered']
    #allocation14 [shape = 'u8[2048]{0}', space=vmem, size = 0x800, scoped, tag = 'input window, operand 9, single buffered']
    #allocation15 [shape = 's32[1]{0}', space=sflag, size = 0x4, scoped, tag = 'scoped memory for discriminator_forward.1']
    #allocation16 [shape = 'u8[294912]{0}', space=vmem, size = 0x48000, scoped, tag = 'input window, operand 11, single buffered']
    #allocation17 [shape = 'u8[36864]{0}', space=vmem, size = 0x9000, scoped, tag = 'input window, operand 12, single buffered']
    #allocation18 [shape = 's32[1]{0}', space=sflag, size = 0x4, scoped, tag = 'scoped memory for discriminator_forward.1']
    #allocation19 [shape = 'u8[9216]{0}', space=vmem, size = 0x2400, scoped, tag = 'input window, operand 13, single buffered']
    %21 = vsyncpa [#allocation4], 0
    %22 = vsyncpa [#allocation6], 0
    %23 = vsyncpa [#allocation9], 0
    %24 = vsyncpa [#allocation12], 0
    %25 = vsyncpa [#allocation15], 0
    %26 = vsyncpa [#allocation18], 0
    loop: start=0, step=1, limit=4
    $region2: #{discriminator_forward.1} parent=1 // loop_pre_header
      _
    $region3: #{discriminator_forward.1} parent=1 // loop_header
      %s28 = sphi 0, %s32
      %p29 = scmp.ge.s32.totalorder %s28, 4
      %s38 = sphi 0, %s40
      %s41 = sphi 0, %s38
      %s42 = sphi 0, %s41
      %s58 = sphi 0, %s42
      %s62 = sphi 0, %s62
      %s64 = sphi 0, %s62
      %s65 = sphi 0, %s64
      %s79 = sphi 0, %s65
      %s83 = sphi 0, %s83
      %s85 = sphi 0, %s83
      %s86 = sphi 0, %s85
      %s100 = sphi 0, %s86
      %s104 = sphi 0, %s104
      %s106 = sphi 0, %s104
      %s107 = sphi 0, %s106
      %s121 = sphi 0, %s107
      %s125 = sphi 0, %s125
      %s127 = sphi 0, %s125
      %s128 = sphi 0, %s127
      %s142 = sphi 0, %s128
      %s146 = sphi 0, %s146
      %s148 = sphi 0, %s146
      %s149 = sphi 0, %s148
      %s163 = sphi 0, %s149
      %s167 = sphi 0, %s167
      %s169 = sphi 0, %s167
      %s170 = sphi 0, %s169
      %s184 = sphi 0, %s170
      %s188 = sphi 0, %s188
      %s190 = sphi 0, %s188
      %s191 = sphi 0, %s190
      %s205 = sphi 0, %s191
      %s209 = sphi 0, %s209
      %s211 = sphi 0, %s209
      %s212 = sphi 0, %s211
      %s226 = sphi 0, %s212
      %s230 = sphi 0, %s230
      %s232 = sphi 0, %s230
      %s233 = sphi 0, %s232
      %s247 = sphi 0, %s233
      %s251 = sphi 0, %s251
      %s253 = sphi 0, %s251
      %s254 = sphi 0, %s253
      %s268 = sphi 0, %s254
      %s272 = sphi 0, %s272
      %s274 = sphi 0, %s272
      %s275 = sphi 0, %s274
      %s289 = sphi 0, %s275
      %s293 = sphi 0, %s293
      %s295 = sphi 0, %s293
      %s296 = sphi 0, %s295
      %s310 = sphi 0, %s296
      %s314 = sphi 0, %s314
      %s316 = sphi 0, %s314
      %s317 = sphi 0, %s316
      %s331 = sphi 0, %s317
      %s337 = sphi 0, %s339
      %s340 = sphi 0, %s337
      %s341 = sphi 0, %s340
      %s357 = sphi 0, %s341
    $region4: #{discriminator_forward.1} parent=1 // loop_header_branch
      %31 = sbr.rel (%p29) target = $region8
    $region5: #{discriminator_forward.1} parent=1 // loop_body
      %s33 = ssub.s32 %s28, 1
      %s34 = ssub.s32 %s28, 2
      %s35 = sadd.s32 %s28, 1
      %s36 = ssub.s32 %s28, %s35
      %p37 = scmp.eq.s32.totalorder %s36, 0
      %s39 = sadd.s32 %s38, 1
      %s40 = scalar_select %p37, %s38, %s39
      %p43 = pneg %p37
      %p44 = scmp.eq.s32.totalorder %s28, 1
      %p45 = por %p43, %p44
      %p46 = scmp.ne.s32.totalorder %s38, %s41
      %p47 = scmp.eq.s32.totalorder %s28, 0
      %p48 = por %p46, %p47
      %p49 = scmp.ne.s32.totalorder %s38, %s41
      %p50 = scmp.eq.s32.totalorder %s33, 1
      %p51 = por %p49, %p50
      %p52 = scmp.ne.s32.totalorder %s41, %s42
      %p53 = scmp.eq.s32.totalorder %s33, 0
      %p54 = por %p52, %p53
      %p55 = scmp.ne.s32.totalorder %s41, %s42
      %p56 = scmp.eq.s32.totalorder %s34, 1
      %p57 = por %p55, %p56
      %p59 = scmp.ne.s32.totalorder %s42, %s58
      %p60 = scmp.eq.s32.totalorder %s34, 0
      %p61 = por %p59, %p60
      %s63 = sadd.s32 %s62, 1
      %p66 = scmp.eq.s32.totalorder %s28, 1
      %p67 = scmp.ne.s32.totalorder %s62, %s64
      %p68 = scmp.eq.s32.totalorder %s28, 0
      %p69 = por %p67, %p68
      %p70 = scmp.ne.s32.totalorder %s62, %s64
      %p71 = scmp.eq.s32.totalorder %s33, 1
      %p72 = por %p70, %p71
      %p73 = scmp.ne.s32.totalorder %s64, %s65
      %p74 = scmp.eq.s32.totalorder %s33, 0
      %p75 = por %p73, %p74
      %p76 = scmp.ne.s32.totalorder %s64, %s65
      %p77 = scmp.eq.s32.totalorder %s34, 1
      %p78 = por %p76, %p77
      %p80 = scmp.ne.s32.totalorder %s65, %s79
      %p81 = scmp.eq.s32.totalorder %s34, 0
      %p82 = por %p80, %p81
      %s84 = sadd.s32 %s83, 1
      %p87 = scmp.eq.s32.totalorder %s28, 1
      %p88 = scmp.ne.s32.totalorder %s83, %s85
      %p89 = scmp.eq.s32.totalorder %s28, 0
      %p90 = por %p88, %p89
      %p91 = scmp.ne.s32.totalorder %s83, %s85
      %p92 = scmp.eq.s32.totalorder %s33, 1
      %p93 = por %p91, %p92
      %p94 = scmp.ne.s32.totalorder %s85, %s86
      %p95 = scmp.eq.s32.totalorder %s33, 0
      %p96 = por %p94, %p95
      %p97 = scmp.ne.s32.totalorder %s85, %s86
      %p98 = scmp.eq.s32.totalorder %s34, 1
      %p99 = por %p97, %p98
      %p101 = scmp.ne.s32.totalorder %s86, %s100
      %p102 = scmp.eq.s32.totalorder %s34, 0
      %p103 = por %p101, %p102
      %s105 = sadd.s32 %s104, 1
      %p108 = scmp.eq.s32.totalorder %s28, 1
      %p109 = scmp.ne.s32.totalorder %s104, %s106
      %p110 = scmp.eq.s32.totalorder %s28, 0
      %p111 = por %p109, %p110
      %p112 = scmp.ne.s32.totalorder %s104, %s106
      %p113 = scmp.eq.s32.totalorder %s33, 1
      %p114 = por %p112, %p113
      %p115 = scmp.ne.s32.totalorder %s106, %s107
      %p116 = scmp.eq.s32.totalorder %s33, 0
      %p117 = por %p115, %p116
      %p118 = scmp.ne.s32.totalorder %s106, %s107
      %p119 = scmp.eq.s32.totalorder %s34, 1
      %p120 = por %p118, %p119
      %p122 = scmp.ne.s32.totalorder %s107, %s121
      %p123 = scmp.eq.s32.totalorder %s34, 0
      %p124 = por %p122, %p123
      %s126 = sadd.s32 %s125, 1
      %p129 = scmp.eq.s32.totalorder %s28, 1
      %p130 = scmp.ne.s32.totalorder %s125, %s127
      %p131 = scmp.eq.s32.totalorder %s28, 0
      %p132 = por %p130, %p131
      %p133 = scmp.ne.s32.totalorder %s125, %s127
      %p134 = scmp.eq.s32.totalorder %s33, 1
      %p135 = por %p133, %p134
      %p136 = scmp.ne.s32.totalorder %s127, %s128
      %p137 = scmp.eq.s32.totalorder %s33, 0
      %p138 = por %p136, %p137
      %p139 = scmp.ne.s32.totalorder %s127, %s128
      %p140 = scmp.eq.s32.totalorder %s34, 1
      %p141 = por %p139, %p140
      %p143 = scmp.ne.s32.totalorder %s128, %s142
      %p144 = scmp.eq.s32.totalorder %s34, 0
      %p145 = por %p143, %p144
      %s147 = sadd.s32 %s146, 1
      %p150 = scmp.eq.s32.totalorder %s28, 1
      %p151 = scmp.ne.s32.totalorder %s146, %s148
      %p152 = scmp.eq.s32.totalorder %s28, 0
      %p153 = por %p151, %p152
      %p154 = scmp.ne.s32.totalorder %s146, %s148
      %p155 = scmp.eq.s32.totalorder %s33, 1
      %p156 = por %p154, %p155
      %p157 = scmp.ne.s32.totalorder %s148, %s149
      %p158 = scmp.eq.s32.totalorder %s33, 0
      %p159 = por %p157, %p158
      %p160 = scmp.ne.s32.totalorder %s148, %s149
      %p161 = scmp.eq.s32.totalorder %s34, 1
      %p162 = por %p160, %p161
      %p164 = scmp.ne.s32.totalorder %s149, %s163
      %p165 = scmp.eq.s32.totalorder %s34, 0
      %p166 = por %p164, %p165
      %s168 = sadd.s32 %s167, 1
      %p171 = scmp.eq.s32.totalorder %s28, 1
      %p172 = scmp.ne.s32.totalorder %s167, %s169
      %p173 = scmp.eq.s32.totalorder %s28, 0
      %p174 = por %p172, %p173
      %p175 = scmp.ne.s32.totalorder %s167, %s169
      %p176 = scmp.eq.s32.totalorder %s33, 1
      %p177 = por %p175, %p176
      %p178 = scmp.ne.s32.totalorder %s169, %s170
      %p179 = scmp.eq.s32.totalorder %s33, 0
      %p180 = por %p178, %p179
      %p181 = scmp.ne.s32.totalorder %s169, %s170
      %p182 = scmp.eq.s32.totalorder %s34, 1
      %p183 = por %p181, %p182
      %p185 = scmp.ne.s32.totalorder %s170, %s184
      %p186 = scmp.eq.s32.totalorder %s34, 0
      %p187 = por %p185, %p186
      %s189 = sadd.s32 %s188, 1
      %p192 = scmp.eq.s32.totalorder %s28, 1
      %p193 = scmp.ne.s32.totalorder %s188, %s190
      %p194 = scmp.eq.s32.totalorder %s28, 0
      %p195 = por %p193, %p194
      %p196 = scmp.ne.s32.totalorder %s188, %s190
      %p197 = scmp.eq.s32.totalorder %s33, 1
      %p198 = por %p196, %p197
      %p199 = scmp.ne.s32.totalorder %s190, %s191
      %p200 = scmp.eq.s32.totalorder %s33, 0
      %p201 = por %p199, %p200
      %p202 = scmp.ne.s32.totalorder %s190, %s191
      %p203 = scmp.eq.s32.totalorder %s34, 1
      %p204 = por %p202, %p203
      %p206 = scmp.ne.s32.totalorder %s191, %s205
      %p207 = scmp.eq.s32.totalorder %s34, 0
      %p208 = por %p206, %p207
      %s210 = sadd.s32 %s209, 1
      %p213 = scmp.eq.s32.totalorder %s28, 1
      %p214 = scmp.ne.s32.totalorder %s209, %s211
      %p215 = scmp.eq.s32.totalorder %s28, 0
      %p216 = por %p214, %p215
      %p217 = scmp.ne.s32.totalorder %s209, %s211
      %p218 = scmp.eq.s32.totalorder %s33, 1
      %p219 = por %p217, %p218
      %p220 = scmp.ne.s32.totalorder %s211, %s212
      %p221 = scmp.eq.s32.totalorder %s33, 0
      %p222 = por %p220, %p221
      %p223 = scmp.ne.s32.totalorder %s211, %s212
      %p224 = scmp.eq.s32.totalorder %s34, 1
      %p225 = por %p223, %p224
      %p227 = scmp.ne.s32.totalorder %s212, %s226
      %p228 = scmp.eq.s32.totalorder %s34, 0
      %p229 = por %p227, %p228
      %s231 = sadd.s32 %s230, 1
      %p234 = scmp.eq.s32.totalorder %s28, 1
      %p235 = scmp.ne.s32.totalorder %s230, %s232
      %p236 = scmp.eq.s32.totalorder %s28, 0
      %p237 = por %p235, %p236
      %p238 = scmp.ne.s32.totalorder %s230, %s232
      %p239 = scmp.eq.s32.totalorder %s33, 1
      %p240 = por %p238, %p239
      %p241 = scmp.ne.s32.totalorder %s232, %s233
      %p242 = scmp.eq.s32.totalorder %s33, 0
      %p243 = por %p241, %p242
      %p244 = scmp.ne.s32.totalorder %s232, %s233
      %p245 = scmp.eq.s32.totalorder %s34, 1
      %p246 = por %p244, %p245
      %p248 = scmp.ne.s32.totalorder %s233, %s247
      %p249 = scmp.eq.s32.totalorder %s34, 0
      %p250 = por %p248, %p249
      %s252 = sadd.s32 %s251, 1
      %p255 = scmp.eq.s32.totalorder %s28, 1
      %p256 = scmp.ne.s32.totalorder %s251, %s253
      %p257 = scmp.eq.s32.totalorder %s28, 0
      %p258 = por %p256, %p257
      %p259 = scmp.ne.s32.totalorder %s251, %s253
      %p260 = scmp.eq.s32.totalorder %s33, 1
      %p261 = por %p259, %p260
      %p262 = scmp.ne.s32.totalorder %s253, %s254
      %p263 = scmp.eq.s32.totalorder %s33, 0
      %p264 = por %p262, %p263
      %p265 = scmp.ne.s32.totalorder %s253, %s254
      %p266 = scmp.eq.s32.totalorder %s34, 1
      %p267 = por %p265, %p266
      %p269 = scmp.ne.s32.totalorder %s254, %s268
      %p270 = scmp.eq.s32.totalorder %s34, 0
      %p271 = por %p269, %p270
      %s273 = sadd.s32 %s272, 1
      %p276 = scmp.eq.s32.totalorder %s28, 1
      %p277 = scmp.ne.s32.totalorder %s272, %s274
      %p278 = scmp.eq.s32.totalorder %s28, 0
      %p279 = por %p277, %p278
      %p280 = scmp.ne.s32.totalorder %s272, %s274
      %p281 = scmp.eq.s32.totalorder %s33, 1
      %p282 = por %p280, %p281
      %p283 = scmp.ne.s32.totalorder %s274, %s275
      %p284 = scmp.eq.s32.totalorder %s33, 0
      %p285 = por %p283, %p284
      %p286 = scmp.ne.s32.totalorder %s274, %s275
      %p287 = scmp.eq.s32.totalorder %s34, 1
      %p288 = por %p286, %p287
      %p290 = scmp.ne.s32.totalorder %s275, %s289
      %p291 = scmp.eq.s32.totalorder %s34, 0
      %p292 = por %p290, %p291
      %s294 = sadd.s32 %s293, 1
      %p297 = scmp.eq.s32.totalorder %s28, 1
      %p298 = scmp.ne.s32.totalorder %s293, %s295
      %p299 = scmp.eq.s32.totalorder %s28, 0
      %p300 = por %p298, %p299
      %p301 = scmp.ne.s32.totalorder %s293, %s295
      %p302 = scmp.eq.s32.totalorder %s33, 1
      %p303 = por %p301, %p302
      %p304 = scmp.ne.s32.totalorder %s295, %s296
      %p305 = scmp.eq.s32.totalorder %s33, 0
      %p306 = por %p304, %p305
      %p307 = scmp.ne.s32.totalorder %s295, %s296
      %p308 = scmp.eq.s32.totalorder %s34, 1
      %p309 = por %p307, %p308
      %p311 = scmp.ne.s32.totalorder %s296, %s310
      %p312 = scmp.eq.s32.totalorder %s34, 0
      %p313 = por %p311, %p312
      %s315 = sadd.s32 %s314, 1
      %p318 = scmp.eq.s32.totalorder %s28, 1
      %p319 = scmp.ne.s32.totalorder %s314, %s316
      %p320 = scmp.eq.s32.totalorder %s28, 0
      %p321 = por %p319, %p320
      %p322 = scmp.ne.s32.totalorder %s314, %s316
      %p323 = scmp.eq.s32.totalorder %s33, 1
      %p324 = por %p322, %p323
      %p325 = scmp.ne.s32.totalorder %s316, %s317
      %p326 = scmp.eq.s32.totalorder %s33, 0
      %p327 = por %p325, %p326
      %p328 = scmp.ne.s32.totalorder %s316, %s317
      %p329 = scmp.eq.s32.totalorder %s34, 1
      %p330 = por %p328, %p329
      %p332 = scmp.ne.s32.totalorder %s317, %s331
      %p333 = scmp.eq.s32.totalorder %s34, 0
      %p334 = por %p332, %p333
      %s335 = ssub.s32 %s28, %s35
      %p336 = scmp.eq.s32.totalorder %s335, 0
      %s338 = sadd.s32 %s337, 1
      %s339 = scalar_select %p336, %s337, %s338
      %p342 = pneg %p336
      %p343 = scmp.eq.s32.totalorder %s28, 1
      %p344 = por %p342, %p343
      %p345 = scmp.ne.s32.totalorder %s337, %s340
      %p346 = scmp.eq.s32.totalorder %s28, 0
      %p347 = por %p345, %p346
      %p348 = scmp.ne.s32.totalorder %s337, %s340
      %p349 = scmp.eq.s32.totalorder %s33, 1
      %p350 = por %p348, %p349
      %p351 = scmp.ne.s32.totalorder %s340, %s341
      %p352 = scmp.eq.s32.totalorder %s33, 0
      %p353 = por %p351, %p352
      %p354 = scmp.ne.s32.totalorder %s340, %s341
      %p355 = scmp.eq.s32.totalorder %s34, 1
      %p356 = por %p354, %p355
      %p358 = scmp.ne.s32.totalorder %s341, %s357
      %p359 = scmp.eq.s32.totalorder %s34, 0
      %p360 = por %p358, %p359
      %p361 = scmp.le.s32.totalorder 1, %s28
      %p362 = scmp.lt.s32.totalorder %s28, 3
      %p363 = pnand %p361, %p362
      %p364 = pneg %p363
      // Predicated region
      $region9: #{discriminator_forward.1} parent=5 // pred_check
        _
      $region10: #{discriminator_forward.1} parent=5 // pred_check_branch
        %366 = sbr.rel (%p363) target = $region12
      $region11: #{discriminator_forward.1} parent=5 // pred_region
        %s367 = ssub.s32 %s28, 1
        // Predicated region
        $region13: #{discriminator_forward.1} parent=11 // pred_check
          %p368 = pneg %p75
        $region14: #{discriminator_forward.1} parent=11 // pred_check_branch
          %370 = sbr.rel (%p368) target = $region16
        $region15: #{discriminator_forward.1} parent=11 // pred_region
          %s372 = ssub.s32 192, 192
          %373 = vsyncadd [#allocation4], %s372
          %s374 = sshll.u32 [#allocation3], 4
          %s375 = int_to_ptr.vmem [resolvable:$true] %s374
          %380 = dma.hbm_to_vmem [thread:$0]  %s1, 192, %s375, [#allocation4], 64, 64, 4
        $region16: #{discriminator_forward.1} parent=11 // pred_fallthru
          _
        // Predicated region
        $region17: #{discriminator_forward.1} parent=11 // pred_check
          %p381 = pneg %p96
        $region18: #{discriminator_forward.1} parent=11 // pred_check_branch
          %383 = sbr.rel (%p381) target = $region20
        $region19: #{discriminator_forward.1} parent=11 // pred_region
          %s385 = ssub.s32 16, 16
          %386 = vsyncadd [#allocation6], %s385
          %s388 = sshll.u32 [#allocation5], 4
          %s389 = int_to_ptr.vmem [resolvable:$true] %s388
          %391 = dma.hbm_to_vmem [thread:$0]  %s2, 16, %s389, [#allocation6]
        $region20: #{discriminator_forward.1} parent=11 // pred_fallthru
          _
        // Predicated region
        $region21: #{discriminator_forward.1} parent=11 // pred_check
          %p392 = pneg %p117
        $region22: #{discriminator_forward.1} parent=11 // pred_check_branch
          %394 = sbr.rel (%p392) target = $region24
        $region23: #{discriminator_forward.1} parent=11 // pred_region
          %s396 = ssub.s32 4608, 4608
          %397 = vsyncadd [#allocation6], %s396
          %s398 = sshll.u32 [#allocation7], 4
          %s399 = int_to_ptr.vmem [resolvable:$true] %s398
          %404 = dma.hbm_to_vmem [thread:$0]  %s3, 4608, %s399, [#allocation6], 64, 64, 4
        $region24: #{discriminator_forward.1} parent=11 // pred_fallthru
          _
        // Predicated region
        $region25: #{discriminator_forward.1} parent=11 // pred_check
          %p405 = pneg %p138
        $region26: #{discriminator_forward.1} parent=11 // pred_check_branch
          %407 = sbr.rel (%p405) target = $region28
        $region27: #{discriminator_forward.1} parent=11 // pred_region
          %s409 = ssub.s32 16, 16
          %410 = vsyncadd [#allocation9], %s409
          %s412 = sshll.u32 [#allocation8], 4
          %s413 = int_to_ptr.vmem [resolvable:$true] %s412
          %415 = dma.hbm_to_vmem [thread:$0]  %s4, 16, %s413, [#allocation9]
        $region28: #{discriminator_forward.1} parent=11 // pred_fallthru
          _
        // Predicated region
        $region29: #{discriminator_forward.1} parent=11 // pred_check
          %p416 = pneg %p159
        $region30: #{discriminator_forward.1} parent=11 // pred_check_branch
          %418 = sbr.rel (%p416) target = $region32
        $region31: #{discriminator_forward.1} parent=11 // pred_region
          _
        $region32: #{discriminator_forward.1} parent=11 // pred_fallthru
          _
        // Predicated region
        $region33: #{discriminator_forward.1} parent=11 // pred_check
          %p419 = pneg %p180
        $region34: #{discriminator_forward.1} parent=11 // pred_check_branch
          %421 = sbr.rel (%p419) target = $region36
        $region35: #{discriminator_forward.1} parent=11 // pred_region
          %s423 = ssub.s32 32, 32
          %424 = vsyncadd [#allocation9], %s423
          %s426 = sshll.u32 [#allocation10], 4
          %s427 = int_to_ptr.vmem [resolvable:$true] %s426
          %429 = dma.hbm_to_vmem [thread:$0]  %s6, 32, %s427, [#allocation9]
        $region36: #{discriminator_forward.1} parent=11 // pred_fallthru
          _
        // Predicated region
        $region37: #{discriminator_forward.1} parent=11 // pred_check
          %p430 = pneg %p201
        $region38: #{discriminator_forward.1} parent=11 // pred_check_branch
          %432 = sbr.rel (%p430) target = $region40
        $region39: #{discriminator_forward.1} parent=11 // pred_region
          %s434 = ssub.s32 73728, 73728
          %435 = vsyncadd [#allocation12], %s434
          %s436 = sshll.u32 [#allocation11], 4
          %s437 = int_to_ptr.vmem [resolvable:$true] %s436
          %442 = dma.hbm_to_vmem [thread:$0]  %s7, 73728, %s437, [#allocation12], 256, 256, 16
        $region40: #{discriminator_forward.1} parent=11 // pred_fallthru
          _
        // Predicated region
        $region41: #{discriminator_forward.1} parent=11 // pred_check
          %p443 = pneg %p222
        $region42: #{discriminator_forward.1} parent=11 // pred_check_branch
          %445 = sbr.rel (%p443) target = $region44
        $region43: #{discriminator_forward.1} parent=11 // pred_region
          %s447 = ssub.s32 64, 64
          %448 = vsyncadd [#allocation12], %s447
          %s450 = sshll.u32 [#allocation13], 4
          %s451 = int_to_ptr.vmem [resolvable:$true] %s450
          %453 = dma.hbm_to_vmem [thread:$0]  %s8, 64, %s451, [#allocation12]
        $region44: #{discriminator_forward.1} parent=11 // pred_fallthru
          _
        // Predicated region
        $region45: #{discriminator_forward.1} parent=11 // pred_check
          %p454 = pneg %p243
        $region46: #{discriminator_forward.1} parent=11 // pred_check_branch
          %456 = sbr.rel (%p454) target = $region48
        $region47: #{discriminator_forward.1} parent=11 // pred_region
          %s458 = ssub.s32 64, 64
          %459 = vsyncadd [#allocation15], %s458
          %s461 = sshll.u32 [#allocation14], 4
          %s462 = int_to_ptr.vmem [resolvable:$true] %s461
          %464 = dma.hbm_to_vmem [thread:$0]  %s9, 64, %s462, [#allocation15]
        $region48: #{discriminator_forward.1} parent=11 // pred_fallthru
          _
        // Predicated region
        $region49: #{discriminator_forward.1} parent=11 // pred_check
          %p465 = pneg %p264
        $region50: #{discriminator_forward.1} parent=11 // pred_check_branch
          %467 = sbr.rel (%p465) target = $region52
        $region51: #{discriminator_forward.1} parent=11 // pred_region
          _
        $region52: #{discriminator_forward.1} parent=11 // pred_fallthru
          _
        // Predicated region
        $region53: #{discriminator_forward.1} parent=11 // pred_check
          %p468 = pneg %p285
        $region54: #{discriminator_forward.1} parent=11 // pred_check_branch
          %470 = sbr.rel (%p468) target = $region56
        $region55: #{discriminator_forward.1} parent=11 // pred_region
          %s472 = ssub.s32 9216, 9216
          %473 = vsyncadd [#allocation15], %s472
          %s474 = sshll.u32 [#allocation16], 4
          %s475 = int_to_ptr.vmem [resolvable:$true] %s474
          %480 = dma.hbm_to_vmem [thread:$0]  %s11, 9216, %s475, [#allocation15], 128, 128, 8
        $region56: #{discriminator_forward.1} parent=11 // pred_fallthru
          _
        // Predicated region
        $region57: #{discriminator_forward.1} parent=11 // pred_check
          %p481 = pneg %p306
        $region58: #{discriminator_forward.1} parent=11 // pred_check_branch
          %483 = sbr.rel (%p481) target = $region60
        $region59: #{discriminator_forward.1} parent=11 // pred_region
          %s485 = ssub.s32 1152, 1152
          %486 = vsyncadd [#allocation18], %s485
          %s487 = sshll.u32 [#allocation17], 4
          %s488 = int_to_ptr.vmem [resolvable:$true] %s487
          %493 = dma.hbm_to_vmem [thread:$0]  %s12, 1152, %s488, [#allocation18], 64, 64, 4
        $region60: #{discriminator_forward.1} parent=11 // pred_fallthru
          _
        // Predicated region
        $region61: #{discriminator_forward.1} parent=11 // pred_check
          %p494 = pneg %p327
        $region62: #{discriminator_forward.1} parent=11 // pred_check_branch
          %496 = sbr.rel (%p494) target = $region64
        $region63: #{discriminator_forward.1} parent=11 // pred_region
          %s498 = ssub.s32 288, 288
          %499 = vsyncadd [#allocation18], %s498
          %s500 = sshll.u32 [#allocation19], 4
          %s501 = int_to_ptr.vmem [resolvable:$true] %s500
          %506 = dma.hbm_to_vmem [thread:$0]  %s13, 288, %s501, [#allocation18], 32, 32, 2
        $region64: #{discriminator_forward.1} parent=11 // pred_fallthru
          _
      $region12: #{discriminator_forward.1} parent=5 // pred_fallthru
        _
      %p507 = scmp.lt.s32.totalorder %s28, 2
      // Predicated region
      $region65: #{discriminator_forward.1} parent=5 // pred_check
        %p508 = pneg %p507
      $region66: #{discriminator_forward.1} parent=5 // pred_check_branch
        %510 = sbr.rel (%p508) target = $region68
      $region67: #{discriminator_forward.1} parent=5 // pred_region
        // Predicated region
        $region69: #{discriminator_forward.1} parent=67 // pred_check
          %p511 = pneg %p48
        $region70: #{discriminator_forward.1} parent=67 // pred_check_branch
          %513 = sbr.rel (%p511) target = $region72
        $region71: #{discriminator_forward.1} parent=67 // pred_region
          %p514 = scmp.lt.s32.totalorder %s28, 1
          %s515 = scalar_select %p514, %s28, 1
          %s516 = smul.addr %s515, 32
          %s517 = smul.addr %s516, 8
          %s518 = scalar_lea.vmem %s0, %s517
        $region72: #{discriminator_forward.1} parent=67 // pred_fallthru
          _
      $region68: #{discriminator_forward.1} parent=5 // pred_fallthru
        _
      %p519 = scmp.le.s32.totalorder 1, %s28
      %p520 = scmp.lt.s32.totalorder %s28, 3
      %p521 = pnand %p519, %p520
      %p522 = pneg %p521
      // Predicated region
      $region73: #{discriminator_forward.1} parent=5 // pred_check
        _
      $region74: #{discriminator_forward.1} parent=5 // pred_check_branch
        %524 = sbr.rel (%p521) target = $region76
      $region75: #{discriminator_forward.1} parent=5 // pred_region
        %s525 = ssub.s32 %s28, 1
        // Predicated region
        $region77: #{discriminator_forward.1} parent=75 // pred_check
          %p526 = pneg %p75
        $region78: #{discriminator_forward.1} parent=75 // pred_check_branch
          %528 = sbr.rel (%p526) target = $region80
        $region79: #{discriminator_forward.1} parent=75 // pred_region
          %529 = dma.done [#allocation4], 192
        $region80: #{discriminator_forward.1} parent=75 // pred_fallthru
          _
        // Predicated region
        $region81: #{discriminator_forward.1} parent=75 // pred_check
          %p530 = pneg %p96
        $region82: #{discriminator_forward.1} parent=75 // pred_check_branch
          %532 = sbr.rel (%p530) target = $region84
        $region83: #{discriminator_forward.1} parent=75 // pred_region
          %533 = dma.done [#allocation6], 16
        $region84: #{discriminator_forward.1} parent=75 // pred_fallthru
          _
        // Predicated region
        $region85: #{discriminator_forward.1} parent=75 // pred_check
          %p534 = pneg %p117
        $region86: #{discriminator_forward.1} parent=75 // pred_check_branch
          %536 = sbr.rel (%p534) target = $region88
        $region87: #{discriminator_forward.1} parent=75 // pred_region
          %537 = dma.done [#allocation6], 4608
        $region88: #{discriminator_forward.1} parent=75 // pred_fallthru
          _
        // Predicated region
        $region89: #{discriminator_forward.1} parent=75 // pred_check
          %p538 = pneg %p138
        $region90: #{discriminator_forward.1} parent=75 // pred_check_branch
          %540 = sbr.rel (%p538) target = $region92
        $region91: #{discriminator_forward.1} parent=75 // pred_region
          %541 = dma.done [#allocation9], 16
        $region92: #{discriminator_forward.1} parent=75 // pred_fallthru
          _
        // Predicated region
        $region93: #{discriminator_forward.1} parent=75 // pred_check
          %p542 = pneg %p180
        $region94: #{discriminator_forward.1} parent=75 // pred_check_branch
          %544 = sbr.rel (%p542) target = $region96
        $region95: #{discriminator_forward.1} parent=75 // pred_region
          %545 = dma.done [#allocation9], 32
        $region96: #{discriminator_forward.1} parent=75 // pred_fallthru
          _
        // Predicated region
        $region97: #{discriminator_forward.1} parent=75 // pred_check
          %p546 = pneg %p201
        $region98: #{discriminator_forward.1} parent=75 // pred_check_branch
          %548 = sbr.rel (%p546) target = $region100
        $region99: #{discriminator_forward.1} parent=75 // pred_region
          %549 = dma.done [#allocation12], 73728
        $region100: #{discriminator_forward.1} parent=75 // pred_fallthru
          _
        // Predicated region
        $region101: #{discriminator_forward.1} parent=75 // pred_check
          %p550 = pneg %p222
        $region102: #{discriminator_forward.1} parent=75 // pred_check_branch
          %552 = sbr.rel (%p550) target = $region104
        $region103: #{discriminator_forward.1} parent=75 // pred_region
          %553 = dma.done [#allocation12], 64
        $region104: #{discriminator_forward.1} parent=75 // pred_fallthru
          _
        // Predicated region
        $region105: #{discriminator_forward.1} parent=75 // pred_check
          %p554 = pneg %p243
        $region106: #{discriminator_forward.1} parent=75 // pred_check_branch
          %556 = sbr.rel (%p554) target = $region108
        $region107: #{discriminator_forward.1} parent=75 // pred_region
          %557 = dma.done [#allocation15], 64
        $region108: #{discriminator_forward.1} parent=75 // pred_fallthru
          _
        // Predicated region
        $region109: #{discriminator_forward.1} parent=75 // pred_check
          %p558 = pneg %p285
        $region110: #{discriminator_forward.1} parent=75 // pred_check_branch
          %560 = sbr.rel (%p558) target = $region112
        $region111: #{discriminator_forward.1} parent=75 // pred_region
          %561 = dma.done [#allocation15], 9216
        $region112: #{discriminator_forward.1} parent=75 // pred_fallthru
          _
        // Predicated region
        $region113: #{discriminator_forward.1} parent=75 // pred_check
          %p562 = pneg %p306
        $region114: #{discriminator_forward.1} parent=75 // pred_check_branch
          %564 = sbr.rel (%p562) target = $region116
        $region115: #{discriminator_forward.1} parent=75 // pred_region
          %565 = dma.done [#allocation18], 1152
        $region116: #{discriminator_forward.1} parent=75 // pred_fallthru
          _
        // Predicated region
        $region117: #{discriminator_forward.1} parent=75 // pred_check
          %p566 = pneg %p327
        $region118: #{discriminator_forward.1} parent=75 // pred_check_branch
          %568 = sbr.rel (%p566) target = $region120
        $region119: #{discriminator_forward.1} parent=75 // pred_region
          %569 = dma.done [#allocation18], 288
        $region120: #{discriminator_forward.1} parent=75 // pred_fallthru
          _
        %p570 = scmp.lt.s32.totalorder %s33, 1
        %s571 = scalar_select %p570, %s33, 1
        %s572 = smul.addr %s571, 32
        %s573 = smul.addr %s572, 8
        %s574 = scalar_lea.vmem %s0, %s573
        %p575 = pneg %p54
        %p576 = pneg %p51
        %p577 = pneg %p75
        %p578 = pneg %p72
        %p579 = pneg %p96
        %p580 = pneg %p93
        %p581 = pneg %p117
        %p582 = pneg %p114
        %p583 = pneg %p138
        %p584 = pneg %p135
        %p585 = pneg %p159
        %p586 = pneg %p156
        %p587 = pneg %p180
        %p588 = pneg %p177
        %p589 = pneg %p201
        %p590 = pneg %p198
        %p591 = pneg %p222
        %p592 = pneg %p219
        %p593 = pneg %p243
        %p594 = pneg %p240
        %p595 = pneg %p264
        %p596 = pneg %p261
        %p597 = pneg %p285
        %p598 = pneg %p282
        %p599 = pneg %p306
        %p600 = pneg %p303
        %p601 = pneg %p327
        %p602 = pneg %p324
        %p603 = pneg %p353
        %p604 = pneg %p350
        %p605 = scmp.lt.s32.totalorder %s33, 1
        %s606 = scalar_select %p605, %s33, 1
        %s607 = scalar_lea.vmem %s14, %s606
        %p608 = scmp.lt.s32.totalorder %s33, 1
        %s609 = scalar_select %p608, %s33, 1
        %s610 = smul.addr %s609, 32
        %s611 = smul.addr %s610, 8
        %s612 = scalar_lea.vmem %s0, %s611
        %p613 = scmp.lt.s32.totalorder %s33, 1
        %s614 = scalar_select %p613, %s33, 1
        %s615 = scalar_lea.vmem %s14, %s614
        %v617 = vld [vmem:[%s612] sm:$0xff]
        %v618 = vld [vmem:[%s612 + $0x8] sm:$0xff]
        %v619 = vld [vmem:[%s612 + $0x10] sm:$0xff]
        %v620 = vld [vmem:[%s612 + $0x18] sm:$0xff]
        %v621 = vld [vmem:[%s612 + $0x20] sm:$0xff]
        %v622 = vld [vmem:[%s612 + $0x28] sm:$0xff]
        %v623 = vld [vmem:[%s612 + $0x30] sm:$0xff]
        %v624 = vld [vmem:[%s612 + $0x38] sm:$0xff]
        %v625 = vld [vmem:[%s612 + $0x40] sm:$0xff]
        %v626 = vld [vmem:[%s612 + $0x48] sm:$0xff]
        %v627 = vld [vmem:[%s612 + $0x50] sm:$0xff]
        %v628 = vld [vmem:[%s612 + $0x58] sm:$0xff]
        %v629 = vld [vmem:[%s612 + $0x60] sm:$0xff]
        %v630 = vld [vmem:[%s612 + $0x68] sm:$0xff]
        %v631 = vld [vmem:[%s612 + $0x70] sm:$0xff]
        %v632 = vld [vmem:[%s612 + $0x78] sm:$0xff]
        %v633 = vld [vmem:[%s612 + $0x80] sm:$0xff]
        %v634 = vld [vmem:[%s612 + $0x88] sm:$0xff]
        %v635 = vld [vmem:[%s612 + $0x90] sm:$0xff]
        %v636 = vld [vmem:[%s612 + $0x98] sm:$0xff]
        %v637 = vld [vmem:[%s612 + $0xa0] sm:$0xff]
        %v638 = vld [vmem:[%s612 + $0xa8] sm:$0xff]
        %v639 = vld [vmem:[%s612 + $0xb0] sm:$0xff]
        %v640 = vld [vmem:[%s612 + $0xb8] sm:$0xff]
        %v641 = vld [vmem:[%s612 + $0xc0] sm:$0xff]
        %v642 = vld [vmem:[%s612 + $0xc8] sm:$0xff]
        %v643 = vld [vmem:[%s612 + $0xd0] sm:$0xff]
        %v644 = vld [vmem:[%s612 + $0xd8] sm:$0xff]
        %v645 = vld [vmem:[%s612 + $0xe0] sm:$0xff]
        %v646 = vld [vmem:[%s612 + $0xe8] sm:$0xff]
        %v647 = vld [vmem:[%s612 + $0xf0] sm:$0xff]
        %v648 = vld [vmem:[%s612 + $0xf8] sm:$0xff]
        %v649 = vpack.c.bf16 %v618, %v617
        %v650 = vpack.c.bf16 %v620, %v619
        %v651 = vpack.c.bf16 %v622, %v621
        %v652 = vpack.c.bf16 %v624, %v623
        %v653 = vpack.c.bf16 %v626, %v625
        %v654 = vpack.c.bf16 %v628, %v627
        %v655 = vpack.c.bf16 %v630, %v629
        %v656 = vpack.c.bf16 %v632, %v631
        %v657 = vpack.c.bf16 %v634, %v633
        %v658 = vpack.c.bf16 %v636, %v635
        %v659 = vpack.c.bf16 %v638, %v637
        %v660 = vpack.c.bf16 %v640, %v639
        %v661 = vpack.c.bf16 %v642, %v641
        %v662 = vpack.c.bf16 %v644, %v643
        %v663 = vpack.c.bf16 %v646, %v645
        %v664 = vpack.c.bf16 %v648, %v647
        %v665 = vld [vmem:[#allocation3] sm:$0xf]
        %v666 = vld [vmem:[#allocation3 + $0x4] sm:$0xf]
        %v667 = vld [vmem:[#allocation3 + $0x8] sm:$0x1]
        %v668 = vld [vmem:[#allocation5] sm:$0x1]
        %v670 = vlaneseq
        %v671 = vshrl.u32 %v670, 7
        %v672 = vsub.s32 0, %v671
        %v673 = vrot.slane %v668, %v672
        %v678 = vunpack.c.l.b16 %v665
        %v679 = vunpack.c.l.b16 %v666
        %v680 = vunpack.c.l.b16 %v667
        %v681 = vpack.c.b16 %v679, %v678
        %v682 = vpack.c.b16 %v680, %v680
        %vm684 = vcmask 146432
        %v686 = vsel %vm684, %v649, 0
        %v689 = vsel %vm684, %v650, 0
        %v692 = vsel %vm684, %v651, 0
        %v695 = vsel %vm684, %v652, 0
        %v698 = vsel %vm684, %v653, 0
        %v701 = vsel %vm684, %v654, 0
        %v704 = vsel %vm684, %v655, 0
        %v707 = vsel %vm684, %v656, 0
        %v710 = vsel %vm684, %v657, 0
        %v713 = vsel %vm684, %v658, 0
        %v716 = vsel %vm684, %v659, 0
        %v719 = vsel %vm684, %v660, 0
        %v722 = vsel %vm684, %v661, 0
        %v725 = vsel %vm684, %v662, 0
        %v728 = vsel %vm684, %v663, 0
        %v731 = vsel %vm684, %v664, 0
        %vm733 = vcmask 1040384
        %v735 = vsel %vm733, %v682, 0
        %737 = vmatprep.subr.bf16.mxu0 0
        %738 = vmatpush1.bf16.msra.mxu0 0
        %739 = vmatprep.subr.bf16.mxu0 0
        %740 = vmatpush1.bf16.msra.mxu0 0
        %741 = vmatprep.subr.bf16.mxu0 0
        %742 = vmatpush1.bf16.msra.mxu0 0
        %743 = vmatprep.subr.bf16.mxu0 0
        %744 = vmatpush1.bf16.msra.mxu0 0
        %745 = vmatprep.subr.bf16.mxu0 0
        %746 = vmatpush1.bf16.msra.mxu0 0
        %747 = vmatprep.subr.bf16.mxu0 0
        %748 = vmatpush1.bf16.msra.mxu0 0
        %749 = vmatprep.subr.bf16.mxu0 0
        %750 = vmatpush1.bf16.msra.mxu0 %v735
        %751 = vmatprep.subr.bf16.mxu0 0
        %752 = vmatpush1.bf16.msra.mxu0 %v681
        %753 = vmatprep.subr.bf16.mxu0 0
        %754 = vmatpush2.bf16.msra.mxu0 0
        %755 = vmatprep.subr.bf16.mxu0 0
        %756 = vmatpush2.bf16.msra.mxu0 0
        %757 = vmatprep.subr.bf16.mxu0 0
        %758 = vmatpush2.bf16.msra.mxu0 0
        %759 = vmatprep.subr.bf16.mxu0 0
        %760 = vmatpush2.bf16.msra.mxu0 0
        %761 = vmatprep.subr.bf16.mxu0 0
        %762 = vmatpush2.bf16.msra.mxu0 0
        %763 = vmatprep.subr.bf16.mxu0 0
        %764 = vmatpush2.bf16.msra.mxu0 0
        %765 = vmatprep.subr.bf16.mxu0 0
        %766 = vmatpush2.bf16.msra.mxu0 0
        %767 = vmatprep.subr.bf16.mxu0 0
        %768 = vmatpush2.bf16.msra.mxu0 0
        %769 = vmatprep.mubr.bf16.mxu0 0
        %770 = vmatmul.mubr.bf16.gmra.mxu0 %v686
        %v771 = vpop.f32.mrf.mxu0
        %v772 = vadd.f32 %v673, %v771
        %v773 = vpop.f32.mrf.mxu0
        %v774 = vpop.f32.mrf.mxu0
        %v775 = vadd.f32 %v673, %v774
        %v776 = vpop.f32.mrf.mxu0
        %777 = vmatprep.mubr.bf16.mxu0 0
        %778 = vmatmul.mubr.bf16.gmra.mxu0 %v689
        %v779 = vpop.f32.mrf.mxu0
        %v780 = vadd.f32 %v673, %v779
        %v781 = vpop.f32.mrf.mxu0
        %v782 = vpop.f32.mrf.mxu0
        %v783 = vadd.f32 %v673, %v782
        %v784 = vpop.f32.mrf.mxu0
        %785 = vmatprep.mubr.bf16.mxu0 0
        %786 = vmatmul.mubr.bf16.gmra.mxu0 %v692
        %v787 = vpop.f32.mrf.mxu0
        %v788 = vadd.f32 %v673, %v787
        %v789 = vpop.f32.mrf.mxu0
        %v790 = vpop.f32.mrf.mxu0
        %v791 = vadd.f32 %v673, %v790
        %v792 = vpop.f32.mrf.mxu0
        %793 = vmatprep.mubr.bf16.mxu0 0
        %794 = vmatmul.mubr.bf16.gmra.mxu0 %v695
        %v795 = vpop.f32.mrf.mxu0
        %v796 = vadd.f32 %v673, %v795
        %v797 = vpop.f32.mrf.mxu0
        %v798 = vpop.f32.mrf.mxu0
        %v799 = vadd.f32 %v673, %v798
        %v800 = vpop.f32.mrf.mxu0
        %801 = vmatprep.mubr.bf16.mxu0 0
        %802 = vmatmul.mubr.bf16.gmra.mxu0 %v698
        %v803 = vpop.f32.mrf.mxu0
        %v804 = vadd.f32 %v673, %v803
        %v805 = vpop.f32.mrf.mxu0
        %v806 = vpop.f32.mrf.mxu0
        %v807 = vadd.f32 %v673, %v806
        %v808 = vpop.f32.mrf.mxu0
        %809 = vmatprep.mubr.bf16.mxu0 0
        %810 = vmatmul.mubr.bf16.gmra.mxu0 %v701
        %v811 = vpop.f32.mrf.mxu0
        %v812 = vadd.f32 %v673, %v811
        %v813 = vpop.f32.mrf.mxu0
        %v814 = vpop.f32.mrf.mxu0
        %v815 = vadd.f32 %v673, %v814
        %v816 = vpop.f32.mrf.mxu0
        %817 = vmatprep.mubr.bf16.mxu0 0
        %818 = vmatmul.mubr.bf16.gmra.mxu0 %v704
        %v819 = vpop.f32.mrf.mxu0
        %v820 = vadd.f32 %v673, %v819
        %v821 = vpop.f32.mrf.mxu0
        %v822 = vpop.f32.mrf.mxu0
        %v823 = vadd.f32 %v673, %v822
        %v824 = vpop.f32.mrf.mxu0
        %825 = vmatprep.mubr.bf16.mxu0 0
        %826 = vmatmul.mubr.bf16.gmra.mxu0 %v707
        %v827 = vpop.f32.mrf.mxu0
        %v828 = vadd.f32 %v673, %v827
        %v829 = vpop.f32.mrf.mxu0
        %v830 = vpop.f32.mrf.mxu0
        %v831 = vadd.f32 %v673, %v830
        %v832 = vpop.f32.mrf.mxu0
        %833 = vmatprep.mubr.bf16.mxu0 0
        %834 = vmatmul.mubr.bf16.gmra.mxu0 %v710
        %v835 = vpop.f32.mrf.mxu0
        %v836 = vadd.f32 %v673, %v835
        %v837 = vpop.f32.mrf.mxu0
        %v838 = vpop.f32.mrf.mxu0
        %v839 = vadd.f32 %v673, %v838
        %v840 = vpop.f32.mrf.mxu0
        %841 = vmatprep.mubr.bf16.mxu0 0
        %842 = vmatmul.mubr.bf16.gmra.mxu0 %v713
        %v843 = vpop.f32.mrf.mxu0
        %v844 = vadd.f32 %v673, %v843
        %v845 = vpop.f32.mrf.mxu0
        %v846 = vpop.f32.mrf.mxu0
        %v847 = vadd.f32 %v673, %v846
        %v848 = vpop.f32.mrf.mxu0
        %849 = vmatprep.mubr.bf16.mxu0 0
        %850 = vmatmul.mubr.bf16.gmra.mxu0 %v716
        %v851 = vpop.f32.mrf.mxu0
        %v852 = vadd.f32 %v673, %v851
        %v853 = vpop.f32.mrf.mxu0
        %v854 = vpop.f32.mrf.mxu0
        %v855 = vadd.f32 %v673, %v854
        %v856 = vpop.f32.mrf.mxu0
        %857 = vmatprep.mubr.bf16.mxu0 0
        %858 = vmatmul.mubr.bf16.gmra.mxu0 %v719
        %v859 = vpop.f32.mrf.mxu0
        %v860 = vadd.f32 %v673, %v859
        %v861 = vpop.f32.mrf.mxu0
        %v862 = vpop.f32.mrf.mxu0
        %v863 = vadd.f32 %v673, %v862
        %v864 = vpop.f32.mrf.mxu0
        %865 = vmatprep.mubr.bf16.mxu0 0
        %866 = vmatmul.mubr.bf16.gmra.mxu0 %v722
        %v867 = vpop.f32.mrf.mxu0
        %v868 = vadd.f32 %v673, %v867
        %v869 = vpop.f32.mrf.mxu0
        %v870 = vpop.f32.mrf.mxu0
        %v871 = vadd.f32 %v673, %v870
        %v872 = vpop.f32.mrf.mxu0
        %873 = vmatprep.mubr.bf16.mxu0 0
        %874 = vmatmul.mubr.bf16.gmra.mxu0 %v725
        %v875 = vpop.f32.mrf.mxu0
        %v876 = vadd.f32 %v673, %v875
        %v877 = vpop.f32.mrf.mxu0
        %v878 = vpop.f32.mrf.mxu0
        %v879 = vadd.f32 %v673, %v878
        %v880 = vpop.f32.mrf.mxu0
        %881 = vmatprep.mubr.bf16.mxu0 0
        %882 = vmatmul.mubr.bf16.gmra.mxu0 %v728
        %v883 = vpop.f32.mrf.mxu0
        %v884 = vadd.f32 %v673, %v883
        %v885 = vpop.f32.mrf.mxu0
        %v886 = vpop.f32.mrf.mxu0
        %v887 = vadd.f32 %v673, %v886
        %v888 = vpop.f32.mrf.mxu0
        %889 = vmatprep.mubr.bf16.mxu0 0
        %890 = vmatmul.mubr.bf16.gmra.mxu0 %v731
        %v891 = vpop.f32.mrf.mxu0
        %v892 = vadd.f32 %v673, %v891
        %v893 = vpop.f32.mrf.mxu0
        %v894 = vpop.f32.mrf.mxu0
        %v895 = vadd.f32 %v673, %v894
        %v896 = vpop.f32.mrf.mxu0
        %897 = vdwg.mxu0
        %vm898 = vcmp.ge.f32.partialorder %v772, 0.0
        %vm899 = vcmp.ge.f32.partialorder %v775, 0.0
        %vm900 = vcmp.ge.f32.partialorder %v780, 0.0
        %vm901 = vcmp.ge.f32.partialorder %v783, 0.0
        %vm902 = vcmp.ge.f32.partialorder %v788, 0.0
        %vm903 = vcmp.ge.f32.partialorder %v791, 0.0
        %vm904 = vcmp.ge.f32.partialorder %v796, 0.0
        %vm905 = vcmp.ge.f32.partialorder %v799, 0.0
        %vm906 = vcmp.ge.f32.partialorder %v804, 0.0
        %vm907 = vcmp.ge.f32.partialorder %v807, 0.0
        %vm908 = vcmp.ge.f32.partialorder %v812, 0.0
        %vm909 = vcmp.ge.f32.partialorder %v815, 0.0
        %vm910 = vcmp.ge.f32.partialorder %v820, 0.0
        %vm911 = vcmp.ge.f32.partialorder %v823, 0.0
        %vm912 = vcmp.ge.f32.partialorder %v828, 0.0
        %vm913 = vcmp.ge.f32.partialorder %v831, 0.0
        %vm914 = vcmp.ge.f32.partialorder %v836, 0.0
        %vm915 = vcmp.ge.f32.partialorder %v839, 0.0
        %vm916 = vcmp.ge.f32.partialorder %v844, 0.0
        %vm917 = vcmp.ge.f32.partialorder %v847, 0.0
        %vm918 = vcmp.ge.f32.partialorder %v852, 0.0
        %vm919 = vcmp.ge.f32.partialorder %v855, 0.0
        %vm920 = vcmp.ge.f32.partialorder %v860, 0.0
        %vm921 = vcmp.ge.f32.partialorder %v863, 0.0
        %vm922 = vcmp.ge.f32.partialorder %v868, 0.0
        %vm923 = vcmp.ge.f32.partialorder %v871, 0.0
        %vm924 = vcmp.ge.f32.partialorder %v876, 0.0
        %vm925 = vcmp.ge.f32.partialorder %v879, 0.0
        %vm926 = vcmp.ge.f32.partialorder %v884, 0.0
        %vm927 = vcmp.ge.f32.partialorder %v887, 0.0
        %vm928 = vcmp.ge.f32.partialorder %v892, 0.0
        %vm929 = vcmp.ge.f32.partialorder %v895, 0.0
        %v930 = vmul.f32 %v772, 0.2
        %v931 = vmul.f32 %v775, 0.2
        %v932 = vmul.f32 %v780, 0.2
        %v933 = vmul.f32 %v783, 0.2
        %v934 = vmul.f32 %v788, 0.2
        %v935 = vmul.f32 %v791, 0.2
        %v936 = vmul.f32 %v796, 0.2
        %v937 = vmul.f32 %v799, 0.2
        %v938 = vmul.f32 %v804, 0.2
        %v939 = vmul.f32 %v807, 0.2
        %v940 = vmul.f32 %v812, 0.2
        %v941 = vmul.f32 %v815, 0.2
        %v942 = vmul.f32 %v820, 0.2
        %v943 = vmul.f32 %v823, 0.2
        %v944 = vmul.f32 %v828, 0.2
        %v945 = vmul.f32 %v831, 0.2
        %v946 = vmul.f32 %v836, 0.2
        %v947 = vmul.f32 %v839, 0.2
        %v948 = vmul.f32 %v844, 0.2
        %v949 = vmul.f32 %v847, 0.2
        %v950 = vmul.f32 %v852, 0.2
        %v951 = vmul.f32 %v855, 0.2
        %v952 = vmul.f32 %v860, 0.2
        %v953 = vmul.f32 %v863, 0.2
        %v954 = vmul.f32 %v868, 0.2
        %v955 = vmul.f32 %v871, 0.2
        %v956 = vmul.f32 %v876, 0.2
        %v957 = vmul.f32 %v879, 0.2
        %v958 = vmul.f32 %v884, 0.2
        %v959 = vmul.f32 %v887, 0.2
        %v960 = vmul.f32 %v892, 0.2
        %v961 = vmul.f32 %v895, 0.2
        %v962 = vsel %vm898, %v772, %v930
        %v963 = vsel %vm899, %v775, %v931
        %v964 = vsel %vm900, %v780, %v932
        %v965 = vsel %vm901, %v783, %v933
        %v966 = vsel %vm902, %v788, %v934
        %v967 = vsel %vm903, %v791, %v935
        %v968 = vsel %vm904, %v796, %v936
        %v969 = vsel %vm905, %v799, %v937
        %v970 = vsel %vm906, %v804, %v938
        %v971 = vsel %vm907, %v807, %v939
        %v972 = vsel %vm908, %v812, %v940
        %v973 = vsel %vm909, %v815, %v941
        %v974 = vsel %vm910, %v820, %v942
        %v975 = vsel %vm911, %v823, %v943
        %v976 = vsel %vm912, %v828, %v944
        %v977 = vsel %vm913, %v831, %v945
        %v978 = vsel %vm914, %v836, %v946
        %v979 = vsel %vm915, %v839, %v947
        %v980 = vsel %vm916, %v844, %v948
        %v981 = vsel %vm917, %v847, %v949
        %v982 = vsel %vm918, %v852, %v950
        %v983 = vsel %vm919, %v855, %v951
        %v984 = vsel %vm920, %v860, %v952
        %v985 = vsel %vm921, %v863, %v953
        %v986 = vsel %vm922, %v868, %v954
        %v987 = vsel %vm923, %v871, %v955
        %v988 = vsel %vm924, %v876, %v956
        %v989 = vsel %vm925, %v879, %v957
        %v990 = vsel %vm926, %v884, %v958
        %v991 = vsel %vm927, %v887, %v959
        %v992 = vsel %vm928, %v892, %v960
        %v993 = vsel %vm929, %v895, %v961
        %v994 = vpack.c.bf16 %v963, %v962
        %v995 = vpack.c.bf16 %v965, %v964
        %v996 = vpack.c.bf16 %v967, %v966
        %v997 = vpack.c.bf16 %v969, %v968
        %v998 = vpack.c.bf16 %v971, %v970
        %v999 = vpack.c.bf16 %v973, %v972
        %v1000 = vpack.c.bf16 %v975, %v974
        %v1001 = vpack.c.bf16 %v977, %v976
        %v1002 = vpack.c.bf16 %v979, %v978
        %v1003 = vpack.c.bf16 %v981, %v980
        %v1004 = vpack.c.bf16 %v983, %v982
        %v1005 = vpack.c.bf16 %v985, %v984
        %v1006 = vpack.c.bf16 %v987, %v986
        %v1007 = vpack.c.bf16 %v989, %v988
        %v1008 = vpack.c.bf16 %v991, %v990
        %v1009 = vpack.c.bf16 %v993, %v992
        %v1010 = vld [vmem:[#allocation16] sm:$0xff]
        %v1011 = vld [vmem:[#allocation16 + $0x8] sm:$0xff]
        %v1012 = vld [vmem:[#allocation16 + $0x10] sm:$0xff]
        %v1013 = vld [vmem:[#allocation16 + $0x18] sm:$0xff]
        %v1014 = vld [vmem:[#allocation16 + $0x20] sm:$0xff]
        %v1015 = vld [vmem:[#allocation16 + $0x28] sm:$0xff]
        %v1016 = vld [vmem:[#allocation16 + $0x30] sm:$0xff]
        %v1017 = vld [vmem:[#allocation16 + $0x38] sm:$0xff]
        %v1026 = vunpack.c.l.b16 %v1010
        %v1027 = vunpack.c.h.b16 %v1010
        %v1028 = vunpack.c.l.b16 %v1011
        %v1029 = vunpack.c.h.b16 %v1011
        %v1030 = vunpack.c.l.b16 %v1012
        %v1031 = vunpack.c.h.b16 %v1012
        %v1032 = vunpack.c.l.b16 %v1013
        %v1033 = vunpack.c.h.b16 %v1013
        %v1034 = vunpack.c.l.b16 %v1014
        %v1035 = vunpack.c.h.b16 %v1014
        %v1036 = vunpack.c.l.b16 %v1015
        %v1037 = vunpack.c.h.b16 %v1015
        %v1038 = vunpack.c.l.b16 %v1016
        %v1039 = vunpack.c.h.b16 %v1016
        %v1040 = vunpack.c.l.b16 %v1017
        %v1041 = vunpack.c.h.b16 %v1017
        %v1042 = vpack.c.b16 %v1028, %v1026
        %v1043 = vpack.c.b16 %v1029, %v1027
        %v1044 = vpack.c.b16 %v1032, %v1030
        %v1045 = vpack.c.b16 %v1033, %v1031
        %v1046 = vpack.c.b16 %v1036, %v1034
        %v1047 = vpack.c.b16 %v1037, %v1035
        %v1048 = vpack.c.b16 %v1040, %v1038
        %v1049 = vpack.c.b16 %v1041, %v1039
        %1058 = vmatprep.subr.bf16.mxu0 0
        %1059 = vmatpush1.bf16.msra.mxu0 %v1001
        %1060 = vmatprep.subr.bf16.mxu0 0
        %1061 = vmatpush1.bf16.msra.mxu0 %v1000
        %1062 = vmatprep.subr.bf16.mxu0 0
        %1063 = vmatpush1.bf16.msra.mxu0 %v999
        %1064 = vmatprep.subr.bf16.mxu0 0
        %1065 = vmatpush1.bf16.msra.mxu0 %v998
        %1066 = vmatprep.subr.bf16.mxu0 0
        %1067 = vmatpush1.bf16.msra.mxu0 %v997
        %1068 = vmatprep.subr.bf16.mxu0 0
        %1069 = vmatpush1.bf16.msra.mxu0 %v996
        %1070 = vmatprep.subr.bf16.mxu0 0
        %1071 = vmatpush1.bf16.msra.mxu0 %v995
        %1072 = vmatprep.subr.bf16.mxu0 0
        %1073 = vmatpush1.bf16.msra.mxu0 %v994
        %1074 = vmatprep.subr.bf16.mxu0 0
        %1075 = vmatpush2.bf16.msra.mxu0 %v1009
        %1076 = vmatprep.subr.bf16.mxu0 0
        %1077 = vmatpush2.bf16.msra.mxu0 %v1008
        %1078 = vmatprep.subr.bf16.mxu0 0
        %1079 = vmatpush2.bf16.msra.mxu0 %v1007
        %1080 = vmatprep.subr.bf16.mxu0 0
        %1081 = vmatpush2.bf16.msra.mxu0 %v1006
        %1082 = vmatprep.subr.bf16.mxu0 0
        %1083 = vmatpush2.bf16.msra.mxu0 %v1005
        %1084 = vmatprep.subr.bf16.mxu0 0
        %1085 = vmatpush2.bf16.msra.mxu0 %v1004
        %1086 = vmatprep.subr.bf16.mxu0 0
        %1087 = vmatpush2.bf16.msra.mxu0 %v1003
        %1088 = vmatprep.subr.bf16.mxu0 0
        %1089 = vmatpush2.bf16.msra.mxu0 %v1002
        %1090 = vmatprep.mubr.bf16.mxu0 %v1043
        %1091 = vmatmul.mubr.bf16.gmra.mxu0 %v1042
        %v1092 = vpop.f32.mrf.mxu0
        %v1093 = vadd.f32 0.0, %v1092
        %v1094 = vpop.f32.mrf.mxu0
        %v1095 = vpop.f32.mrf.mxu0
        %v1096 = vadd.f32 0.0, %v1095
        %v1097 = vpop.f32.mrf.mxu0
        %1098 = vmatprep.mubr.bf16.mxu0 %v1045
        %1099 = vmatmul.mubr.bf16.gmra.mxu0 %v1044
        %v1100 = vpop.f32.mrf.mxu0
        %v1101 = vadd.f32 0.0, %v1100
        %v1102 = vpop.f32.mrf.mxu0
        %v1103 = vpop.f32.mrf.mxu0
        %v1104 = vadd.f32 0.0, %v1103
        %v1105 = vpop.f32.mrf.mxu0
        %1106 = vmatprep.mubr.bf16.mxu0 %v1047
        %1107 = vmatmul.mubr.bf16.gmra.mxu0 %v1046
        %v1108 = vpop.f32.mrf.mxu0
        %v1109 = vadd.f32 0.0, %v1108
        %v1110 = vpop.f32.mrf.mxu0
        %v1111 = vpop.f32.mrf.mxu0
        %v1112 = vadd.f32 0.0, %v1111
        %v1113 = vpop.f32.mrf.mxu0
        %1114 = vmatprep.mubr.bf16.mxu0 %v1049
        %1115 = vmatmul.mubr.bf16.gmra.mxu0 %v1048
        %v1116 = vpop.f32.mrf.mxu0
        %v1117 = vadd.f32 0.0, %v1116
        %v1118 = vpop.f32.mrf.mxu0
        %v1119 = vpop.f32.mrf.mxu0
        %v1120 = vadd.f32 0.0, %v1119
        %v1121 = vpop.f32.mrf.mxu0
        %1122 = vdwg.mxu0
        %s1123 = scalar_lea.vmem [#allocation16], 64
        %v1124 = vld [vmem:[%s1123] sm:$0xff]
        %v1125 = vld [vmem:[%s1123 + $0x8] sm:$0xff]
        %v1126 = vld [vmem:[%s1123 + $0x10] sm:$0xff]
        %v1127 = vld [vmem:[%s1123 + $0x18] sm:$0xff]
        %v1128 = vld [vmem:[%s1123 + $0x20] sm:$0xff]
        %v1129 = vld [vmem:[%s1123 + $0x28] sm:$0xff]
        %v1130 = vld [vmem:[%s1123 + $0x30] sm:$0xff]
        %v1131 = vld [vmem:[%s1123 + $0x38] sm:$0xff]
        %v1140 = vunpack.c.l.b16 %v1124
        %v1141 = vunpack.c.h.b16 %v1124
        %v1142 = vunpack.c.l.b16 %v1125
        %v1143 = vunpack.c.h.b16 %v1125
        %v1144 = vunpack.c.l.b16 %v1126
        %v1145 = vunpack.c.h.b16 %v1126
        %v1146 = vunpack.c.l.b16 %v1127
        %v1147 = vunpack.c.h.b16 %v1127
        %v1148 = vunpack.c.l.b16 %v1128
        %v1149 = vunpack.c.h.b16 %v1128
        %v1150 = vunpack.c.l.b16 %v1129
        %v1151 = vunpack.c.h.b16 %v1129
        %v1152 = vunpack.c.l.b16 %v1130
        %v1153 = vunpack.c.h.b16 %v1130
        %v1154 = vunpack.c.l.b16 %v1131
        %v1155 = vunpack.c.h.b16 %v1131
        %v1156 = vpack.c.b16 %v1142, %v1140
        %v1157 = vpack.c.b16 %v1143, %v1141
        %v1158 = vpack.c.b16 %v1146, %v1144
        %v1159 = vpack.c.b16 %v1147, %v1145
        %v1160 = vpack.c.b16 %v1150, %v1148
        %v1161 = vpack.c.b16 %v1151, %v1149
        %v1162 = vpack.c.b16 %v1154, %v1152
        %v1163 = vpack.c.b16 %v1155, %v1153
        %1172 = vmatprep.subr.bf16.mxu0 0
        %1173 = vmatpush1.bf16.msra.mxu0 %v1001
        %1174 = vmatprep.subr.bf16.mxu0 0
        %1175 = vmatpush1.bf16.msra.mxu0 %v1000
        %1176 = vmatprep.subr.bf16.mxu0 0
        %1177 = vmatpush1.bf16.msra.mxu0 %v999
        %1178 = vmatprep.subr.bf16.mxu0 0
        %1179 = vmatpush1.bf16.msra.mxu0 %v998
        %1180 = vmatprep.subr.bf16.mxu0 0
        %1181 = vmatpush1.bf16.msra.mxu0 %v997
        %1182 = vmatprep.subr.bf16.mxu0 0
        %1183 = vmatpush1.bf16.msra.mxu0 %v996
        %1184 = vmatprep.subr.bf16.mxu0 0
        %1185 = vmatpush1.bf16.msra.mxu0 %v995
        %1186 = vmatprep.subr.bf16.mxu0 0
        %1187 = vmatpush1.bf16.msra.mxu0 %v994
        %1188 = vmatprep.subr.bf16.mxu0 0
        %1189 = vmatpush2.bf16.msra.mxu0 %v1009
        %1190 = vmatprep.subr.bf16.mxu0 0
        %1191 = vmatpush2.bf16.msra.mxu0 %v1008
        %1192 = vmatprep.subr.bf16.mxu0 0
        %1193 = vmatpush2.bf16.msra.mxu0 %v1007
        %1194 = vmatprep.subr.bf16.mxu0 0
        %1195 = vmatpush2.bf16.msra.mxu0 %v1006
        %1196 = vmatprep.subr.bf16.mxu0 0
        %1197 = vmatpush2.bf16.msra.mxu0 %v1005
        %1198 = vmatprep.subr.bf16.mxu0 0
        %1199 = vmatpush2.bf16.msra.mxu0 %v1004
        %1200 = vmatprep.subr.bf16.mxu0 0
        %1201 = vmatpush2.bf16.msra.mxu0 %v1003
        %1202 = vmatprep.subr.bf16.mxu0 0
        %1203 = vmatpush2.bf16.msra.mxu0 %v1002
        %1204 = vmatprep.mubr.bf16.mxu0 %v1157
        %1205 = vmatmul.mubr.bf16.gmra.mxu0 %v1156
        %v1206 = vpop.f32.mrf.mxu0
        %v1207 = vadd.f32 0.0, %v1206
        %v1208 = vpop.f32.mrf.mxu0
        %v1209 = vpop.f32.mrf.mxu0
        %v1210 = vadd.f32 0.0, %v1209
        %v1211 = vpop.f32.mrf.mxu0
        %1212 = vmatprep.mubr.bf16.mxu0 %v1159
        %1213 = vmatmul.mubr.bf16.gmra.mxu0 %v1158
        %v1214 = vpop.f32.mrf.mxu0
        %v1215 = vadd.f32 0.0, %v1214
        %v1216 = vpop.f32.mrf.mxu0
        %v1217 = vpop.f32.mrf.mxu0
        %v1218 = vadd.f32 0.0, %v1217
        %v1219 = vpop.f32.mrf.mxu0
        %1220 = vmatprep.mubr.bf16.mxu0 %v1161
        %1221 = vmatmul.mubr.bf16.gmra.mxu0 %v1160
        %v1222 = vpop.f32.mrf.mxu0
        %v1223 = vadd.f32 0.0, %v1222
        %v1224 = vpop.f32.mrf.mxu0
        %v1225 = vpop.f32.mrf.mxu0
        %v1226 = vadd.f32 0.0, %v1225
        %v1227 = vpop.f32.mrf.mxu0
        %1228 = vmatprep.mubr.bf16.mxu0 %v1163
        %1229 = vmatmul.mubr.bf16.gmra.mxu0 %v1162
        %v1230 = vpop.f32.mrf.mxu0
        %v1231 = vadd.f32 0.0, %v1230
        %v1232 = vpop.f32.mrf.mxu0
        %v1233 = vpop.f32.mrf.mxu0
        %v1234 = vadd.f32 0.0, %v1233
        %v1235 = vpop.f32.mrf.mxu0
        %1236 = vdwg.mxu0
        %s1237 = scalar_lea.vmem [#allocation16], 128
        %v1238 = vld [vmem:[%s1237] sm:$0xff]
        %v1239 = vld [vmem:[%s1237 + $0x8] sm:$0xff]
        %v1240 = vld [vmem:[%s1237 + $0x10] sm:$0xff]
        %v1241 = vld [vmem:[%s1237 + $0x18] sm:$0xff]
        %v1242 = vld [vmem:[%s1237 + $0x20] sm:$0xff]
        %v1243 = vld [vmem:[%s1237 + $0x28] sm:$0xff]
        %v1244 = vld [vmem:[%s1237 + $0x30] sm:$0xff]
        %v1245 = vld [vmem:[%s1237 + $0x38] sm:$0xff]
        %v1254 = vunpack.c.l.b16 %v1238
        %v1255 = vunpack.c.h.b16 %v1238
        %v1256 = vunpack.c.l.b16 %v1239
        %v1257 = vunpack.c.h.b16 %v1239
        %v1258 = vunpack.c.l.b16 %v1240
        %v1259 = vunpack.c.h.b16 %v1240
        %v1260 = vunpack.c.l.b16 %v1241
        %v1261 = vunpack.c.h.b16 %v1241
        %v1262 = vunpack.c.l.b16 %v1242
        %v1263 = vunpack.c.h.b16 %v1242
        %v1264 = vunpack.c.l.b16 %v1243
        %v1265 = vunpack.c.h.b16 %v1243
        %v1266 = vunpack.c.l.b16 %v1244
        %v1267 = vunpack.c.h.b16 %v1244
        %v1268 = vunpack.c.l.b16 %v1245
        %v1269 = vunpack.c.h.b16 %v1245
        %v1270 = vpack.c.b16 %v1256, %v1254
        %v1271 = vpack.c.b16 %v1257, %v1255
        %v1272 = vpack.c.b16 %v1260, %v1258
        %v1273 = vpack.c.b16 %v1261, %v1259
        %v1274 = vpack.c.b16 %v1264, %v1262
        %v1275 = vpack.c.b16 %v1265, %v1263
        %v1276 = vpack.c.b16 %v1268, %v1266
        %v1277 = vpack.c.b16 %v1269, %v1267
        %1286 = vmatprep.subr.bf16.mxu0 0
        %1287 = vmatpush1.bf16.msra.mxu0 %v1001
        %1288 = vmatprep.subr.bf16.mxu0 0
        %1289 = vmatpush1.bf16.msra.mxu0 %v1000
        %1290 = vmatprep.subr.bf16.mxu0 0
        %1291 = vmatpush1.bf16.msra.mxu0 %v999
        %1292 = vmatprep.subr.bf16.mxu0 0
        %1293 = vmatpush1.bf16.msra.mxu0 %v998
        %1294 = vmatprep.subr.bf16.mxu0 0
        %1295 = vmatpush1.bf16.msra.mxu0 %v997
        %1296 = vmatprep.subr.bf16.mxu0 0
        %1297 = vmatpush1.bf16.msra.mxu0 %v996
        %1298 = vmatprep.subr.bf16.mxu0 0
        %1299 = vmatpush1.bf16.msra.mxu0 %v995
        %1300 = vmatprep.subr.bf16.mxu0 0
        %1301 = vmatpush1.bf16.msra.mxu0 %v994
        %1302 = vmatprep.subr.bf16.mxu0 0
        %1303 = vmatpush2.bf16.msra.mxu0 %v1009
        %1304 = vmatprep.subr.bf16.mxu0 0
        %1305 = vmatpush2.bf16.msra.mxu0 %v1008
        %1306 = vmatprep.subr.bf16.mxu0 0
        %1307 = vmatpush2.bf16.msra.mxu0 %v1007
        %1308 = vmatprep.subr.bf16.mxu0 0
        %1309 = vmatpush2.bf16.msra.mxu0 %v1006
        %1310 = vmatprep.subr.bf16.mxu0 0
        %1311 = vmatpush2.bf16.msra.mxu0 %v1005
        %1312 = vmatprep.subr.bf16.mxu0 0
        %1313 = vmatpush2.bf16.msra.mxu0 %v1004
        %1314 = vmatprep.subr.bf16.mxu0 0
        %1315 = vmatpush2.bf16.msra.mxu0 %v1003
        %1316 = vmatprep.subr.bf16.mxu0 0
        %1317 = vmatpush2.bf16.msra.mxu0 %v1002
        %1318 = vmatprep.mubr.bf16.mxu0 %v1271
        %1319 = vmatmul.mubr.bf16.gmra.mxu0 %v1270
        %v1320 = vpop.f32.mrf.mxu0
        %v1321 = vadd.f32 0.0, %v1320
        %v1322 = vpop.f32.mrf.mxu0
        %v1323 = vpop.f32.mrf.mxu0
        %v1324 = vadd.f32 0.0, %v1323
        %v1325 = vpop.f32.mrf.mxu0
        %1326 = vmatprep.mubr.bf16.mxu0 %v1273
        %1327 = vmatmul.mubr.bf16.gmra.mxu0 %v1272
        %v1328 = vpop.f32.mrf.mxu0
        %v1329 = vadd.f32 0.0, %v1328
        %v1330 = vpop.f32.mrf.mxu0
        %v1331 = vpop.f32.mrf.mxu0
        %v1332 = vadd.f32 0.0, %v1331
        %v1333 = vpop.f32.mrf.mxu0
        %1334 = vmatprep.mubr.bf16.mxu0 %v1275
        %1335 = vmatmul.mubr.bf16.gmra.mxu0 %v1274
        %v1336 = vpop.f32.mrf.mxu0
        %v1337 = vadd.f32 0.0, %v1336
        %v1338 = vpop.f32.mrf.mxu0
        %v1339 = vpop.f32.mrf.mxu0
        %v1340 = vadd.f32 0.0, %v1339
        %v1341 = vpop.f32.mrf.mxu0
        %1342 = vmatprep.mubr.bf16.mxu0 %v1277
        %1343 = vmatmul.mubr.bf16.gmra.mxu0 %v1276
        %v1344 = vpop.f32.mrf.mxu0
        %v1345 = vadd.f32 0.0, %v1344
        %v1346 = vpop.f32.mrf.mxu0
        %v1347 = vpop.f32.mrf.mxu0
        %v1348 = vadd.f32 0.0, %v1347
        %v1349 = vpop.f32.mrf.mxu0
        %1350 = vdwg.mxu0
        %s1351 = scalar_lea.vmem [#allocation16], 192
        %v1352 = vld [vmem:[%s1351] sm:$0xff]
        %v1353 = vld [vmem:[%s1351 + $0x8] sm:$0xff]
        %v1354 = vld [vmem:[%s1351 + $0x10] sm:$0xff]
        %v1355 = vld [vmem:[%s1351 + $0x18] sm:$0xff]
        %v1356 = vld [vmem:[%s1351 + $0x20] sm:$0xff]
        %v1357 = vld [vmem:[%s1351 + $0x28] sm:$0xff]
        %v1358 = vld [vmem:[%s1351 + $0x30] sm:$0xff]
        %v1359 = vld [vmem:[%s1351 + $0x38] sm:$0xff]
        %v1368 = vunpack.c.l.b16 %v1352
        %v1369 = vunpack.c.h.b16 %v1352
        %v1370 = vunpack.c.l.b16 %v1353
        %v1371 = vunpack.c.h.b16 %v1353
        %v1372 = vunpack.c.l.b16 %v1354
        %v1373 = vunpack.c.h.b16 %v1354
        %v1374 = vunpack.c.l.b16 %v1355
        %v1375 = vunpack.c.h.b16 %v1355
        %v1376 = vunpack.c.l.b16 %v1356
        %v1377 = vunpack.c.h.b16 %v1356
        %v1378 = vunpack.c.l.b16 %v1357
        %v1379 = vunpack.c.h.b16 %v1357
        %v1380 = vunpack.c.l.b16 %v1358
        %v1381 = vunpack.c.h.b16 %v1358
        %v1382 = vunpack.c.l.b16 %v1359
        %v1383 = vunpack.c.h.b16 %v1359
        %v1384 = vpack.c.b16 %v1370, %v1368
        %v1385 = vpack.c.b16 %v1371, %v1369
        %v1386 = vpack.c.b16 %v1374, %v1372
        %v1387 = vpack.c.b16 %v1375, %v1373
        %v1388 = vpack.c.b16 %v1378, %v1376
        %v1389 = vpack.c.b16 %v1379, %v1377
        %v1390 = vpack.c.b16 %v1382, %v1380
        %v1391 = vpack.c.b16 %v1383, %v1381
        %1400 = vmatprep.subr.bf16.mxu0 0
        %1401 = vmatpush1.bf16.msra.mxu0 %v1001
        %1402 = vmatprep.subr.bf16.mxu0 0
        %1403 = vmatpush1.bf16.msra.mxu0 %v1000
        %1404 = vmatprep.subr.bf16.mxu0 0
        %1405 = vmatpush1.bf16.msra.mxu0 %v999
        %1406 = vmatprep.subr.bf16.mxu0 0
        %1407 = vmatpush1.bf16.msra.mxu0 %v998
        %1408 = vmatprep.subr.bf16.mxu0 0
        %1409 = vmatpush1.bf16.msra.mxu0 %v997
        %1410 = vmatprep.subr.bf16.mxu0 0
        %1411 = vmatpush1.bf16.msra.mxu0 %v996
        %1412 = vmatprep.subr.bf16.mxu0 0
        %1413 = vmatpush1.bf16.msra.mxu0 %v995
        %1414 = vmatprep.subr.bf16.mxu0 0
        %1415 = vmatpush1.bf16.msra.mxu0 %v994
        %1416 = vmatprep.subr.bf16.mxu0 0
        %1417 = vmatpush2.bf16.msra.mxu0 %v1009
        %1418 = vmatprep.subr.bf16.mxu0 0
        %1419 = vmatpush2.bf16.msra.mxu0 %v1008
        %1420 = vmatprep.subr.bf16.mxu0 0
        %1421 = vmatpush2.bf16.msra.mxu0 %v1007
        %1422 = vmatprep.subr.bf16.mxu0 0
        %1423 = vmatpush2.bf16.msra.mxu0 %v1006
        %1424 = vmatprep.subr.bf16.mxu0 0
        %1425 = vmatpush2.bf16.msra.mxu0 %v1005
        %1426 = vmatprep.subr.bf16.mxu0 0
        %1427 = vmatpush2.bf16.msra.mxu0 %v1004
        %1428 = vmatprep.subr.bf16.mxu0 0
        %1429 = vmatpush2.bf16.msra.mxu0 %v1003
        %1430 = vmatprep.subr.bf16.mxu0 0
        %1431 = vmatpush2.bf16.msra.mxu0 %v1002
        %1432 = vmatprep.mubr.bf16.mxu0 %v1385
        %1433 = vmatmul.mubr.bf16.gmra.mxu0 %v1384
        %v1434 = vpop.f32.mrf.mxu0
        %v1435 = vadd.f32 0.0, %v1434
        %v1436 = vpop.f32.mrf.mxu0
        %v1437 = vpop.f32.mrf.mxu0
        %v1438 = vadd.f32 0.0, %v1437
        %v1439 = vpop.f32.mrf.mxu0
        %1440 = vmatprep.mubr.bf16.mxu0 %v1387
        %1441 = vmatmul.mubr.bf16.gmra.mxu0 %v1386
        %v1442 = vpop.f32.mrf.mxu0
        %v1443 = vadd.f32 0.0, %v1442
        %v1444 = vpop.f32.mrf.mxu0
        %v1445 = vpop.f32.mrf.mxu0
        %v1446 = vadd.f32 0.0, %v1445
        %v1447 = vpop.f32.mrf.mxu0
        %1448 = vmatprep.mubr.bf16.mxu0 %v1389
        %1449 = vmatmul.mubr.bf16.gmra.mxu0 %v1388
        %v1450 = vpop.f32.mrf.mxu0
        %v1451 = vadd.f32 0.0, %v1450
        %v1452 = vpop.f32.mrf.mxu0
        %v1453 = vpop.f32.mrf.mxu0
        %v1454 = vadd.f32 0.0, %v1453
        %v1455 = vpop.f32.mrf.mxu0
        %1456 = vmatprep.mubr.bf16.mxu0 %v1391
        %1457 = vmatmul.mubr.bf16.gmra.mxu0 %v1390
        %v1458 = vpop.f32.mrf.mxu0
        %v1459 = vadd.f32 0.0, %v1458
        %v1460 = vpop.f32.mrf.mxu0
        %v1461 = vpop.f32.mrf.mxu0
        %v1462 = vadd.f32 0.0, %v1461
        %v1463 = vpop.f32.mrf.mxu0
        %1464 = vdwg.mxu0
        %s1465 = scalar_lea.vmem [#allocation16], 256
        %v1466 = vld [vmem:[%s1465] sm:$0xff]
        %v1467 = vld [vmem:[%s1465 + $0x8] sm:$0xff]
        %v1468 = vld [vmem:[%s1465 + $0x10] sm:$0xff]
        %v1469 = vld [vmem:[%s1465 + $0x18] sm:$0xff]
        %v1470 = vld [vmem:[%s1465 + $0x20] sm:$0xff]
        %v1471 = vld [vmem:[%s1465 + $0x28] sm:$0xff]
        %v1472 = vld [vmem:[%s1465 + $0x30] sm:$0xff]
        %v1473 = vld [vmem:[%s1465 + $0x38] sm:$0xff]
        %v1482 = vunpack.c.l.b16 %v1466
        %v1483 = vunpack.c.h.b16 %v1466
        %v1484 = vunpack.c.l.b16 %v1467
        %v1485 = vunpack.c.h.b16 %v1467
        %v1486 = vunpack.c.l.b16 %v1468
        %v1487 = vunpack.c.h.b16 %v1468
        %v1488 = vunpack.c.l.b16 %v1469
        %v1489 = vunpack.c.h.b16 %v1469
        %v1490 = vunpack.c.l.b16 %v1470
        %v1491 = vunpack.c.h.b16 %v1470
        %v1492 = vunpack.c.l.b16 %v1471
        %v1493 = vunpack.c.h.b16 %v1471
        %v1494 = vunpack.c.l.b16 %v1472
        %v1495 = vunpack.c.h.b16 %v1472
        %v1496 = vunpack.c.l.b16 %v1473
        %v1497 = vunpack.c.h.b16 %v1473
        %v1498 = vpack.c.b16 %v1484, %v1482
        %v1499 = vpack.c.b16 %v1485, %v1483
        %v1500 = vpack.c.b16 %v1488, %v1486
        %v1501 = vpack.c.b16 %v1489, %v1487
        %v1502 = vpack.c.b16 %v1492, %v1490
        %v1503 = vpack.c.b16 %v1493, %v1491
        %v1504 = vpack.c.b16 %v1496, %v1494
        %v1505 = vpack.c.b16 %v1497, %v1495
        %1514 = vmatprep.subr.bf16.mxu0 0
        %1515 = vmatpush1.bf16.msra.mxu0 %v1001
        %1516 = vmatprep.subr.bf16.mxu0 0
        %1517 = vmatpush1.bf16.msra.mxu0 %v1000
        %1518 = vmatprep.subr.bf16.mxu0 0
        %1519 = vmatpush1.bf16.msra.mxu0 %v999
        %1520 = vmatprep.subr.bf16.mxu0 0
        %1521 = vmatpush1.bf16.msra.mxu0 %v998
        %1522 = vmatprep.subr.bf16.mxu0 0
        %1523 = vmatpush1.bf16.msra.mxu0 %v997
        %1524 = vmatprep.subr.bf16.mxu0 0
        %1525 = vmatpush1.bf16.msra.mxu0 %v996
        %1526 = vmatprep.subr.bf16.mxu0 0
        %1527 = vmatpush1.bf16.msra.mxu0 %v995
        %1528 = vmatprep.subr.bf16.mxu0 0
        %1529 = vmatpush1.bf16.msra.mxu0 %v994
        %1530 = vmatprep.subr.bf16.mxu0 0
        %1531 = vmatpush2.bf16.msra.mxu0 %v1009
        %1532 = vmatprep.subr.bf16.mxu0 0
        %1533 = vmatpush2.bf16.msra.mxu0 %v1008
        %1534 = vmatprep.subr.bf16.mxu0 0
        %1535 = vmatpush2.bf16.msra.mxu0 %v1007
        %1536 = vmatprep.subr.bf16.mxu0 0
        %1537 = vmatpush2.bf16.msra.mxu0 %v1006
        %1538 = vmatprep.subr.bf16.mxu0 0
        %1539 = vmatpush2.bf16.msra.mxu0 %v1005
        %1540 = vmatprep.subr.bf16.mxu0 0
        %1541 = vmatpush2.bf16.msra.mxu0 %v1004
        %1542 = vmatprep.subr.bf16.mxu0 0
        %1543 = vmatpush2.bf16.msra.mxu0 %v1003
        %1544 = vmatprep.subr.bf16.mxu0 0
        %1545 = vmatpush2.bf16.msra.mxu0 %v1002
        %1546 = vmatprep.mubr.bf16.mxu0 %v1499
        %1547 = vmatmul.mubr.bf16.gmra.mxu0 %v1498
        %v1548 = vpop.f32.mrf.mxu0
        %v1549 = vadd.f32 0.0, %v1548
        %v1550 = vpop.f32.mrf.mxu0
        %v1551 = vpop.f32.mrf.mxu0
        %v1552 = vadd.f32 0.0, %v1551
        %v1553 = vpop.f32.mrf.mxu0
        %1554 = vmatprep.mubr.bf16.mxu0 %v1501
        %1555 = vmatmul.mubr.bf16.gmra.mxu0 %v1500
        %v1556 = vpop.f32.mrf.mxu0
        %v1557 = vadd.f32 0.0, %v1556
        %v1558 = vpop.f32.mrf.mxu0
        %v1559 = vpop.f32.mrf.mxu0
        %v1560 = vadd.f32 0.0, %v1559
        %v1561 = vpop.f32.mrf.mxu0
        %1562 = vmatprep.mubr.bf16.mxu0 %v1503
        %1563 = vmatmul.mubr.bf16.gmra.mxu0 %v1502
        %v1564 = vpop.f32.mrf.mxu0
        %v1565 = vadd.f32 0.0, %v1564
        %v1566 = vpop.f32.mrf.mxu0
        %v1567 = vpop.f32.mrf.mxu0
        %v1568 = vadd.f32 0.0, %v1567
        %v1569 = vpop.f32.mrf.mxu0
        %1570 = vmatprep.mubr.bf16.mxu0 %v1505
        %1571 = vmatmul.mubr.bf16.gmra.mxu0 %v1504
        %v1572 = vpop.f32.mrf.mxu0
        %v1573 = vadd.f32 0.0, %v1572
        %v1574 = vpop.f32.mrf.mxu0
        %v1575 = vpop.f32.mrf.mxu0
        %v1576 = vadd.f32 0.0, %v1575
        %v1577 = vpop.f32.mrf.mxu0
        %1578 = vdwg.mxu0
        %s1579 = scalar_lea.vmem [#allocation16], 320
        %v1580 = vld [vmem:[%s1579] sm:$0xff]
        %v1581 = vld [vmem:[%s1579 + $0x8] sm:$0xff]
        %v1582 = vld [vmem:[%s1579 + $0x10] sm:$0xff]
        %v1583 = vld [vmem:[%s1579 + $0x18] sm:$0xff]
        %v1584 = vld [vmem:[%s1579 + $0x20] sm:$0xff]
        %v1585 = vld [vmem:[%s1579 + $0x28] sm:$0xff]
        %v1586 = vld [vmem:[%s1579 + $0x30] sm:$0xff]
        %v1587 = vld [vmem:[%s1579 + $0x38] sm:$0xff]
        %v1596 = vunpack.c.l.b16 %v1580
        %v1597 = vunpack.c.h.b16 %v1580
        %v1598 = vunpack.c.l.b16 %v1581
        %v1599 = vunpack.c.h.b16 %v1581
        %v1600 = vunpack.c.l.b16 %v1582
        %v1601 = vunpack.c.h.b16 %v1582
        %v1602 = vunpack.c.l.b16 %v1583
        %v1603 = vunpack.c.h.b16 %v1583
        %v1604 = vunpack.c.l.b16 %v1584
        %v1605 = vunpack.c.h.b16 %v1584
        %v1606 = vunpack.c.l.b16 %v1585
        %v1607 = vunpack.c.h.b16 %v1585
        %v1608 = vunpack.c.l.b16 %v1586
        %v1609 = vunpack.c.h.b16 %v1586
        %v1610 = vunpack.c.l.b16 %v1587
        %v1611 = vunpack.c.h.b16 %v1587
        %v1612 = vpack.c.b16 %v1598, %v1596
        %v1613 = vpack.c.b16 %v1599, %v1597
        %v1614 = vpack.c.b16 %v1602, %v1600
        %v1615 = vpack.c.b16 %v1603, %v1601
        %v1616 = vpack.c.b16 %v1606, %v1604
        %v1617 = vpack.c.b16 %v1607, %v1605
        %v1618 = vpack.c.b16 %v1610, %v1608
        %v1619 = vpack.c.b16 %v1611, %v1609
        %1628 = vmatprep.subr.bf16.mxu0 0
        %1629 = vmatpush1.bf16.msra.mxu0 %v1001
        %1630 = vmatprep.subr.bf16.mxu0 0
        %1631 = vmatpush1.bf16.msra.mxu0 %v1000
        %1632 = vmatprep.subr.bf16.mxu0 0
        %1633 = vmatpush1.bf16.msra.mxu0 %v999
        %1634 = vmatprep.subr.bf16.mxu0 0
        %1635 = vmatpush1.bf16.msra.mxu0 %v998
        %1636 = vmatprep.subr.bf16.mxu0 0
        %1637 = vmatpush1.bf16.msra.mxu0 %v997
        %1638 = vmatprep.subr.bf16.mxu0 0
        %1639 = vmatpush1.bf16.msra.mxu0 %v996
        %1640 = vmatprep.subr.bf16.mxu0 0
        %1641 = vmatpush1.bf16.msra.mxu0 %v995
        %1642 = vmatprep.subr.bf16.mxu0 0
        %1643 = vmatpush1.bf16.msra.mxu0 %v994
        %1644 = vmatprep.subr.bf16.mxu0 0
        %1645 = vmatpush2.bf16.msra.mxu0 %v1009
        %1646 = vmatprep.subr.bf16.mxu0 0
        %1647 = vmatpush2.bf16.msra.mxu0 %v1008
        %1648 = vmatprep.subr.bf16.mxu0 0
        %1649 = vmatpush2.bf16.msra.mxu0 %v1007
        %1650 = vmatprep.subr.bf16.mxu0 0
        %1651 = vmatpush2.bf16.msra.mxu0 %v1006
        %1652 = vmatprep.subr.bf16.mxu0 0
        %1653 = vmatpush2.bf16.msra.mxu0 %v1005
        %1654 = vmatprep.subr.bf16.mxu0 0
        %1655 = vmatpush2.bf16.msra.mxu0 %v1004
        %1656 = vmatprep.subr.bf16.mxu0 0
        %1657 = vmatpush2.bf16.msra.mxu0 %v1003
        %1658 = vmatprep.subr.bf16.mxu0 0
        %1659 = vmatpush2.bf16.msra.mxu0 %v1002
        %1660 = vmatprep.mubr.bf16.mxu0 %v1613
        %1661 = vmatmul.mubr.bf16.gmra.mxu0 %v1612
        %v1662 = vpop.f32.mrf.mxu0
        %v1663 = vadd.f32 0.0, %v1662
        %v1664 = vpop.f32.mrf.mxu0
        %v1665 = vpop.f32.mrf.mxu0
        %v1666 = vadd.f32 0.0, %v1665
        %v1667 = vpop.f32.mrf.mxu0
        %1668 = vmatprep.mubr.bf16.mxu0 %v1615
        %1669 = vmatmul.mubr.bf16.gmra.mxu0 %v1614
        %v1670 = vpop.f32.mrf.mxu0
        %v1671 = vadd.f32 0.0, %v1670
        %v1672 = vpop.f32.mrf.mxu0
        %v1673 = vpop.f32.mrf.mxu0
        %v1674 = vadd.f32 0.0, %v1673
        %v1675 = vpop.f32.mrf.mxu0
        %1676 = vmatprep.mubr.bf16.mxu0 %v1617
        %1677 = vmatmul.mubr.bf16.gmra.mxu0 %v1616
        %v1678 = vpop.f32.mrf.mxu0
        %v1679 = vadd.f32 0.0, %v1678
        %v1680 = vpop.f32.mrf.mxu0
        %v1681 = vpop.f32.mrf.mxu0
        %v1682 = vadd.f32 0.0, %v1681
        %v1683 = vpop.f32.mrf.mxu0
        %1684 = vmatprep.mubr.bf16.mxu0 %v1619
        %1685 = vmatmul.mubr.bf16.gmra.mxu0 %v1618
        %v1686 = vpop.f32.mrf.mxu0
        %v1687 = vadd.f32 0.0, %v1686
        %v1688 = vpop.f32.mrf.mxu0
        %v1689 = vpop.f32.mrf.mxu0
        %v1690 = vadd.f32 0.0, %v1689
        %v1691 = vpop.f32.mrf.mxu0
        %1692 = vdwg.mxu0
        %s1693 = scalar_lea.vmem [#allocation16], 384
        %v1694 = vld [vmem:[%s1693] sm:$0xff]
        %v1695 = vld [vmem:[%s1693 + $0x8] sm:$0xff]
        %v1696 = vld [vmem:[%s1693 + $0x10] sm:$0xff]
        %v1697 = vld [vmem:[%s1693 + $0x18] sm:$0xff]
        %v1698 = vld [vmem:[%s1693 + $0x20] sm:$0xff]
        %v1699 = vld [vmem:[%s1693 + $0x28] sm:$0xff]
        %v1700 = vld [vmem:[%s1693 + $0x30] sm:$0xff]
        %v1701 = vld [vmem:[%s1693 + $0x38] sm:$0xff]
        %v1710 = vunpack.c.l.b16 %v1694
        %v1711 = vunpack.c.h.b16 %v1694
        %v1712 = vunpack.c.l.b16 %v1695
        %v1713 = vunpack.c.h.b16 %v1695
        %v1714 = vunpack.c.l.b16 %v1696
        %v1715 = vunpack.c.h.b16 %v1696
        %v1716 = vunpack.c.l.b16 %v1697
        %v1717 = vunpack.c.h.b16 %v1697
        %v1718 = vunpack.c.l.b16 %v1698
        %v1719 = vunpack.c.h.b16 %v1698
        %v1720 = vunpack.c.l.b16 %v1699
        %v1721 = vunpack.c.h.b16 %v1699
        %v1722 = vunpack.c.l.b16 %v1700
        %v1723 = vunpack.c.h.b16 %v1700
        %v1724 = vunpack.c.l.b16 %v1701
        %v1725 = vunpack.c.h.b16 %v1701
        %v1726 = vpack.c.b16 %v1712, %v1710
        %v1727 = vpack.c.b16 %v1713, %v1711
        %v1728 = vpack.c.b16 %v1716, %v1714
        %v1729 = vpack.c.b16 %v1717, %v1715
        %v1730 = vpack.c.b16 %v1720, %v1718
        %v1731 = vpack.c.b16 %v1721, %v1719
        %v1732 = vpack.c.b16 %v1724, %v1722
        %v1733 = vpack.c.b16 %v1725, %v1723
        %1742 = vmatprep.subr.bf16.mxu0 0
        %1743 = vmatpush1.bf16.msra.mxu0 %v1001
        %1744 = vmatprep.subr.bf16.mxu0 0
        %1745 = vmatpush1.bf16.msra.mxu0 %v1000
        %1746 = vmatprep.subr.bf16.mxu0 0
        %1747 = vmatpush1.bf16.msra.mxu0 %v999
        %1748 = vmatprep.subr.bf16.mxu0 0
        %1749 = vmatpush1.bf16.msra.mxu0 %v998
        %1750 = vmatprep.subr.bf16.mxu0 0
        %1751 = vmatpush1.bf16.msra.mxu0 %v997
        %1752 = vmatprep.subr.bf16.mxu0 0
        %1753 = vmatpush1.bf16.msra.mxu0 %v996
        %1754 = vmatprep.subr.bf16.mxu0 0
        %1755 = vmatpush1.bf16.msra.mxu0 %v995
        %1756 = vmatprep.subr.bf16.mxu0 0
        %1757 = vmatpush1.bf16.msra.mxu0 %v994
        %1758 = vmatprep.subr.bf16.mxu0 0
        %1759 = vmatpush2.bf16.msra.mxu0 %v1009
        %1760 = vmatprep.subr.bf16.mxu0 0
        %1761 = vmatpush2.bf16.msra.mxu0 %v1008
        %1762 = vmatprep.subr.bf16.mxu0 0
        %1763 = vmatpush2.bf16.msra.mxu0 %v1007
        %1764 = vmatprep.subr.bf16.mxu0 0
        %1765 = vmatpush2.bf16.msra.mxu0 %v1006
        %1766 = vmatprep.subr.bf16.mxu0 0
        %1767 = vmatpush2.bf16.msra.mxu0 %v1005
        %1768 = vmatprep.subr.bf16.mxu0 0
        %1769 = vmatpush2.bf16.msra.mxu0 %v1004
        %1770 = vmatprep.subr.bf16.mxu0 0
        %1771 = vmatpush2.bf16.msra.mxu0 %v1003
        %1772 = vmatprep.subr.bf16.mxu0 0
        %1773 = vmatpush2.bf16.msra.mxu0 %v1002
        %1774 = vmatprep.mubr.bf16.mxu0 %v1727
        %1775 = vmatmul.mubr.bf16.gmra.mxu0 %v1726
        %v1776 = vpop.f32.mrf.mxu0
        %v1777 = vadd.f32 0.0, %v1776
        %v1778 = vpop.f32.mrf.mxu0
        %v1779 = vpop.f32.mrf.mxu0
        %v1780 = vadd.f32 0.0, %v1779
        %v1781 = vpop.f32.mrf.mxu0
        %1782 = vmatprep.mubr.bf16.mxu0 %v1729
        %1783 = vmatmul.mubr.bf16.gmra.mxu0 %v1728
        %v1784 = vpop.f32.mrf.mxu0
        %v1785 = vadd.f32 0.0, %v1784
        %v1786 = vpop.f32.mrf.mxu0
        %v1787 = vpop.f32.mrf.mxu0
        %v1788 = vadd.f32 0.0, %v1787
        %v1789 = vpop.f32.mrf.mxu0
        %1790 = vmatprep.mubr.bf16.mxu0 %v1731
        %1791 = vmatmul.mubr.bf16.gmra.mxu0 %v1730
        %v1792 = vpop.f32.mrf.mxu0
        %v1793 = vadd.f32 0.0, %v1792
        %v1794 = vpop.f32.mrf.mxu0
        %v1795 = vpop.f32.mrf.mxu0
        %v1796 = vadd.f32 0.0, %v1795
        %v1797 = vpop.f32.mrf.mxu0
        %1798 = vmatprep.mubr.bf16.mxu0 %v1733
        %1799 = vmatmul.mubr.bf16.gmra.mxu0 %v1732
        %v1800 = vpop.f32.mrf.mxu0
        %v1801 = vadd.f32 0.0, %v1800
        %v1802 = vpop.f32.mrf.mxu0
        %v1803 = vpop.f32.mrf.mxu0
        %v1804 = vadd.f32 0.0, %v1803
        %v1805 = vpop.f32.mrf.mxu0
        %1806 = vdwg.mxu0
        %s1807 = scalar_lea.vmem [#allocation16], 448
        %v1808 = vld [vmem:[%s1807] sm:$0xff]
        %v1809 = vld [vmem:[%s1807 + $0x8] sm:$0xff]
        %v1810 = vld [vmem:[%s1807 + $0x10] sm:$0xff]
        %v1811 = vld [vmem:[%s1807 + $0x18] sm:$0xff]
        %v1812 = vld [vmem:[%s1807 + $0x20] sm:$0xff]
        %v1813 = vld [vmem:[%s1807 + $0x28] sm:$0xff]
        %v1814 = vld [vmem:[%s1807 + $0x30] sm:$0xff]
        %v1815 = vld [vmem:[%s1807 + $0x38] sm:$0xff]
        %v1824 = vunpack.c.l.b16 %v1808
        %v1825 = vunpack.c.h.b16 %v1808
        %v1826 = vunpack.c.l.b16 %v1809
        %v1827 = vunpack.c.h.b16 %v1809
        %v1828 = vunpack.c.l.b16 %v1810
        %v1829 = vunpack.c.h.b16 %v1810
        %v1830 = vunpack.c.l.b16 %v1811
        %v1831 = vunpack.c.h.b16 %v1811
        %v1832 = vunpack.c.l.b16 %v1812
        %v1833 = vunpack.c.h.b16 %v1812
        %v1834 = vunpack.c.l.b16 %v1813
        %v1835 = vunpack.c.h.b16 %v1813
        %v1836 = vunpack.c.l.b16 %v1814
        %v1837 = vunpack.c.h.b16 %v1814
        %v1838 = vunpack.c.l.b16 %v1815
        %v1839 = vunpack.c.h.b16 %v1815
        %v1840 = vpack.c.b16 %v1826, %v1824
        %v1841 = vpack.c.b16 %v1827, %v1825
        %v1842 = vpack.c.b16 %v1830, %v1828
        %v1843 = vpack.c.b16 %v1831, %v1829
        %v1844 = vpack.c.b16 %v1834, %v1832
        %v1845 = vpack.c.b16 %v1835, %v1833
        %v1846 = vpack.c.b16 %v1838, %v1836
        %v1847 = vpack.c.b16 %v1839, %v1837
        %1856 = vmatprep.subr.bf16.mxu0 0
        %1857 = vmatpush1.bf16.msra.mxu0 %v1001
        %1858 = vmatprep.subr.bf16.mxu0 0
        %1859 = vmatpush1.bf16.msra.mxu0 %v1000
        %1860 = vmatprep.subr.bf16.mxu0 0
        %1861 = vmatpush1.bf16.msra.mxu0 %v999
        %1862 = vmatprep.subr.bf16.mxu0 0
        %1863 = vmatpush1.bf16.msra.mxu0 %v998
        %1864 = vmatprep.subr.bf16.mxu0 0
        %1865 = vmatpush1.bf16.msra.mxu0 %v997
        %1866 = vmatprep.subr.bf16.mxu0 0
        %1867 = vmatpush1.bf16.msra.mxu0 %v996
        %1868 = vmatprep.subr.bf16.mxu0 0
        %1869 = vmatpush1.bf16.msra.mxu0 %v995
        %1870 = vmatprep.subr.bf16.mxu0 0
        %1871 = vmatpush1.bf16.msra.mxu0 %v994
        %1872 = vmatprep.subr.bf16.mxu0 0
        %1873 = vmatpush2.bf16.msra.mxu0 %v1009
        %1874 = vmatprep.subr.bf16.mxu0 0
        %1875 = vmatpush2.bf16.msra.mxu0 %v1008
        %1876 = vmatprep.subr.bf16.mxu0 0
        %1877 = vmatpush2.bf16.msra.mxu0 %v1007
        %1878 = vmatprep.subr.bf16.mxu0 0
        %1879 = vmatpush2.bf16.msra.mxu0 %v1006
        %1880 = vmatprep.subr.bf16.mxu0 0
        %1881 = vmatpush2.bf16.msra.mxu0 %v1005
        %1882 = vmatprep.subr.bf16.mxu0 0
        %1883 = vmatpush2.bf16.msra.mxu0 %v1004
        %1884 = vmatprep.subr.bf16.mxu0 0
        %1885 = vmatpush2.bf16.msra.mxu0 %v1003
        %1886 = vmatprep.subr.bf16.mxu0 0
        %1887 = vmatpush2.bf16.msra.mxu0 %v1002
        %1888 = vmatprep.mubr.bf16.mxu0 %v1841
        %1889 = vmatmul.mubr.bf16.gmra.mxu0 %v1840
        %v1890 = vpop.f32.mrf.mxu0
        %v1891 = vadd.f32 0.0, %v1890
        %v1892 = vpop.f32.mrf.mxu0
        %v1893 = vpop.f32.mrf.mxu0
        %v1894 = vadd.f32 0.0, %v1893
        %v1895 = vpop.f32.mrf.mxu0
        %1896 = vmatprep.mubr.bf16.mxu0 %v1843
        %1897 = vmatmul.mubr.bf16.gmra.mxu0 %v1842
        %v1898 = vpop.f32.mrf.mxu0
        %v1899 = vadd.f32 0.0, %v1898
        %v1900 = vpop.f32.mrf.mxu0
        %v1901 = vpop.f32.mrf.mxu0
        %v1902 = vadd.f32 0.0, %v1901
        %v1903 = vpop.f32.mrf.mxu0
        %1904 = vmatprep.mubr.bf16.mxu0 %v1845
        %1905 = vmatmul.mubr.bf16.gmra.mxu0 %v1844
        %v1906 = vpop.f32.mrf.mxu0
        %v1907 = vadd.f32 0.0, %v1906
        %v1908 = vpop.f32.mrf.mxu0
        %v1909 = vpop.f32.mrf.mxu0
        %v1910 = vadd.f32 0.0, %v1909
        %v1911 = vpop.f32.mrf.mxu0
        %1912 = vmatprep.mubr.bf16.mxu0 %v1847
        %1913 = vmatmul.mubr.bf16.gmra.mxu0 %v1846
        %v1914 = vpop.f32.mrf.mxu0
        %v1915 = vadd.f32 0.0, %v1914
        %v1916 = vpop.f32.mrf.mxu0
        %v1917 = vpop.f32.mrf.mxu0
        %v1918 = vadd.f32 0.0, %v1917
        %v1919 = vpop.f32.mrf.mxu0
        %1920 = vdwg.mxu0
        %s1921 = scalar_lea.vmem [#allocation16], 512
        %v1922 = vld [vmem:[%s1921] sm:$0xff]
        %v1923 = vld [vmem:[%s1921 + $0x8] sm:$0xff]
        %v1924 = vld [vmem:[%s1921 + $0x10] sm:$0xff]
        %v1925 = vld [vmem:[%s1921 + $0x18] sm:$0xff]
        %v1926 = vld [vmem:[%s1921 + $0x20] sm:$0xff]
        %v1927 = vld [vmem:[%s1921 + $0x28] sm:$0xff]
        %v1928 = vld [vmem:[%s1921 + $0x30] sm:$0xff]
        %v1929 = vld [vmem:[%s1921 + $0x38] sm:$0xff]
        %v1938 = vunpack.c.l.b16 %v1922
        %v1939 = vunpack.c.h.b16 %v1922
        %v1940 = vunpack.c.l.b16 %v1923
        %v1941 = vunpack.c.h.b16 %v1923
        %v1942 = vunpack.c.l.b16 %v1924
        %v1943 = vunpack.c.h.b16 %v1924
        %v1944 = vunpack.c.l.b16 %v1925
        %v1945 = vunpack.c.h.b16 %v1925
        %v1946 = vunpack.c.l.b16 %v1926
        %v1947 = vunpack.c.h.b16 %v1926
        %v1948 = vunpack.c.l.b16 %v1927
        %v1949 = vunpack.c.h.b16 %v1927
        %v1950 = vunpack.c.l.b16 %v1928
        %v1951 = vunpack.c.h.b16 %v1928
        %v1952 = vunpack.c.l.b16 %v1929
        %v1953 = vunpack.c.h.b16 %v1929
        %v1954 = vpack.c.b16 %v1940, %v1938
        %v1955 = vpack.c.b16 %v1941, %v1939
        %v1956 = vpack.c.b16 %v1944, %v1942
        %v1957 = vpack.c.b16 %v1945, %v1943
        %v1958 = vpack.c.b16 %v1948, %v1946
        %v1959 = vpack.c.b16 %v1949, %v1947
        %v1960 = vpack.c.b16 %v1952, %v1950
        %v1961 = vpack.c.b16 %v1953, %v1951
        %1970 = vmatprep.subr.bf16.mxu0 0
        %1971 = vmatpush1.bf16.msra.mxu0 %v1001
        %1972 = vmatprep.subr.bf16.mxu0 0
        %1973 = vmatpush1.bf16.msra.mxu0 %v1000
        %1974 = vmatprep.subr.bf16.mxu0 0
        %1975 = vmatpush1.bf16.msra.mxu0 %v999
        %1976 = vmatprep.subr.bf16.mxu0 0
        %1977 = vmatpush1.bf16.msra.mxu0 %v998
        %1978 = vmatprep.subr.bf16.mxu0 0
        %1979 = vmatpush1.bf16.msra.mxu0 %v997
        %1980 = vmatprep.subr.bf16.mxu0 0
        %1981 = vmatpush1.bf16.msra.mxu0 %v996
        %1982 = vmatprep.subr.bf16.mxu0 0
        %1983 = vmatpush1.bf16.msra.mxu0 %v995
        %1984 = vmatprep.subr.bf16.mxu0 0
        %1985 = vmatpush1.bf16.msra.mxu0 %v994
        %1986 = vmatprep.subr.bf16.mxu0 0
        %1987 = vmatpush2.bf16.msra.mxu0 %v1009
        %1988 = vmatprep.subr.bf16.mxu0 0
        %1989 = vmatpush2.bf16.msra.mxu0 %v1008
        %1990 = vmatprep.subr.bf16.mxu0 0
        %1991 = vmatpush2.bf16.msra.mxu0 %v1007
        %1992 = vmatprep.subr.bf16.mxu0 0
        %1993 = vmatpush2.bf16.msra.mxu0 %v1006
        %1994 = vmatprep.subr.bf16.mxu0 0
        %1995 = vmatpush2.bf16.msra.mxu0 %v1005
        %1996 = vmatprep.subr.bf16.mxu0 0
        %1997 = vmatpush2.bf16.msra.mxu0 %v1004
        %1998 = vmatprep.subr.bf16.mxu0 0
        %1999 = vmatpush2.bf16.msra.mxu0 %v1003
        %2000 = vmatprep.subr.bf16.mxu0 0
        %2001 = vmatpush2.bf16.msra.mxu0 %v1002
        %2002 = vmatprep.mubr.bf16.mxu0 %v1955
        %2003 = vmatmul.mubr.bf16.gmra.mxu0 %v1954
        %v2004 = vpop.f32.mrf.mxu0
        %v2005 = vadd.f32 0.0, %v2004
        %v2006 = vpop.f32.mrf.mxu0
        %v2007 = vpop.f32.mrf.mxu0
        %v2008 = vadd.f32 0.0, %v2007
        %v2009 = vpop.f32.mrf.mxu0
        %2010 = vmatprep.mubr.bf16.mxu0 %v1957
        %2011 = vmatmul.mubr.bf16.gmra.mxu0 %v1956
        %v2012 = vpop.f32.mrf.mxu0
        %v2013 = vadd.f32 0.0, %v2012
        %v2014 = vpop.f32.mrf.mxu0
        %v2015 = vpop.f32.mrf.mxu0
        %v2016 = vadd.f32 0.0, %v2015
        %v2017 = vpop.f32.mrf.mxu0
        %2018 = vmatprep.mubr.bf16.mxu0 %v1959
        %2019 = vmatmul.mubr.bf16.gmra.mxu0 %v1958
        %v2020 = vpop.f32.mrf.mxu0
        %v2021 = vadd.f32 0.0, %v2020
        %v2022 = vpop.f32.mrf.mxu0
        %v2023 = vpop.f32.mrf.mxu0
        %v2024 = vadd.f32 0.0, %v2023
        %v2025 = vpop.f32.mrf.mxu0
        %2026 = vmatprep.mubr.bf16.mxu0 %v1961
        %2027 = vmatmul.mubr.bf16.gmra.mxu0 %v1960
        %v2028 = vpop.f32.mrf.mxu0
        %v2029 = vadd.f32 0.0, %v2028
        %v2030 = vpop.f32.mrf.mxu0
        %v2031 = vpop.f32.mrf.mxu0
        %v2032 = vadd.f32 0.0, %v2031
        %v2033 = vpop.f32.mrf.mxu0
        %2034 = vdwg.mxu0
        %2043 = vrot.lane.b32.xlu0 %v1207, 64
        %v2044 = vpop.permute.xlu0 %2043
        %2045 = vrot.lane.b32.xlu0 %v1210, 64
        %v2046 = vpop.permute.xlu0 %2045
        %2047 = vrot.lane.b32.xlu0 %v1215, 64
        %v2048 = vpop.permute.xlu0 %2047
        %2049 = vrot.lane.b32.xlu0 %v1218, 64
        %v2050 = vpop.permute.xlu0 %2049
        %2051 = vrot.lane.b32.xlu0 %v1223, 64
        %v2052 = vpop.permute.xlu0 %2051
        %2053 = vrot.lane.b32.xlu0 %v1226, 64
        %v2054 = vpop.permute.xlu0 %2053
        %2055 = vrot.lane.b32.xlu0 %v1231, 64
        %v2056 = vpop.permute.xlu0 %2055
        %2057 = vrot.lane.b32.xlu0 %v1234, 64
        %v2058 = vpop.permute.xlu0 %2057
        %2075 = vrot.lane.b32.xlu0 %v1435, 64
        %v2076 = vpop.permute.xlu0 %2075
        %2077 = vrot.lane.b32.xlu0 %v1438, 64
        %v2078 = vpop.permute.xlu0 %2077
        %2079 = vrot.lane.b32.xlu0 %v1443, 64
        %v2080 = vpop.permute.xlu0 %2079
        %2081 = vrot.lane.b32.xlu0 %v1446, 64
        %v2082 = vpop.permute.xlu0 %2081
        %2083 = vrot.lane.b32.xlu0 %v1451, 64
        %v2084 = vpop.permute.xlu0 %2083
        %2085 = vrot.lane.b32.xlu0 %v1454, 64
        %v2086 = vpop.permute.xlu0 %2085
        %2087 = vrot.lane.b32.xlu0 %v1459, 64
        %v2088 = vpop.permute.xlu0 %2087
        %2089 = vrot.lane.b32.xlu0 %v1462, 64
        %v2090 = vpop.permute.xlu0 %2089
        %2107 = vrot.lane.b32.xlu0 %v1663, 64
        %v2108 = vpop.permute.xlu0 %2107
        %2109 = vrot.lane.b32.xlu0 %v1666, 64
        %v2110 = vpop.permute.xlu0 %2109
        %2111 = vrot.lane.b32.xlu0 %v1671, 64
        %v2112 = vpop.permute.xlu0 %2111
        %2113 = vrot.lane.b32.xlu0 %v1674, 64
        %v2114 = vpop.permute.xlu0 %2113
        %2115 = vrot.lane.b32.xlu0 %v1679, 64
        %v2116 = vpop.permute.xlu0 %2115
        %2117 = vrot.lane.b32.xlu0 %v1682, 64
        %v2118 = vpop.permute.xlu0 %2117
        %2119 = vrot.lane.b32.xlu0 %v1687, 64
        %v2120 = vpop.permute.xlu0 %2119
        %2121 = vrot.lane.b32.xlu0 %v1690, 64
        %v2122 = vpop.permute.xlu0 %2121
        %2139 = vrot.lane.b32.xlu0 %v1891, 64
        %v2140 = vpop.permute.xlu0 %2139
        %2141 = vrot.lane.b32.xlu0 %v1894, 64
        %v2142 = vpop.permute.xlu0 %2141
        %2143 = vrot.lane.b32.xlu0 %v1899, 64
        %v2144 = vpop.permute.xlu0 %2143
        %2145 = vrot.lane.b32.xlu0 %v1902, 64
        %v2146 = vpop.permute.xlu0 %2145
        %2147 = vrot.lane.b32.xlu0 %v1907, 64
        %v2148 = vpop.permute.xlu0 %2147
        %2149 = vrot.lane.b32.xlu0 %v1910, 64
        %v2150 = vpop.permute.xlu0 %2149
        %2151 = vrot.lane.b32.xlu0 %v1915, 64
        %v2152 = vpop.permute.xlu0 %2151
        %2153 = vrot.lane.b32.xlu0 %v1918, 64
        %v2154 = vpop.permute.xlu0 %2153
        %vm2163 = vcmask 523264
        %v2164 = vsel %vm2163, %v1093, %v2044
        %v2165 = vsel %vm2163, %v1096, %v2046
        %v2166 = vsel %vm2163, %v1101, %v2048
        %v2167 = vsel %vm2163, %v1104, %v2050
        %v2168 = vsel %vm2163, %v1109, %v2052
        %v2169 = vsel %vm2163, %v1112, %v2054
        %v2170 = vsel %vm2163, %v1117, %v2056
        %v2171 = vsel %vm2163, %v1120, %v2058
        %v2172 = vsel %vm2163, %v1321, %v2076
        %v2173 = vsel %vm2163, %v1324, %v2078
        %v2174 = vsel %vm2163, %v1329, %v2080
        %v2175 = vsel %vm2163, %v1332, %v2082
        %v2176 = vsel %vm2163, %v1337, %v2084
        %v2177 = vsel %vm2163, %v1340, %v2086
        %v2178 = vsel %vm2163, %v1345, %v2088
        %v2179 = vsel %vm2163, %v1348, %v2090
        %v2180 = vsel %vm2163, %v1549, %v2108
        %v2181 = vsel %vm2163, %v1552, %v2110
        %v2182 = vsel %vm2163, %v1557, %v2112
        %v2183 = vsel %vm2163, %v1560, %v2114
        %v2184 = vsel %vm2163, %v1565, %v2116
        %v2185 = vsel %vm2163, %v1568, %v2118
        %v2186 = vsel %vm2163, %v1573, %v2120
        %v2187 = vsel %vm2163, %v1576, %v2122
        %v2188 = vsel %vm2163, %v1777, %v2140
        %v2189 = vsel %vm2163, %v1780, %v2142
        %v2190 = vsel %vm2163, %v1785, %v2144
        %v2191 = vsel %vm2163, %v1788, %v2146
        %v2192 = vsel %vm2163, %v1793, %v2148
        %v2193 = vsel %vm2163, %v1796, %v2150
        %v2194 = vsel %vm2163, %v1801, %v2152
        %v2195 = vsel %vm2163, %v1804, %v2154
        %v2196 = vpack.c.bf16 %v2165, %v2164
        %v2197 = vpack.c.bf16 %v2173, %v2172
        %v2198 = vpack.c.bf16 %v2181, %v2180
        %v2199 = vpack.c.bf16 %v2189, %v2188
        %v2200 = vpack.c.bf16 %v2008, %v2005
        %v2201 = vpack.c.bf16 %v2167, %v2166
        %v2202 = vpack.c.bf16 %v2175, %v2174
        %v2203 = vpack.c.bf16 %v2183, %v2182
        %v2204 = vpack.c.bf16 %v2191, %v2190
        %v2205 = vpack.c.bf16 %v2016, %v2013
        %v2206 = vpack.c.bf16 %v2169, %v2168
        %v2207 = vpack.c.bf16 %v2177, %v2176
        %v2208 = vpack.c.bf16 %v2185, %v2184
        %v2209 = vpack.c.bf16 %v2193, %v2192
        %v2210 = vpack.c.bf16 %v2024, %v2021
        %v2211 = vpack.c.bf16 %v2171, %v2170
        %v2212 = vpack.c.bf16 %v2179, %v2178
        %v2213 = vpack.c.bf16 %v2187, %v2186
        %v2214 = vpack.c.bf16 %v2195, %v2194
        %v2215 = vpack.c.bf16 %v2032, %v2029
        %v2216 = vld [vmem:[#allocation7] sm:$0xf]
        %v2217 = vld [vmem:[#allocation7 + $0x4] sm:$0xf]
        %v2218 = vld [vmem:[#allocation7 + $0x8] sm:$0xf]
        %v2219 = vld [vmem:[#allocation7 + $0xc] sm:$0xf]
        %v2220 = vld [vmem:[#allocation7 + $0x10] sm:$0xf]
        %v2221 = vld [vmem:[#allocation7 + $0x14] sm:$0xf]
        %v2222 = vld [vmem:[#allocation7 + $0x18] sm:$0xf]
        %v2223 = vld [vmem:[#allocation7 + $0x1c] sm:$0xf]
        %v2224 = vld [vmem:[#allocation7 + $0x20] sm:$0xf]
        %v2225 = vld [vmem:[#allocation7 + $0x24] sm:$0xf]
        %v2226 = vld [vmem:[#allocation7 + $0x28] sm:$0xf]
        %v2227 = vld [vmem:[#allocation7 + $0x2c] sm:$0xf]
        %v2228 = vld [vmem:[#allocation7 + $0x30] sm:$0xf]
        %v2229 = vld [vmem:[#allocation7 + $0x34] sm:$0xf]
        %v2230 = vld [vmem:[#allocation7 + $0x38] sm:$0xf]
        %v2231 = vld [vmem:[#allocation7 + $0x3c] sm:$0xf]
        %v2232 = vld [vmem:[#allocation7 + $0x40] sm:$0xf]
        %v2233 = vld [vmem:[#allocation7 + $0x44] sm:$0xf]
        %v2234 = vld [vmem:[#allocation7 + $0x48] sm:$0xf]
        %v2235 = vld [vmem:[#allocation7 + $0x4c] sm:$0xf]
        %v2236 = vld [vmem:[#allocation7 + $0x50] sm:$0xf]
        %v2237 = vld [vmem:[#allocation7 + $0x54] sm:$0xf]
        %v2238 = vld [vmem:[#allocation7 + $0x58] sm:$0xf]
        %v2239 = vld [vmem:[#allocation7 + $0x5c] sm:$0xf]
        %v2240 = vld [vmem:[#allocation7 + $0x60] sm:$0xf]
        %v2241 = vld [vmem:[#allocation7 + $0x64] sm:$0xf]
        %v2242 = vld [vmem:[#allocation7 + $0x68] sm:$0xf]
        %v2243 = vld [vmem:[#allocation7 + $0x6c] sm:$0xf]
        %v2244 = vld [vmem:[#allocation7 + $0x70] sm:$0xf]
        %v2245 = vld [vmem:[#allocation7 + $0x74] sm:$0xf]
        %v2246 = vld [vmem:[#allocation7 + $0x78] sm:$0xf]
        %v2247 = vld [vmem:[#allocation7 + $0x7c] sm:$0xf]
        %v2248 = vld [vmem:[#allocation7 + $0x80] sm:$0xf]
        %v2249 = vld [vmem:[#allocation7 + $0x84] sm:$0xf]
        %v2250 = vld [vmem:[#allocation7 + $0x88] sm:$0xf]
        %v2251 = vld [vmem:[#allocation7 + $0x8c] sm:$0xf]
        %v2252 = vld [vmem:[#allocation7 + $0x90] sm:$0xf]
        %v2253 = vld [vmem:[#allocation7 + $0x94] sm:$0xf]
        %v2254 = vld [vmem:[#allocation7 + $0x98] sm:$0xf]
        %v2255 = vld [vmem:[#allocation7 + $0x9c] sm:$0xf]
        %v2256 = vld [vmem:[#allocation7 + $0xa0] sm:$0xf]
        %v2257 = vld [vmem:[#allocation7 + $0xa4] sm:$0xf]
        %v2258 = vld [vmem:[#allocation7 + $0xa8] sm:$0xf]
        %v2259 = vld [vmem:[#allocation7 + $0xac] sm:$0xf]
        %v2260 = vld [vmem:[#allocation7 + $0xb0] sm:$0xf]
        %v2261 = vld [vmem:[#allocation7 + $0xb4] sm:$0xf]
        %v2262 = vld [vmem:[#allocation7 + $0xb8] sm:$0xf]
        %v2263 = vld [vmem:[#allocation7 + $0xbc] sm:$0xf]
        %v2264 = vld [vmem:[#allocation7 + $0xc0] sm:$0xf]
        %v2265 = vld [vmem:[#allocation7 + $0xc4] sm:$0xf]
        %v2266 = vld [vmem:[#allocation7 + $0xc8] sm:$0xf]
        %v2267 = vld [vmem:[#allocation7 + $0xcc] sm:$0xf]
        %v2268 = vld [vmem:[#allocation7 + $0xd0] sm:$0xf]
        %v2269 = vld [vmem:[#allocation7 + $0xd4] sm:$0xf]
        %v2270 = vld [vmem:[#allocation7 + $0xd8] sm:$0xf]
        %v2271 = vld [vmem:[#allocation7 + $0xdc] sm:$0xf]
        %v2272 = vld [vmem:[#allocation7 + $0xe0] sm:$0xf]
        %v2273 = vld [vmem:[#allocation7 + $0xe4] sm:$0xf]
        %v2274 = vld [vmem:[#allocation7 + $0xe8] sm:$0xf]
        %v2275 = vld [vmem:[#allocation7 + $0xec] sm:$0xf]
        %v2276 = vld [vmem:[#allocation7 + $0xf0] sm:$0xf]
        %v2277 = vld [vmem:[#allocation7 + $0xf4] sm:$0xf]
        %v2278 = vld [vmem:[#allocation7 + $0xf8] sm:$0xf]
        %v2279 = vld [vmem:[#allocation7 + $0xfc] sm:$0xf]
        %v2280 = vld [vmem:[#allocation7 + $0x100] sm:$0xf]
        %v2281 = vld [vmem:[#allocation7 + $0x104] sm:$0xf]
        %v2282 = vld [vmem:[#allocation7 + $0x108] sm:$0xf]
        %v2283 = vld [vmem:[#allocation7 + $0x10c] sm:$0xf]
        %v2284 = vld [vmem:[#allocation7 + $0x110] sm:$0xf]
        %v2285 = vld [vmem:[#allocation7 + $0x114] sm:$0xf]
        %v2286 = vld [vmem:[#allocation7 + $0x118] sm:$0xf]
        %v2287 = vld [vmem:[#allocation7 + $0x11c] sm:$0xf]
        %v2288 = vld [vmem:[#allocation8] sm:$0x1]
        %v2290 = vlaneseq
        %v2291 = vshrl.u32 %v2290, 7
        %v2292 = vsub.s32 0, %v2291
        %v2293 = vrot.slane %v2288, %v2292
        %v2367 = vunpack.c.l.b16 %v2216
        %v2368 = vunpack.c.l.b16 %v2217
        %v2369 = vunpack.c.l.b16 %v2218
        %v2370 = vunpack.c.l.b16 %v2219
        %v2371 = vunpack.c.l.b16 %v2220
        %v2372 = vunpack.c.l.b16 %v2221
        %v2373 = vunpack.c.l.b16 %v2222
        %v2374 = vunpack.c.l.b16 %v2223
        %v2375 = vunpack.c.l.b16 %v2224
        %v2376 = vunpack.c.l.b16 %v2225
        %v2377 = vunpack.c.l.b16 %v2226
        %v2378 = vunpack.c.l.b16 %v2227
        %v2379 = vunpack.c.l.b16 %v2228
        %v2380 = vunpack.c.l.b16 %v2229
        %v2381 = vunpack.c.l.b16 %v2230
        %v2382 = vunpack.c.l.b16 %v2231
        %v2383 = vunpack.c.l.b16 %v2232
        %v2384 = vunpack.c.l.b16 %v2233
        %v2385 = vunpack.c.l.b16 %v2234
        %v2386 = vunpack.c.l.b16 %v2235
        %v2387 = vunpack.c.l.b16 %v2236
        %v2388 = vunpack.c.l.b16 %v2237
        %v2389 = vunpack.c.l.b16 %v2238
        %v2390 = vunpack.c.l.b16 %v2239
        %v2391 = vunpack.c.l.b16 %v2240
        %v2392 = vunpack.c.l.b16 %v2241
        %v2393 = vunpack.c.l.b16 %v2242
        %v2394 = vunpack.c.l.b16 %v2243
        %v2395 = vunpack.c.l.b16 %v2244
        %v2396 = vunpack.c.l.b16 %v2245
        %v2397 = vunpack.c.l.b16 %v2246
        %v2398 = vunpack.c.l.b16 %v2247
        %v2399 = vunpack.c.l.b16 %v2248
        %v2400 = vunpack.c.l.b16 %v2249
        %v2401 = vunpack.c.l.b16 %v2250
        %v2402 = vunpack.c.l.b16 %v2251
        %v2403 = vunpack.c.l.b16 %v2252
        %v2404 = vunpack.c.l.b16 %v2253
        %v2405 = vunpack.c.l.b16 %v2254
        %v2406 = vunpack.c.l.b16 %v2255
        %v2407 = vunpack.c.l.b16 %v2256
        %v2408 = vunpack.c.l.b16 %v2257
        %v2409 = vunpack.c.l.b16 %v2258
        %v2410 = vunpack.c.l.b16 %v2259
        %v2411 = vunpack.c.l.b16 %v2260
        %v2412 = vunpack.c.l.b16 %v2261
        %v2413 = vunpack.c.l.b16 %v2262
        %v2414 = vunpack.c.l.b16 %v2263
        %v2415 = vunpack.c.l.b16 %v2264
        %v2416 = vunpack.c.l.b16 %v2265
        %v2417 = vunpack.c.l.b16 %v2266
        %v2418 = vunpack.c.l.b16 %v2267
        %v2419 = vunpack.c.l.b16 %v2268
        %v2420 = vunpack.c.l.b16 %v2269
        %v2421 = vunpack.c.l.b16 %v2270
        %v2422 = vunpack.c.l.b16 %v2271
        %v2423 = vunpack.c.l.b16 %v2272
        %v2424 = vunpack.c.l.b16 %v2273
        %v2425 = vunpack.c.l.b16 %v2274
        %v2426 = vunpack.c.l.b16 %v2275
        %v2427 = vunpack.c.l.b16 %v2276
        %v2428 = vunpack.c.l.b16 %v2277
        %v2429 = vunpack.c.l.b16 %v2278
        %v2430 = vunpack.c.l.b16 %v2279
        %v2431 = vunpack.c.l.b16 %v2280
        %v2432 = vunpack.c.l.b16 %v2281
        %v2433 = vunpack.c.l.b16 %v2282
        %v2434 = vunpack.c.l.b16 %v2283
        %v2435 = vunpack.c.l.b16 %v2284
        %v2436 = vunpack.c.l.b16 %v2285
        %v2437 = vunpack.c.l.b16 %v2286
        %v2438 = vunpack.c.l.b16 %v2287
        %v2439 = vpack.c.b16 %v2368, %v2367
        %v2440 = vpack.c.b16 %v2370, %v2369
        %v2441 = vpack.c.b16 %v2372, %v2371
        %v2442 = vpack.c.b16 %v2374, %v2373
        %v2443 = vpack.c.b16 %v2376, %v2375
        %v2444 = vpack.c.b16 %v2378, %v2377
        %v2445 = vpack.c.b16 %v2380, %v2379
        %v2446 = vpack.c.b16 %v2382, %v2381
        %v2447 = vpack.c.b16 %v2384, %v2383
        %v2448 = vpack.c.b16 %v2386, %v2385
        %v2449 = vpack.c.b16 %v2388, %v2387
        %v2450 = vpack.c.b16 %v2390, %v2389
        %v2451 = vpack.c.b16 %v2392, %v2391
        %v2452 = vpack.c.b16 %v2394, %v2393
        %v2453 = vpack.c.b16 %v2396, %v2395
        %v2454 = vpack.c.b16 %v2398, %v2397
        %v2455 = vpack.c.b16 %v2400, %v2399
        %v2456 = vpack.c.b16 %v2402, %v2401
        %v2457 = vpack.c.b16 %v2404, %v2403
        %v2458 = vpack.c.b16 %v2406, %v2405
        %v2459 = vpack.c.b16 %v2408, %v2407
        %v2460 = vpack.c.b16 %v2410, %v2409
        %v2461 = vpack.c.b16 %v2412, %v2411
        %v2462 = vpack.c.b16 %v2414, %v2413
        %v2463 = vpack.c.b16 %v2416, %v2415
        %v2464 = vpack.c.b16 %v2418, %v2417
        %v2465 = vpack.c.b16 %v2420, %v2419
        %v2466 = vpack.c.b16 %v2422, %v2421
        %v2467 = vpack.c.b16 %v2424, %v2423
        %v2468 = vpack.c.b16 %v2426, %v2425
        %v2469 = vpack.c.b16 %v2428, %v2427
        %v2470 = vpack.c.b16 %v2430, %v2429
        %v2471 = vpack.c.b16 %v2432, %v2431
        %v2472 = vpack.c.b16 %v2434, %v2433
        %v2473 = vpack.c.b16 %v2436, %v2435
        %v2474 = vpack.c.b16 %v2438, %v2437
        %v2512 = vsel %vm2163, %v2200, 0
        %v2515 = vsel %vm2163, %v2205, 0
        %v2518 = vsel %vm2163, %v2210, 0
        %v2521 = vsel %vm2163, %v2215, 0
        %2523 = vmatprep.subr.bf16.mxu0 0
        %2524 = vmatpush1.bf16.msra.mxu0 %v2446
        %2525 = vmatprep.subr.bf16.mxu0 0
        %2526 = vmatpush1.bf16.msra.mxu0 %v2445
        %2527 = vmatprep.subr.bf16.mxu0 0
        %2528 = vmatpush1.bf16.msra.mxu0 %v2444
        %2529 = vmatprep.subr.bf16.mxu0 0
        %2530 = vmatpush1.bf16.msra.mxu0 %v2443
        %2531 = vmatprep.subr.bf16.mxu0 0
        %2532 = vmatpush1.bf16.msra.mxu0 %v2442
        %2533 = vmatprep.subr.bf16.mxu0 0
        %2534 = vmatpush1.bf16.msra.mxu0 %v2441
        %2535 = vmatprep.subr.bf16.mxu0 0
        %2536 = vmatpush1.bf16.msra.mxu0 %v2440
        %2537 = vmatprep.subr.bf16.mxu0 0
        %2538 = vmatpush1.bf16.msra.mxu0 %v2439
        %2539 = vmatprep.subr.bf16.mxu0 0
        %2540 = vmatpush2.bf16.msra.mxu0 %v2454
        %2541 = vmatprep.subr.bf16.mxu0 0
        %2542 = vmatpush2.bf16.msra.mxu0 %v2453
        %2543 = vmatprep.subr.bf16.mxu0 0
        %2544 = vmatpush2.bf16.msra.mxu0 %v2452
        %2545 = vmatprep.subr.bf16.mxu0 0
        %2546 = vmatpush2.bf16.msra.mxu0 %v2451
        %2547 = vmatprep.subr.bf16.mxu0 0
        %2548 = vmatpush2.bf16.msra.mxu0 %v2450
        %2549 = vmatprep.subr.bf16.mxu0 0
        %2550 = vmatpush2.bf16.msra.mxu0 %v2449
        %2551 = vmatprep.subr.bf16.mxu0 0
        %2552 = vmatpush2.bf16.msra.mxu0 %v2448
        %2553 = vmatprep.subr.bf16.mxu0 0
        %2554 = vmatpush2.bf16.msra.mxu0 %v2447
        %2555 = vmatprep.mubr.bf16.mxu0 %v2197
        %2556 = vmatmul.mubr.bf16.gmra.mxu0 %v2196
        %v2557 = vpop.f32.mrf.mxu0
        %v2558 = vadd.f32 %v2293, %v2557
        %v2559 = vpop.f32.mrf.mxu0
        %v2560 = vpop.f32.mrf.mxu0
        %v2561 = vadd.f32 %v2293, %v2560
        %v2562 = vpop.f32.mrf.mxu0
        %2563 = vmatprep.mubr.bf16.mxu0 %v2202
        %2564 = vmatmul.mubr.bf16.gmra.mxu0 %v2201
        %v2565 = vpop.f32.mrf.mxu0
        %v2566 = vadd.f32 %v2293, %v2565
        %v2567 = vpop.f32.mrf.mxu0
        %v2568 = vpop.f32.mrf.mxu0
        %v2569 = vadd.f32 %v2293, %v2568
        %v2570 = vpop.f32.mrf.mxu0
        %2571 = vmatprep.mubr.bf16.mxu0 %v2207
        %2572 = vmatmul.mubr.bf16.gmra.mxu0 %v2206
        %v2573 = vpop.f32.mrf.mxu0
        %v2574 = vadd.f32 %v2293, %v2573
        %v2575 = vpop.f32.mrf.mxu0
        %v2576 = vpop.f32.mrf.mxu0
        %v2577 = vadd.f32 %v2293, %v2576
        %v2578 = vpop.f32.mrf.mxu0
        %2579 = vmatprep.mubr.bf16.mxu0 %v2212
        %2580 = vmatmul.mubr.bf16.gmra.mxu0 %v2211
        %v2581 = vpop.f32.mrf.mxu0
        %v2582 = vadd.f32 %v2293, %v2581
        %v2583 = vpop.f32.mrf.mxu0
        %v2584 = vpop.f32.mrf.mxu0
        %v2585 = vadd.f32 %v2293, %v2584
        %v2586 = vpop.f32.mrf.mxu0
        %2587 = vdwg.mxu0
        %2588 = vmatprep.subr.bf16.mxu0 0
        %2589 = vmatpush1.bf16.msra.mxu0 %v2462
        %2590 = vmatprep.subr.bf16.mxu0 0
        %2591 = vmatpush1.bf16.msra.mxu0 %v2461
        %2592 = vmatprep.subr.bf16.mxu0 0
        %2593 = vmatpush1.bf16.msra.mxu0 %v2460
        %2594 = vmatprep.subr.bf16.mxu0 0
        %2595 = vmatpush1.bf16.msra.mxu0 %v2459
        %2596 = vmatprep.subr.bf16.mxu0 0
        %2597 = vmatpush1.bf16.msra.mxu0 %v2458
        %2598 = vmatprep.subr.bf16.mxu0 0
        %2599 = vmatpush1.bf16.msra.mxu0 %v2457
        %2600 = vmatprep.subr.bf16.mxu0 0
        %2601 = vmatpush1.bf16.msra.mxu0 %v2456
        %2602 = vmatprep.subr.bf16.mxu0 0
        %2603 = vmatpush1.bf16.msra.mxu0 %v2455
        %2604 = vmatprep.subr.bf16.mxu0 0
        %2605 = vmatpush2.bf16.msra.mxu0 %v2470
        %2606 = vmatprep.subr.bf16.mxu0 0
        %2607 = vmatpush2.bf16.msra.mxu0 %v2469
        %2608 = vmatprep.subr.bf16.mxu0 0
        %2609 = vmatpush2.bf16.msra.mxu0 %v2468
        %2610 = vmatprep.subr.bf16.mxu0 0
        %2611 = vmatpush2.bf16.msra.mxu0 %v2467
        %2612 = vmatprep.subr.bf16.mxu0 0
        %2613 = vmatpush2.bf16.msra.mxu0 %v2466
        %2614 = vmatprep.subr.bf16.mxu0 0
        %2615 = vmatpush2.bf16.msra.mxu0 %v2465
        %2616 = vmatprep.subr.bf16.mxu0 0
        %2617 = vmatpush2.bf16.msra.mxu0 %v2464
        %2618 = vmatprep.subr.bf16.mxu0 0
        %2619 = vmatpush2.bf16.msra.mxu0 %v2463
        %2620 = vmatprep.mubr.bf16.mxu0 %v2199
        %2621 = vmatmul.mubr.bf16.gmra.mxu0 %v2198
        %v2622 = vpop.f32.mrf.mxu0
        %v2623 = vadd.f32 %v2558, %v2622
        %v2624 = vpop.f32.mrf.mxu0
        %v2625 = vpop.f32.mrf.mxu0
        %v2626 = vadd.f32 %v2561, %v2625
        %v2627 = vpop.f32.mrf.mxu0
        %2628 = vmatprep.mubr.bf16.mxu0 %v2204
        %2629 = vmatmul.mubr.bf16.gmra.mxu0 %v2203
        %v2630 = vpop.f32.mrf.mxu0
        %v2631 = vadd.f32 %v2566, %v2630
        %v2632 = vpop.f32.mrf.mxu0
        %v2633 = vpop.f32.mrf.mxu0
        %v2634 = vadd.f32 %v2569, %v2633
        %v2635 = vpop.f32.mrf.mxu0
        %2636 = vmatprep.mubr.bf16.mxu0 %v2209
        %2637 = vmatmul.mubr.bf16.gmra.mxu0 %v2208
        %v2638 = vpop.f32.mrf.mxu0
        %v2639 = vadd.f32 %v2574, %v2638
        %v2640 = vpop.f32.mrf.mxu0
        %v2641 = vpop.f32.mrf.mxu0
        %v2642 = vadd.f32 %v2577, %v2641
        %v2643 = vpop.f32.mrf.mxu0
        %2644 = vmatprep.mubr.bf16.mxu0 %v2214
        %2645 = vmatmul.mubr.bf16.gmra.mxu0 %v2213
        %v2646 = vpop.f32.mrf.mxu0
        %v2647 = vadd.f32 %v2582, %v2646
        %v2648 = vpop.f32.mrf.mxu0
        %v2649 = vpop.f32.mrf.mxu0
        %v2650 = vadd.f32 %v2585, %v2649
        %v2651 = vpop.f32.mrf.mxu0
        %2652 = vdwg.mxu0
        %2653 = vmatprep.subr.bf16.mxu0 0
        %2654 = vmatpush1.bf16.msra.mxu0 0
        %2655 = vmatprep.subr.bf16.mxu0 0
        %2656 = vmatpush1.bf16.msra.mxu0 0
        %2657 = vmatprep.subr.bf16.mxu0 0
        %2658 = vmatpush1.bf16.msra.mxu0 0
        %2659 = vmatprep.subr.bf16.mxu0 0
        %2660 = vmatpush1.bf16.msra.mxu0 0
        %2661 = vmatprep.subr.bf16.mxu0 0
        %2662 = vmatpush1.bf16.msra.mxu0 %v2474
        %2663 = vmatprep.subr.bf16.mxu0 0
        %2664 = vmatpush1.bf16.msra.mxu0 %v2473
        %2665 = vmatprep.subr.bf16.mxu0 0
        %2666 = vmatpush1.bf16.msra.mxu0 %v2472
        %2667 = vmatprep.subr.bf16.mxu0 0
        %2668 = vmatpush1.bf16.msra.mxu0 %v2471
        %2669 = vmatprep.subr.bf16.mxu0 0
        %2670 = vmatpush2.bf16.msra.mxu0 0
        %2671 = vmatprep.subr.bf16.mxu0 0
        %2672 = vmatpush2.bf16.msra.mxu0 0
        %2673 = vmatprep.subr.bf16.mxu0 0
        %2674 = vmatpush2.bf16.msra.mxu0 0
        %2675 = vmatprep.subr.bf16.mxu0 0
        %2676 = vmatpush2.bf16.msra.mxu0 0
        %2677 = vmatprep.subr.bf16.mxu0 0
        %2678 = vmatpush2.bf16.msra.mxu0 0
        %2679 = vmatprep.subr.bf16.mxu0 0
        %2680 = vmatpush2.bf16.msra.mxu0 0
        %2681 = vmatprep.subr.bf16.mxu0 0
        %2682 = vmatpush2.bf16.msra.mxu0 0
        %2683 = vmatprep.subr.bf16.mxu0 0
        %2684 = vmatpush2.bf16.msra.mxu0 0
        %2685 = vmatprep.mubr.bf16.mxu0 0
        %2686 = vmatmul.mubr.bf16.gmra.mxu0 %v2512
        %v2687 = vpop.f32.mrf.mxu0
        %v2688 = vadd.f32 %v2623, %v2687
        %v2689 = vpop.f32.mrf.mxu0
        %v2690 = vpop.f32.mrf.mxu0
        %v2691 = vadd.f32 %v2626, %v2690
        %v2692 = vpop.f32.mrf.mxu0
        %2693 = vmatprep.mubr.bf16.mxu0 0
        %2694 = vmatmul.mubr.bf16.gmra.mxu0 %v2515
        %v2695 = vpop.f32.mrf.mxu0
        %v2696 = vadd.f32 %v2631, %v2695
        %v2697 = vpop.f32.mrf.mxu0
        %v2698 = vpop.f32.mrf.mxu0
        %v2699 = vadd.f32 %v2634, %v2698
        %v2700 = vpop.f32.mrf.mxu0
        %2701 = vmatprep.mubr.bf16.mxu0 0
        %2702 = vmatmul.mubr.bf16.gmra.mxu0 %v2518
        %v2703 = vpop.f32.mrf.mxu0
        %v2704 = vadd.f32 %v2639, %v2703
        %v2705 = vpop.f32.mrf.mxu0
        %v2706 = vpop.f32.mrf.mxu0
        %v2707 = vadd.f32 %v2642, %v2706
        %v2708 = vpop.f32.mrf.mxu0
        %2709 = vmatprep.mubr.bf16.mxu0 0
        %2710 = vmatmul.mubr.bf16.gmra.mxu0 %v2521
        %v2711 = vpop.f32.mrf.mxu0
        %v2712 = vadd.f32 %v2647, %v2711
        %v2713 = vpop.f32.mrf.mxu0
        %v2714 = vpop.f32.mrf.mxu0
        %v2715 = vadd.f32 %v2650, %v2714
        %v2716 = vpop.f32.mrf.mxu0
        %2717 = vdwg.mxu0
        %vm2718 = vcmp.ge.f32.partialorder %v2688, 0.0
        %vm2719 = vcmp.ge.f32.partialorder %v2691, 0.0
        %vm2720 = vcmp.ge.f32.partialorder %v2696, 0.0
        %vm2721 = vcmp.ge.f32.partialorder %v2699, 0.0
        %vm2722 = vcmp.ge.f32.partialorder %v2704, 0.0
        %vm2723 = vcmp.ge.f32.partialorder %v2707, 0.0
        %vm2724 = vcmp.ge.f32.partialorder %v2712, 0.0
        %vm2725 = vcmp.ge.f32.partialorder %v2715, 0.0
        %v2726 = vmul.f32 %v2688, 0.2
        %v2727 = vmul.f32 %v2691, 0.2
        %v2728 = vmul.f32 %v2696, 0.2
        %v2729 = vmul.f32 %v2699, 0.2
        %v2730 = vmul.f32 %v2704, 0.2
        %v2731 = vmul.f32 %v2707, 0.2
        %v2732 = vmul.f32 %v2712, 0.2
        %v2733 = vmul.f32 %v2715, 0.2
        %v2734 = vsel %vm2718, %v2688, %v2726
        %v2735 = vsel %vm2719, %v2691, %v2727
        %v2736 = vsel %vm2720, %v2696, %v2728
        %v2737 = vsel %vm2721, %v2699, %v2729
        %v2738 = vsel %vm2722, %v2704, %v2730
        %v2739 = vsel %vm2723, %v2707, %v2731
        %v2740 = vsel %vm2724, %v2712, %v2732
        %v2741 = vsel %vm2725, %v2715, %v2733
        %v2742 = vpack.c.bf16 %v2735, %v2734
        %v2743 = vpack.c.bf16 %v2737, %v2736
        %v2744 = vpack.c.bf16 %v2739, %v2738
        %v2745 = vpack.c.bf16 %v2741, %v2740
        %v2746 = vld [vmem:[#allocation17] sm:$0xf]
        %v2747 = vld [vmem:[#allocation17 + $0x4] sm:$0xf]
        %v2750 = vunpack.c.l.b16 %v2746
        %v2751 = vunpack.c.l.b16 %v2747
        %v2752 = vpack.c.b16 %v2751, %v2750
        %v2754 = vsel %vm2163, %v2752, 0
        %2756 = vmatprep.subr.bf16.mxu0 0
        %2757 = vmatpush1.bf16.msra.mxu0 0
        %2758 = vmatprep.subr.bf16.mxu0 0
        %2759 = vmatpush1.bf16.msra.mxu0 0
        %2760 = vmatprep.subr.bf16.mxu0 0
        %2761 = vmatpush1.bf16.msra.mxu0 0
        %2762 = vmatprep.subr.bf16.mxu0 0
        %2763 = vmatpush1.bf16.msra.mxu0 0
        %2764 = vmatprep.subr.bf16.mxu0 0
        %2765 = vmatpush1.bf16.msra.mxu0 %v2745
        %2766 = vmatprep.subr.bf16.mxu0 0
        %2767 = vmatpush1.bf16.msra.mxu0 %v2744
        %2768 = vmatprep.subr.bf16.mxu0 0
        %2769 = vmatpush1.bf16.msra.mxu0 %v2743
        %2770 = vmatprep.subr.bf16.mxu0 0
        %2771 = vmatpush1.bf16.msra.mxu0 %v2742
        %2772 = vmatprep.subr.bf16.mxu0 0
        %2773 = vmatpush2.bf16.msra.mxu0 0
        %2774 = vmatprep.subr.bf16.mxu0 0
        %2775 = vmatpush2.bf16.msra.mxu0 0
        %2776 = vmatprep.subr.bf16.mxu0 0
        %2777 = vmatpush2.bf16.msra.mxu0 0
        %2778 = vmatprep.subr.bf16.mxu0 0
        %2779 = vmatpush2.bf16.msra.mxu0 0
        %2780 = vmatprep.subr.bf16.mxu0 0
        %2781 = vmatpush2.bf16.msra.mxu0 0
        %2782 = vmatprep.subr.bf16.mxu0 0
        %2783 = vmatpush2.bf16.msra.mxu0 0
        %2784 = vmatprep.subr.bf16.mxu0 0
        %2785 = vmatpush2.bf16.msra.mxu0 0
        %2786 = vmatprep.subr.bf16.mxu0 0
        %2787 = vmatpush2.bf16.msra.mxu0 0
        %2788 = vmatprep.mubr.bf16.mxu0 0
        %2789 = vmatmul.mubr.bf16.gmra.mxu0 %v2754
        %v2790 = vpop.f32.mrf.mxu0
        %v2791 = vadd.f32 0.0, %v2790
        %v2792 = vpop.f32.mrf.mxu0
        %v2793 = vpop.f32.mrf.mxu0
        %v2794 = vadd.f32 0.0, %v2793
        %v2795 = vpop.f32.mrf.mxu0
        %2796 = vdwg.mxu0
        %s2797 = scalar_lea.vmem [#allocation17], 8
        %v2798 = vld [vmem:[%s2797] sm:$0xf]
        %v2799 = vld [vmem:[%s2797 + $0x4] sm:$0xf]
        %v2802 = vunpack.c.l.b16 %v2798
        %v2803 = vunpack.c.l.b16 %v2799
        %v2804 = vpack.c.b16 %v2803, %v2802
        %v2806 = vsel %vm2163, %v2804, 0
        %2808 = vmatprep.subr.bf16.mxu0 0
        %2809 = vmatpush1.bf16.msra.mxu0 0
        %2810 = vmatprep.subr.bf16.mxu0 0
        %2811 = vmatpush1.bf16.msra.mxu0 0
        %2812 = vmatprep.subr.bf16.mxu0 0
        %2813 = vmatpush1.bf16.msra.mxu0 0
        %2814 = vmatprep.subr.bf16.mxu0 0
        %2815 = vmatpush1.bf16.msra.mxu0 0
        %2816 = vmatprep.subr.bf16.mxu0 0
        %2817 = vmatpush1.bf16.msra.mxu0 %v2745
        %2818 = vmatprep.subr.bf16.mxu0 0
        %2819 = vmatpush1.bf16.msra.mxu0 %v2744
        %2820 = vmatprep.subr.bf16.mxu0 0
        %2821 = vmatpush1.bf16.msra.mxu0 %v2743
        %2822 = vmatprep.subr.bf16.mxu0 0
        %2823 = vmatpush1.bf16.msra.mxu0 %v2742
        %2824 = vmatprep.subr.bf16.mxu0 0
        %2825 = vmatpush2.bf16.msra.mxu0 0
        %2826 = vmatprep.subr.bf16.mxu0 0
        %2827 = vmatpush2.bf16.msra.mxu0 0
        %2828 = vmatprep.subr.bf16.mxu0 0
        %2829 = vmatpush2.bf16.msra.mxu0 0
        %2830 = vmatprep.subr.bf16.mxu0 0
        %2831 = vmatpush2.bf16.msra.mxu0 0
        %2832 = vmatprep.subr.bf16.mxu0 0
        %2833 = vmatpush2.bf16.msra.mxu0 0
        %2834 = vmatprep.subr.bf16.mxu0 0
        %2835 = vmatpush2.bf16.msra.mxu0 0
        %2836 = vmatprep.subr.bf16.mxu0 0
        %2837 = vmatpush2.bf16.msra.mxu0 0
        %2838 = vmatprep.subr.bf16.mxu0 0
        %2839 = vmatpush2.bf16.msra.mxu0 0
        %2840 = vmatprep.mubr.bf16.mxu0 0
        %2841 = vmatmul.mubr.bf16.gmra.mxu0 %v2806
        %v2842 = vpop.f32.mrf.mxu0
        %v2843 = vadd.f32 0.0, %v2842
        %v2844 = vpop.f32.mrf.mxu0
        %v2845 = vpop.f32.mrf.mxu0
        %v2846 = vadd.f32 0.0, %v2845
        %v2847 = vpop.f32.mrf.mxu0
        %2848 = vdwg.mxu0
        %s2849 = scalar_lea.vmem [#allocation17], 16
        %v2850 = vld [vmem:[%s2849] sm:$0xf]
        %v2851 = vld [vmem:[%s2849 + $0x4] sm:$0xf]
        %v2854 = vunpack.c.l.b16 %v2850
        %v2855 = vunpack.c.l.b16 %v2851
        %v2856 = vpack.c.b16 %v2855, %v2854
        %v2858 = vsel %vm2163, %v2856, 0
        %2860 = vmatprep.subr.bf16.mxu0 0
        %2861 = vmatpush1.bf16.msra.mxu0 0
        %2862 = vmatprep.subr.bf16.mxu0 0
        %2863 = vmatpush1.bf16.msra.mxu0 0
        %2864 = vmatprep.subr.bf16.mxu0 0
        %2865 = vmatpush1.bf16.msra.mxu0 0
        %2866 = vmatprep.subr.bf16.mxu0 0
        %2867 = vmatpush1.bf16.msra.mxu0 0
        %2868 = vmatprep.subr.bf16.mxu0 0
        %2869 = vmatpush1.bf16.msra.mxu0 %v2745
        %2870 = vmatprep.subr.bf16.mxu0 0
        %2871 = vmatpush1.bf16.msra.mxu0 %v2744
        %2872 = vmatprep.subr.bf16.mxu0 0
        %2873 = vmatpush1.bf16.msra.mxu0 %v2743
        %2874 = vmatprep.subr.bf16.mxu0 0
        %2875 = vmatpush1.bf16.msra.mxu0 %v2742
        %2876 = vmatprep.subr.bf16.mxu0 0
        %2877 = vmatpush2.bf16.msra.mxu0 0
        %2878 = vmatprep.subr.bf16.mxu0 0
        %2879 = vmatpush2.bf16.msra.mxu0 0
        %2880 = vmatprep.subr.bf16.mxu0 0
        %2881 = vmatpush2.bf16.msra.mxu0 0
        %2882 = vmatprep.subr.bf16.mxu0 0
        %2883 = vmatpush2.bf16.msra.mxu0 0
        %2884 = vmatprep.subr.bf16.mxu0 0
        %2885 = vmatpush2.bf16.msra.mxu0 0
        %2886 = vmatprep.subr.bf16.mxu0 0
        %2887 = vmatpush2.bf16.msra.mxu0 0
        %2888 = vmatprep.subr.bf16.mxu0 0
        %2889 = vmatpush2.bf16.msra.mxu0 0
        %2890 = vmatprep.subr.bf16.mxu0 0
        %2891 = vmatpush2.bf16.msra.mxu0 0
        %2892 = vmatprep.mubr.bf16.mxu0 0
        %2893 = vmatmul.mubr.bf16.gmra.mxu0 %v2858
        %v2894 = vpop.f32.mrf.mxu0
        %v2895 = vadd.f32 0.0, %v2894
        %v2896 = vpop.f32.mrf.mxu0
        %v2897 = vpop.f32.mrf.mxu0
        %v2898 = vadd.f32 0.0, %v2897
        %v2899 = vpop.f32.mrf.mxu0
        %2900 = vdwg.mxu0
        %s2901 = scalar_lea.vmem [#allocation17], 24
        %v2902 = vld [vmem:[%s2901] sm:$0xf]
        %v2903 = vld [vmem:[%s2901 + $0x4] sm:$0xf]
        %v2906 = vunpack.c.l.b16 %v2902
        %v2907 = vunpack.c.l.b16 %v2903
        %v2908 = vpack.c.b16 %v2907, %v2906
        %v2910 = vsel %vm2163, %v2908, 0
        %2912 = vmatprep.subr.bf16.mxu0 0
        %2913 = vmatpush1.bf16.msra.mxu0 0
        %2914 = vmatprep.subr.bf16.mxu0 0
        %2915 = vmatpush1.bf16.msra.mxu0 0
        %2916 = vmatprep.subr.bf16.mxu0 0
        %2917 = vmatpush1.bf16.msra.mxu0 0
        %2918 = vmatprep.subr.bf16.mxu0 0
        %2919 = vmatpush1.bf16.msra.mxu0 0
        %2920 = vmatprep.subr.bf16.mxu0 0
        %2921 = vmatpush1.bf16.msra.mxu0 %v2745
        %2922 = vmatprep.subr.bf16.mxu0 0
        %2923 = vmatpush1.bf16.msra.mxu0 %v2744
        %2924 = vmatprep.subr.bf16.mxu0 0
        %2925 = vmatpush1.bf16.msra.mxu0 %v2743
        %2926 = vmatprep.subr.bf16.mxu0 0
        %2927 = vmatpush1.bf16.msra.mxu0 %v2742
        %2928 = vmatprep.subr.bf16.mxu0 0
        %2929 = vmatpush2.bf16.msra.mxu0 0
        %2930 = vmatprep.subr.bf16.mxu0 0
        %2931 = vmatpush2.bf16.msra.mxu0 0
        %2932 = vmatprep.subr.bf16.mxu0 0
        %2933 = vmatpush2.bf16.msra.mxu0 0
        %2934 = vmatprep.subr.bf16.mxu0 0
        %2935 = vmatpush2.bf16.msra.mxu0 0
        %2936 = vmatprep.subr.bf16.mxu0 0
        %2937 = vmatpush2.bf16.msra.mxu0 0
        %2938 = vmatprep.subr.bf16.mxu0 0
        %2939 = vmatpush2.bf16.msra.mxu0 0
        %2940 = vmatprep.subr.bf16.mxu0 0
        %2941 = vmatpush2.bf16.msra.mxu0 0
        %2942 = vmatprep.subr.bf16.mxu0 0
        %2943 = vmatpush2.bf16.msra.mxu0 0
        %2944 = vmatprep.mubr.bf16.mxu0 0
        %2945 = vmatmul.mubr.bf16.gmra.mxu0 %v2910
        %v2946 = vpop.f32.mrf.mxu0
        %v2947 = vadd.f32 0.0, %v2946
        %v2948 = vpop.f32.mrf.mxu0
        %v2949 = vpop.f32.mrf.mxu0
        %v2950 = vadd.f32 0.0, %v2949
        %v2951 = vpop.f32.mrf.mxu0
        %2952 = vdwg.mxu0
        %s2953 = scalar_lea.vmem [#allocation17], 32
        %v2954 = vld [vmem:[%s2953] sm:$0xf]
        %v2955 = vld [vmem:[%s2953 + $0x4] sm:$0xf]
        %v2958 = vunpack.c.l.b16 %v2954
        %v2959 = vunpack.c.l.b16 %v2955
        %v2960 = vpack.c.b16 %v2959, %v2958
        %v2962 = vsel %vm2163, %v2960, 0
        %2964 = vmatprep.subr.bf16.mxu0 0
        %2965 = vmatpush1.bf16.msra.mxu0 0
        %2966 = vmatprep.subr.bf16.mxu0 0
        %2967 = vmatpush1.bf16.msra.mxu0 0
        %2968 = vmatprep.subr.bf16.mxu0 0
        %2969 = vmatpush1.bf16.msra.mxu0 0
        %2970 = vmatprep.subr.bf16.mxu0 0
        %2971 = vmatpush1.bf16.msra.mxu0 0
        %2972 = vmatprep.subr.bf16.mxu0 0
        %2973 = vmatpush1.bf16.msra.mxu0 %v2745
        %2974 = vmatprep.subr.bf16.mxu0 0
        %2975 = vmatpush1.bf16.msra.mxu0 %v2744
        %2976 = vmatprep.subr.bf16.mxu0 0
        %2977 = vmatpush1.bf16.msra.mxu0 %v2743
        %2978 = vmatprep.subr.bf16.mxu0 0
        %2979 = vmatpush1.bf16.msra.mxu0 %v2742
        %2980 = vmatprep.subr.bf16.mxu0 0
        %2981 = vmatpush2.bf16.msra.mxu0 0
        %2982 = vmatprep.subr.bf16.mxu0 0
        %2983 = vmatpush2.bf16.msra.mxu0 0
        %2984 = vmatprep.subr.bf16.mxu0 0
        %2985 = vmatpush2.bf16.msra.mxu0 0
        %2986 = vmatprep.subr.bf16.mxu0 0
        %2987 = vmatpush2.bf16.msra.mxu0 0
        %2988 = vmatprep.subr.bf16.mxu0 0
        %2989 = vmatpush2.bf16.msra.mxu0 0
        %2990 = vmatprep.subr.bf16.mxu0 0
        %2991 = vmatpush2.bf16.msra.mxu0 0
        %2992 = vmatprep.subr.bf16.mxu0 0
        %2993 = vmatpush2.bf16.msra.mxu0 0
        %2994 = vmatprep.subr.bf16.mxu0 0
        %2995 = vmatpush2.bf16.msra.mxu0 0
        %2996 = vmatprep.mubr.bf16.mxu0 0
        %2997 = vmatmul.mubr.bf16.gmra.mxu0 %v2962
        %v2998 = vpop.f32.mrf.mxu0
        %v2999 = vadd.f32 0.0, %v2998
        %v3000 = vpop.f32.mrf.mxu0
        %v3001 = vpop.f32.mrf.mxu0
        %v3002 = vadd.f32 0.0, %v3001
        %v3003 = vpop.f32.mrf.mxu0
        %3004 = vdwg.mxu0
        %s3005 = scalar_lea.vmem [#allocation17], 40
        %v3006 = vld [vmem:[%s3005] sm:$0xf]
        %v3007 = vld [vmem:[%s3005 + $0x4] sm:$0xf]
        %v3010 = vunpack.c.l.b16 %v3006
        %v3011 = vunpack.c.l.b16 %v3007
        %v3012 = vpack.c.b16 %v3011, %v3010
        %v3014 = vsel %vm2163, %v3012, 0
        %3016 = vmatprep.subr.bf16.mxu0 0
        %3017 = vmatpush1.bf16.msra.mxu0 0
        %3018 = vmatprep.subr.bf16.mxu0 0
        %3019 = vmatpush1.bf16.msra.mxu0 0
        %3020 = vmatprep.subr.bf16.mxu0 0
        %3021 = vmatpush1.bf16.msra.mxu0 0
        %3022 = vmatprep.subr.bf16.mxu0 0
        %3023 = vmatpush1.bf16.msra.mxu0 0
        %3024 = vmatprep.subr.bf16.mxu0 0
        %3025 = vmatpush1.bf16.msra.mxu0 %v2745
        %3026 = vmatprep.subr.bf16.mxu0 0
        %3027 = vmatpush1.bf16.msra.mxu0 %v2744
        %3028 = vmatprep.subr.bf16.mxu0 0
        %3029 = vmatpush1.bf16.msra.mxu0 %v2743
        %3030 = vmatprep.subr.bf16.mxu0 0
        %3031 = vmatpush1.bf16.msra.mxu0 %v2742
        %3032 = vmatprep.subr.bf16.mxu0 0
        %3033 = vmatpush2.bf16.msra.mxu0 0
        %3034 = vmatprep.subr.bf16.mxu0 0
        %3035 = vmatpush2.bf16.msra.mxu0 0
        %3036 = vmatprep.subr.bf16.mxu0 0
        %3037 = vmatpush2.bf16.msra.mxu0 0
        %3038 = vmatprep.subr.bf16.mxu0 0
        %3039 = vmatpush2.bf16.msra.mxu0 0
        %3040 = vmatprep.subr.bf16.mxu0 0
        %3041 = vmatpush2.bf16.msra.mxu0 0
        %3042 = vmatprep.subr.bf16.mxu0 0
        %3043 = vmatpush2.bf16.msra.mxu0 0
        %3044 = vmatprep.subr.bf16.mxu0 0
        %3045 = vmatpush2.bf16.msra.mxu0 0
        %3046 = vmatprep.subr.bf16.mxu0 0
        %3047 = vmatpush2.bf16.msra.mxu0 0
        %3048 = vmatprep.mubr.bf16.mxu0 0
        %3049 = vmatmul.mubr.bf16.gmra.mxu0 %v3014
        %v3050 = vpop.f32.mrf.mxu0
        %v3051 = vadd.f32 0.0, %v3050
        %v3052 = vpop.f32.mrf.mxu0
        %v3053 = vpop.f32.mrf.mxu0
        %v3054 = vadd.f32 0.0, %v3053
        %v3055 = vpop.f32.mrf.mxu0
        %3056 = vdwg.mxu0
        %s3057 = scalar_lea.vmem [#allocation17], 48
        %v3058 = vld [vmem:[%s3057] sm:$0xf]
        %v3059 = vld [vmem:[%s3057 + $0x4] sm:$0xf]
        %v3062 = vunpack.c.l.b16 %v3058
        %v3063 = vunpack.c.l.b16 %v3059
        %v3064 = vpack.c.b16 %v3063, %v3062
        %v3066 = vsel %vm2163, %v3064, 0
        %3068 = vmatprep.subr.bf16.mxu0 0
        %3069 = vmatpush1.bf16.msra.mxu0 0
        %3070 = vmatprep.subr.bf16.mxu0 0
        %3071 = vmatpush1.bf16.msra.mxu0 0
        %3072 = vmatprep.subr.bf16.mxu0 0
        %3073 = vmatpush1.bf16.msra.mxu0 0
        %3074 = vmatprep.subr.bf16.mxu0 0
        %3075 = vmatpush1.bf16.msra.mxu0 0
        %3076 = vmatprep.subr.bf16.mxu0 0
        %3077 = vmatpush1.bf16.msra.mxu0 %v2745
        %3078 = vmatprep.subr.bf16.mxu0 0
        %3079 = vmatpush1.bf16.msra.mxu0 %v2744
        %3080 = vmatprep.subr.bf16.mxu0 0
        %3081 = vmatpush1.bf16.msra.mxu0 %v2743
        %3082 = vmatprep.subr.bf16.mxu0 0
        %3083 = vmatpush1.bf16.msra.mxu0 %v2742
        %3084 = vmatprep.subr.bf16.mxu0 0
        %3085 = vmatpush2.bf16.msra.mxu0 0
        %3086 = vmatprep.subr.bf16.mxu0 0
        %3087 = vmatpush2.bf16.msra.mxu0 0
        %3088 = vmatprep.subr.bf16.mxu0 0
        %3089 = vmatpush2.bf16.msra.mxu0 0
        %3090 = vmatprep.subr.bf16.mxu0 0
        %3091 = vmatpush2.bf16.msra.mxu0 0
        %3092 = vmatprep.subr.bf16.mxu0 0
        %3093 = vmatpush2.bf16.msra.mxu0 0
        %3094 = vmatprep.subr.bf16.mxu0 0
        %3095 = vmatpush2.bf16.msra.mxu0 0
        %3096 = vmatprep.subr.bf16.mxu0 0
        %3097 = vmatpush2.bf16.msra.mxu0 0
        %3098 = vmatprep.subr.bf16.mxu0 0
        %3099 = vmatpush2.bf16.msra.mxu0 0
        %3100 = vmatprep.mubr.bf16.mxu0 0
        %3101 = vmatmul.mubr.bf16.gmra.mxu0 %v3066
        %v3102 = vpop.f32.mrf.mxu0
        %v3103 = vadd.f32 0.0, %v3102
        %v3104 = vpop.f32.mrf.mxu0
        %v3105 = vpop.f32.mrf.mxu0
        %v3106 = vadd.f32 0.0, %v3105
        %v3107 = vpop.f32.mrf.mxu0
        %3108 = vdwg.mxu0
        %s3109 = scalar_lea.vmem [#allocation17], 56
        %v3110 = vld [vmem:[%s3109] sm:$0xf]
        %v3111 = vld [vmem:[%s3109 + $0x4] sm:$0xf]
        %v3114 = vunpack.c.l.b16 %v3110
        %v3115 = vunpack.c.l.b16 %v3111
        %v3116 = vpack.c.b16 %v3115, %v3114
        %v3118 = vsel %vm2163, %v3116, 0
        %3120 = vmatprep.subr.bf16.mxu0 0
        %3121 = vmatpush1.bf16.msra.mxu0 0
        %3122 = vmatprep.subr.bf16.mxu0 0
        %3123 = vmatpush1.bf16.msra.mxu0 0
        %3124 = vmatprep.subr.bf16.mxu0 0
        %3125 = vmatpush1.bf16.msra.mxu0 0
        %3126 = vmatprep.subr.bf16.mxu0 0
        %3127 = vmatpush1.bf16.msra.mxu0 0
        %3128 = vmatprep.subr.bf16.mxu0 0
        %3129 = vmatpush1.bf16.msra.mxu0 %v2745
        %3130 = vmatprep.subr.bf16.mxu0 0
        %3131 = vmatpush1.bf16.msra.mxu0 %v2744
        %3132 = vmatprep.subr.bf16.mxu0 0
        %3133 = vmatpush1.bf16.msra.mxu0 %v2743
        %3134 = vmatprep.subr.bf16.mxu0 0
        %3135 = vmatpush1.bf16.msra.mxu0 %v2742
        %3136 = vmatprep.subr.bf16.mxu0 0
        %3137 = vmatpush2.bf16.msra.mxu0 0
        %3138 = vmatprep.subr.bf16.mxu0 0
        %3139 = vmatpush2.bf16.msra.mxu0 0
        %3140 = vmatprep.subr.bf16.mxu0 0
        %3141 = vmatpush2.bf16.msra.mxu0 0
        %3142 = vmatprep.subr.bf16.mxu0 0
        %3143 = vmatpush2.bf16.msra.mxu0 0
        %3144 = vmatprep.subr.bf16.mxu0 0
        %3145 = vmatpush2.bf16.msra.mxu0 0
        %3146 = vmatprep.subr.bf16.mxu0 0
        %3147 = vmatpush2.bf16.msra.mxu0 0
        %3148 = vmatprep.subr.bf16.mxu0 0
        %3149 = vmatpush2.bf16.msra.mxu0 0
        %3150 = vmatprep.subr.bf16.mxu0 0
        %3151 = vmatpush2.bf16.msra.mxu0 0
        %3152 = vmatprep.mubr.bf16.mxu0 0
        %3153 = vmatmul.mubr.bf16.gmra.mxu0 %v3118
        %v3154 = vpop.f32.mrf.mxu0
        %v3155 = vadd.f32 0.0, %v3154
        %v3156 = vpop.f32.mrf.mxu0
        %v3157 = vpop.f32.mrf.mxu0
        %v3158 = vadd.f32 0.0, %v3157
        %v3159 = vpop.f32.mrf.mxu0
        %3160 = vdwg.mxu0
        %s3161 = scalar_lea.vmem [#allocation17], 64
        %v3162 = vld [vmem:[%s3161] sm:$0xf]
        %v3163 = vld [vmem:[%s3161 + $0x4] sm:$0xf]
        %v3166 = vunpack.c.l.b16 %v3162
        %v3167 = vunpack.c.l.b16 %v3163
        %v3168 = vpack.c.b16 %v3167, %v3166
        %v3170 = vsel %vm2163, %v3168, 0
        %3172 = vmatprep.subr.bf16.mxu0 0
        %3173 = vmatpush1.bf16.msra.mxu0 0
        %3174 = vmatprep.subr.bf16.mxu0 0
        %3175 = vmatpush1.bf16.msra.mxu0 0
        %3176 = vmatprep.subr.bf16.mxu0 0
        %3177 = vmatpush1.bf16.msra.mxu0 0
        %3178 = vmatprep.subr.bf16.mxu0 0
        %3179 = vmatpush1.bf16.msra.mxu0 0
        %3180 = vmatprep.subr.bf16.mxu0 0
        %3181 = vmatpush1.bf16.msra.mxu0 %v2745
        %3182 = vmatprep.subr.bf16.mxu0 0
        %3183 = vmatpush1.bf16.msra.mxu0 %v2744
        %3184 = vmatprep.subr.bf16.mxu0 0
        %3185 = vmatpush1.bf16.msra.mxu0 %v2743
        %3186 = vmatprep.subr.bf16.mxu0 0
        %3187 = vmatpush1.bf16.msra.mxu0 %v2742
        %3188 = vmatprep.subr.bf16.mxu0 0
        %3189 = vmatpush2.bf16.msra.mxu0 0
        %3190 = vmatprep.subr.bf16.mxu0 0
        %3191 = vmatpush2.bf16.msra.mxu0 0
        %3192 = vmatprep.subr.bf16.mxu0 0
        %3193 = vmatpush2.bf16.msra.mxu0 0
        %3194 = vmatprep.subr.bf16.mxu0 0
        %3195 = vmatpush2.bf16.msra.mxu0 0
        %3196 = vmatprep.subr.bf16.mxu0 0
        %3197 = vmatpush2.bf16.msra.mxu0 0
        %3198 = vmatprep.subr.bf16.mxu0 0
        %3199 = vmatpush2.bf16.msra.mxu0 0
        %3200 = vmatprep.subr.bf16.mxu0 0
        %3201 = vmatpush2.bf16.msra.mxu0 0
        %3202 = vmatprep.subr.bf16.mxu0 0
        %3203 = vmatpush2.bf16.msra.mxu0 0
        %3204 = vmatprep.mubr.bf16.mxu0 0
        %3205 = vmatmul.mubr.bf16.gmra.mxu0 %v3170
        %v3206 = vpop.f32.mrf.mxu0
        %v3207 = vadd.f32 0.0, %v3206
        %v3208 = vpop.f32.mrf.mxu0
        %v3209 = vpop.f32.mrf.mxu0
        %v3210 = vadd.f32 0.0, %v3209
        %v3211 = vpop.f32.mrf.mxu0
        %3212 = vdwg.mxu0
        %v3213 = vpack.c.bf16 %v2794, %v2791
        %v3214 = vpack.c.bf16 %v2846, %v2843
        %v3215 = vpack.c.bf16 %v2898, %v2895
        %v3216 = vpack.c.bf16 %v2950, %v2947
        %v3217 = vpack.c.bf16 %v3002, %v2999
        %v3218 = vpack.c.bf16 %v3054, %v3051
        %v3219 = vpack.c.bf16 %v3106, %v3103
        %v3220 = vpack.c.bf16 %v3158, %v3155
        %v3221 = vpack.c.bf16 %v3210, %v3207
        %v3222 = vld [vmem:[%s5] sm:$0xff]
        %v3223 = vld [vmem:[%s5 + $0x8] sm:$0xff]
        %v3224 = vld [vmem:[%s5 + $0x10] sm:$0xff]
        %v3225 = vld [vmem:[%s5 + $0x18] sm:$0xff]
        %v3226 = vld [vmem:[%s5 + $0x20] sm:$0xff]
        %v3227 = vld [vmem:[%s5 + $0x28] sm:$0xff]
        %v3228 = vld [vmem:[%s5 + $0x30] sm:$0xff]
        %v3229 = vld [vmem:[%s5 + $0x38] sm:$0xff]
        %v3230 = vld [vmem:[%s5 + $0x40] sm:$0xff]
        %v3231 = vld [vmem:[%s5 + $0x48] sm:$0xff]
        %v3232 = vld [vmem:[%s5 + $0x50] sm:$0xff]
        %v3233 = vld [vmem:[%s5 + $0x58] sm:$0xff]
        %v3234 = vld [vmem:[%s5 + $0x60] sm:$0xff]
        %v3235 = vld [vmem:[%s5 + $0x68] sm:$0xff]
        %v3236 = vld [vmem:[%s5 + $0x70] sm:$0xff]
        %v3237 = vld [vmem:[%s5 + $0x78] sm:$0xff]
        %v3238 = vld [vmem:[%s5 + $0x80] sm:$0xff]
        %v3239 = vld [vmem:[%s5 + $0x88] sm:$0xff]
        %v3240 = vld [vmem:[%s5 + $0x90] sm:$0xff]
        %v3241 = vld [vmem:[%s5 + $0x98] sm:$0xff]
        %v3242 = vld [vmem:[%s5 + $0xa0] sm:$0xff]
        %v3243 = vld [vmem:[%s5 + $0xa8] sm:$0xff]
        %v3244 = vld [vmem:[%s5 + $0xb0] sm:$0xff]
        %v3245 = vld [vmem:[%s5 + $0xb8] sm:$0xff]
        %v3246 = vld [vmem:[%s5 + $0xc0] sm:$0xff]
        %v3247 = vld [vmem:[%s5 + $0xc8] sm:$0xff]
        %v3248 = vld [vmem:[%s5 + $0xd0] sm:$0xff]
        %v3249 = vld [vmem:[%s5 + $0xd8] sm:$0xff]
        %v3250 = vld [vmem:[%s5 + $0xe0] sm:$0xff]
        %v3251 = vld [vmem:[%s5 + $0xe8] sm:$0xff]
        %v3252 = vld [vmem:[%s5 + $0xf0] sm:$0xff]
        %v3253 = vld [vmem:[%s5 + $0xf8] sm:$0xff]
        %v3254 = vld [vmem:[%s5 + $0x100] sm:$0xff]
        %v3255 = vld [vmem:[%s5 + $0x108] sm:$0xff]
        %v3256 = vld [vmem:[%s5 + $0x110] sm:$0xff]
        %v3257 = vld [vmem:[%s5 + $0x118] sm:$0xff]
        %v3258 = vld [vmem:[%s5 + $0x120] sm:$0xff]
        %v3259 = vld [vmem:[%s5 + $0x128] sm:$0xff]
        %v3260 = vld [vmem:[%s5 + $0x130] sm:$0xff]
        %v3261 = vld [vmem:[%s5 + $0x138] sm:$0xff]
        %v3262 = vld [vmem:[%s5 + $0x140] sm:$0xff]
        %v3263 = vld [vmem:[%s5 + $0x148] sm:$0xff]
        %v3264 = vld [vmem:[%s5 + $0x150] sm:$0xff]
        %v3265 = vld [vmem:[%s5 + $0x158] sm:$0xff]
        %v3266 = vld [vmem:[%s5 + $0x160] sm:$0xff]
        %v3267 = vld [vmem:[%s5 + $0x168] sm:$0xff]
        %v3268 = vld [vmem:[%s5 + $0x170] sm:$0xff]
        %v3269 = vld [vmem:[%s5 + $0x178] sm:$0xff]
        %v3270 = vld [vmem:[%s5 + $0x180] sm:$0xff]
        %v3271 = vld [vmem:[%s5 + $0x188] sm:$0xff]
        %v3272 = vld [vmem:[%s5 + $0x190] sm:$0xff]
        %v3273 = vld [vmem:[%s5 + $0x198] sm:$0xff]
        %v3274 = vld [vmem:[%s5 + $0x1a0] sm:$0xff]
        %v3275 = vld [vmem:[%s5 + $0x1a8] sm:$0xff]
        %v3276 = vld [vmem:[%s5 + $0x1b0] sm:$0xff]
        %v3277 = vld [vmem:[%s5 + $0x1b8] sm:$0xff]
        %v3278 = vld [vmem:[%s5 + $0x1c0] sm:$0xff]
        %v3279 = vld [vmem:[%s5 + $0x1c8] sm:$0xff]
        %v3280 = vld [vmem:[%s5 + $0x1d0] sm:$0xff]
        %v3281 = vld [vmem:[%s5 + $0x1d8] sm:$0xff]
        %v3282 = vld [vmem:[%s5 + $0x1e0] sm:$0xff]
        %v3283 = vld [vmem:[%s5 + $0x1e8] sm:$0xff]
        %v3284 = vld [vmem:[%s5 + $0x1f0] sm:$0xff]
        %v3285 = vld [vmem:[%s5 + $0x1f8] sm:$0xff]
        %v3286 = vld [vmem:[%s5 + $0x200] sm:$0xff]
        %v3287 = vld [vmem:[%s5 + $0x208] sm:$0xff]
        %v3288 = vld [vmem:[%s5 + $0x210] sm:$0xff]
        %v3289 = vld [vmem:[%s5 + $0x218] sm:$0xff]
        %v3290 = vld [vmem:[%s5 + $0x220] sm:$0xff]
        %v3291 = vld [vmem:[%s5 + $0x228] sm:$0xff]
        %v3292 = vld [vmem:[%s5 + $0x230] sm:$0xff]
        %v3293 = vld [vmem:[%s5 + $0x238] sm:$0xff]
        %v3294 = vld [vmem:[%s5 + $0x240] sm:$0xff]
        %v3295 = vld [vmem:[%s5 + $0x248] sm:$0xff]
        %v3296 = vld [vmem:[%s5 + $0x250] sm:$0xff]
        %v3297 = vld [vmem:[%s5 + $0x258] sm:$0xff]
        %v3298 = vld [vmem:[%s5 + $0x260] sm:$0xff]
        %v3299 = vld [vmem:[%s5 + $0x268] sm:$0xff]
        %v3300 = vld [vmem:[%s5 + $0x270] sm:$0xff]
        %v3301 = vld [vmem:[%s5 + $0x278] sm:$0xff]
        %v3302 = vld [vmem:[%s5 + $0x280] sm:$0xff]
        %v3303 = vld [vmem:[%s5 + $0x288] sm:$0xff]
        %v3304 = vld [vmem:[%s5 + $0x290] sm:$0xff]
        %v3305 = vld [vmem:[%s5 + $0x298] sm:$0xff]
        %v3306 = vld [vmem:[%s5 + $0x2a0] sm:$0xff]
        %v3307 = vld [vmem:[%s5 + $0x2a8] sm:$0xff]
        %v3308 = vld [vmem:[%s5 + $0x2b0] sm:$0xff]
        %v3309 = vld [vmem:[%s5 + $0x2b8] sm:$0xff]
        %v3310 = vld [vmem:[%s5 + $0x2c0] sm:$0xff]
        %v3311 = vld [vmem:[%s5 + $0x2c8] sm:$0xff]
        %v3312 = vld [vmem:[%s5 + $0x2d0] sm:$0xff]
        %v3313 = vld [vmem:[%s5 + $0x2d8] sm:$0xff]
        %v3314 = vld [vmem:[%s5 + $0x2e0] sm:$0xff]
        %v3315 = vld [vmem:[%s5 + $0x2e8] sm:$0xff]
        %v3316 = vld [vmem:[%s5 + $0x2f0] sm:$0xff]
        %v3317 = vld [vmem:[%s5 + $0x2f8] sm:$0xff]
        %v3318 = vld [vmem:[%s5 + $0x300] sm:$0xff]
        %v3319 = vld [vmem:[%s5 + $0x308] sm:$0xff]
        %v3320 = vld [vmem:[%s5 + $0x310] sm:$0xff]
        %v3321 = vld [vmem:[%s5 + $0x318] sm:$0xff]
        %v3322 = vld [vmem:[%s5 + $0x320] sm:$0xff]
        %v3323 = vld [vmem:[%s5 + $0x328] sm:$0xff]
        %v3324 = vld [vmem:[%s5 + $0x330] sm:$0xff]
        %v3325 = vld [vmem:[%s5 + $0x338] sm:$0xff]
        %v3326 = vld [vmem:[%s5 + $0x340] sm:$0xff]
        %v3327 = vld [vmem:[%s5 + $0x348] sm:$0xff]
        %v3328 = vld [vmem:[%s5 + $0x350] sm:$0xff]
        %v3329 = vld [vmem:[%s5 + $0x358] sm:$0xff]
        %v3330 = vld [vmem:[%s5 + $0x360] sm:$0xff]
        %v3331 = vld [vmem:[%s5 + $0x368] sm:$0xff]
        %v3332 = vld [vmem:[%s5 + $0x370] sm:$0xff]
        %v3333 = vld [vmem:[%s5 + $0x378] sm:$0xff]
        %v3334 = vld [vmem:[%s5 + $0x380] sm:$0xff]
        %v3335 = vld [vmem:[%s5 + $0x388] sm:$0xff]
        %v3336 = vld [vmem:[%s5 + $0x390] sm:$0xff]
        %v3337 = vld [vmem:[%s5 + $0x398] sm:$0xff]
        %v3338 = vld [vmem:[%s5 + $0x3a0] sm:$0xff]
        %v3339 = vld [vmem:[%s5 + $0x3a8] sm:$0xff]
        %v3340 = vld [vmem:[%s5 + $0x3b0] sm:$0xff]
        %v3341 = vld [vmem:[%s5 + $0x3b8] sm:$0xff]
        %v3342 = vld [vmem:[%s5 + $0x3c0] sm:$0xff]
        %v3343 = vld [vmem:[%s5 + $0x3c8] sm:$0xff]
        %v3344 = vld [vmem:[%s5 + $0x3d0] sm:$0xff]
        %v3345 = vld [vmem:[%s5 + $0x3d8] sm:$0xff]
        %v3346 = vld [vmem:[%s5 + $0x3e0] sm:$0xff]
        %v3347 = vld [vmem:[%s5 + $0x3e8] sm:$0xff]
        %v3348 = vld [vmem:[%s5 + $0x3f0] sm:$0xff]
        %v3349 = vld [vmem:[%s5 + $0x3f8] sm:$0xff]
        %v3350 = vld [vmem:[%s5 + $0x400] sm:$0xff]
        %v3351 = vld [vmem:[%s5 + $0x408] sm:$0xff]
        %v3352 = vld [vmem:[%s5 + $0x410] sm:$0xff]
        %v3353 = vld [vmem:[%s5 + $0x418] sm:$0xff]
        %v3354 = vld [vmem:[%s5 + $0x420] sm:$0xff]
        %v3355 = vld [vmem:[%s5 + $0x428] sm:$0xff]
        %v3356 = vld [vmem:[%s5 + $0x430] sm:$0xff]
        %v3357 = vld [vmem:[%s5 + $0x438] sm:$0xff]
        %v3358 = vld [vmem:[%s5 + $0x440] sm:$0xff]
        %v3359 = vld [vmem:[%s5 + $0x448] sm:$0xff]
        %v3360 = vld [vmem:[%s5 + $0x450] sm:$0xff]
        %v3361 = vld [vmem:[%s5 + $0x458] sm:$0xff]
        %v3362 = vld [vmem:[%s5 + $0x460] sm:$0xff]
        %v3363 = vld [vmem:[%s5 + $0x468] sm:$0xff]
        %v3364 = vld [vmem:[%s5 + $0x470] sm:$0xff]
        %v3365 = vld [vmem:[%s5 + $0x478] sm:$0xff]
        %v3366 = vld [vmem:[#allocation10] sm:$0x3]
        %v3368 = vlaneseq
        %v3369 = vshrl.u32 %v3368, 7
        %v3370 = vsub.s32 0, %v3369
        %v3371 = vrot.slane %v3366, %v3370
        %v3372 = vlaneseq
        %v3373 = vshrl.u32 %v3372, 7
        %v3374 = vsub.s32 1, %v3373
        %v3375 = vrot.slane %v3366, %v3374
        %v3522 = vunpack.c.l.b16 %v3222
        %v3523 = vunpack.c.h.b16 %v3222
        %v3524 = vunpack.c.l.b16 %v3223
        %v3525 = vunpack.c.h.b16 %v3223
        %v3526 = vunpack.c.l.b16 %v3224
        %v3527 = vunpack.c.h.b16 %v3224
        %v3528 = vunpack.c.l.b16 %v3225
        %v3529 = vunpack.c.h.b16 %v3225
        %v3530 = vunpack.c.l.b16 %v3226
        %v3531 = vunpack.c.h.b16 %v3226
        %v3532 = vunpack.c.l.b16 %v3227
        %v3533 = vunpack.c.h.b16 %v3227
        %v3534 = vunpack.c.l.b16 %v3228
        %v3535 = vunpack.c.h.b16 %v3228
        %v3536 = vunpack.c.l.b16 %v3229
        %v3537 = vunpack.c.h.b16 %v3229
        %v3538 = vunpack.c.l.b16 %v3230
        %v3539 = vunpack.c.h.b16 %v3230
        %v3540 = vunpack.c.l.b16 %v3231
        %v3541 = vunpack.c.h.b16 %v3231
        %v3542 = vunpack.c.l.b16 %v3232
        %v3543 = vunpack.c.h.b16 %v3232
        %v3544 = vunpack.c.l.b16 %v3233
        %v3545 = vunpack.c.h.b16 %v3233
        %v3546 = vunpack.c.l.b16 %v3234
        %v3547 = vunpack.c.h.b16 %v3234
        %v3548 = vunpack.c.l.b16 %v3235
        %v3549 = vunpack.c.h.b16 %v3235
        %v3550 = vunpack.c.l.b16 %v3236
        %v3551 = vunpack.c.h.b16 %v3236
        %v3552 = vunpack.c.l.b16 %v3237
        %v3553 = vunpack.c.h.b16 %v3237
        %v3554 = vunpack.c.l.b16 %v3238
        %v3555 = vunpack.c.h.b16 %v3238
        %v3556 = vunpack.c.l.b16 %v3239
        %v3557 = vunpack.c.h.b16 %v3239
        %v3558 = vunpack.c.l.b16 %v3240
        %v3559 = vunpack.c.h.b16 %v3240
        %v3560 = vunpack.c.l.b16 %v3241
        %v3561 = vunpack.c.h.b16 %v3241
        %v3562 = vunpack.c.l.b16 %v3242
        %v3563 = vunpack.c.h.b16 %v3242
        %v3564 = vunpack.c.l.b16 %v3243
        %v3565 = vunpack.c.h.b16 %v3243
        %v3566 = vunpack.c.l.b16 %v3244
        %v3567 = vunpack.c.h.b16 %v3244
        %v3568 = vunpack.c.l.b16 %v3245
        %v3569 = vunpack.c.h.b16 %v3245
        %v3570 = vunpack.c.l.b16 %v3246
        %v3571 = vunpack.c.h.b16 %v3246
        %v3572 = vunpack.c.l.b16 %v3247
        %v3573 = vunpack.c.h.b16 %v3247
        %v3574 = vunpack.c.l.b16 %v3248
        %v3575 = vunpack.c.h.b16 %v3248
        %v3576 = vunpack.c.l.b16 %v3249
        %v3577 = vunpack.c.h.b16 %v3249
        %v3578 = vunpack.c.l.b16 %v3250
        %v3579 = vunpack.c.h.b16 %v3250
        %v3580 = vunpack.c.l.b16 %v3251
        %v3581 = vunpack.c.h.b16 %v3251
        %v3582 = vunpack.c.l.b16 %v3252
        %v3583 = vunpack.c.h.b16 %v3252
        %v3584 = vunpack.c.l.b16 %v3253
        %v3585 = vunpack.c.h.b16 %v3253
        %v3586 = vunpack.c.l.b16 %v3254
        %v3587 = vunpack.c.h.b16 %v3254
        %v3588 = vunpack.c.l.b16 %v3255
        %v3589 = vunpack.c.h.b16 %v3255
        %v3590 = vunpack.c.l.b16 %v3256
        %v3591 = vunpack.c.h.b16 %v3256
        %v3592 = vunpack.c.l.b16 %v3257
        %v3593 = vunpack.c.h.b16 %v3257
        %v3594 = vunpack.c.l.b16 %v3258
        %v3595 = vunpack.c.h.b16 %v3258
        %v3596 = vunpack.c.l.b16 %v3259
        %v3597 = vunpack.c.h.b16 %v3259
        %v3598 = vunpack.c.l.b16 %v3260
        %v3599 = vunpack.c.h.b16 %v3260
        %v3600 = vunpack.c.l.b16 %v3261
        %v3601 = vunpack.c.h.b16 %v3261
        %v3602 = vunpack.c.l.b16 %v3262
        %v3603 = vunpack.c.h.b16 %v3262
        %v3604 = vunpack.c.l.b16 %v3263
        %v3605 = vunpack.c.h.b16 %v3263
        %v3606 = vunpack.c.l.b16 %v3264
        %v3607 = vunpack.c.h.b16 %v3264
        %v3608 = vunpack.c.l.b16 %v3265
        %v3609 = vunpack.c.h.b16 %v3265
        %v3610 = vunpack.c.l.b16 %v3266
        %v3611 = vunpack.c.h.b16 %v3266
        %v3612 = vunpack.c.l.b16 %v3267
        %v3613 = vunpack.c.h.b16 %v3267
        %v3614 = vunpack.c.l.b16 %v3268
        %v3615 = vunpack.c.h.b16 %v3268
        %v3616 = vunpack.c.l.b16 %v3269
        %v3617 = vunpack.c.h.b16 %v3269
        %v3618 = vunpack.c.l.b16 %v3270
        %v3619 = vunpack.c.h.b16 %v3270
        %v3620 = vunpack.c.l.b16 %v3271
        %v3621 = vunpack.c.h.b16 %v3271
        %v3622 = vunpack.c.l.b16 %v3272
        %v3623 = vunpack.c.h.b16 %v3272
        %v3624 = vunpack.c.l.b16 %v3273
        %v3625 = vunpack.c.h.b16 %v3273
        %v3626 = vunpack.c.l.b16 %v3274
        %v3627 = vunpack.c.h.b16 %v3274
        %v3628 = vunpack.c.l.b16 %v3275
        %v3629 = vunpack.c.h.b16 %v3275
        %v3630 = vunpack.c.l.b16 %v3276
        %v3631 = vunpack.c.h.b16 %v3276
        %v3632 = vunpack.c.l.b16 %v3277
        %v3633 = vunpack.c.h.b16 %v3277
        %v3634 = vunpack.c.l.b16 %v3278
        %v3635 = vunpack.c.h.b16 %v3278
        %v3636 = vunpack.c.l.b16 %v3279
        %v3637 = vunpack.c.h.b16 %v3279
        %v3638 = vunpack.c.l.b16 %v3280
        %v3639 = vunpack.c.h.b16 %v3280
        %v3640 = vunpack.c.l.b16 %v3281
        %v3641 = vunpack.c.h.b16 %v3281
        %v3642 = vunpack.c.l.b16 %v3282
        %v3643 = vunpack.c.h.b16 %v3282
        %v3644 = vunpack.c.l.b16 %v3283
        %v3645 = vunpack.c.h.b16 %v3283
        %v3646 = vunpack.c.l.b16 %v3284
        %v3647 = vunpack.c.h.b16 %v3284
        %v3648 = vunpack.c.l.b16 %v3285
        %v3649 = vunpack.c.h.b16 %v3285
        %v3650 = vunpack.c.l.b16 %v3286
        %v3651 = vunpack.c.h.b16 %v3286
        %v3652 = vunpack.c.l.b16 %v3287
        %v3653 = vunpack.c.h.b16 %v3287
        %v3654 = vunpack.c.l.b16 %v3288
        %v3655 = vunpack.c.h.b16 %v3288
        %v3656 = vunpack.c.l.b16 %v3289
        %v3657 = vunpack.c.h.b16 %v3289
        %v3658 = vunpack.c.l.b16 %v3290
        %v3659 = vunpack.c.h.b16 %v3290
        %v3660 = vunpack.c.l.b16 %v3291
        %v3661 = vunpack.c.h.b16 %v3291
        %v3662 = vunpack.c.l.b16 %v3292
        %v3663 = vunpack.c.h.b16 %v3292
        %v3664 = vunpack.c.l.b16 %v3293
        %v3665 = vunpack.c.h.b16 %v3293
        %v3666 = vunpack.c.l.b16 %v3294
        %v3667 = vunpack.c.h.b16 %v3294
        %v3668 = vunpack.c.l.b16 %v3295
        %v3669 = vunpack.c.h.b16 %v3295
        %v3670 = vunpack.c.l.b16 %v3296
        %v3671 = vunpack.c.h.b16 %v3296
        %v3672 = vunpack.c.l.b16 %v3297
        %v3673 = vunpack.c.h.b16 %v3297
        %v3674 = vunpack.c.l.b16 %v3298
        %v3675 = vunpack.c.h.b16 %v3298
        %v3676 = vunpack.c.l.b16 %v3299
        %v3677 = vunpack.c.h.b16 %v3299
        %v3678 = vunpack.c.l.b16 %v3300
        %v3679 = vunpack.c.h.b16 %v3300
        %v3680 = vunpack.c.l.b16 %v3301
        %v3681 = vunpack.c.h.b16 %v3301
        %v3682 = vunpack.c.l.b16 %v3302
        %v3683 = vunpack.c.h.b16 %v3302
        %v3684 = vunpack.c.l.b16 %v3303
        %v3685 = vunpack.c.h.b16 %v3303
        %v3686 = vunpack.c.l.b16 %v3304
        %v3687 = vunpack.c.h.b16 %v3304
        %v3688 = vunpack.c.l.b16 %v3305
        %v3689 = vunpack.c.h.b16 %v3305
        %v3690 = vunpack.c.l.b16 %v3306
        %v3691 = vunpack.c.h.b16 %v3306
        %v3692 = vunpack.c.l.b16 %v3307
        %v3693 = vunpack.c.h.b16 %v3307
        %v3694 = vunpack.c.l.b16 %v3308
        %v3695 = vunpack.c.h.b16 %v3308
        %v3696 = vunpack.c.l.b16 %v3309
        %v3697 = vunpack.c.h.b16 %v3309
        %v3698 = vunpack.c.l.b16 %v3310
        %v3699 = vunpack.c.h.b16 %v3310
        %v3700 = vunpack.c.l.b16 %v3311
        %v3701 = vunpack.c.h.b16 %v3311
        %v3702 = vunpack.c.l.b16 %v3312
        %v3703 = vunpack.c.h.b16 %v3312
        %v3704 = vunpack.c.l.b16 %v3313
        %v3705 = vunpack.c.h.b16 %v3313
        %v3706 = vunpack.c.l.b16 %v3314
        %v3707 = vunpack.c.h.b16 %v3314
        %v3708 = vunpack.c.l.b16 %v3315
        %v3709 = vunpack.c.h.b16 %v3315
        %v3710 = vunpack.c.l.b16 %v3316
        %v3711 = vunpack.c.h.b16 %v3316
        %v3712 = vunpack.c.l.b16 %v3317
        %v3713 = vunpack.c.h.b16 %v3317
        %v3714 = vunpack.c.l.b16 %v3318
        %v3715 = vunpack.c.h.b16 %v3318
        %v3716 = vunpack.c.l.b16 %v3319
        %v3717 = vunpack.c.h.b16 %v3319
        %v3718 = vunpack.c.l.b16 %v3320
        %v3719 = vunpack.c.h.b16 %v3320
        %v3720 = vunpack.c.l.b16 %v3321
        %v3721 = vunpack.c.h.b16 %v3321
        %v3722 = vunpack.c.l.b16 %v3322
        %v3723 = vunpack.c.h.b16 %v3322
        %v3724 = vunpack.c.l.b16 %v3323
        %v3725 = vunpack.c.h.b16 %v3323
        %v3726 = vunpack.c.l.b16 %v3324
        %v3727 = vunpack.c.h.b16 %v3324
        %v3728 = vunpack.c.l.b16 %v3325
        %v3729 = vunpack.c.h.b16 %v3325
        %v3730 = vunpack.c.l.b16 %v3326
        %v3731 = vunpack.c.h.b16 %v3326
        %v3732 = vunpack.c.l.b16 %v3327
        %v3733 = vunpack.c.h.b16 %v3327
        %v3734 = vunpack.c.l.b16 %v3328
        %v3735 = vunpack.c.h.b16 %v3328
        %v3736 = vunpack.c.l.b16 %v3329
        %v3737 = vunpack.c.h.b16 %v3329
        %v3738 = vunpack.c.l.b16 %v3330
        %v3739 = vunpack.c.h.b16 %v3330
        %v3740 = vunpack.c.l.b16 %v3331
        %v3741 = vunpack.c.h.b16 %v3331
        %v3742 = vunpack.c.l.b16 %v3332
        %v3743 = vunpack.c.h.b16 %v3332
        %v3744 = vunpack.c.l.b16 %v3333
        %v3745 = vunpack.c.h.b16 %v3333
        %v3746 = vunpack.c.l.b16 %v3334
        %v3747 = vunpack.c.h.b16 %v3334
        %v3748 = vunpack.c.l.b16 %v3335
        %v3749 = vunpack.c.h.b16 %v3335
        %v3750 = vunpack.c.l.b16 %v3336
        %v3751 = vunpack.c.h.b16 %v3336
        %v3752 = vunpack.c.l.b16 %v3337
        %v3753 = vunpack.c.h.b16 %v3337
        %v3754 = vunpack.c.l.b16 %v3338
        %v3755 = vunpack.c.h.b16 %v3338
        %v3756 = vunpack.c.l.b16 %v3339
        %v3757 = vunpack.c.h.b16 %v3339
        %v3758 = vunpack.c.l.b16 %v3340
        %v3759 = vunpack.c.h.b16 %v3340
        %v3760 = vunpack.c.l.b16 %v3341
        %v3761 = vunpack.c.h.b16 %v3341
        %v3762 = vunpack.c.l.b16 %v3342
        %v3763 = vunpack.c.h.b16 %v3342
        %v3764 = vunpack.c.l.b16 %v3343
        %v3765 = vunpack.c.h.b16 %v3343
        %v3766 = vunpack.c.l.b16 %v3344
        %v3767 = vunpack.c.h.b16 %v3344
        %v3768 = vunpack.c.l.b16 %v3345
        %v3769 = vunpack.c.h.b16 %v3345
        %v3770 = vunpack.c.l.b16 %v3346
        %v3771 = vunpack.c.h.b16 %v3346
        %v3772 = vunpack.c.l.b16 %v3347
        %v3773 = vunpack.c.h.b16 %v3347
        %v3774 = vunpack.c.l.b16 %v3348
        %v3775 = vunpack.c.h.b16 %v3348
        %v3776 = vunpack.c.l.b16 %v3349
        %v3777 = vunpack.c.h.b16 %v3349
        %v3778 = vunpack.c.l.b16 %v3350
        %v3779 = vunpack.c.h.b16 %v3350
        %v3780 = vunpack.c.l.b16 %v3351
        %v3781 = vunpack.c.h.b16 %v3351
        %v3782 = vunpack.c.l.b16 %v3352
        %v3783 = vunpack.c.h.b16 %v3352
        %v3784 = vunpack.c.l.b16 %v3353
        %v3785 = vunpack.c.h.b16 %v3353
        %v3786 = vunpack.c.l.b16 %v3354
        %v3787 = vunpack.c.h.b16 %v3354
        %v3788 = vunpack.c.l.b16 %v3355
        %v3789 = vunpack.c.h.b16 %v3355
        %v3790 = vunpack.c.l.b16 %v3356
        %v3791 = vunpack.c.h.b16 %v3356
        %v3792 = vunpack.c.l.b16 %v3357
        %v3793 = vunpack.c.h.b16 %v3357
        %v3794 = vunpack.c.l.b16 %v3358
        %v3795 = vunpack.c.h.b16 %v3358
        %v3796 = vunpack.c.l.b16 %v3359
        %v3797 = vunpack.c.h.b16 %v3359
        %v3798 = vunpack.c.l.b16 %v3360
        %v3799 = vunpack.c.h.b16 %v3360
        %v3800 = vunpack.c.l.b16 %v3361
        %v3801 = vunpack.c.h.b16 %v3361
        %v3802 = vunpack.c.l.b16 %v3362
        %v3803 = vunpack.c.h.b16 %v3362
        %v3804 = vunpack.c.l.b16 %v3363
        %v3805 = vunpack.c.h.b16 %v3363
        %v3806 = vunpack.c.l.b16 %v3364
        %v3807 = vunpack.c.h.b16 %v3364
        %v3808 = vunpack.c.l.b16 %v3365
        %v3809 = vunpack.c.h.b16 %v3365
        %v3810 = vpack.c.b16 %v3524, %v3522
        %v3811 = vpack.c.b16 %v3525, %v3523
        %v3812 = vpack.c.b16 %v3528, %v3526
        %v3813 = vpack.c.b16 %v3529, %v3527
        %v3814 = vpack.c.b16 %v3532, %v3530
        %v3815 = vpack.c.b16 %v3533, %v3531
        %v3816 = vpack.c.b16 %v3536, %v3534
        %v3817 = vpack.c.b16 %v3537, %v3535
        %v3818 = vpack.c.b16 %v3540, %v3538
        %v3819 = vpack.c.b16 %v3541, %v3539
        %v3820 = vpack.c.b16 %v3544, %v3542
        %v3821 = vpack.c.b16 %v3545, %v3543
        %v3822 = vpack.c.b16 %v3548, %v3546
        %v3823 = vpack.c.b16 %v3549, %v3547
        %v3824 = vpack.c.b16 %v3552, %v3550
        %v3825 = vpack.c.b16 %v3553, %v3551
        %v3826 = vpack.c.b16 %v3556, %v3554
        %v3827 = vpack.c.b16 %v3557, %v3555
        %v3828 = vpack.c.b16 %v3560, %v3558
        %v3829 = vpack.c.b16 %v3561, %v3559
        %v3830 = vpack.c.b16 %v3564, %v3562
        %v3831 = vpack.c.b16 %v3565, %v3563
        %v3832 = vpack.c.b16 %v3568, %v3566
        %v3833 = vpack.c.b16 %v3569, %v3567
        %v3834 = vpack.c.b16 %v3572, %v3570
        %v3835 = vpack.c.b16 %v3573, %v3571
        %v3836 = vpack.c.b16 %v3576, %v3574
        %v3837 = vpack.c.b16 %v3577, %v3575
        %v3838 = vpack.c.b16 %v3580, %v3578
        %v3839 = vpack.c.b16 %v3581, %v3579
        %v3840 = vpack.c.b16 %v3584, %v3582
        %v3841 = vpack.c.b16 %v3585, %v3583
        %v3842 = vpack.c.b16 %v3588, %v3586
        %v3843 = vpack.c.b16 %v3589, %v3587
        %v3844 = vpack.c.b16 %v3592, %v3590
        %v3845 = vpack.c.b16 %v3593, %v3591
        %v3846 = vpack.c.b16 %v3596, %v3594
        %v3847 = vpack.c.b16 %v3597, %v3595
        %v3848 = vpack.c.b16 %v3600, %v3598
        %v3849 = vpack.c.b16 %v3601, %v3599
        %v3850 = vpack.c.b16 %v3604, %v3602
        %v3851 = vpack.c.b16 %v3605, %v3603
        %v3852 = vpack.c.b16 %v3608, %v3606
        %v3853 = vpack.c.b16 %v3609, %v3607
        %v3854 = vpack.c.b16 %v3612, %v3610
        %v3855 = vpack.c.b16 %v3613, %v3611
        %v3856 = vpack.c.b16 %v3616, %v3614
        %v3857 = vpack.c.b16 %v3617, %v3615
        %v3858 = vpack.c.b16 %v3620, %v3618
        %v3859 = vpack.c.b16 %v3621, %v3619
        %v3860 = vpack.c.b16 %v3624, %v3622
        %v3861 = vpack.c.b16 %v3625, %v3623
        %v3862 = vpack.c.b16 %v3628, %v3626
        %v3863 = vpack.c.b16 %v3629, %v3627
        %v3864 = vpack.c.b16 %v3632, %v3630
        %v3865 = vpack.c.b16 %v3633, %v3631
        %v3866 = vpack.c.b16 %v3636, %v3634
        %v3867 = vpack.c.b16 %v3637, %v3635
        %v3868 = vpack.c.b16 %v3640, %v3638
        %v3869 = vpack.c.b16 %v3641, %v3639
        %v3870 = vpack.c.b16 %v3644, %v3642
        %v3871 = vpack.c.b16 %v3645, %v3643
        %v3872 = vpack.c.b16 %v3648, %v3646
        %v3873 = vpack.c.b16 %v3649, %v3647
        %v3874 = vpack.c.b16 %v3652, %v3650
        %v3875 = vpack.c.b16 %v3653, %v3651
        %v3876 = vpack.c.b16 %v3656, %v3654
        %v3877 = vpack.c.b16 %v3657, %v3655
        %v3878 = vpack.c.b16 %v3660, %v3658
        %v3879 = vpack.c.b16 %v3661, %v3659
        %v3880 = vpack.c.b16 %v3664, %v3662
        %v3881 = vpack.c.b16 %v3665, %v3663
        %v3882 = vpack.c.b16 %v3668, %v3666
        %v3883 = vpack.c.b16 %v3669, %v3667
        %v3884 = vpack.c.b16 %v3672, %v3670
        %v3885 = vpack.c.b16 %v3673, %v3671
        %v3886 = vpack.c.b16 %v3676, %v3674
        %v3887 = vpack.c.b16 %v3677, %v3675
        %v3888 = vpack.c.b16 %v3680, %v3678
        %v3889 = vpack.c.b16 %v3681, %v3679
        %v3890 = vpack.c.b16 %v3684, %v3682
        %v3891 = vpack.c.b16 %v3685, %v3683
        %v3892 = vpack.c.b16 %v3688, %v3686
        %v3893 = vpack.c.b16 %v3689, %v3687
        %v3894 = vpack.c.b16 %v3692, %v3690
        %v3895 = vpack.c.b16 %v3693, %v3691
        %v3896 = vpack.c.b16 %v3696, %v3694
        %v3897 = vpack.c.b16 %v3697, %v3695
        %v3898 = vpack.c.b16 %v3700, %v3698
        %v3899 = vpack.c.b16 %v3701, %v3699
        %v3900 = vpack.c.b16 %v3704, %v3702
        %v3901 = vpack.c.b16 %v3705, %v3703
        %v3902 = vpack.c.b16 %v3708, %v3706
        %v3903 = vpack.c.b16 %v3709, %v3707
        %v3904 = vpack.c.b16 %v3712, %v3710
        %v3905 = vpack.c.b16 %v3713, %v3711
        %v3906 = vpack.c.b16 %v3716, %v3714
        %v3907 = vpack.c.b16 %v3717, %v3715
        %v3908 = vpack.c.b16 %v3720, %v3718
        %v3909 = vpack.c.b16 %v3721, %v3719
        %v3910 = vpack.c.b16 %v3724, %v3722
        %v3911 = vpack.c.b16 %v3725, %v3723
        %v3912 = vpack.c.b16 %v3728, %v3726
        %v3913 = vpack.c.b16 %v3729, %v3727
        %v3914 = vpack.c.b16 %v3732, %v3730
        %v3915 = vpack.c.b16 %v3733, %v3731
        %v3916 = vpack.c.b16 %v3736, %v3734
        %v3917 = vpack.c.b16 %v3737, %v3735
        %v3918 = vpack.c.b16 %v3740, %v3738
        %v3919 = vpack.c.b16 %v3741, %v3739
        %v3920 = vpack.c.b16 %v3744, %v3742
        %v3921 = vpack.c.b16 %v3745, %v3743
        %v3922 = vpack.c.b16 %v3748, %v3746
        %v3923 = vpack.c.b16 %v3749, %v3747
        %v3924 = vpack.c.b16 %v3752, %v3750
        %v3925 = vpack.c.b16 %v3753, %v3751
        %v3926 = vpack.c.b16 %v3756, %v3754
        %v3927 = vpack.c.b16 %v3757, %v3755
        %v3928 = vpack.c.b16 %v3760, %v3758
        %v3929 = vpack.c.b16 %v3761, %v3759
        %v3930 = vpack.c.b16 %v3764, %v3762
        %v3931 = vpack.c.b16 %v3765, %v3763
        %v3932 = vpack.c.b16 %v3768, %v3766
        %v3933 = vpack.c.b16 %v3769, %v3767
        %v3934 = vpack.c.b16 %v3772, %v3770
        %v3935 = vpack.c.b16 %v3773, %v3771
        %v3936 = vpack.c.b16 %v3776, %v3774
        %v3937 = vpack.c.b16 %v3777, %v3775
        %v3938 = vpack.c.b16 %v3780, %v3778
        %v3939 = vpack.c.b16 %v3781, %v3779
        %v3940 = vpack.c.b16 %v3784, %v3782
        %v3941 = vpack.c.b16 %v3785, %v3783
        %v3942 = vpack.c.b16 %v3788, %v3786
        %v3943 = vpack.c.b16 %v3789, %v3787
        %v3944 = vpack.c.b16 %v3792, %v3790
        %v3945 = vpack.c.b16 %v3793, %v3791
        %v3946 = vpack.c.b16 %v3796, %v3794
        %v3947 = vpack.c.b16 %v3797, %v3795
        %v3948 = vpack.c.b16 %v3800, %v3798
        %v3949 = vpack.c.b16 %v3801, %v3799
        %v3950 = vpack.c.b16 %v3804, %v3802
        %v3951 = vpack.c.b16 %v3805, %v3803
        %v3952 = vpack.c.b16 %v3808, %v3806
        %v3953 = vpack.c.b16 %v3809, %v3807
        %4098 = vmatprep.subr.bf16.mxu0 %v3825
        %4099 = vmatpush1.bf16.msra.mxu0 %v3824
        %4100 = vmatprep.subr.bf16.mxu0 %v3823
        %4101 = vmatpush1.bf16.msra.mxu0 %v3822
        %4102 = vmatprep.subr.bf16.mxu0 %v3821
        %4103 = vmatpush1.bf16.msra.mxu0 %v3820
        %4104 = vmatprep.subr.bf16.mxu0 %v3819
        %4105 = vmatpush1.bf16.msra.mxu0 %v3818
        %4106 = vmatprep.subr.bf16.mxu0 %v3817
        %4107 = vmatpush1.bf16.msra.mxu0 %v3816
        %4108 = vmatprep.subr.bf16.mxu0 %v3815
        %4109 = vmatpush1.bf16.msra.mxu0 %v3814
        %4110 = vmatprep.subr.bf16.mxu0 %v3813
        %4111 = vmatpush1.bf16.msra.mxu0 %v3812
        %4112 = vmatprep.subr.bf16.mxu0 %v3811
        %4113 = vmatpush1.bf16.msra.mxu0 %v3810
        %4114 = vmatprep.subr.bf16.mxu0 %v3841
        %4115 = vmatpush2.bf16.msra.mxu0 %v3840
        %4116 = vmatprep.subr.bf16.mxu0 %v3839
        %4117 = vmatpush2.bf16.msra.mxu0 %v3838
        %4118 = vmatprep.subr.bf16.mxu0 %v3837
        %4119 = vmatpush2.bf16.msra.mxu0 %v3836
        %4120 = vmatprep.subr.bf16.mxu0 %v3835
        %4121 = vmatpush2.bf16.msra.mxu0 %v3834
        %4122 = vmatprep.subr.bf16.mxu0 %v3833
        %4123 = vmatpush2.bf16.msra.mxu0 %v3832
        %4124 = vmatprep.subr.bf16.mxu0 %v3831
        %4125 = vmatpush2.bf16.msra.mxu0 %v3830
        %4126 = vmatprep.subr.bf16.mxu0 %v3829
        %4127 = vmatpush2.bf16.msra.mxu0 %v3828
        %4128 = vmatprep.subr.bf16.mxu0 %v3827
        %4129 = vmatpush2.bf16.msra.mxu0 %v3826
        %4130 = vmatprep.mubr.bf16.mxu0 %v3214
        %4131 = vmatmul.mubr.bf16.gmra.mxu0 %v3213
        %v4132 = vpop.f32.mrf.mxu0
        %v4133 = vadd.f32 %v3371, %v4132
        %v4134 = vpop.f32.mrf.mxu0
        %v4135 = vadd.f32 %v3375, %v4134
        %v4136 = vpop.f32.mrf.mxu0
        %v4137 = vadd.f32 %v3371, %v4136
        %v4138 = vpop.f32.mrf.mxu0
        %v4139 = vadd.f32 %v3375, %v4138
        %4140 = vdwg.mxu0
        %4141 = vmatprep.subr.bf16.mxu0 %v3857
        %4142 = vmatpush1.bf16.msra.mxu0 %v3856
        %4143 = vmatprep.subr.bf16.mxu0 %v3855
        %4144 = vmatpush1.bf16.msra.mxu0 %v3854
        %4145 = vmatprep.subr.bf16.mxu0 %v3853
        %4146 = vmatpush1.bf16.msra.mxu0 %v3852
        %4147 = vmatprep.subr.bf16.mxu0 %v3851
        %4148 = vmatpush1.bf16.msra.mxu0 %v3850
        %4149 = vmatprep.subr.bf16.mxu0 %v3849
        %4150 = vmatpush1.bf16.msra.mxu0 %v3848
        %4151 = vmatprep.subr.bf16.mxu0 %v3847
        %4152 = vmatpush1.bf16.msra.mxu0 %v3846
        %4153 = vmatprep.subr.bf16.mxu0 %v3845
        %4154 = vmatpush1.bf16.msra.mxu0 %v3844
        %4155 = vmatprep.subr.bf16.mxu0 %v3843
        %4156 = vmatpush1.bf16.msra.mxu0 %v3842
        %4157 = vmatprep.subr.bf16.mxu0 %v3873
        %4158 = vmatpush2.bf16.msra.mxu0 %v3872
        %4159 = vmatprep.subr.bf16.mxu0 %v3871
        %4160 = vmatpush2.bf16.msra.mxu0 %v3870
        %4161 = vmatprep.subr.bf16.mxu0 %v3869
        %4162 = vmatpush2.bf16.msra.mxu0 %v3868
        %4163 = vmatprep.subr.bf16.mxu0 %v3867
        %4164 = vmatpush2.bf16.msra.mxu0 %v3866
        %4165 = vmatprep.subr.bf16.mxu0 %v3865
        %4166 = vmatpush2.bf16.msra.mxu0 %v3864
        %4167 = vmatprep.subr.bf16.mxu0 %v3863
        %4168 = vmatpush2.bf16.msra.mxu0 %v3862
        %4169 = vmatprep.subr.bf16.mxu0 %v3861
        %4170 = vmatpush2.bf16.msra.mxu0 %v3860
        %4171 = vmatprep.subr.bf16.mxu0 %v3859
        %4172 = vmatpush2.bf16.msra.mxu0 %v3858
        %4173 = vmatprep.mubr.bf16.mxu0 %v3216
        %4174 = vmatmul.mubr.bf16.gmra.mxu0 %v3215
        %v4175 = vpop.f32.mrf.mxu0
        %v4176 = vadd.f32 %v4133, %v4175
        %v4177 = vpop.f32.mrf.mxu0
        %v4178 = vadd.f32 %v4135, %v4177
        %v4179 = vpop.f32.mrf.mxu0
        %v4180 = vadd.f32 %v4137, %v4179
        %v4181 = vpop.f32.mrf.mxu0
        %v4182 = vadd.f32 %v4139, %v4181
        %4183 = vdwg.mxu0
        %4184 = vmatprep.subr.bf16.mxu0 %v3889
        %4185 = vmatpush1.bf16.msra.mxu0 %v3888
        %4186 = vmatprep.subr.bf16.mxu0 %v3887
        %4187 = vmatpush1.bf16.msra.mxu0 %v3886
        %4188 = vmatprep.subr.bf16.mxu0 %v3885
        %4189 = vmatpush1.bf16.msra.mxu0 %v3884
        %4190 = vmatprep.subr.bf16.mxu0 %v3883
        %4191 = vmatpush1.bf16.msra.mxu0 %v3882
        %4192 = vmatprep.subr.bf16.mxu0 %v3881
        %4193 = vmatpush1.bf16.msra.mxu0 %v3880
        %4194 = vmatprep.subr.bf16.mxu0 %v3879
        %4195 = vmatpush1.bf16.msra.mxu0 %v3878
        %4196 = vmatprep.subr.bf16.mxu0 %v3877
        %4197 = vmatpush1.bf16.msra.mxu0 %v3876
        %4198 = vmatprep.subr.bf16.mxu0 %v3875
        %4199 = vmatpush1.bf16.msra.mxu0 %v3874
        %4200 = vmatprep.subr.bf16.mxu0 %v3905
        %4201 = vmatpush2.bf16.msra.mxu0 %v3904
        %4202 = vmatprep.subr.bf16.mxu0 %v3903
        %4203 = vmatpush2.bf16.msra.mxu0 %v3902
        %4204 = vmatprep.subr.bf16.mxu0 %v3901
        %4205 = vmatpush2.bf16.msra.mxu0 %v3900
        %4206 = vmatprep.subr.bf16.mxu0 %v3899
        %4207 = vmatpush2.bf16.msra.mxu0 %v3898
        %4208 = vmatprep.subr.bf16.mxu0 %v3897
        %4209 = vmatpush2.bf16.msra.mxu0 %v3896
        %4210 = vmatprep.subr.bf16.mxu0 %v3895
        %4211 = vmatpush2.bf16.msra.mxu0 %v3894
        %4212 = vmatprep.subr.bf16.mxu0 %v3893
        %4213 = vmatpush2.bf16.msra.mxu0 %v3892
        %4214 = vmatprep.subr.bf16.mxu0 %v3891
        %4215 = vmatpush2.bf16.msra.mxu0 %v3890
        %4216 = vmatprep.mubr.bf16.mxu0 %v3218
        %4217 = vmatmul.mubr.bf16.gmra.mxu0 %v3217
        %v4218 = vpop.f32.mrf.mxu0
        %v4219 = vadd.f32 %v4176, %v4218
        %v4220 = vpop.f32.mrf.mxu0
        %v4221 = vadd.f32 %v4178, %v4220
        %v4222 = vpop.f32.mrf.mxu0
        %v4223 = vadd.f32 %v4180, %v4222
        %v4224 = vpop.f32.mrf.mxu0
        %v4225 = vadd.f32 %v4182, %v4224
        %4226 = vdwg.mxu0
        %4227 = vmatprep.subr.bf16.mxu0 %v3921
        %4228 = vmatpush1.bf16.msra.mxu0 %v3920
        %4229 = vmatprep.subr.bf16.mxu0 %v3919
        %4230 = vmatpush1.bf16.msra.mxu0 %v3918
        %4231 = vmatprep.subr.bf16.mxu0 %v3917
        %4232 = vmatpush1.bf16.msra.mxu0 %v3916
        %4233 = vmatprep.subr.bf16.mxu0 %v3915
        %4234 = vmatpush1.bf16.msra.mxu0 %v3914
        %4235 = vmatprep.subr.bf16.mxu0 %v3913
        %4236 = vmatpush1.bf16.msra.mxu0 %v3912
        %4237 = vmatprep.subr.bf16.mxu0 %v3911
        %4238 = vmatpush1.bf16.msra.mxu0 %v3910
        %4239 = vmatprep.subr.bf16.mxu0 %v3909
        %4240 = vmatpush1.bf16.msra.mxu0 %v3908
        %4241 = vmatprep.subr.bf16.mxu0 %v3907
        %4242 = vmatpush1.bf16.msra.mxu0 %v3906
        %4243 = vmatprep.subr.bf16.mxu0 %v3937
        %4244 = vmatpush2.bf16.msra.mxu0 %v3936
        %4245 = vmatprep.subr.bf16.mxu0 %v3935
        %4246 = vmatpush2.bf16.msra.mxu0 %v3934
        %4247 = vmatprep.subr.bf16.mxu0 %v3933
        %4248 = vmatpush2.bf16.msra.mxu0 %v3932
        %4249 = vmatprep.subr.bf16.mxu0 %v3931
        %4250 = vmatpush2.bf16.msra.mxu0 %v3930
        %4251 = vmatprep.subr.bf16.mxu0 %v3929
        %4252 = vmatpush2.bf16.msra.mxu0 %v3928
        %4253 = vmatprep.subr.bf16.mxu0 %v3927
        %4254 = vmatpush2.bf16.msra.mxu0 %v3926
        %4255 = vmatprep.subr.bf16.mxu0 %v3925
        %4256 = vmatpush2.bf16.msra.mxu0 %v3924
        %4257 = vmatprep.subr.bf16.mxu0 %v3923
        %4258 = vmatpush2.bf16.msra.mxu0 %v3922
        %4259 = vmatprep.mubr.bf16.mxu0 %v3220
        %4260 = vmatmul.mubr.bf16.gmra.mxu0 %v3219
        %v4261 = vpop.f32.mrf.mxu0
        %v4262 = vadd.f32 %v4219, %v4261
        %v4263 = vpop.f32.mrf.mxu0
        %v4264 = vadd.f32 %v4221, %v4263
        %v4265 = vpop.f32.mrf.mxu0
        %v4266 = vadd.f32 %v4223, %v4265
        %v4267 = vpop.f32.mrf.mxu0
        %v4268 = vadd.f32 %v4225, %v4267
        %4269 = vdwg.mxu0
        %4270 = vmatprep.subr.bf16.mxu0 %v3953
        %4271 = vmatpush1.bf16.msra.mxu0 %v3952
        %4272 = vmatprep.subr.bf16.mxu0 %v3951
        %4273 = vmatpush1.bf16.msra.mxu0 %v3950
        %4274 = vmatprep.subr.bf16.mxu0 %v3949
        %4275 = vmatpush1.bf16.msra.mxu0 %v3948
        %4276 = vmatprep.subr.bf16.mxu0 %v3947
        %4277 = vmatpush1.bf16.msra.mxu0 %v3946
        %4278 = vmatprep.subr.bf16.mxu0 %v3945
        %4279 = vmatpush1.bf16.msra.mxu0 %v3944
        %4280 = vmatprep.subr.bf16.mxu0 %v3943
        %4281 = vmatpush1.bf16.msra.mxu0 %v3942
        %4282 = vmatprep.subr.bf16.mxu0 %v3941
        %4283 = vmatpush1.bf16.msra.mxu0 %v3940
        %4284 = vmatprep.subr.bf16.mxu0 %v3939
        %4285 = vmatpush1.bf16.msra.mxu0 %v3938
        %4286 = vmatprep.subr.bf16.mxu0 0
        %4287 = vmatpush2.bf16.msra.mxu0 0
        %4288 = vmatprep.subr.bf16.mxu0 0
        %4289 = vmatpush2.bf16.msra.mxu0 0
        %4290 = vmatprep.subr.bf16.mxu0 0
        %4291 = vmatpush2.bf16.msra.mxu0 0
        %4292 = vmatprep.subr.bf16.mxu0 0
        %4293 = vmatpush2.bf16.msra.mxu0 0
        %4294 = vmatprep.subr.bf16.mxu0 0
        %4295 = vmatpush2.bf16.msra.mxu0 0
        %4296 = vmatprep.subr.bf16.mxu0 0
        %4297 = vmatpush2.bf16.msra.mxu0 0
        %4298 = vmatprep.subr.bf16.mxu0 0
        %4299 = vmatpush2.bf16.msra.mxu0 0
        %4300 = vmatprep.subr.bf16.mxu0 0
        %4301 = vmatpush2.bf16.msra.mxu0 0
        %4302 = vmatprep.mubr.bf16.mxu0 0
        %4303 = vmatmul.mubr.bf16.gmra.mxu0 %v3221
        %v4304 = vpop.f32.mrf.mxu0
        %v4305 = vadd.f32 %v4262, %v4304
        %v4306 = vpop.f32.mrf.mxu0
        %v4307 = vadd.f32 %v4264, %v4306
        %v4308 = vpop.f32.mrf.mxu0
        %v4309 = vadd.f32 %v4266, %v4308
        %v4310 = vpop.f32.mrf.mxu0
        %v4311 = vadd.f32 %v4268, %v4310
        %4312 = vdwg.mxu0
        %vm4313 = vcmp.ge.f32.partialorder %v4305, 0.0
        %vm4314 = vcmp.ge.f32.partialorder %v4307, 0.0
        %vm4315 = vcmp.ge.f32.partialorder %v4309, 0.0
        %vm4316 = vcmp.ge.f32.partialorder %v4311, 0.0
        %v4317 = vmul.f32 %v4305, 0.2
        %v4318 = vmul.f32 %v4307, 0.2
        %v4319 = vmul.f32 %v4309, 0.2
        %v4320 = vmul.f32 %v4311, 0.2
        %v4321 = vsel %vm4313, %v4305, %v4317
        %v4322 = vsel %vm4314, %v4307, %v4318
        %v4323 = vsel %vm4315, %v4309, %v4319
        %v4324 = vsel %vm4316, %v4311, %v4320
        %v4325 = vpack.c.bf16 %v4323, %v4321
        %v4326 = vpack.c.bf16 %v4324, %v4322
        %v4327 = vld [vmem:[#allocation19] sm:$0x3]
        %vm4328 = vcmask 130048
        %v4330 = vsel %vm4328, %v4327, 0
        %4332 = vmatprep.subr.bf16.mxu0 0
        %4333 = vmatpush1.bf16.msra.mxu0 0
        %4334 = vmatprep.subr.bf16.mxu0 0
        %4335 = vmatpush1.bf16.msra.mxu0 0
        %4336 = vmatprep.subr.bf16.mxu0 0
        %4337 = vmatpush1.bf16.msra.mxu0 0
        %4338 = vmatprep.subr.bf16.mxu0 0
        %4339 = vmatpush1.bf16.msra.mxu0 0
        %4340 = vmatprep.subr.bf16.mxu0 0
        %4341 = vmatpush1.bf16.msra.mxu0 0
        %4342 = vmatprep.subr.bf16.mxu0 0
        %4343 = vmatpush1.bf16.msra.mxu0 0
        %4344 = vmatprep.subr.bf16.mxu0 0
        %4345 = vmatpush1.bf16.msra.mxu0 0
        %4346 = vmatprep.subr.bf16.mxu0 %v4326
        %4347 = vmatpush1.bf16.msra.mxu0 %v4325
        %4348 = vmatprep.subr.bf16.mxu0 0
        %4349 = vmatpush2.bf16.msra.mxu0 0
        %4350 = vmatprep.subr.bf16.mxu0 0
        %4351 = vmatpush2.bf16.msra.mxu0 0
        %4352 = vmatprep.subr.bf16.mxu0 0
        %4353 = vmatpush2.bf16.msra.mxu0 0
        %4354 = vmatprep.subr.bf16.mxu0 0
        %4355 = vmatpush2.bf16.msra.mxu0 0
        %4356 = vmatprep.subr.bf16.mxu0 0
        %4357 = vmatpush2.bf16.msra.mxu0 0
        %4358 = vmatprep.subr.bf16.mxu0 0
        %4359 = vmatpush2.bf16.msra.mxu0 0
        %4360 = vmatprep.subr.bf16.mxu0 0
        %4361 = vmatpush2.bf16.msra.mxu0 0
        %4362 = vmatprep.subr.bf16.mxu0 0
        %4363 = vmatpush2.bf16.msra.mxu0 0
        %4364 = vmatprep.mubr.bf16.mxu0 0
        %4365 = vmatmul.mubr.bf16.gmra.mxu0 %v4330
        %v4366 = vpop.f32.mrf.mxu0
        %v4367 = vadd.f32 0.0, %v4366
        %v4368 = vpop.f32.mrf.mxu0
        %v4369 = vadd.f32 0.0, %v4368
        %v4370 = vpop.f32.mrf.mxu0
        %v4371 = vpop.f32.mrf.mxu0
        %4372 = vdwg.mxu0
        %s4373 = scalar_lea.vmem [#allocation19], 2
        %v4374 = vld [vmem:[%s4373] sm:$0x3]
        %v4376 = vsel %vm4328, %v4374, 0
        %4378 = vmatprep.subr.bf16.mxu0 0
        %4379 = vmatpush1.bf16.msra.mxu0 0
        %4380 = vmatprep.subr.bf16.mxu0 0
        %4381 = vmatpush1.bf16.msra.mxu0 0
        %4382 = vmatprep.subr.bf16.mxu0 0
        %4383 = vmatpush1.bf16.msra.mxu0 0
        %4384 = vmatprep.subr.bf16.mxu0 0
        %4385 = vmatpush1.bf16.msra.mxu0 0
        %4386 = vmatprep.subr.bf16.mxu0 0
        %4387 = vmatpush1.bf16.msra.mxu0 0
        %4388 = vmatprep.subr.bf16.mxu0 0
        %4389 = vmatpush1.bf16.msra.mxu0 0
        %4390 = vmatprep.subr.bf16.mxu0 0
        %4391 = vmatpush1.bf16.msra.mxu0 0
        %4392 = vmatprep.subr.bf16.mxu0 %v4326
        %4393 = vmatpush1.bf16.msra.mxu0 %v4325
        %4394 = vmatprep.subr.bf16.mxu0 0
        %4395 = vmatpush2.bf16.msra.mxu0 0
        %4396 = vmatprep.subr.bf16.mxu0 0
        %4397 = vmatpush2.bf16.msra.mxu0 0
        %4398 = vmatprep.subr.bf16.mxu0 0
        %4399 = vmatpush2.bf16.msra.mxu0 0
        %4400 = vmatprep.subr.bf16.mxu0 0
        %4401 = vmatpush2.bf16.msra.mxu0 0
        %4402 = vmatprep.subr.bf16.mxu0 0
        %4403 = vmatpush2.bf16.msra.mxu0 0
        %4404 = vmatprep.subr.bf16.mxu0 0
        %4405 = vmatpush2.bf16.msra.mxu0 0
        %4406 = vmatprep.subr.bf16.mxu0 0
        %4407 = vmatpush2.bf16.msra.mxu0 0
        %4408 = vmatprep.subr.bf16.mxu0 0
        %4409 = vmatpush2.bf16.msra.mxu0 0
        %4410 = vmatprep.mubr.bf16.mxu0 0
        %4411 = vmatmul.mubr.bf16.gmra.mxu0 %v4376
        %v4412 = vpop.f32.mrf.mxu0
        %v4413 = vadd.f32 0.0, %v4412
        %v4414 = vpop.f32.mrf.mxu0
        %v4415 = vadd.f32 0.0, %v4414
        %v4416 = vpop.f32.mrf.mxu0
        %v4417 = vpop.f32.mrf.mxu0
        %4418 = vdwg.mxu0
        %s4419 = scalar_lea.vmem [#allocation19], 4
        %v4420 = vld [vmem:[%s4419] sm:$0x3]
        %v4422 = vsel %vm4328, %v4420, 0
        %4424 = vmatprep.subr.bf16.mxu0 0
        %4425 = vmatpush1.bf16.msra.mxu0 0
        %4426 = vmatprep.subr.bf16.mxu0 0
        %4427 = vmatpush1.bf16.msra.mxu0 0
        %4428 = vmatprep.subr.bf16.mxu0 0
        %4429 = vmatpush1.bf16.msra.mxu0 0
        %4430 = vmatprep.subr.bf16.mxu0 0
        %4431 = vmatpush1.bf16.msra.mxu0 0
        %4432 = vmatprep.subr.bf16.mxu0 0
        %4433 = vmatpush1.bf16.msra.mxu0 0
        %4434 = vmatprep.subr.bf16.mxu0 0
        %4435 = vmatpush1.bf16.msra.mxu0 0
        %4436 = vmatprep.subr.bf16.mxu0 0
        %4437 = vmatpush1.bf16.msra.mxu0 0
        %4438 = vmatprep.subr.bf16.mxu0 %v4326
        %4439 = vmatpush1.bf16.msra.mxu0 %v4325
        %4440 = vmatprep.subr.bf16.mxu0 0
        %4441 = vmatpush2.bf16.msra.mxu0 0
        %4442 = vmatprep.subr.bf16.mxu0 0
        %4443 = vmatpush2.bf16.msra.mxu0 0
        %4444 = vmatprep.subr.bf16.mxu0 0
        %4445 = vmatpush2.bf16.msra.mxu0 0
        %4446 = vmatprep.subr.bf16.mxu0 0
        %4447 = vmatpush2.bf16.msra.mxu0 0
        %4448 = vmatprep.subr.bf16.mxu0 0
        %4449 = vmatpush2.bf16.msra.mxu0 0
        %4450 = vmatprep.subr.bf16.mxu0 0
        %4451 = vmatpush2.bf16.msra.mxu0 0
        %4452 = vmatprep.subr.bf16.mxu0 0
        %4453 = vmatpush2.bf16.msra.mxu0 0
        %4454 = vmatprep.subr.bf16.mxu0 0
        %4455 = vmatpush2.bf16.msra.mxu0 0
        %4456 = vmatprep.mubr.bf16.mxu0 0
        %4457 = vmatmul.mubr.bf16.gmra.mxu0 %v4422
        %v4458 = vpop.f32.mrf.mxu0
        %v4459 = vadd.f32 0.0, %v4458
        %v4460 = vpop.f32.mrf.mxu0
        %v4461 = vadd.f32 0.0, %v4460
        %v4462 = vpop.f32.mrf.mxu0
        %v4463 = vpop.f32.mrf.mxu0
        %4464 = vdwg.mxu0
        %s4465 = scalar_lea.vmem [#allocation19], 6
        %v4466 = vld [vmem:[%s4465] sm:$0x3]
        %v4468 = vsel %vm4328, %v4466, 0
        %4470 = vmatprep.subr.bf16.mxu0 0
        %4471 = vmatpush1.bf16.msra.mxu0 0
        %4472 = vmatprep.subr.bf16.mxu0 0
        %4473 = vmatpush1.bf16.msra.mxu0 0
        %4474 = vmatprep.subr.bf16.mxu0 0
        %4475 = vmatpush1.bf16.msra.mxu0 0
        %4476 = vmatprep.subr.bf16.mxu0 0
        %4477 = vmatpush1.bf16.msra.mxu0 0
        %4478 = vmatprep.subr.bf16.mxu0 0
        %4479 = vmatpush1.bf16.msra.mxu0 0
        %4480 = vmatprep.subr.bf16.mxu0 0
        %4481 = vmatpush1.bf16.msra.mxu0 0
        %4482 = vmatprep.subr.bf16.mxu0 0
        %4483 = vmatpush1.bf16.msra.mxu0 0
        %4484 = vmatprep.subr.bf16.mxu0 %v4326
        %4485 = vmatpush1.bf16.msra.mxu0 %v4325
        %4486 = vmatprep.subr.bf16.mxu0 0
        %4487 = vmatpush2.bf16.msra.mxu0 0
        %4488 = vmatprep.subr.bf16.mxu0 0
        %4489 = vmatpush2.bf16.msra.mxu0 0
        %4490 = vmatprep.subr.bf16.mxu0 0
        %4491 = vmatpush2.bf16.msra.mxu0 0
        %4492 = vmatprep.subr.bf16.mxu0 0
        %4493 = vmatpush2.bf16.msra.mxu0 0
        %4494 = vmatprep.subr.bf16.mxu0 0
        %4495 = vmatpush2.bf16.msra.mxu0 0
        %4496 = vmatprep.subr.bf16.mxu0 0
        %4497 = vmatpush2.bf16.msra.mxu0 0
        %4498 = vmatprep.subr.bf16.mxu0 0
        %4499 = vmatpush2.bf16.msra.mxu0 0
        %4500 = vmatprep.subr.bf16.mxu0 0
        %4501 = vmatpush2.bf16.msra.mxu0 0
        %4502 = vmatprep.mubr.bf16.mxu0 0
        %4503 = vmatmul.mubr.bf16.gmra.mxu0 %v4468
        %v4504 = vpop.f32.mrf.mxu0
        %v4505 = vadd.f32 0.0, %v4504
        %v4506 = vpop.f32.mrf.mxu0
        %v4507 = vadd.f32 0.0, %v4506
        %v4508 = vpop.f32.mrf.mxu0
        %v4509 = vpop.f32.mrf.mxu0
        %4510 = vdwg.mxu0
        %s4511 = scalar_lea.vmem [#allocation19], 8
        %v4512 = vld [vmem:[%s4511] sm:$0x3]
        %v4514 = vsel %vm4328, %v4512, 0
        %4516 = vmatprep.subr.bf16.mxu0 0
        %4517 = vmatpush1.bf16.msra.mxu0 0
        %4518 = vmatprep.subr.bf16.mxu0 0
        %4519 = vmatpush1.bf16.msra.mxu0 0
        %4520 = vmatprep.subr.bf16.mxu0 0
        %4521 = vmatpush1.bf16.msra.mxu0 0
        %4522 = vmatprep.subr.bf16.mxu0 0
        %4523 = vmatpush1.bf16.msra.mxu0 0
        %4524 = vmatprep.subr.bf16.mxu0 0
        %4525 = vmatpush1.bf16.msra.mxu0 0
        %4526 = vmatprep.subr.bf16.mxu0 0
        %4527 = vmatpush1.bf16.msra.mxu0 0
        %4528 = vmatprep.subr.bf16.mxu0 0
        %4529 = vmatpush1.bf16.msra.mxu0 0
        %4530 = vmatprep.subr.bf16.mxu0 %v4326
        %4531 = vmatpush1.bf16.msra.mxu0 %v4325
        %4532 = vmatprep.subr.bf16.mxu0 0
        %4533 = vmatpush2.bf16.msra.mxu0 0
        %4534 = vmatprep.subr.bf16.mxu0 0
        %4535 = vmatpush2.bf16.msra.mxu0 0
        %4536 = vmatprep.subr.bf16.mxu0 0
        %4537 = vmatpush2.bf16.msra.mxu0 0
        %4538 = vmatprep.subr.bf16.mxu0 0
        %4539 = vmatpush2.bf16.msra.mxu0 0
        %4540 = vmatprep.subr.bf16.mxu0 0
        %4541 = vmatpush2.bf16.msra.mxu0 0
        %4542 = vmatprep.subr.bf16.mxu0 0
        %4543 = vmatpush2.bf16.msra.mxu0 0
        %4544 = vmatprep.subr.bf16.mxu0 0
        %4545 = vmatpush2.bf16.msra.mxu0 0
        %4546 = vmatprep.subr.bf16.mxu0 0
        %4547 = vmatpush2.bf16.msra.mxu0 0
        %4548 = vmatprep.mubr.bf16.mxu0 0
        %4549 = vmatmul.mubr.bf16.gmra.mxu0 %v4514
        %v4550 = vpop.f32.mrf.mxu0
        %v4551 = vadd.f32 0.0, %v4550
        %v4552 = vpop.f32.mrf.mxu0
        %v4553 = vadd.f32 0.0, %v4552
        %v4554 = vpop.f32.mrf.mxu0
        %v4555 = vpop.f32.mrf.mxu0
        %4556 = vdwg.mxu0
        %s4557 = scalar_lea.vmem [#allocation19], 10
        %v4558 = vld [vmem:[%s4557] sm:$0x3]
        %v4560 = vsel %vm4328, %v4558, 0
        %4562 = vmatprep.subr.bf16.mxu0 0
        %4563 = vmatpush1.bf16.msra.mxu0 0
        %4564 = vmatprep.subr.bf16.mxu0 0
        %4565 = vmatpush1.bf16.msra.mxu0 0
        %4566 = vmatprep.subr.bf16.mxu0 0
        %4567 = vmatpush1.bf16.msra.mxu0 0
        %4568 = vmatprep.subr.bf16.mxu0 0
        %4569 = vmatpush1.bf16.msra.mxu0 0
        %4570 = vmatprep.subr.bf16.mxu0 0
        %4571 = vmatpush1.bf16.msra.mxu0 0
        %4572 = vmatprep.subr.bf16.mxu0 0
        %4573 = vmatpush1.bf16.msra.mxu0 0
        %4574 = vmatprep.subr.bf16.mxu0 0
        %4575 = vmatpush1.bf16.msra.mxu0 0
        %4576 = vmatprep.subr.bf16.mxu0 %v4326
        %4577 = vmatpush1.bf16.msra.mxu0 %v4325
        %4578 = vmatprep.subr.bf16.mxu0 0
        %4579 = vmatpush2.bf16.msra.mxu0 0
        %4580 = vmatprep.subr.bf16.mxu0 0
        %4581 = vmatpush2.bf16.msra.mxu0 0
        %4582 = vmatprep.subr.bf16.mxu0 0
        %4583 = vmatpush2.bf16.msra.mxu0 0
        %4584 = vmatprep.subr.bf16.mxu0 0
        %4585 = vmatpush2.bf16.msra.mxu0 0
        %4586 = vmatprep.subr.bf16.mxu0 0
        %4587 = vmatpush2.bf16.msra.mxu0 0
        %4588 = vmatprep.subr.bf16.mxu0 0
        %4589 = vmatpush2.bf16.msra.mxu0 0
        %4590 = vmatprep.subr.bf16.mxu0 0
        %4591 = vmatpush2.bf16.msra.mxu0 0
        %4592 = vmatprep.subr.bf16.mxu0 0
        %4593 = vmatpush2.bf16.msra.mxu0 0
        %4594 = vmatprep.mubr.bf16.mxu0 0
        %4595 = vmatmul.mubr.bf16.gmra.mxu0 %v4560
        %v4596 = vpop.f32.mrf.mxu0
        %v4597 = vadd.f32 0.0, %v4596
        %v4598 = vpop.f32.mrf.mxu0
        %v4599 = vadd.f32 0.0, %v4598
        %v4600 = vpop.f32.mrf.mxu0
        %v4601 = vpop.f32.mrf.mxu0
        %4602 = vdwg.mxu0
        %s4603 = scalar_lea.vmem [#allocation19], 12
        %v4604 = vld [vmem:[%s4603] sm:$0x3]
        %v4606 = vsel %vm4328, %v4604, 0
        %4608 = vmatprep.subr.bf16.mxu0 0
        %4609 = vmatpush1.bf16.msra.mxu0 0
        %4610 = vmatprep.subr.bf16.mxu0 0
        %4611 = vmatpush1.bf16.msra.mxu0 0
        %4612 = vmatprep.subr.bf16.mxu0 0
        %4613 = vmatpush1.bf16.msra.mxu0 0
        %4614 = vmatprep.subr.bf16.mxu0 0
        %4615 = vmatpush1.bf16.msra.mxu0 0
        %4616 = vmatprep.subr.bf16.mxu0 0
        %4617 = vmatpush1.bf16.msra.mxu0 0
        %4618 = vmatprep.subr.bf16.mxu0 0
        %4619 = vmatpush1.bf16.msra.mxu0 0
        %4620 = vmatprep.subr.bf16.mxu0 0
        %4621 = vmatpush1.bf16.msra.mxu0 0
        %4622 = vmatprep.subr.bf16.mxu0 %v4326
        %4623 = vmatpush1.bf16.msra.mxu0 %v4325
        %4624 = vmatprep.subr.bf16.mxu0 0
        %4625 = vmatpush2.bf16.msra.mxu0 0
        %4626 = vmatprep.subr.bf16.mxu0 0
        %4627 = vmatpush2.bf16.msra.mxu0 0
        %4628 = vmatprep.subr.bf16.mxu0 0
        %4629 = vmatpush2.bf16.msra.mxu0 0
        %4630 = vmatprep.subr.bf16.mxu0 0
        %4631 = vmatpush2.bf16.msra.mxu0 0
        %4632 = vmatprep.subr.bf16.mxu0 0
        %4633 = vmatpush2.bf16.msra.mxu0 0
        %4634 = vmatprep.subr.bf16.mxu0 0
        %4635 = vmatpush2.bf16.msra.mxu0 0
        %4636 = vmatprep.subr.bf16.mxu0 0
        %4637 = vmatpush2.bf16.msra.mxu0 0
        %4638 = vmatprep.subr.bf16.mxu0 0
        %4639 = vmatpush2.bf16.msra.mxu0 0
        %4640 = vmatprep.mubr.bf16.mxu0 0
        %4641 = vmatmul.mubr.bf16.gmra.mxu0 %v4606
        %v4642 = vpop.f32.mrf.mxu0
        %v4643 = vadd.f32 0.0, %v4642
        %v4644 = vpop.f32.mrf.mxu0
        %v4645 = vadd.f32 0.0, %v4644
        %v4646 = vpop.f32.mrf.mxu0
        %v4647 = vpop.f32.mrf.mxu0
        %4648 = vdwg.mxu0
        %s4649 = scalar_lea.vmem [#allocation19], 14
        %v4650 = vld [vmem:[%s4649] sm:$0x3]
        %v4652 = vsel %vm4328, %v4650, 0
        %4654 = vmatprep.subr.bf16.mxu0 0
        %4655 = vmatpush1.bf16.msra.mxu0 0
        %4656 = vmatprep.subr.bf16.mxu0 0
        %4657 = vmatpush1.bf16.msra.mxu0 0
        %4658 = vmatprep.subr.bf16.mxu0 0
        %4659 = vmatpush1.bf16.msra.mxu0 0
        %4660 = vmatprep.subr.bf16.mxu0 0
        %4661 = vmatpush1.bf16.msra.mxu0 0
        %4662 = vmatprep.subr.bf16.mxu0 0
        %4663 = vmatpush1.bf16.msra.mxu0 0
        %4664 = vmatprep.subr.bf16.mxu0 0
        %4665 = vmatpush1.bf16.msra.mxu0 0
        %4666 = vmatprep.subr.bf16.mxu0 0
        %4667 = vmatpush1.bf16.msra.mxu0 0
        %4668 = vmatprep.subr.bf16.mxu0 %v4326
        %4669 = vmatpush1.bf16.msra.mxu0 %v4325
        %4670 = vmatprep.subr.bf16.mxu0 0
        %4671 = vmatpush2.bf16.msra.mxu0 0
        %4672 = vmatprep.subr.bf16.mxu0 0
        %4673 = vmatpush2.bf16.msra.mxu0 0
        %4674 = vmatprep.subr.bf16.mxu0 0
        %4675 = vmatpush2.bf16.msra.mxu0 0
        %4676 = vmatprep.subr.bf16.mxu0 0
        %4677 = vmatpush2.bf16.msra.mxu0 0
        %4678 = vmatprep.subr.bf16.mxu0 0
        %4679 = vmatpush2.bf16.msra.mxu0 0
        %4680 = vmatprep.subr.bf16.mxu0 0
        %4681 = vmatpush2.bf16.msra.mxu0 0
        %4682 = vmatprep.subr.bf16.mxu0 0
        %4683 = vmatpush2.bf16.msra.mxu0 0
        %4684 = vmatprep.subr.bf16.mxu0 0
        %4685 = vmatpush2.bf16.msra.mxu0 0
        %4686 = vmatprep.mubr.bf16.mxu0 0
        %4687 = vmatmul.mubr.bf16.gmra.mxu0 %v4652
        %v4688 = vpop.f32.mrf.mxu0
        %v4689 = vadd.f32 0.0, %v4688
        %v4690 = vpop.f32.mrf.mxu0
        %v4691 = vadd.f32 0.0, %v4690
        %v4692 = vpop.f32.mrf.mxu0
        %v4693 = vpop.f32.mrf.mxu0
        %4694 = vdwg.mxu0
        %s4695 = scalar_lea.vmem [#allocation19], 16
        %v4696 = vld [vmem:[%s4695] sm:$0x3]
        %v4698 = vsel %vm4328, %v4696, 0
        %4700 = vmatprep.subr.bf16.mxu0 0
        %4701 = vmatpush1.bf16.msra.mxu0 0
        %4702 = vmatprep.subr.bf16.mxu0 0
        %4703 = vmatpush1.bf16.msra.mxu0 0
        %4704 = vmatprep.subr.bf16.mxu0 0
        %4705 = vmatpush1.bf16.msra.mxu0 0
        %4706 = vmatprep.subr.bf16.mxu0 0
        %4707 = vmatpush1.bf16.msra.mxu0 0
        %4708 = vmatprep.subr.bf16.mxu0 0
        %4709 = vmatpush1.bf16.msra.mxu0 0
        %4710 = vmatprep.subr.bf16.mxu0 0
        %4711 = vmatpush1.bf16.msra.mxu0 0
        %4712 = vmatprep.subr.bf16.mxu0 0
        %4713 = vmatpush1.bf16.msra.mxu0 0
        %4714 = vmatprep.subr.bf16.mxu0 %v4326
        %4715 = vmatpush1.bf16.msra.mxu0 %v4325
        %4716 = vmatprep.subr.bf16.mxu0 0
        %4717 = vmatpush2.bf16.msra.mxu0 0
        %4718 = vmatprep.subr.bf16.mxu0 0
        %4719 = vmatpush2.bf16.msra.mxu0 0
        %4720 = vmatprep.subr.bf16.mxu0 0
        %4721 = vmatpush2.bf16.msra.mxu0 0
        %4722 = vmatprep.subr.bf16.mxu0 0
        %4723 = vmatpush2.bf16.msra.mxu0 0
        %4724 = vmatprep.subr.bf16.mxu0 0
        %4725 = vmatpush2.bf16.msra.mxu0 0
        %4726 = vmatprep.subr.bf16.mxu0 0
        %4727 = vmatpush2.bf16.msra.mxu0 0
        %4728 = vmatprep.subr.bf16.mxu0 0
        %4729 = vmatpush2.bf16.msra.mxu0 0
        %4730 = vmatprep.subr.bf16.mxu0 0
        %4731 = vmatpush2.bf16.msra.mxu0 0
        %4732 = vmatprep.mubr.bf16.mxu0 0
        %4733 = vmatmul.mubr.bf16.gmra.mxu0 %v4698
        %v4734 = vpop.f32.mrf.mxu0
        %v4735 = vadd.f32 0.0, %v4734
        %v4736 = vpop.f32.mrf.mxu0
        %v4737 = vadd.f32 0.0, %v4736
        %v4738 = vpop.f32.mrf.mxu0
        %v4739 = vpop.f32.mrf.mxu0
        %4740 = vdwg.mxu0
        %v4741 = vpack.c.bf16 %v4367, %v4367
        %v4742 = vpack.c.bf16 %v4369, %v4369
        %v4743 = vpack.c.bf16 %v4413, %v4413
        %v4744 = vpack.c.bf16 %v4415, %v4415
        %v4745 = vpack.c.bf16 %v4459, %v4459
        %v4746 = vpack.c.bf16 %v4461, %v4461
        %v4747 = vpack.c.bf16 %v4505, %v4505
        %v4748 = vpack.c.bf16 %v4507, %v4507
        %v4749 = vpack.c.bf16 %v4551, %v4551
        %v4750 = vpack.c.bf16 %v4553, %v4553
        %v4751 = vpack.c.bf16 %v4597, %v4597
        %v4752 = vpack.c.bf16 %v4599, %v4599
        %v4753 = vpack.c.bf16 %v4643, %v4643
        %v4754 = vpack.c.bf16 %v4645, %v4645
        %v4755 = vpack.c.bf16 %v4689, %v4689
        %v4756 = vpack.c.bf16 %v4691, %v4691
        %v4757 = vpack.c.bf16 %v4735, %v4735
        %v4758 = vpack.c.bf16 %v4737, %v4737
        %v4759 = vld [vmem:[#allocation11] sm:$0xff]
        %v4760 = vld [vmem:[#allocation11 + $0x8] sm:$0xff]
        %v4761 = vld [vmem:[#allocation11 + $0x10] sm:$0xff]
        %v4762 = vld [vmem:[#allocation11 + $0x18] sm:$0xff]
        %v4763 = vld [vmem:[#allocation11 + $0x20] sm:$0xff]
        %v4764 = vld [vmem:[#allocation11 + $0x28] sm:$0xff]
        %v4765 = vld [vmem:[#allocation11 + $0x30] sm:$0xff]
        %v4766 = vld [vmem:[#allocation11 + $0x38] sm:$0xff]
        %v4767 = vld [vmem:[#allocation11 + $0x40] sm:$0xff]
        %v4768 = vld [vmem:[#allocation11 + $0x48] sm:$0xff]
        %v4769 = vld [vmem:[#allocation11 + $0x50] sm:$0xff]
        %v4770 = vld [vmem:[#allocation11 + $0x58] sm:$0xff]
        %v4771 = vld [vmem:[#allocation11 + $0x60] sm:$0xff]
        %v4772 = vld [vmem:[#allocation11 + $0x68] sm:$0xff]
        %v4773 = vld [vmem:[#allocation11 + $0x70] sm:$0xff]
        %v4774 = vld [vmem:[#allocation11 + $0x78] sm:$0xff]
        %v4775 = vld [vmem:[#allocation11 + $0x80] sm:$0xff]
        %v4776 = vld [vmem:[#allocation11 + $0x88] sm:$0xff]
        %v4777 = vld [vmem:[#allocation11 + $0x90] sm:$0xff]
        %v4778 = vld [vmem:[#allocation11 + $0x98] sm:$0xff]
        %v4779 = vld [vmem:[#allocation11 + $0xa0] sm:$0xff]
        %v4780 = vld [vmem:[#allocation11 + $0xa8] sm:$0xff]
        %v4781 = vld [vmem:[#allocation11 + $0xb0] sm:$0xff]
        %v4782 = vld [vmem:[#allocation11 + $0xb8] sm:$0xff]
        %v4783 = vld [vmem:[#allocation11 + $0xc0] sm:$0xff]
        %v4784 = vld [vmem:[#allocation11 + $0xc8] sm:$0xff]
        %v4785 = vld [vmem:[#allocation11 + $0xd0] sm:$0xff]
        %v4786 = vld [vmem:[#allocation11 + $0xd8] sm:$0xff]
        %v4787 = vld [vmem:[#allocation11 + $0xe0] sm:$0xff]
        %v4788 = vld [vmem:[#allocation11 + $0xe8] sm:$0xff]
        %v4789 = vld [vmem:[#allocation11 + $0xf0] sm:$0xff]
        %v4790 = vld [vmem:[#allocation11 + $0xf8] sm:$0xff]
        %v4791 = vld [vmem:[#allocation11 + $0x100] sm:$0xff]
        %v4792 = vld [vmem:[#allocation11 + $0x108] sm:$0xff]
        %v4793 = vld [vmem:[#allocation11 + $0x110] sm:$0xff]
        %v4794 = vld [vmem:[#allocation11 + $0x118] sm:$0xff]
        %v4795 = vld [vmem:[#allocation11 + $0x120] sm:$0xff]
        %v4796 = vld [vmem:[#allocation11 + $0x128] sm:$0xff]
        %v4797 = vld [vmem:[#allocation11 + $0x130] sm:$0xff]
        %v4798 = vld [vmem:[#allocation11 + $0x138] sm:$0xff]
        %v4799 = vld [vmem:[#allocation11 + $0x140] sm:$0xff]
        %v4800 = vld [vmem:[#allocation11 + $0x148] sm:$0xff]
        %v4801 = vld [vmem:[#allocation11 + $0x150] sm:$0xff]
        %v4802 = vld [vmem:[#allocation11 + $0x158] sm:$0xff]
        %v4803 = vld [vmem:[#allocation11 + $0x160] sm:$0xff]
        %v4804 = vld [vmem:[#allocation11 + $0x168] sm:$0xff]
        %v4805 = vld [vmem:[#allocation11 + $0x170] sm:$0xff]
        %v4806 = vld [vmem:[#allocation11 + $0x178] sm:$0xff]
        %v4807 = vld [vmem:[#allocation11 + $0x180] sm:$0xff]
        %v4808 = vld [vmem:[#allocation11 + $0x188] sm:$0xff]
        %v4809 = vld [vmem:[#allocation11 + $0x190] sm:$0xff]
        %v4810 = vld [vmem:[#allocation11 + $0x198] sm:$0xff]
        %v4811 = vld [vmem:[#allocation11 + $0x1a0] sm:$0xff]
        %v4812 = vld [vmem:[#allocation11 + $0x1a8] sm:$0xff]
        %v4813 = vld [vmem:[#allocation11 + $0x1b0] sm:$0xff]
        %v4814 = vld [vmem:[#allocation11 + $0x1b8] sm:$0xff]
        %v4815 = vld [vmem:[#allocation11 + $0x1c0] sm:$0xff]
        %v4816 = vld [vmem:[#allocation11 + $0x1c8] sm:$0xff]
        %v4817 = vld [vmem:[#allocation11 + $0x1d0] sm:$0xff]
        %v4818 = vld [vmem:[#allocation11 + $0x1d8] sm:$0xff]
        %v4819 = vld [vmem:[#allocation11 + $0x1e0] sm:$0xff]
        %v4820 = vld [vmem:[#allocation11 + $0x1e8] sm:$0xff]
        %v4821 = vld [vmem:[#allocation11 + $0x1f0] sm:$0xff]
        %v4822 = vld [vmem:[#allocation11 + $0x1f8] sm:$0xff]
        %v4823 = vld [vmem:[#allocation11 + $0x200] sm:$0xff]
        %v4824 = vld [vmem:[#allocation11 + $0x208] sm:$0xff]
        %v4825 = vld [vmem:[#allocation11 + $0x210] sm:$0xff]
        %v4826 = vld [vmem:[#allocation11 + $0x218] sm:$0xff]
        %v4827 = vld [vmem:[#allocation11 + $0x220] sm:$0xff]
        %v4828 = vld [vmem:[#allocation11 + $0x228] sm:$0xff]
        %v4829 = vld [vmem:[#allocation11 + $0x230] sm:$0xff]
        %v4830 = vld [vmem:[#allocation11 + $0x238] sm:$0xff]
        %v4831 = vld [vmem:[#allocation11 + $0x240] sm:$0xff]
        %v4832 = vld [vmem:[#allocation11 + $0x248] sm:$0xff]
        %v4833 = vld [vmem:[#allocation11 + $0x250] sm:$0xff]
        %v4834 = vld [vmem:[#allocation11 + $0x258] sm:$0xff]
        %v4835 = vld [vmem:[#allocation11 + $0x260] sm:$0xff]
        %v4836 = vld [vmem:[#allocation11 + $0x268] sm:$0xff]
        %v4837 = vld [vmem:[#allocation11 + $0x270] sm:$0xff]
        %v4838 = vld [vmem:[#allocation11 + $0x278] sm:$0xff]
        %v4839 = vld [vmem:[#allocation11 + $0x280] sm:$0xff]
        %v4840 = vld [vmem:[#allocation11 + $0x288] sm:$0xff]
        %v4841 = vld [vmem:[#allocation11 + $0x290] sm:$0xff]
        %v4842 = vld [vmem:[#allocation11 + $0x298] sm:$0xff]
        %v4843 = vld [vmem:[#allocation11 + $0x2a0] sm:$0xff]
        %v4844 = vld [vmem:[#allocation11 + $0x2a8] sm:$0xff]
        %v4845 = vld [vmem:[#allocation11 + $0x2b0] sm:$0xff]
        %v4846 = vld [vmem:[#allocation11 + $0x2b8] sm:$0xff]
        %v4847 = vld [vmem:[#allocation11 + $0x2c0] sm:$0xff]
        %v4848 = vld [vmem:[#allocation11 + $0x2c8] sm:$0xff]
        %v4849 = vld [vmem:[#allocation11 + $0x2d0] sm:$0xff]
        %v4850 = vld [vmem:[#allocation11 + $0x2d8] sm:$0xff]
        %v4851 = vld [vmem:[#allocation11 + $0x2e0] sm:$0xff]
        %v4852 = vld [vmem:[#allocation11 + $0x2e8] sm:$0xff]
        %v4853 = vld [vmem:[#allocation11 + $0x2f0] sm:$0xff]
        %v4854 = vld [vmem:[#allocation11 + $0x2f8] sm:$0xff]
        %v4855 = vld [vmem:[#allocation11 + $0x300] sm:$0xff]
        %v4856 = vld [vmem:[#allocation11 + $0x308] sm:$0xff]
        %v4857 = vld [vmem:[#allocation11 + $0x310] sm:$0xff]
        %v4858 = vld [vmem:[#allocation11 + $0x318] sm:$0xff]
        %v4859 = vld [vmem:[#allocation11 + $0x320] sm:$0xff]
        %v4860 = vld [vmem:[#allocation11 + $0x328] sm:$0xff]
        %v4861 = vld [vmem:[#allocation11 + $0x330] sm:$0xff]
        %v4862 = vld [vmem:[#allocation11 + $0x338] sm:$0xff]
        %v4863 = vld [vmem:[#allocation11 + $0x340] sm:$0xff]
        %v4864 = vld [vmem:[#allocation11 + $0x348] sm:$0xff]
        %v4865 = vld [vmem:[#allocation11 + $0x350] sm:$0xff]
        %v4866 = vld [vmem:[#allocation11 + $0x358] sm:$0xff]
        %v4867 = vld [vmem:[#allocation11 + $0x360] sm:$0xff]
        %v4868 = vld [vmem:[#allocation11 + $0x368] sm:$0xff]
        %v4869 = vld [vmem:[#allocation11 + $0x370] sm:$0xff]
        %v4870 = vld [vmem:[#allocation11 + $0x378] sm:$0xff]
        %v4871 = vld [vmem:[#allocation11 + $0x380] sm:$0xff]
        %v4872 = vld [vmem:[#allocation11 + $0x388] sm:$0xff]
        %v4873 = vld [vmem:[#allocation11 + $0x390] sm:$0xff]
        %v4874 = vld [vmem:[#allocation11 + $0x398] sm:$0xff]
        %v4875 = vld [vmem:[#allocation11 + $0x3a0] sm:$0xff]
        %v4876 = vld [vmem:[#allocation11 + $0x3a8] sm:$0xff]
        %v4877 = vld [vmem:[#allocation11 + $0x3b0] sm:$0xff]
        %v4878 = vld [vmem:[#allocation11 + $0x3b8] sm:$0xff]
        %v4879 = vld [vmem:[#allocation11 + $0x3c0] sm:$0xff]
        %v4880 = vld [vmem:[#allocation11 + $0x3c8] sm:$0xff]
        %v4881 = vld [vmem:[#allocation11 + $0x3d0] sm:$0xff]
        %v4882 = vld [vmem:[#allocation11 + $0x3d8] sm:$0xff]
        %v4883 = vld [vmem:[#allocation11 + $0x3e0] sm:$0xff]
        %v4884 = vld [vmem:[#allocation11 + $0x3e8] sm:$0xff]
        %v4885 = vld [vmem:[#allocation11 + $0x3f0] sm:$0xff]
        %v4886 = vld [vmem:[#allocation11 + $0x3f8] sm:$0xff]
        %v4887 = vld [vmem:[#allocation11 + $0x400] sm:$0xff]
        %v4888 = vld [vmem:[#allocation11 + $0x408] sm:$0xff]
        %v4889 = vld [vmem:[#allocation11 + $0x410] sm:$0xff]
        %v4890 = vld [vmem:[#allocation11 + $0x418] sm:$0xff]
        %v4891 = vld [vmem:[#allocation11 + $0x420] sm:$0xff]
        %v4892 = vld [vmem:[#allocation11 + $0x428] sm:$0xff]
        %v4893 = vld [vmem:[#allocation11 + $0x430] sm:$0xff]
        %v4894 = vld [vmem:[#allocation11 + $0x438] sm:$0xff]
        %v4895 = vld [vmem:[#allocation11 + $0x440] sm:$0xff]
        %v4896 = vld [vmem:[#allocation11 + $0x448] sm:$0xff]
        %v4897 = vld [vmem:[#allocation11 + $0x450] sm:$0xff]
        %v4898 = vld [vmem:[#allocation11 + $0x458] sm:$0xff]
        %v4899 = vld [vmem:[#allocation11 + $0x460] sm:$0xff]
        %v4900 = vld [vmem:[#allocation11 + $0x468] sm:$0xff]
        %v4901 = vld [vmem:[#allocation11 + $0x470] sm:$0xff]
        %v4902 = vld [vmem:[#allocation11 + $0x478] sm:$0xff]
        %v4903 = vld [vmem:[#allocation11 + $0x480] sm:$0xff]
        %v4904 = vld [vmem:[#allocation11 + $0x488] sm:$0xff]
        %v4905 = vld [vmem:[#allocation11 + $0x490] sm:$0xff]
        %v4906 = vld [vmem:[#allocation11 + $0x498] sm:$0xff]
        %v4907 = vld [vmem:[#allocation11 + $0x4a0] sm:$0xff]
        %v4908 = vld [vmem:[#allocation11 + $0x4a8] sm:$0xff]
        %v4909 = vld [vmem:[#allocation11 + $0x4b0] sm:$0xff]
        %v4910 = vld [vmem:[#allocation11 + $0x4b8] sm:$0xff]
        %v4911 = vld [vmem:[#allocation11 + $0x4c0] sm:$0xff]
        %v4912 = vld [vmem:[#allocation11 + $0x4c8] sm:$0xff]
        %v4913 = vld [vmem:[#allocation11 + $0x4d0] sm:$0xff]
        %v4914 = vld [vmem:[#allocation11 + $0x4d8] sm:$0xff]
        %v4915 = vld [vmem:[#allocation11 + $0x4e0] sm:$0xff]
        %v4916 = vld [vmem:[#allocation11 + $0x4e8] sm:$0xff]
        %v4917 = vld [vmem:[#allocation11 + $0x4f0] sm:$0xff]
        %v4918 = vld [vmem:[#allocation11 + $0x4f8] sm:$0xff]
        %v4919 = vld [vmem:[#allocation11 + $0x500] sm:$0xff]
        %v4920 = vld [vmem:[#allocation11 + $0x508] sm:$0xff]
        %v4921 = vld [vmem:[#allocation11 + $0x510] sm:$0xff]
        %v4922 = vld [vmem:[#allocation11 + $0x518] sm:$0xff]
        %v4923 = vld [vmem:[#allocation11 + $0x520] sm:$0xff]
        %v4924 = vld [vmem:[#allocation11 + $0x528] sm:$0xff]
        %v4925 = vld [vmem:[#allocation11 + $0x530] sm:$0xff]
        %v4926 = vld [vmem:[#allocation11 + $0x538] sm:$0xff]
        %v4927 = vld [vmem:[#allocation11 + $0x540] sm:$0xff]
        %v4928 = vld [vmem:[#allocation11 + $0x548] sm:$0xff]
        %v4929 = vld [vmem:[#allocation11 + $0x550] sm:$0xff]
        %v4930 = vld [vmem:[#allocation11 + $0x558] sm:$0xff]
        %v4931 = vld [vmem:[#allocation11 + $0x560] sm:$0xff]
        %v4932 = vld [vmem:[#allocation11 + $0x568] sm:$0xff]
        %v4933 = vld [vmem:[#allocation11 + $0x570] sm:$0xff]
        %v4934 = vld [vmem:[#allocation11 + $0x578] sm:$0xff]
        %v4935 = vld [vmem:[#allocation11 + $0x580] sm:$0xff]
        %v4936 = vld [vmem:[#allocation11 + $0x588] sm:$0xff]
        %v4937 = vld [vmem:[#allocation11 + $0x590] sm:$0xff]
        %v4938 = vld [vmem:[#allocation11 + $0x598] sm:$0xff]
        %v4939 = vld [vmem:[#allocation11 + $0x5a0] sm:$0xff]
        %v4940 = vld [vmem:[#allocation11 + $0x5a8] sm:$0xff]
        %v4941 = vld [vmem:[#allocation11 + $0x5b0] sm:$0xff]
        %v4942 = vld [vmem:[#allocation11 + $0x5b8] sm:$0xff]
        %v4943 = vld [vmem:[#allocation11 + $0x5c0] sm:$0xff]
        %v4944 = vld [vmem:[#allocation11 + $0x5c8] sm:$0xff]
        %v4945 = vld [vmem:[#allocation11 + $0x5d0] sm:$0xff]
        %v4946 = vld [vmem:[#allocation11 + $0x5d8] sm:$0xff]
        %v4947 = vld [vmem:[#allocation11 + $0x5e0] sm:$0xff]
        %v4948 = vld [vmem:[#allocation11 + $0x5e8] sm:$0xff]
        %v4949 = vld [vmem:[#allocation11 + $0x5f0] sm:$0xff]
        %v4950 = vld [vmem:[#allocation11 + $0x5f8] sm:$0xff]
        %v4951 = vld [vmem:[#allocation11 + $0x600] sm:$0xff]
        %v4952 = vld [vmem:[#allocation11 + $0x608] sm:$0xff]
        %v4953 = vld [vmem:[#allocation11 + $0x610] sm:$0xff]
        %v4954 = vld [vmem:[#allocation11 + $0x618] sm:$0xff]
        %v4955 = vld [vmem:[#allocation11 + $0x620] sm:$0xff]
        %v4956 = vld [vmem:[#allocation11 + $0x628] sm:$0xff]
        %v4957 = vld [vmem:[#allocation11 + $0x630] sm:$0xff]
        %v4958 = vld [vmem:[#allocation11 + $0x638] sm:$0xff]
        %v4959 = vld [vmem:[#allocation11 + $0x640] sm:$0xff]
        %v4960 = vld [vmem:[#allocation11 + $0x648] sm:$0xff]
        %v4961 = vld [vmem:[#allocation11 + $0x650] sm:$0xff]
        %v4962 = vld [vmem:[#allocation11 + $0x658] sm:$0xff]
        %v4963 = vld [vmem:[#allocation11 + $0x660] sm:$0xff]
        %v4964 = vld [vmem:[#allocation11 + $0x668] sm:$0xff]
        %v4965 = vld [vmem:[#allocation11 + $0x670] sm:$0xff]
        %v4966 = vld [vmem:[#allocation11 + $0x678] sm:$0xff]
        %v4967 = vld [vmem:[#allocation11 + $0x680] sm:$0xff]
        %v4968 = vld [vmem:[#allocation11 + $0x688] sm:$0xff]
        %v4969 = vld [vmem:[#allocation11 + $0x690] sm:$0xff]
        %v4970 = vld [vmem:[#allocation11 + $0x698] sm:$0xff]
        %v4971 = vld [vmem:[#allocation11 + $0x6a0] sm:$0xff]
        %v4972 = vld [vmem:[#allocation11 + $0x6a8] sm:$0xff]
        %v4973 = vld [vmem:[#allocation11 + $0x6b0] sm:$0xff]
        %v4974 = vld [vmem:[#allocation11 + $0x6b8] sm:$0xff]
        %v4975 = vld [vmem:[#allocation11 + $0x6c0] sm:$0xff]
        %v4976 = vld [vmem:[#allocation11 + $0x6c8] sm:$0xff]
        %v4977 = vld [vmem:[#allocation11 + $0x6d0] sm:$0xff]
        %v4978 = vld [vmem:[#allocation11 + $0x6d8] sm:$0xff]
        %v4979 = vld [vmem:[#allocation11 + $0x6e0] sm:$0xff]
        %v4980 = vld [vmem:[#allocation11 + $0x6e8] sm:$0xff]
        %v4981 = vld [vmem:[#allocation11 + $0x6f0] sm:$0xff]
        %v4982 = vld [vmem:[#allocation11 + $0x6f8] sm:$0xff]
        %v4983 = vld [vmem:[#allocation11 + $0x700] sm:$0xff]
        %v4984 = vld [vmem:[#allocation11 + $0x708] sm:$0xff]
        %v4985 = vld [vmem:[#allocation11 + $0x710] sm:$0xff]
        %v4986 = vld [vmem:[#allocation11 + $0x718] sm:$0xff]
        %v4987 = vld [vmem:[#allocation11 + $0x720] sm:$0xff]
        %v4988 = vld [vmem:[#allocation11 + $0x728] sm:$0xff]
        %v4989 = vld [vmem:[#allocation11 + $0x730] sm:$0xff]
        %v4990 = vld [vmem:[#allocation11 + $0x738] sm:$0xff]
        %v4991 = vld [vmem:[#allocation11 + $0x740] sm:$0xff]
        %v4992 = vld [vmem:[#allocation11 + $0x748] sm:$0xff]
        %v4993 = vld [vmem:[#allocation11 + $0x750] sm:$0xff]
        %v4994 = vld [vmem:[#allocation11 + $0x758] sm:$0xff]
        %v4995 = vld [vmem:[#allocation11 + $0x760] sm:$0xff]
        %v4996 = vld [vmem:[#allocation11 + $0x768] sm:$0xff]
        %v4997 = vld [vmem:[#allocation11 + $0x770] sm:$0xff]
        %v4998 = vld [vmem:[#allocation11 + $0x778] sm:$0xff]
        %v4999 = vld [vmem:[#allocation11 + $0x780] sm:$0xff]
        %v5000 = vld [vmem:[#allocation11 + $0x788] sm:$0xff]
        %v5001 = vld [vmem:[#allocation11 + $0x790] sm:$0xff]
        %v5002 = vld [vmem:[#allocation11 + $0x798] sm:$0xff]
        %v5003 = vld [vmem:[#allocation11 + $0x7a0] sm:$0xff]
        %v5004 = vld [vmem:[#allocation11 + $0x7a8] sm:$0xff]
        %v5005 = vld [vmem:[#allocation11 + $0x7b0] sm:$0xff]
        %v5006 = vld [vmem:[#allocation11 + $0x7b8] sm:$0xff]
        %v5007 = vld [vmem:[#allocation11 + $0x7c0] sm:$0xff]
        %v5008 = vld [vmem:[#allocation11 + $0x7c8] sm:$0xff]
        %v5009 = vld [vmem:[#allocation11 + $0x7d0] sm:$0xff]
        %v5010 = vld [vmem:[#allocation11 + $0x7d8] sm:$0xff]
        %v5011 = vld [vmem:[#allocation11 + $0x7e0] sm:$0xff]
        %v5012 = vld [vmem:[#allocation11 + $0x7e8] sm:$0xff]
        %v5013 = vld [vmem:[#allocation11 + $0x7f0] sm:$0xff]
        %v5014 = vld [vmem:[#allocation11 + $0x7f8] sm:$0xff]
        %v5015 = vld [vmem:[#allocation11 + $0x800] sm:$0xff]
        %v5016 = vld [vmem:[#allocation11 + $0x808] sm:$0xff]
        %v5017 = vld [vmem:[#allocation11 + $0x810] sm:$0xff]
        %v5018 = vld [vmem:[#allocation11 + $0x818] sm:$0xff]
        %v5019 = vld [vmem:[#allocation11 + $0x820] sm:$0xff]
        %v5020 = vld [vmem:[#allocation11 + $0x828] sm:$0xff]
        %v5021 = vld [vmem:[#allocation11 + $0x830] sm:$0xff]
        %v5022 = vld [vmem:[#allocation11 + $0x838] sm:$0xff]
        %v5023 = vld [vmem:[#allocation11 + $0x840] sm:$0xff]
        %v5024 = vld [vmem:[#allocation11 + $0x848] sm:$0xff]
        %v5025 = vld [vmem:[#allocation11 + $0x850] sm:$0xff]
        %v5026 = vld [vmem:[#allocation11 + $0x858] sm:$0xff]
        %v5027 = vld [vmem:[#allocation11 + $0x860] sm:$0xff]
        %v5028 = vld [vmem:[#allocation11 + $0x868] sm:$0xff]
        %v5029 = vld [vmem:[#allocation11 + $0x870] sm:$0xff]
        %v5030 = vld [vmem:[#allocation11 + $0x878] sm:$0xff]
        %v5031 = vld [vmem:[#allocation11 + $0x880] sm:$0xff]
        %v5032 = vld [vmem:[#allocation11 + $0x888] sm:$0xff]
        %v5033 = vld [vmem:[#allocation11 + $0x890] sm:$0xff]
        %v5034 = vld [vmem:[#allocation11 + $0x898] sm:$0xff]
        %v5035 = vld [vmem:[#allocation11 + $0x8a0] sm:$0xff]
        %v5036 = vld [vmem:[#allocation11 + $0x8a8] sm:$0xff]
        %v5037 = vld [vmem:[#allocation11 + $0x8b0] sm:$0xff]
        %v5038 = vld [vmem:[#allocation11 + $0x8b8] sm:$0xff]
        %v5039 = vld [vmem:[#allocation11 + $0x8c0] sm:$0xff]
        %v5040 = vld [vmem:[#allocation11 + $0x8c8] sm:$0xff]
        %v5041 = vld [vmem:[#allocation11 + $0x8d0] sm:$0xff]
        %v5042 = vld [vmem:[#allocation11 + $0x8d8] sm:$0xff]
        %v5043 = vld [vmem:[#allocation11 + $0x8e0] sm:$0xff]
        %v5044 = vld [vmem:[#allocation11 + $0x8e8] sm:$0xff]
        %v5045 = vld [vmem:[#allocation11 + $0x8f0] sm:$0xff]
        %v5046 = vld [vmem:[#allocation11 + $0x8f8] sm:$0xff]
        %v5047 = vld [vmem:[#allocation11 + $0x900] sm:$0xff]
        %v5048 = vld [vmem:[#allocation11 + $0x908] sm:$0xff]
        %v5049 = vld [vmem:[#allocation11 + $0x910] sm:$0xff]
        %v5050 = vld [vmem:[#allocation11 + $0x918] sm:$0xff]
        %v5051 = vld [vmem:[#allocation11 + $0x920] sm:$0xff]
        %v5052 = vld [vmem:[#allocation11 + $0x928] sm:$0xff]
        %v5053 = vld [vmem:[#allocation11 + $0x930] sm:$0xff]
        %v5054 = vld [vmem:[#allocation11 + $0x938] sm:$0xff]
        %v5055 = vld [vmem:[#allocation11 + $0x940] sm:$0xff]
        %v5056 = vld [vmem:[#allocation11 + $0x948] sm:$0xff]
        %v5057 = vld [vmem:[#allocation11 + $0x950] sm:$0xff]
        %v5058 = vld [vmem:[#allocation11 + $0x958] sm:$0xff]
        %v5059 = vld [vmem:[#allocation11 + $0x960] sm:$0xff]
        %v5060 = vld [vmem:[#allocation11 + $0x968] sm:$0xff]
        %v5061 = vld [vmem:[#allocation11 + $0x970] sm:$0xff]
        %v5062 = vld [vmem:[#allocation11 + $0x978] sm:$0xff]
        %v5063 = vld [vmem:[#allocation11 + $0x980] sm:$0xff]
        %v5064 = vld [vmem:[#allocation11 + $0x988] sm:$0xff]
        %v5065 = vld [vmem:[#allocation11 + $0x990] sm:$0xff]
        %v5066 = vld [vmem:[#allocation11 + $0x998] sm:$0xff]
        %v5067 = vld [vmem:[#allocation11 + $0x9a0] sm:$0xff]
        %v5068 = vld [vmem:[#allocation11 + $0x9a8] sm:$0xff]
        %v5069 = vld [vmem:[#allocation11 + $0x9b0] sm:$0xff]
        %v5070 = vld [vmem:[#allocation11 + $0x9b8] sm:$0xff]
        %v5071 = vld [vmem:[#allocation11 + $0x9c0] sm:$0xff]
        %v5072 = vld [vmem:[#allocation11 + $0x9c8] sm:$0xff]
        %v5073 = vld [vmem:[#allocation11 + $0x9d0] sm:$0xff]
        %v5074 = vld [vmem:[#allocation11 + $0x9d8] sm:$0xff]
        %v5075 = vld [vmem:[#allocation11 + $0x9e0] sm:$0xff]
        %v5076 = vld [vmem:[#allocation11 + $0x9e8] sm:$0xff]
        %v5077 = vld [vmem:[#allocation11 + $0x9f0] sm:$0xff]
        %v5078 = vld [vmem:[#allocation11 + $0x9f8] sm:$0xff]
        %v5079 = vld [vmem:[#allocation11 + $0xa00] sm:$0xff]
        %v5080 = vld [vmem:[#allocation11 + $0xa08] sm:$0xff]
        %v5081 = vld [vmem:[#allocation11 + $0xa10] sm:$0xff]
        %v5082 = vld [vmem:[#allocation11 + $0xa18] sm:$0xff]
        %v5083 = vld [vmem:[#allocation11 + $0xa20] sm:$0xff]
        %v5084 = vld [vmem:[#allocation11 + $0xa28] sm:$0xff]
        %v5085 = vld [vmem:[#allocation11 + $0xa30] sm:$0xff]
        %v5086 = vld [vmem:[#allocation11 + $0xa38] sm:$0xff]
        %v5087 = vld [vmem:[#allocation11 + $0xa40] sm:$0xff]
        %v5088 = vld [vmem:[#allocation11 + $0xa48] sm:$0xff]
        %v5089 = vld [vmem:[#allocation11 + $0xa50] sm:$0xff]
        %v5090 = vld [vmem:[#allocation11 + $0xa58] sm:$0xff]
        %v5091 = vld [vmem:[#allocation11 + $0xa60] sm:$0xff]
        %v5092 = vld [vmem:[#allocation11 + $0xa68] sm:$0xff]
        %v5093 = vld [vmem:[#allocation11 + $0xa70] sm:$0xff]
        %v5094 = vld [vmem:[#allocation11 + $0xa78] sm:$0xff]
        %v5095 = vld [vmem:[#allocation11 + $0xa80] sm:$0xff]
        %v5096 = vld [vmem:[#allocation11 + $0xa88] sm:$0xff]
        %v5097 = vld [vmem:[#allocation11 + $0xa90] sm:$0xff]
        %v5098 = vld [vmem:[#allocation11 + $0xa98] sm:$0xff]
        %v5099 = vld [vmem:[#allocation11 + $0xaa0] sm:$0xff]
        %v5100 = vld [vmem:[#allocation11 + $0xaa8] sm:$0xff]
        %v5101 = vld [vmem:[#allocation11 + $0xab0] sm:$0xff]
        %v5102 = vld [vmem:[#allocation11 + $0xab8] sm:$0xff]
        %v5103 = vld [vmem:[#allocation11 + $0xac0] sm:$0xff]
        %v5104 = vld [vmem:[#allocation11 + $0xac8] sm:$0xff]
        %v5105 = vld [vmem:[#allocation11 + $0xad0] sm:$0xff]
        %v5106 = vld [vmem:[#allocation11 + $0xad8] sm:$0xff]
        %v5107 = vld [vmem:[#allocation11 + $0xae0] sm:$0xff]
        %v5108 = vld [vmem:[#allocation11 + $0xae8] sm:$0xff]
        %v5109 = vld [vmem:[#allocation11 + $0xaf0] sm:$0xff]
        %v5110 = vld [vmem:[#allocation11 + $0xaf8] sm:$0xff]
        %v5111 = vld [vmem:[#allocation11 + $0xb00] sm:$0xff]
        %v5112 = vld [vmem:[#allocation11 + $0xb08] sm:$0xff]
        %v5113 = vld [vmem:[#allocation11 + $0xb10] sm:$0xff]
        %v5114 = vld [vmem:[#allocation11 + $0xb18] sm:$0xff]
        %v5115 = vld [vmem:[#allocation11 + $0xb20] sm:$0xff]
        %v5116 = vld [vmem:[#allocation11 + $0xb28] sm:$0xff]
        %v5117 = vld [vmem:[#allocation11 + $0xb30] sm:$0xff]
        %v5118 = vld [vmem:[#allocation11 + $0xb38] sm:$0xff]
        %v5119 = vld [vmem:[#allocation11 + $0xb40] sm:$0xff]
        %v5120 = vld [vmem:[#allocation11 + $0xb48] sm:$0xff]
        %v5121 = vld [vmem:[#allocation11 + $0xb50] sm:$0xff]
        %v5122 = vld [vmem:[#allocation11 + $0xb58] sm:$0xff]
        %v5123 = vld [vmem:[#allocation11 + $0xb60] sm:$0xff]
        %v5124 = vld [vmem:[#allocation11 + $0xb68] sm:$0xff]
        %v5125 = vld [vmem:[#allocation11 + $0xb70] sm:$0xff]
        %v5126 = vld [vmem:[#allocation11 + $0xb78] sm:$0xff]
        %v5127 = vld [vmem:[#allocation11 + $0xb80] sm:$0xff]
        %v5128 = vld [vmem:[#allocation11 + $0xb88] sm:$0xff]
        %v5129 = vld [vmem:[#allocation11 + $0xb90] sm:$0xff]
        %v5130 = vld [vmem:[#allocation11 + $0xb98] sm:$0xff]
        %v5131 = vld [vmem:[#allocation11 + $0xba0] sm:$0xff]
        %v5132 = vld [vmem:[#allocation11 + $0xba8] sm:$0xff]
        %v5133 = vld [vmem:[#allocation11 + $0xbb0] sm:$0xff]
        %v5134 = vld [vmem:[#allocation11 + $0xbb8] sm:$0xff]
        %v5135 = vld [vmem:[#allocation11 + $0xbc0] sm:$0xff]
        %v5136 = vld [vmem:[#allocation11 + $0xbc8] sm:$0xff]
        %v5137 = vld [vmem:[#allocation11 + $0xbd0] sm:$0xff]
        %v5138 = vld [vmem:[#allocation11 + $0xbd8] sm:$0xff]
        %v5139 = vld [vmem:[#allocation11 + $0xbe0] sm:$0xff]
        %v5140 = vld [vmem:[#allocation11 + $0xbe8] sm:$0xff]
        %v5141 = vld [vmem:[#allocation11 + $0xbf0] sm:$0xff]
        %v5142 = vld [vmem:[#allocation11 + $0xbf8] sm:$0xff]
        %v5143 = vld [vmem:[#allocation11 + $0xc00] sm:$0xff]
        %v5144 = vld [vmem:[#allocation11 + $0xc08] sm:$0xff]
        %v5145 = vld [vmem:[#allocation11 + $0xc10] sm:$0xff]
        %v5146 = vld [vmem:[#allocation11 + $0xc18] sm:$0xff]
        %v5147 = vld [vmem:[#allocation11 + $0xc20] sm:$0xff]
        %v5148 = vld [vmem:[#allocation11 + $0xc28] sm:$0xff]
        %v5149 = vld [vmem:[#allocation11 + $0xc30] sm:$0xff]
        %v5150 = vld [vmem:[#allocation11 + $0xc38] sm:$0xff]
        %v5151 = vld [vmem:[#allocation11 + $0xc40] sm:$0xff]
        %v5152 = vld [vmem:[#allocation11 + $0xc48] sm:$0xff]
        %v5153 = vld [vmem:[#allocation11 + $0xc50] sm:$0xff]
        %v5154 = vld [vmem:[#allocation11 + $0xc58] sm:$0xff]
        %v5155 = vld [vmem:[#allocation11 + $0xc60] sm:$0xff]
        %v5156 = vld [vmem:[#allocation11 + $0xc68] sm:$0xff]
        %v5157 = vld [vmem:[#allocation11 + $0xc70] sm:$0xff]
        %v5158 = vld [vmem:[#allocation11 + $0xc78] sm:$0xff]
        %v5159 = vld [vmem:[#allocation11 + $0xc80] sm:$0xff]
        %v5160 = vld [vmem:[#allocation11 + $0xc88] sm:$0xff]
        %v5161 = vld [vmem:[#allocation11 + $0xc90] sm:$0xff]
        %v5162 = vld [vmem:[#allocation11 + $0xc98] sm:$0xff]
        %v5163 = vld [vmem:[#allocation11 + $0xca0] sm:$0xff]
        %v5164 = vld [vmem:[#allocation11 + $0xca8] sm:$0xff]
        %v5165 = vld [vmem:[#allocation11 + $0xcb0] sm:$0xff]
        %v5166 = vld [vmem:[#allocation11 + $0xcb8] sm:$0xff]
        %v5167 = vld [vmem:[#allocation11 + $0xcc0] sm:$0xff]
        %v5168 = vld [vmem:[#allocation11 + $0xcc8] sm:$0xff]
        %v5169 = vld [vmem:[#allocation11 + $0xcd0] sm:$0xff]
        %v5170 = vld [vmem:[#allocation11 + $0xcd8] sm:$0xff]
        %v5171 = vld [vmem:[#allocation11 + $0xce0] sm:$0xff]
        %v5172 = vld [vmem:[#allocation11 + $0xce8] sm:$0xff]
        %v5173 = vld [vmem:[#allocation11 + $0xcf0] sm:$0xff]
        %v5174 = vld [vmem:[#allocation11 + $0xcf8] sm:$0xff]
        %v5175 = vld [vmem:[#allocation11 + $0xd00] sm:$0xff]
        %v5176 = vld [vmem:[#allocation11 + $0xd08] sm:$0xff]
        %v5177 = vld [vmem:[#allocation11 + $0xd10] sm:$0xff]
        %v5178 = vld [vmem:[#allocation11 + $0xd18] sm:$0xff]
        %v5179 = vld [vmem:[#allocation11 + $0xd20] sm:$0xff]
        %v5180 = vld [vmem:[#allocation11 + $0xd28] sm:$0xff]
        %v5181 = vld [vmem:[#allocation11 + $0xd30] sm:$0xff]
        %v5182 = vld [vmem:[#allocation11 + $0xd38] sm:$0xff]
        %v5183 = vld [vmem:[#allocation11 + $0xd40] sm:$0xff]
        %v5184 = vld [vmem:[#allocation11 + $0xd48] sm:$0xff]
        %v5185 = vld [vmem:[#allocation11 + $0xd50] sm:$0xff]
        %v5186 = vld [vmem:[#allocation11 + $0xd58] sm:$0xff]
        %v5187 = vld [vmem:[#allocation11 + $0xd60] sm:$0xff]
        %v5188 = vld [vmem:[#allocation11 + $0xd68] sm:$0xff]
        %v5189 = vld [vmem:[#allocation11 + $0xd70] sm:$0xff]
        %v5190 = vld [vmem:[#allocation11 + $0xd78] sm:$0xff]
        %v5191 = vld [vmem:[#allocation11 + $0xd80] sm:$0xff]
        %v5192 = vld [vmem:[#allocation11 + $0xd88] sm:$0xff]
        %v5193 = vld [vmem:[#allocation11 + $0xd90] sm:$0xff]
        %v5194 = vld [vmem:[#allocation11 + $0xd98] sm:$0xff]
        %v5195 = vld [vmem:[#allocation11 + $0xda0] sm:$0xff]
        %v5196 = vld [vmem:[#allocation11 + $0xda8] sm:$0xff]
        %v5197 = vld [vmem:[#allocation11 + $0xdb0] sm:$0xff]
        %v5198 = vld [vmem:[#allocation11 + $0xdb8] sm:$0xff]
        %v5199 = vld [vmem:[#allocation11 + $0xdc0] sm:$0xff]
        %v5200 = vld [vmem:[#allocation11 + $0xdc8] sm:$0xff]
        %v5201 = vld [vmem:[#allocation11 + $0xdd0] sm:$0xff]
        %v5202 = vld [vmem:[#allocation11 + $0xdd8] sm:$0xff]
        %v5203 = vld [vmem:[#allocation11 + $0xde0] sm:$0xff]
        %v5204 = vld [vmem:[#allocation11 + $0xde8] sm:$0xff]
        %v5205 = vld [vmem:[#allocation11 + $0xdf0] sm:$0xff]
        %v5206 = vld [vmem:[#allocation11 + $0xdf8] sm:$0xff]
        %v5207 = vld [vmem:[#allocation11 + $0xe00] sm:$0xff]
        %v5208 = vld [vmem:[#allocation11 + $0xe08] sm:$0xff]
        %v5209 = vld [vmem:[#allocation11 + $0xe10] sm:$0xff]
        %v5210 = vld [vmem:[#allocation11 + $0xe18] sm:$0xff]
        %v5211 = vld [vmem:[#allocation11 + $0xe20] sm:$0xff]
        %v5212 = vld [vmem:[#allocation11 + $0xe28] sm:$0xff]
        %v5213 = vld [vmem:[#allocation11 + $0xe30] sm:$0xff]
        %v5214 = vld [vmem:[#allocation11 + $0xe38] sm:$0xff]
        %v5215 = vld [vmem:[#allocation11 + $0xe40] sm:$0xff]
        %v5216 = vld [vmem:[#allocation11 + $0xe48] sm:$0xff]
        %v5217 = vld [vmem:[#allocation11 + $0xe50] sm:$0xff]
        %v5218 = vld [vmem:[#allocation11 + $0xe58] sm:$0xff]
        %v5219 = vld [vmem:[#allocation11 + $0xe60] sm:$0xff]
        %v5220 = vld [vmem:[#allocation11 + $0xe68] sm:$0xff]
        %v5221 = vld [vmem:[#allocation11 + $0xe70] sm:$0xff]
        %v5222 = vld [vmem:[#allocation11 + $0xe78] sm:$0xff]
        %v5223 = vld [vmem:[#allocation11 + $0xe80] sm:$0xff]
        %v5224 = vld [vmem:[#allocation11 + $0xe88] sm:$0xff]
        %v5225 = vld [vmem:[#allocation11 + $0xe90] sm:$0xff]
        %v5226 = vld [vmem:[#allocation11 + $0xe98] sm:$0xff]
        %v5227 = vld [vmem:[#allocation11 + $0xea0] sm:$0xff]
        %v5228 = vld [vmem:[#allocation11 + $0xea8] sm:$0xff]
        %v5229 = vld [vmem:[#allocation11 + $0xeb0] sm:$0xff]
        %v5230 = vld [vmem:[#allocation11 + $0xeb8] sm:$0xff]
        %v5231 = vld [vmem:[#allocation11 + $0xec0] sm:$0xff]
        %v5232 = vld [vmem:[#allocation11 + $0xec8] sm:$0xff]
        %v5233 = vld [vmem:[#allocation11 + $0xed0] sm:$0xff]
        %v5234 = vld [vmem:[#allocation11 + $0xed8] sm:$0xff]
        %v5235 = vld [vmem:[#allocation11 + $0xee0] sm:$0xff]
        %v5236 = vld [vmem:[#allocation11 + $0xee8] sm:$0xff]
        %v5237 = vld [vmem:[#allocation11 + $0xef0] sm:$0xff]
        %v5238 = vld [vmem:[#allocation11 + $0xef8] sm:$0xff]
        %v5239 = vld [vmem:[#allocation11 + $0xf00] sm:$0xff]
        %v5240 = vld [vmem:[#allocation11 + $0xf08] sm:$0xff]
        %v5241 = vld [vmem:[#allocation11 + $0xf10] sm:$0xff]
        %v5242 = vld [vmem:[#allocation11 + $0xf18] sm:$0xff]
        %v5243 = vld [vmem:[#allocation11 + $0xf20] sm:$0xff]
        %v5244 = vld [vmem:[#allocation11 + $0xf28] sm:$0xff]
        %v5245 = vld [vmem:[#allocation11 + $0xf30] sm:$0xff]
        %v5246 = vld [vmem:[#allocation11 + $0xf38] sm:$0xff]
        %v5247 = vld [vmem:[#allocation11 + $0xf40] sm:$0xff]
        %v5248 = vld [vmem:[#allocation11 + $0xf48] sm:$0xff]
        %v5249 = vld [vmem:[#allocation11 + $0xf50] sm:$0xff]
        %v5250 = vld [vmem:[#allocation11 + $0xf58] sm:$0xff]
        %v5251 = vld [vmem:[#allocation11 + $0xf60] sm:$0xff]
        %v5252 = vld [vmem:[#allocation11 + $0xf68] sm:$0xff]
        %v5253 = vld [vmem:[#allocation11 + $0xf70] sm:$0xff]
        %v5254 = vld [vmem:[#allocation11 + $0xf78] sm:$0xff]
        %v5255 = vld [vmem:[#allocation11 + $0xf80] sm:$0xff]
        %v5256 = vld [vmem:[#allocation11 + $0xf88] sm:$0xff]
        %v5257 = vld [vmem:[#allocation11 + $0xf90] sm:$0xff]
        %v5258 = vld [vmem:[#allocation11 + $0xf98] sm:$0xff]
        %v5259 = vld [vmem:[#allocation11 + $0xfa0] sm:$0xff]
        %v5260 = vld [vmem:[#allocation11 + $0xfa8] sm:$0xff]
        %v5261 = vld [vmem:[#allocation11 + $0xfb0] sm:$0xff]
        %v5262 = vld [vmem:[#allocation11 + $0xfb8] sm:$0xff]
        %v5263 = vld [vmem:[#allocation11 + $0xfc0] sm:$0xff]
        %v5264 = vld [vmem:[#allocation11 + $0xfc8] sm:$0xff]
        %v5265 = vld [vmem:[#allocation11 + $0xfd0] sm:$0xff]
        %v5266 = vld [vmem:[#allocation11 + $0xfd8] sm:$0xff]
        %v5267 = vld [vmem:[#allocation11 + $0xfe0] sm:$0xff]
        %v5268 = vld [vmem:[#allocation11 + $0xfe8] sm:$0xff]
        %v5269 = vld [vmem:[#allocation11 + $0xff0] sm:$0xff]
        %v5270 = vld [vmem:[#allocation11 + $0xff8] sm:$0xff]
        %v5271 = vld [vmem:[#allocation11 + $0x1000] sm:$0xff]
        %v5272 = vld [vmem:[#allocation11 + $0x1008] sm:$0xff]
        %v5273 = vld [vmem:[#allocation11 + $0x1010] sm:$0xff]
        %v5274 = vld [vmem:[#allocation11 + $0x1018] sm:$0xff]
        %v5275 = vld [vmem:[#allocation11 + $0x1020] sm:$0xff]
        %v5276 = vld [vmem:[#allocation11 + $0x1028] sm:$0xff]
        %v5277 = vld [vmem:[#allocation11 + $0x1030] sm:$0xff]
        %v5278 = vld [vmem:[#allocation11 + $0x1038] sm:$0xff]
        %v5279 = vld [vmem:[#allocation11 + $0x1040] sm:$0xff]
        %v5280 = vld [vmem:[#allocation11 + $0x1048] sm:$0xff]
        %v5281 = vld [vmem:[#allocation11 + $0x1050] sm:$0xff]
        %v5282 = vld [vmem:[#allocation11 + $0x1058] sm:$0xff]
        %v5283 = vld [vmem:[#allocation11 + $0x1060] sm:$0xff]
        %v5284 = vld [vmem:[#allocation11 + $0x1068] sm:$0xff]
        %v5285 = vld [vmem:[#allocation11 + $0x1070] sm:$0xff]
        %v5286 = vld [vmem:[#allocation11 + $0x1078] sm:$0xff]
        %v5287 = vld [vmem:[#allocation11 + $0x1080] sm:$0xff]
        %v5288 = vld [vmem:[#allocation11 + $0x1088] sm:$0xff]
        %v5289 = vld [vmem:[#allocation11 + $0x1090] sm:$0xff]
        %v5290 = vld [vmem:[#allocation11 + $0x1098] sm:$0xff]
        %v5291 = vld [vmem:[#allocation11 + $0x10a0] sm:$0xff]
        %v5292 = vld [vmem:[#allocation11 + $0x10a8] sm:$0xff]
        %v5293 = vld [vmem:[#allocation11 + $0x10b0] sm:$0xff]
        %v5294 = vld [vmem:[#allocation11 + $0x10b8] sm:$0xff]
        %v5295 = vld [vmem:[#allocation11 + $0x10c0] sm:$0xff]
        %v5296 = vld [vmem:[#allocation11 + $0x10c8] sm:$0xff]
        %v5297 = vld [vmem:[#allocation11 + $0x10d0] sm:$0xff]
        %v5298 = vld [vmem:[#allocation11 + $0x10d8] sm:$0xff]
        %v5299 = vld [vmem:[#allocation11 + $0x10e0] sm:$0xff]
        %v5300 = vld [vmem:[#allocation11 + $0x10e8] sm:$0xff]
        %v5301 = vld [vmem:[#allocation11 + $0x10f0] sm:$0xff]
        %v5302 = vld [vmem:[#allocation11 + $0x10f8] sm:$0xff]
        %v5303 = vld [vmem:[#allocation11 + $0x1100] sm:$0xff]
        %v5304 = vld [vmem:[#allocation11 + $0x1108] sm:$0xff]
        %v5305 = vld [vmem:[#allocation11 + $0x1110] sm:$0xff]
        %v5306 = vld [vmem:[#allocation11 + $0x1118] sm:$0xff]
        %v5307 = vld [vmem:[#allocation11 + $0x1120] sm:$0xff]
        %v5308 = vld [vmem:[#allocation11 + $0x1128] sm:$0xff]
        %v5309 = vld [vmem:[#allocation11 + $0x1130] sm:$0xff]
        %v5310 = vld [vmem:[#allocation11 + $0x1138] sm:$0xff]
        %v5311 = vld [vmem:[#allocation11 + $0x1140] sm:$0xff]
        %v5312 = vld [vmem:[#allocation11 + $0x1148] sm:$0xff]
        %v5313 = vld [vmem:[#allocation11 + $0x1150] sm:$0xff]
        %v5314 = vld [vmem:[#allocation11 + $0x1158] sm:$0xff]
        %v5315 = vld [vmem:[#allocation11 + $0x1160] sm:$0xff]
        %v5316 = vld [vmem:[#allocation11 + $0x1168] sm:$0xff]
        %v5317 = vld [vmem:[#allocation11 + $0x1170] sm:$0xff]
        %v5318 = vld [vmem:[#allocation11 + $0x1178] sm:$0xff]
        %v5319 = vld [vmem:[#allocation11 + $0x1180] sm:$0xff]
        %v5320 = vld [vmem:[#allocation11 + $0x1188] sm:$0xff]
        %v5321 = vld [vmem:[#allocation11 + $0x1190] sm:$0xff]
        %v5322 = vld [vmem:[#allocation11 + $0x1198] sm:$0xff]
        %v5323 = vld [vmem:[#allocation11 + $0x11a0] sm:$0xff]
        %v5324 = vld [vmem:[#allocation11 + $0x11a8] sm:$0xff]
        %v5325 = vld [vmem:[#allocation11 + $0x11b0] sm:$0xff]
        %v5326 = vld [vmem:[#allocation11 + $0x11b8] sm:$0xff]
        %v5327 = vld [vmem:[#allocation11 + $0x11c0] sm:$0xff]
        %v5328 = vld [vmem:[#allocation11 + $0x11c8] sm:$0xff]
        %v5329 = vld [vmem:[#allocation11 + $0x11d0] sm:$0xff]
        %v5330 = vld [vmem:[#allocation11 + $0x11d8] sm:$0xff]
        %v5331 = vld [vmem:[#allocation11 + $0x11e0] sm:$0xff]
        %v5332 = vld [vmem:[#allocation11 + $0x11e8] sm:$0xff]
        %v5333 = vld [vmem:[#allocation11 + $0x11f0] sm:$0xff]
        %v5334 = vld [vmem:[#allocation11 + $0x11f8] sm:$0xff]
        %v5335 = vld [vmem:[#allocation13] sm:$0xf]
        %v5337 = vlaneseq
        %v5338 = vshrl.u32 %v5337, 7
        %v5339 = vsub.s32 0, %v5338
        %v5340 = vrot.slane %v5335, %v5339
        %v5341 = vlaneseq
        %v5342 = vshrl.u32 %v5341, 7
        %v5343 = vsub.s32 1, %v5342
        %v5344 = vrot.slane %v5335, %v5343
        %v5345 = vlaneseq
        %v5346 = vshrl.u32 %v5345, 7
        %v5347 = vsub.s32 2, %v5346
        %v5348 = vrot.slane %v5335, %v5347
        %v5349 = vlaneseq
        %v5350 = vshrl.u32 %v5349, 7
        %v5351 = vsub.s32 3, %v5350
        %v5352 = vrot.slane %v5335, %v5351
        %v5933 = vunpack.c.l.b16 %v4759
        %v5934 = vunpack.c.h.b16 %v4759
        %v5935 = vunpack.c.l.b16 %v4760
        %v5936 = vunpack.c.h.b16 %v4760
        %v5937 = vunpack.c.l.b16 %v4761
        %v5938 = vunpack.c.h.b16 %v4761
        %v5939 = vunpack.c.l.b16 %v4762
        %v5940 = vunpack.c.h.b16 %v4762
        %v5941 = vunpack.c.l.b16 %v4763
        %v5942 = vunpack.c.h.b16 %v4763
        %v5943 = vunpack.c.l.b16 %v4764
        %v5944 = vunpack.c.h.b16 %v4764
        %v5945 = vunpack.c.l.b16 %v4765
        %v5946 = vunpack.c.h.b16 %v4765
        %v5947 = vunpack.c.l.b16 %v4766
        %v5948 = vunpack.c.h.b16 %v4766
        %v5949 = vunpack.c.l.b16 %v4767
        %v5950 = vunpack.c.h.b16 %v4767
        %v5951 = vunpack.c.l.b16 %v4768
        %v5952 = vunpack.c.h.b16 %v4768
        %v5953 = vunpack.c.l.b16 %v4769
        %v5954 = vunpack.c.h.b16 %v4769
        %v5955 = vunpack.c.l.b16 %v4770
        %v5956 = vunpack.c.h.b16 %v4770
        %v5957 = vunpack.c.l.b16 %v4771
        %v5958 = vunpack.c.h.b16 %v4771
        %v5959 = vunpack.c.l.b16 %v4772
        %v5960 = vunpack.c.h.b16 %v4772
        %v5961 = vunpack.c.l.b16 %v4773
        %v5962 = vunpack.c.h.b16 %v4773
        %v5963 = vunpack.c.l.b16 %v4774
        %v5964 = vunpack.c.h.b16 %v4774
        %v5965 = vunpack.c.l.b16 %v4775
        %v5966 = vunpack.c.h.b16 %v4775
        %v5967 = vunpack.c.l.b16 %v4776
        %v5968 = vunpack.c.h.b16 %v4776
        %v5969 = vunpack.c.l.b16 %v4777
        %v5970 = vunpack.c.h.b16 %v4777
        %v5971 = vunpack.c.l.b16 %v4778
        %v5972 = vunpack.c.h.b16 %v4778
        %v5973 = vunpack.c.l.b16 %v4779
        %v5974 = vunpack.c.h.b16 %v4779
        %v5975 = vunpack.c.l.b16 %v4780
        %v5976 = vunpack.c.h.b16 %v4780
        %v5977 = vunpack.c.l.b16 %v4781
        %v5978 = vunpack.c.h.b16 %v4781
        %v5979 = vunpack.c.l.b16 %v4782
        %v5980 = vunpack.c.h.b16 %v4782
        %v5981 = vunpack.c.l.b16 %v4783
        %v5982 = vunpack.c.h.b16 %v4783
        %v5983 = vunpack.c.l.b16 %v4784
        %v5984 = vunpack.c.h.b16 %v4784
        %v5985 = vunpack.c.l.b16 %v4785
        %v5986 = vunpack.c.h.b16 %v4785
        %v5987 = vunpack.c.l.b16 %v4786
        %v5988 = vunpack.c.h.b16 %v4786
        %v5989 = vunpack.c.l.b16 %v4787
        %v5990 = vunpack.c.h.b16 %v4787
        %v5991 = vunpack.c.l.b16 %v4788
        %v5992 = vunpack.c.h.b16 %v4788
        %v5993 = vunpack.c.l.b16 %v4789
        %v5994 = vunpack.c.h.b16 %v4789
        %v5995 = vunpack.c.l.b16 %v4790
        %v5996 = vunpack.c.h.b16 %v4790
        %v5997 = vunpack.c.l.b16 %v4791
        %v5998 = vunpack.c.h.b16 %v4791
        %v5999 = vunpack.c.l.b16 %v4792
        %v6000 = vunpack.c.h.b16 %v4792
        %v6001 = vunpack.c.l.b16 %v4793
        %v6002 = vunpack.c.h.b16 %v4793
        %v6003 = vunpack.c.l.b16 %v4794
        %v6004 = vunpack.c.h.b16 %v4794
        %v6005 = vunpack.c.l.b16 %v4795
        %v6006 = vunpack.c.h.b16 %v4795
        %v6007 = vunpack.c.l.b16 %v4796
        %v6008 = vunpack.c.h.b16 %v4796
        %v6009 = vunpack.c.l.b16 %v4797
        %v6010 = vunpack.c.h.b16 %v4797
        %v6011 = vunpack.c.l.b16 %v4798
        %v6012 = vunpack.c.h.b16 %v4798
        %v6013 = vunpack.c.l.b16 %v4799
        %v6014 = vunpack.c.h.b16 %v4799
        %v6015 = vunpack.c.l.b16 %v4800
        %v6016 = vunpack.c.h.b16 %v4800
        %v6017 = vunpack.c.l.b16 %v4801
        %v6018 = vunpack.c.h.b16 %v4801
        %v6019 = vunpack.c.l.b16 %v4802
        %v6020 = vunpack.c.h.b16 %v4802
        %v6021 = vunpack.c.l.b16 %v4803
        %v6022 = vunpack.c.h.b16 %v4803
        %v6023 = vunpack.c.l.b16 %v4804
        %v6024 = vunpack.c.h.b16 %v4804
        %v6025 = vunpack.c.l.b16 %v4805
        %v6026 = vunpack.c.h.b16 %v4805
        %v6027 = vunpack.c.l.b16 %v4806
        %v6028 = vunpack.c.h.b16 %v4806
        %v6029 = vunpack.c.l.b16 %v4807
        %v6030 = vunpack.c.h.b16 %v4807
        %v6031 = vunpack.c.l.b16 %v4808
        %v6032 = vunpack.c.h.b16 %v4808
        %v6033 = vunpack.c.l.b16 %v4809
        %v6034 = vunpack.c.h.b16 %v4809
        %v6035 = vunpack.c.l.b16 %v4810
        %v6036 = vunpack.c.h.b16 %v4810
        %v6037 = vunpack.c.l.b16 %v4811
        %v6038 = vunpack.c.h.b16 %v4811
        %v6039 = vunpack.c.l.b16 %v4812
        %v6040 = vunpack.c.h.b16 %v4812
        %v6041 = vunpack.c.l.b16 %v4813
        %v6042 = vunpack.c.h.b16 %v4813
        %v6043 = vunpack.c.l.b16 %v4814
        %v6044 = vunpack.c.h.b16 %v4814
        %v6045 = vunpack.c.l.b16 %v4815
        %v6046 = vunpack.c.h.b16 %v4815
        %v6047 = vunpack.c.l.b16 %v4816
        %v6048 = vunpack.c.h.b16 %v4816
        %v6049 = vunpack.c.l.b16 %v4817
        %v6050 = vunpack.c.h.b16 %v4817
        %v6051 = vunpack.c.l.b16 %v4818
        %v6052 = vunpack.c.h.b16 %v4818
        %v6053 = vunpack.c.l.b16 %v4819
        %v6054 = vunpack.c.h.b16 %v4819
        %v6055 = vunpack.c.l.b16 %v4820
        %v6056 = vunpack.c.h.b16 %v4820
        %v6057 = vunpack.c.l.b16 %v4821
        %v6058 = vunpack.c.h.b16 %v4821
        %v6059 = vunpack.c.l.b16 %v4822
        %v6060 = vunpack.c.h.b16 %v4822
        %v6061 = vunpack.c.l.b16 %v4823
        %v6062 = vunpack.c.h.b16 %v4823
        %v6063 = vunpack.c.l.b16 %v4824
        %v6064 = vunpack.c.h.b16 %v4824
        %v6065 = vunpack.c.l.b16 %v4825
        %v6066 = vunpack.c.h.b16 %v4825
        %v6067 = vunpack.c.l.b16 %v4826
        %v6068 = vunpack.c.h.b16 %v4826
        %v6069 = vunpack.c.l.b16 %v4827
        %v6070 = vunpack.c.h.b16 %v4827
        %v6071 = vunpack.c.l.b16 %v4828
        %v6072 = vunpack.c.h.b16 %v4828
        %v6073 = vunpack.c.l.b16 %v4829
        %v6074 = vunpack.c.h.b16 %v4829
        %v6075 = vunpack.c.l.b16 %v4830
        %v6076 = vunpack.c.h.b16 %v4830
        %v6077 = vunpack.c.l.b16 %v4831
        %v6078 = vunpack.c.h.b16 %v4831
        %v6079 = vunpack.c.l.b16 %v4832
        %v6080 = vunpack.c.h.b16 %v4832
        %v6081 = vunpack.c.l.b16 %v4833
        %v6082 = vunpack.c.h.b16 %v4833
        %v6083 = vunpack.c.l.b16 %v4834
        %v6084 = vunpack.c.h.b16 %v4834
        %v6085 = vunpack.c.l.b16 %v4835
        %v6086 = vunpack.c.h.b16 %v4835
        %v6087 = vunpack.c.l.b16 %v4836
        %v6088 = vunpack.c.h.b16 %v4836
        %v6089 = vunpack.c.l.b16 %v4837
        %v6090 = vunpack.c.h.b16 %v4837
        %v6091 = vunpack.c.l.b16 %v4838
        %v6092 = vunpack.c.h.b16 %v4838
        %v6093 = vunpack.c.l.b16 %v4839
        %v6094 = vunpack.c.h.b16 %v4839
        %v6095 = vunpack.c.l.b16 %v4840
        %v6096 = vunpack.c.h.b16 %v4840
        %v6097 = vunpack.c.l.b16 %v4841
        %v6098 = vunpack.c.h.b16 %v4841
        %v6099 = vunpack.c.l.b16 %v4842
        %v6100 = vunpack.c.h.b16 %v4842
        %v6101 = vunpack.c.l.b16 %v4843
        %v6102 = vunpack.c.h.b16 %v4843
        %v6103 = vunpack.c.l.b16 %v4844
        %v6104 = vunpack.c.h.b16 %v4844
        %v6105 = vunpack.c.l.b16 %v4845
        %v6106 = vunpack.c.h.b16 %v4845
        %v6107 = vunpack.c.l.b16 %v4846
        %v6108 = vunpack.c.h.b16 %v4846
        %v6109 = vunpack.c.l.b16 %v4847
        %v6110 = vunpack.c.h.b16 %v4847
        %v6111 = vunpack.c.l.b16 %v4848
        %v6112 = vunpack.c.h.b16 %v4848
        %v6113 = vunpack.c.l.b16 %v4849
        %v6114 = vunpack.c.h.b16 %v4849
        %v6115 = vunpack.c.l.b16 %v4850
        %v6116 = vunpack.c.h.b16 %v4850
        %v6117 = vunpack.c.l.b16 %v4851
        %v6118 = vunpack.c.h.b16 %v4851
        %v6119 = vunpack.c.l.b16 %v4852
        %v6120 = vunpack.c.h.b16 %v4852
        %v6121 = vunpack.c.l.b16 %v4853
        %v6122 = vunpack.c.h.b16 %v4853
        %v6123 = vunpack.c.l.b16 %v4854
        %v6124 = vunpack.c.h.b16 %v4854
        %v6125 = vunpack.c.l.b16 %v4855
        %v6126 = vunpack.c.h.b16 %v4855
        %v6127 = vunpack.c.l.b16 %v4856
        %v6128 = vunpack.c.h.b16 %v4856
        %v6129 = vunpack.c.l.b16 %v4857
        %v6130 = vunpack.c.h.b16 %v4857
        %v6131 = vunpack.c.l.b16 %v4858
        %v6132 = vunpack.c.h.b16 %v4858
        %v6133 = vunpack.c.l.b16 %v4859
        %v6134 = vunpack.c.h.b16 %v4859
        %v6135 = vunpack.c.l.b16 %v4860
        %v6136 = vunpack.c.h.b16 %v4860
        %v6137 = vunpack.c.l.b16 %v4861
        %v6138 = vunpack.c.h.b16 %v4861
        %v6139 = vunpack.c.l.b16 %v4862
        %v6140 = vunpack.c.h.b16 %v4862
        %v6141 = vunpack.c.l.b16 %v4863
        %v6142 = vunpack.c.h.b16 %v4863
        %v6143 = vunpack.c.l.b16 %v4864
        %v6144 = vunpack.c.h.b16 %v4864
        %v6145 = vunpack.c.l.b16 %v4865
        %v6146 = vunpack.c.h.b16 %v4865
        %v6147 = vunpack.c.l.b16 %v4866
        %v6148 = vunpack.c.h.b16 %v4866
        %v6149 = vunpack.c.l.b16 %v4867
        %v6150 = vunpack.c.h.b16 %v4867
        %v6151 = vunpack.c.l.b16 %v4868
        %v6152 = vunpack.c.h.b16 %v4868
        %v6153 = vunpack.c.l.b16 %v4869
        %v6154 = vunpack.c.h.b16 %v4869
        %v6155 = vunpack.c.l.b16 %v4870
        %v6156 = vunpack.c.h.b16 %v4870
        %v6157 = vunpack.c.l.b16 %v4871
        %v6158 = vunpack.c.h.b16 %v4871
        %v6159 = vunpack.c.l.b16 %v4872
        %v6160 = vunpack.c.h.b16 %v4872
        %v6161 = vunpack.c.l.b16 %v4873
        %v6162 = vunpack.c.h.b16 %v4873
        %v6163 = vunpack.c.l.b16 %v4874
        %v6164 = vunpack.c.h.b16 %v4874
        %v6165 = vunpack.c.l.b16 %v4875
        %v6166 = vunpack.c.h.b16 %v4875
        %v6167 = vunpack.c.l.b16 %v4876
        %v6168 = vunpack.c.h.b16 %v4876
        %v6169 = vunpack.c.l.b16 %v4877
        %v6170 = vunpack.c.h.b16 %v4877
        %v6171 = vunpack.c.l.b16 %v4878
        %v6172 = vunpack.c.h.b16 %v4878
        %v6173 = vunpack.c.l.b16 %v4879
        %v6174 = vunpack.c.h.b16 %v4879
        %v6175 = vunpack.c.l.b16 %v4880
        %v6176 = vunpack.c.h.b16 %v4880
        %v6177 = vunpack.c.l.b16 %v4881
        %v6178 = vunpack.c.h.b16 %v4881
        %v6179 = vunpack.c.l.b16 %v4882
        %v6180 = vunpack.c.h.b16 %v4882
        %v6181 = vunpack.c.l.b16 %v4883
        %v6182 = vunpack.c.h.b16 %v4883
        %v6183 = vunpack.c.l.b16 %v4884
        %v6184 = vunpack.c.h.b16 %v4884
        %v6185 = vunpack.c.l.b16 %v4885
        %v6186 = vunpack.c.h.b16 %v4885
        %v6187 = vunpack.c.l.b16 %v4886
        %v6188 = vunpack.c.h.b16 %v4886
        %v6189 = vunpack.c.l.b16 %v4887
        %v6190 = vunpack.c.h.b16 %v4887
        %v6191 = vunpack.c.l.b16 %v4888
        %v6192 = vunpack.c.h.b16 %v4888
        %v6193 = vunpack.c.l.b16 %v4889
        %v6194 = vunpack.c.h.b16 %v4889
        %v6195 = vunpack.c.l.b16 %v4890
        %v6196 = vunpack.c.h.b16 %v4890
        %v6197 = vunpack.c.l.b16 %v4891
        %v6198 = vunpack.c.h.b16 %v4891
        %v6199 = vunpack.c.l.b16 %v4892
        %v6200 = vunpack.c.h.b16 %v4892
        %v6201 = vunpack.c.l.b16 %v4893
        %v6202 = vunpack.c.h.b16 %v4893
        %v6203 = vunpack.c.l.b16 %v4894
        %v6204 = vunpack.c.h.b16 %v4894
        %v6205 = vunpack.c.l.b16 %v4895
        %v6206 = vunpack.c.h.b16 %v4895
        %v6207 = vunpack.c.l.b16 %v4896
        %v6208 = vunpack.c.h.b16 %v4896
        %v6209 = vunpack.c.l.b16 %v4897
        %v6210 = vunpack.c.h.b16 %v4897
        %v6211 = vunpack.c.l.b16 %v4898
        %v6212 = vunpack.c.h.b16 %v4898
        %v6213 = vunpack.c.l.b16 %v4899
        %v6214 = vunpack.c.h.b16 %v4899
        %v6215 = vunpack.c.l.b16 %v4900
        %v6216 = vunpack.c.h.b16 %v4900
        %v6217 = vunpack.c.l.b16 %v4901
        %v6218 = vunpack.c.h.b16 %v4901
        %v6219 = vunpack.c.l.b16 %v4902
        %v6220 = vunpack.c.h.b16 %v4902
        %v6221 = vunpack.c.l.b16 %v4903
        %v6222 = vunpack.c.h.b16 %v4903
        %v6223 = vunpack.c.l.b16 %v4904
        %v6224 = vunpack.c.h.b16 %v4904
        %v6225 = vunpack.c.l.b16 %v4905
        %v6226 = vunpack.c.h.b16 %v4905
        %v6227 = vunpack.c.l.b16 %v4906
        %v6228 = vunpack.c.h.b16 %v4906
        %v6229 = vunpack.c.l.b16 %v4907
        %v6230 = vunpack.c.h.b16 %v4907
        %v6231 = vunpack.c.l.b16 %v4908
        %v6232 = vunpack.c.h.b16 %v4908
        %v6233 = vunpack.c.l.b16 %v4909
        %v6234 = vunpack.c.h.b16 %v4909
        %v6235 = vunpack.c.l.b16 %v4910
        %v6236 = vunpack.c.h.b16 %v4910
        %v6237 = vunpack.c.l.b16 %v4911
        %v6238 = vunpack.c.h.b16 %v4911
        %v6239 = vunpack.c.l.b16 %v4912
        %v6240 = vunpack.c.h.b16 %v4912
        %v6241 = vunpack.c.l.b16 %v4913
        %v6242 = vunpack.c.h.b16 %v4913
        %v6243 = vunpack.c.l.b16 %v4914
        %v6244 = vunpack.c.h.b16 %v4914
        %v6245 = vunpack.c.l.b16 %v4915
        %v6246 = vunpack.c.h.b16 %v4915
        %v6247 = vunpack.c.l.b16 %v4916
        %v6248 = vunpack.c.h.b16 %v4916
        %v6249 = vunpack.c.l.b16 %v4917
        %v6250 = vunpack.c.h.b16 %v4917
        %v6251 = vunpack.c.l.b16 %v4918
        %v6252 = vunpack.c.h.b16 %v4918
        %v6253 = vunpack.c.l.b16 %v4919
        %v6254 = vunpack.c.h.b16 %v4919
        %v6255 = vunpack.c.l.b16 %v4920
        %v6256 = vunpack.c.h.b16 %v4920
        %v6257 = vunpack.c.l.b16 %v4921
        %v6258 = vunpack.c.h.b16 %v4921
        %v6259 = vunpack.c.l.b16 %v4922
        %v6260 = vunpack.c.h.b16 %v4922
        %v6261 = vunpack.c.l.b16 %v4923
        %v6262 = vunpack.c.h.b16 %v4923
        %v6263 = vunpack.c.l.b16 %v4924
        %v6264 = vunpack.c.h.b16 %v4924
        %v6265 = vunpack.c.l.b16 %v4925
        %v6266 = vunpack.c.h.b16 %v4925
        %v6267 = vunpack.c.l.b16 %v4926
        %v6268 = vunpack.c.h.b16 %v4926
        %v6269 = vunpack.c.l.b16 %v4927
        %v6270 = vunpack.c.h.b16 %v4927
        %v6271 = vunpack.c.l.b16 %v4928
        %v6272 = vunpack.c.h.b16 %v4928
        %v6273 = vunpack.c.l.b16 %v4929
        %v6274 = vunpack.c.h.b16 %v4929
        %v6275 = vunpack.c.l.b16 %v4930
        %v6276 = vunpack.c.h.b16 %v4930
        %v6277 = vunpack.c.l.b16 %v4931
        %v6278 = vunpack.c.h.b16 %v4931
        %v6279 = vunpack.c.l.b16 %v4932
        %v6280 = vunpack.c.h.b16 %v4932
        %v6281 = vunpack.c.l.b16 %v4933
        %v6282 = vunpack.c.h.b16 %v4933
        %v6283 = vunpack.c.l.b16 %v4934
        %v6284 = vunpack.c.h.b16 %v4934
        %v6285 = vunpack.c.l.b16 %v4935
        %v6286 = vunpack.c.h.b16 %v4935
        %v6287 = vunpack.c.l.b16 %v4936
        %v6288 = vunpack.c.h.b16 %v4936
        %v6289 = vunpack.c.l.b16 %v4937
        %v6290 = vunpack.c.h.b16 %v4937
        %v6291 = vunpack.c.l.b16 %v4938
        %v6292 = vunpack.c.h.b16 %v4938
        %v6293 = vunpack.c.l.b16 %v4939
        %v6294 = vunpack.c.h.b16 %v4939
        %v6295 = vunpack.c.l.b16 %v4940
        %v6296 = vunpack.c.h.b16 %v4940
        %v6297 = vunpack.c.l.b16 %v4941
        %v6298 = vunpack.c.h.b16 %v4941
        %v6299 = vunpack.c.l.b16 %v4942
        %v6300 = vunpack.c.h.b16 %v4942
        %v6301 = vunpack.c.l.b16 %v4943
        %v6302 = vunpack.c.h.b16 %v4943
        %v6303 = vunpack.c.l.b16 %v4944
        %v6304 = vunpack.c.h.b16 %v4944
        %v6305 = vunpack.c.l.b16 %v4945
        %v6306 = vunpack.c.h.b16 %v4945
        %v6307 = vunpack.c.l.b16 %v4946
        %v6308 = vunpack.c.h.b16 %v4946
        %v6309 = vunpack.c.l.b16 %v4947
        %v6310 = vunpack.c.h.b16 %v4947
        %v6311 = vunpack.c.l.b16 %v4948
        %v6312 = vunpack.c.h.b16 %v4948
        %v6313 = vunpack.c.l.b16 %v4949
        %v6314 = vunpack.c.h.b16 %v4949
        %v6315 = vunpack.c.l.b16 %v4950
        %v6316 = vunpack.c.h.b16 %v4950
        %v6317 = vunpack.c.l.b16 %v4951
        %v6318 = vunpack.c.h.b16 %v4951
        %v6319 = vunpack.c.l.b16 %v4952
        %v6320 = vunpack.c.h.b16 %v4952
        %v6321 = vunpack.c.l.b16 %v4953
        %v6322 = vunpack.c.h.b16 %v4953
        %v6323 = vunpack.c.l.b16 %v4954
        %v6324 = vunpack.c.h.b16 %v4954
        %v6325 = vunpack.c.l.b16 %v4955
        %v6326 = vunpack.c.h.b16 %v4955
        %v6327 = vunpack.c.l.b16 %v4956
        %v6328 = vunpack.c.h.b16 %v4956
        %v6329 = vunpack.c.l.b16 %v4957
        %v6330 = vunpack.c.h.b16 %v4957
        %v6331 = vunpack.c.l.b16 %v4958
        %v6332 = vunpack.c.h.b16 %v4958
        %v6333 = vunpack.c.l.b16 %v4959
        %v6334 = vunpack.c.h.b16 %v4959
        %v6335 = vunpack.c.l.b16 %v4960
        %v6336 = vunpack.c.h.b16 %v4960
        %v6337 = vunpack.c.l.b16 %v4961
        %v6338 = vunpack.c.h.b16 %v4961
        %v6339 = vunpack.c.l.b16 %v4962
        %v6340 = vunpack.c.h.b16 %v4962
        %v6341 = vunpack.c.l.b16 %v4963
        %v6342 = vunpack.c.h.b16 %v4963
        %v6343 = vunpack.c.l.b16 %v4964
        %v6344 = vunpack.c.h.b16 %v4964
        %v6345 = vunpack.c.l.b16 %v4965
        %v6346 = vunpack.c.h.b16 %v4965
        %v6347 = vunpack.c.l.b16 %v4966
        %v6348 = vunpack.c.h.b16 %v4966
        %v6349 = vunpack.c.l.b16 %v4967
        %v6350 = vunpack.c.h.b16 %v4967
        %v6351 = vunpack.c.l.b16 %v4968
        %v6352 = vunpack.c.h.b16 %v4968
        %v6353 = vunpack.c.l.b16 %v4969
        %v6354 = vunpack.c.h.b16 %v4969
        %v6355 = vunpack.c.l.b16 %v4970
        %v6356 = vunpack.c.h.b16 %v4970
        %v6357 = vunpack.c.l.b16 %v4971
        %v6358 = vunpack.c.h.b16 %v4971
        %v6359 = vunpack.c.l.b16 %v4972
        %v6360 = vunpack.c.h.b16 %v4972
        %v6361 = vunpack.c.l.b16 %v4973
        %v6362 = vunpack.c.h.b16 %v4973
        %v6363 = vunpack.c.l.b16 %v4974
        %v6364 = vunpack.c.h.b16 %v4974
        %v6365 = vunpack.c.l.b16 %v4975
        %v6366 = vunpack.c.h.b16 %v4975
        %v6367 = vunpack.c.l.b16 %v4976
        %v6368 = vunpack.c.h.b16 %v4976
        %v6369 = vunpack.c.l.b16 %v4977
        %v6370 = vunpack.c.h.b16 %v4977
        %v6371 = vunpack.c.l.b16 %v4978
        %v6372 = vunpack.c.h.b16 %v4978
        %v6373 = vunpack.c.l.b16 %v4979
        %v6374 = vunpack.c.h.b16 %v4979
        %v6375 = vunpack.c.l.b16 %v4980
        %v6376 = vunpack.c.h.b16 %v4980
        %v6377 = vunpack.c.l.b16 %v4981
        %v6378 = vunpack.c.h.b16 %v4981
        %v6379 = vunpack.c.l.b16 %v4982
        %v6380 = vunpack.c.h.b16 %v4982
        %v6381 = vunpack.c.l.b16 %v4983
        %v6382 = vunpack.c.h.b16 %v4983
        %v6383 = vunpack.c.l.b16 %v4984
        %v6384 = vunpack.c.h.b16 %v4984
        %v6385 = vunpack.c.l.b16 %v4985
        %v6386 = vunpack.c.h.b16 %v4985
        %v6387 = vunpack.c.l.b16 %v4986
        %v6388 = vunpack.c.h.b16 %v4986
        %v6389 = vunpack.c.l.b16 %v4987
        %v6390 = vunpack.c.h.b16 %v4987
        %v6391 = vunpack.c.l.b16 %v4988
        %v6392 = vunpack.c.h.b16 %v4988
        %v6393 = vunpack.c.l.b16 %v4989
        %v6394 = vunpack.c.h.b16 %v4989
        %v6395 = vunpack.c.l.b16 %v4990
        %v6396 = vunpack.c.h.b16 %v4990
        %v6397 = vunpack.c.l.b16 %v4991
        %v6398 = vunpack.c.h.b16 %v4991
        %v6399 = vunpack.c.l.b16 %v4992
        %v6400 = vunpack.c.h.b16 %v4992
        %v6401 = vunpack.c.l.b16 %v4993
        %v6402 = vunpack.c.h.b16 %v4993
        %v6403 = vunpack.c.l.b16 %v4994
        %v6404 = vunpack.c.h.b16 %v4994
        %v6405 = vunpack.c.l.b16 %v4995
        %v6406 = vunpack.c.h.b16 %v4995
        %v6407 = vunpack.c.l.b16 %v4996
        %v6408 = vunpack.c.h.b16 %v4996
        %v6409 = vunpack.c.l.b16 %v4997
        %v6410 = vunpack.c.h.b16 %v4997
        %v6411 = vunpack.c.l.b16 %v4998
        %v6412 = vunpack.c.h.b16 %v4998
        %v6413 = vunpack.c.l.b16 %v4999
        %v6414 = vunpack.c.h.b16 %v4999
        %v6415 = vunpack.c.l.b16 %v5000
        %v6416 = vunpack.c.h.b16 %v5000
        %v6417 = vunpack.c.l.b16 %v5001
        %v6418 = vunpack.c.h.b16 %v5001
        %v6419 = vunpack.c.l.b16 %v5002
        %v6420 = vunpack.c.h.b16 %v5002
        %v6421 = vunpack.c.l.b16 %v5003
        %v6422 = vunpack.c.h.b16 %v5003
        %v6423 = vunpack.c.l.b16 %v5004
        %v6424 = vunpack.c.h.b16 %v5004
        %v6425 = vunpack.c.l.b16 %v5005
        %v6426 = vunpack.c.h.b16 %v5005
        %v6427 = vunpack.c.l.b16 %v5006
        %v6428 = vunpack.c.h.b16 %v5006
        %v6429 = vunpack.c.l.b16 %v5007
        %v6430 = vunpack.c.h.b16 %v5007
        %v6431 = vunpack.c.l.b16 %v5008
        %v6432 = vunpack.c.h.b16 %v5008
        %v6433 = vunpack.c.l.b16 %v5009
        %v6434 = vunpack.c.h.b16 %v5009
        %v6435 = vunpack.c.l.b16 %v5010
        %v6436 = vunpack.c.h.b16 %v5010
        %v6437 = vunpack.c.l.b16 %v5011
        %v6438 = vunpack.c.h.b16 %v5011
        %v6439 = vunpack.c.l.b16 %v5012
        %v6440 = vunpack.c.h.b16 %v5012
        %v6441 = vunpack.c.l.b16 %v5013
        %v6442 = vunpack.c.h.b16 %v5013
        %v6443 = vunpack.c.l.b16 %v5014
        %v6444 = vunpack.c.h.b16 %v5014
        %v6445 = vunpack.c.l.b16 %v5015
        %v6446 = vunpack.c.h.b16 %v5015
        %v6447 = vunpack.c.l.b16 %v5016
        %v6448 = vunpack.c.h.b16 %v5016
        %v6449 = vunpack.c.l.b16 %v5017
        %v6450 = vunpack.c.h.b16 %v5017
        %v6451 = vunpack.c.l.b16 %v5018
        %v6452 = vunpack.c.h.b16 %v5018
        %v6453 = vunpack.c.l.b16 %v5019
        %v6454 = vunpack.c.h.b16 %v5019
        %v6455 = vunpack.c.l.b16 %v5020
        %v6456 = vunpack.c.h.b16 %v5020
        %v6457 = vunpack.c.l.b16 %v5021
        %v6458 = vunpack.c.h.b16 %v5021
        %v6459 = vunpack.c.l.b16 %v5022
        %v6460 = vunpack.c.h.b16 %v5022
        %v6461 = vunpack.c.l.b16 %v5023
        %v6462 = vunpack.c.h.b16 %v5023
        %v6463 = vunpack.c.l.b16 %v5024
        %v6464 = vunpack.c.h.b16 %v5024
        %v6465 = vunpack.c.l.b16 %v5025
        %v6466 = vunpack.c.h.b16 %v5025
        %v6467 = vunpack.c.l.b16 %v5026
        %v6468 = vunpack.c.h.b16 %v5026
        %v6469 = vunpack.c.l.b16 %v5027
        %v6470 = vunpack.c.h.b16 %v5027
        %v6471 = vunpack.c.l.b16 %v5028
        %v6472 = vunpack.c.h.b16 %v5028
        %v6473 = vunpack.c.l.b16 %v5029
        %v6474 = vunpack.c.h.b16 %v5029
        %v6475 = vunpack.c.l.b16 %v5030
        %v6476 = vunpack.c.h.b16 %v5030
        %v6477 = vunpack.c.l.b16 %v5031
        %v6478 = vunpack.c.h.b16 %v5031
        %v6479 = vunpack.c.l.b16 %v5032
        %v6480 = vunpack.c.h.b16 %v5032
        %v6481 = vunpack.c.l.b16 %v5033
        %v6482 = vunpack.c.h.b16 %v5033
        %v6483 = vunpack.c.l.b16 %v5034
        %v6484 = vunpack.c.h.b16 %v5034
        %v6485 = vunpack.c.l.b16 %v5035
        %v6486 = vunpack.c.h.b16 %v5035
        %v6487 = vunpack.c.l.b16 %v5036
        %v6488 = vunpack.c.h.b16 %v5036
        %v6489 = vunpack.c.l.b16 %v5037
        %v6490 = vunpack.c.h.b16 %v5037
        %v6491 = vunpack.c.l.b16 %v5038
        %v6492 = vunpack.c.h.b16 %v5038
        %v6493 = vunpack.c.l.b16 %v5039
        %v6494 = vunpack.c.h.b16 %v5039
        %v6495 = vunpack.c.l.b16 %v5040
        %v6496 = vunpack.c.h.b16 %v5040
        %v6497 = vunpack.c.l.b16 %v5041
        %v6498 = vunpack.c.h.b16 %v5041
        %v6499 = vunpack.c.l.b16 %v5042
        %v6500 = vunpack.c.h.b16 %v5042
        %v6501 = vunpack.c.l.b16 %v5043
        %v6502 = vunpack.c.h.b16 %v5043
        %v6503 = vunpack.c.l.b16 %v5044
        %v6504 = vunpack.c.h.b16 %v5044
        %v6505 = vunpack.c.l.b16 %v5045
        %v6506 = vunpack.c.h.b16 %v5045
        %v6507 = vunpack.c.l.b16 %v5046
        %v6508 = vunpack.c.h.b16 %v5046
        %v6509 = vunpack.c.l.b16 %v5047
        %v6510 = vunpack.c.h.b16 %v5047
        %v6511 = vunpack.c.l.b16 %v5048
        %v6512 = vunpack.c.h.b16 %v5048
        %v6513 = vunpack.c.l.b16 %v5049
        %v6514 = vunpack.c.h.b16 %v5049
        %v6515 = vunpack.c.l.b16 %v5050
        %v6516 = vunpack.c.h.b16 %v5050
        %v6517 = vunpack.c.l.b16 %v5051
        %v6518 = vunpack.c.h.b16 %v5051
        %v6519 = vunpack.c.l.b16 %v5052
        %v6520 = vunpack.c.h.b16 %v5052
        %v6521 = vunpack.c.l.b16 %v5053
        %v6522 = vunpack.c.h.b16 %v5053
        %v6523 = vunpack.c.l.b16 %v5054
        %v6524 = vunpack.c.h.b16 %v5054
        %v6525 = vunpack.c.l.b16 %v5055
        %v6526 = vunpack.c.h.b16 %v5055
        %v6527 = vunpack.c.l.b16 %v5056
        %v6528 = vunpack.c.h.b16 %v5056
        %v6529 = vunpack.c.l.b16 %v5057
        %v6530 = vunpack.c.h.b16 %v5057
        %v6531 = vunpack.c.l.b16 %v5058
        %v6532 = vunpack.c.h.b16 %v5058
        %v6533 = vunpack.c.l.b16 %v5059
        %v6534 = vunpack.c.h.b16 %v5059
        %v6535 = vunpack.c.l.b16 %v5060
        %v6536 = vunpack.c.h.b16 %v5060
        %v6537 = vunpack.c.l.b16 %v5061
        %v6538 = vunpack.c.h.b16 %v5061
        %v6539 = vunpack.c.l.b16 %v5062
        %v6540 = vunpack.c.h.b16 %v5062
        %v6541 = vunpack.c.l.b16 %v5063
        %v6542 = vunpack.c.h.b16 %v5063
        %v6543 = vunpack.c.l.b16 %v5064
        %v6544 = vunpack.c.h.b16 %v5064
        %v6545 = vunpack.c.l.b16 %v5065
        %v6546 = vunpack.c.h.b16 %v5065
        %v6547 = vunpack.c.l.b16 %v5066
        %v6548 = vunpack.c.h.b16 %v5066
        %v6549 = vunpack.c.l.b16 %v5067
        %v6550 = vunpack.c.h.b16 %v5067
        %v6551 = vunpack.c.l.b16 %v5068
        %v6552 = vunpack.c.h.b16 %v5068
        %v6553 = vunpack.c.l.b16 %v5069
        %v6554 = vunpack.c.h.b16 %v5069
        %v6555 = vunpack.c.l.b16 %v5070
        %v6556 = vunpack.c.h.b16 %v5070
        %v6557 = vunpack.c.l.b16 %v5071
        %v6558 = vunpack.c.h.b16 %v5071
        %v6559 = vunpack.c.l.b16 %v5072
        %v6560 = vunpack.c.h.b16 %v5072
        %v6561 = vunpack.c.l.b16 %v5073
        %v6562 = vunpack.c.h.b16 %v5073
        %v6563 = vunpack.c.l.b16 %v5074
        %v6564 = vunpack.c.h.b16 %v5074
        %v6565 = vunpack.c.l.b16 %v5075
        %v6566 = vunpack.c.h.b16 %v5075
        %v6567 = vunpack.c.l.b16 %v5076
        %v6568 = vunpack.c.h.b16 %v5076
        %v6569 = vunpack.c.l.b16 %v5077
        %v6570 = vunpack.c.h.b16 %v5077
        %v6571 = vunpack.c.l.b16 %v5078
        %v6572 = vunpack.c.h.b16 %v5078
        %v6573 = vunpack.c.l.b16 %v5079
        %v6574 = vunpack.c.h.b16 %v5079
        %v6575 = vunpack.c.l.b16 %v5080
        %v6576 = vunpack.c.h.b16 %v5080
        %v6577 = vunpack.c.l.b16 %v5081
        %v6578 = vunpack.c.h.b16 %v5081
        %v6579 = vunpack.c.l.b16 %v5082
        %v6580 = vunpack.c.h.b16 %v5082
        %v6581 = vunpack.c.l.b16 %v5083
        %v6582 = vunpack.c.h.b16 %v5083
        %v6583 = vunpack.c.l.b16 %v5084
        %v6584 = vunpack.c.h.b16 %v5084
        %v6585 = vunpack.c.l.b16 %v5085
        %v6586 = vunpack.c.h.b16 %v5085
        %v6587 = vunpack.c.l.b16 %v5086
        %v6588 = vunpack.c.h.b16 %v5086
        %v6589 = vunpack.c.l.b16 %v5087
        %v6590 = vunpack.c.h.b16 %v5087
        %v6591 = vunpack.c.l.b16 %v5088
        %v6592 = vunpack.c.h.b16 %v5088
        %v6593 = vunpack.c.l.b16 %v5089
        %v6594 = vunpack.c.h.b16 %v5089
        %v6595 = vunpack.c.l.b16 %v5090
        %v6596 = vunpack.c.h.b16 %v5090
        %v6597 = vunpack.c.l.b16 %v5091
        %v6598 = vunpack.c.h.b16 %v5091
        %v6599 = vunpack.c.l.b16 %v5092
        %v6600 = vunpack.c.h.b16 %v5092
        %v6601 = vunpack.c.l.b16 %v5093
        %v6602 = vunpack.c.h.b16 %v5093
        %v6603 = vunpack.c.l.b16 %v5094
        %v6604 = vunpack.c.h.b16 %v5094
        %v6605 = vunpack.c.l.b16 %v5095
        %v6606 = vunpack.c.h.b16 %v5095
        %v6607 = vunpack.c.l.b16 %v5096
        %v6608 = vunpack.c.h.b16 %v5096
        %v6609 = vunpack.c.l.b16 %v5097
        %v6610 = vunpack.c.h.b16 %v5097
        %v6611 = vunpack.c.l.b16 %v5098
        %v6612 = vunpack.c.h.b16 %v5098
        %v6613 = vunpack.c.l.b16 %v5099
        %v6614 = vunpack.c.h.b16 %v5099
        %v6615 = vunpack.c.l.b16 %v5100
        %v6616 = vunpack.c.h.b16 %v5100
        %v6617 = vunpack.c.l.b16 %v5101
        %v6618 = vunpack.c.h.b16 %v5101
        %v6619 = vunpack.c.l.b16 %v5102
        %v6620 = vunpack.c.h.b16 %v5102
        %v6621 = vunpack.c.l.b16 %v5103
        %v6622 = vunpack.c.h.b16 %v5103
        %v6623 = vunpack.c.l.b16 %v5104
        %v6624 = vunpack.c.h.b16 %v5104
        %v6625 = vunpack.c.l.b16 %v5105
        %v6626 = vunpack.c.h.b16 %v5105
        %v6627 = vunpack.c.l.b16 %v5106
        %v6628 = vunpack.c.h.b16 %v5106
        %v6629 = vunpack.c.l.b16 %v5107
        %v6630 = vunpack.c.h.b16 %v5107
        %v6631 = vunpack.c.l.b16 %v5108
        %v6632 = vunpack.c.h.b16 %v5108
        %v6633 = vunpack.c.l.b16 %v5109
        %v6634 = vunpack.c.h.b16 %v5109
        %v6635 = vunpack.c.l.b16 %v5110
        %v6636 = vunpack.c.h.b16 %v5110
        %v6637 = vunpack.c.l.b16 %v5111
        %v6638 = vunpack.c.h.b16 %v5111
        %v6639 = vunpack.c.l.b16 %v5112
        %v6640 = vunpack.c.h.b16 %v5112
        %v6641 = vunpack.c.l.b16 %v5113
        %v6642 = vunpack.c.h.b16 %v5113
        %v6643 = vunpack.c.l.b16 %v5114
        %v6644 = vunpack.c.h.b16 %v5114
        %v6645 = vunpack.c.l.b16 %v5115
        %v6646 = vunpack.c.h.b16 %v5115
        %v6647 = vunpack.c.l.b16 %v5116
        %v6648 = vunpack.c.h.b16 %v5116
        %v6649 = vunpack.c.l.b16 %v5117
        %v6650 = vunpack.c.h.b16 %v5117
        %v6651 = vunpack.c.l.b16 %v5118
        %v6652 = vunpack.c.h.b16 %v5118
        %v6653 = vunpack.c.l.b16 %v5119
        %v6654 = vunpack.c.h.b16 %v5119
        %v6655 = vunpack.c.l.b16 %v5120
        %v6656 = vunpack.c.h.b16 %v5120
        %v6657 = vunpack.c.l.b16 %v5121
        %v6658 = vunpack.c.h.b16 %v5121
        %v6659 = vunpack.c.l.b16 %v5122
        %v6660 = vunpack.c.h.b16 %v5122
        %v6661 = vunpack.c.l.b16 %v5123
        %v6662 = vunpack.c.h.b16 %v5123
        %v6663 = vunpack.c.l.b16 %v5124
        %v6664 = vunpack.c.h.b16 %v5124
        %v6665 = vunpack.c.l.b16 %v5125
        %v6666 = vunpack.c.h.b16 %v5125
        %v6667 = vunpack.c.l.b16 %v5126
        %v6668 = vunpack.c.h.b16 %v5126
        %v6669 = vunpack.c.l.b16 %v5127
        %v6670 = vunpack.c.h.b16 %v5127
        %v6671 = vunpack.c.l.b16 %v5128
        %v6672 = vunpack.c.h.b16 %v5128
        %v6673 = vunpack.c.l.b16 %v5129
        %v6674 = vunpack.c.h.b16 %v5129
        %v6675 = vunpack.c.l.b16 %v5130
        %v6676 = vunpack.c.h.b16 %v5130
        %v6677 = vunpack.c.l.b16 %v5131
        %v6678 = vunpack.c.h.b16 %v5131
        %v6679 = vunpack.c.l.b16 %v5132
        %v6680 = vunpack.c.h.b16 %v5132
        %v6681 = vunpack.c.l.b16 %v5133
        %v6682 = vunpack.c.h.b16 %v5133
        %v6683 = vunpack.c.l.b16 %v5134
        %v6684 = vunpack.c.h.b16 %v5134
        %v6685 = vunpack.c.l.b16 %v5135
        %v6686 = vunpack.c.h.b16 %v5135
        %v6687 = vunpack.c.l.b16 %v5136
        %v6688 = vunpack.c.h.b16 %v5136
        %v6689 = vunpack.c.l.b16 %v5137
        %v6690 = vunpack.c.h.b16 %v5137
        %v6691 = vunpack.c.l.b16 %v5138
        %v6692 = vunpack.c.h.b16 %v5138
        %v6693 = vunpack.c.l.b16 %v5139
        %v6694 = vunpack.c.h.b16 %v5139
        %v6695 = vunpack.c.l.b16 %v5140
        %v6696 = vunpack.c.h.b16 %v5140
        %v6697 = vunpack.c.l.b16 %v5141
        %v6698 = vunpack.c.h.b16 %v5141
        %v6699 = vunpack.c.l.b16 %v5142
        %v6700 = vunpack.c.h.b16 %v5142
        %v6701 = vunpack.c.l.b16 %v5143
        %v6702 = vunpack.c.h.b16 %v5143
        %v6703 = vunpack.c.l.b16 %v5144
        %v6704 = vunpack.c.h.b16 %v5144
        %v6705 = vunpack.c.l.b16 %v5145
        %v6706 = vunpack.c.h.b16 %v5145
        %v6707 = vunpack.c.l.b16 %v5146
        %v6708 = vunpack.c.h.b16 %v5146
        %v6709 = vunpack.c.l.b16 %v5147
        %v6710 = vunpack.c.h.b16 %v5147
        %v6711 = vunpack.c.l.b16 %v5148
        %v6712 = vunpack.c.h.b16 %v5148
        %v6713 = vunpack.c.l.b16 %v5149
        %v6714 = vunpack.c.h.b16 %v5149
        %v6715 = vunpack.c.l.b16 %v5150
        %v6716 = vunpack.c.h.b16 %v5150
        %v6717 = vunpack.c.l.b16 %v5151
        %v6718 = vunpack.c.h.b16 %v5151
        %v6719 = vunpack.c.l.b16 %v5152
        %v6720 = vunpack.c.h.b16 %v5152
        %v6721 = vunpack.c.l.b16 %v5153
        %v6722 = vunpack.c.h.b16 %v5153
        %v6723 = vunpack.c.l.b16 %v5154
        %v6724 = vunpack.c.h.b16 %v5154
        %v6725 = vunpack.c.l.b16 %v5155
        %v6726 = vunpack.c.h.b16 %v5155
        %v6727 = vunpack.c.l.b16 %v5156
        %v6728 = vunpack.c.h.b16 %v5156
        %v6729 = vunpack.c.l.b16 %v5157
        %v6730 = vunpack.c.h.b16 %v5157
        %v6731 = vunpack.c.l.b16 %v5158
        %v6732 = vunpack.c.h.b16 %v5158
        %v6733 = vunpack.c.l.b16 %v5159
        %v6734 = vunpack.c.h.b16 %v5159
        %v6735 = vunpack.c.l.b16 %v5160
        %v6736 = vunpack.c.h.b16 %v5160
        %v6737 = vunpack.c.l.b16 %v5161
        %v6738 = vunpack.c.h.b16 %v5161
        %v6739 = vunpack.c.l.b16 %v5162
        %v6740 = vunpack.c.h.b16 %v5162
        %v6741 = vunpack.c.l.b16 %v5163
        %v6742 = vunpack.c.h.b16 %v5163
        %v6743 = vunpack.c.l.b16 %v5164
        %v6744 = vunpack.c.h.b16 %v5164
        %v6745 = vunpack.c.l.b16 %v5165
        %v6746 = vunpack.c.h.b16 %v5165
        %v6747 = vunpack.c.l.b16 %v5166
        %v6748 = vunpack.c.h.b16 %v5166
        %v6749 = vunpack.c.l.b16 %v5167
        %v6750 = vunpack.c.h.b16 %v5167
        %v6751 = vunpack.c.l.b16 %v5168
        %v6752 = vunpack.c.h.b16 %v5168
        %v6753 = vunpack.c.l.b16 %v5169
        %v6754 = vunpack.c.h.b16 %v5169
        %v6755 = vunpack.c.l.b16 %v5170
        %v6756 = vunpack.c.h.b16 %v5170
        %v6757 = vunpack.c.l.b16 %v5171
        %v6758 = vunpack.c.h.b16 %v5171
        %v6759 = vunpack.c.l.b16 %v5172
        %v6760 = vunpack.c.h.b16 %v5172
        %v6761 = vunpack.c.l.b16 %v5173
        %v6762 = vunpack.c.h.b16 %v5173
        %v6763 = vunpack.c.l.b16 %v5174
        %v6764 = vunpack.c.h.b16 %v5174
        %v6765 = vunpack.c.l.b16 %v5175
        %v6766 = vunpack.c.h.b16 %v5175
        %v6767 = vunpack.c.l.b16 %v5176
        %v6768 = vunpack.c.h.b16 %v5176
        %v6769 = vunpack.c.l.b16 %v5177
        %v6770 = vunpack.c.h.b16 %v5177
        %v6771 = vunpack.c.l.b16 %v5178
        %v6772 = vunpack.c.h.b16 %v5178
        %v6773 = vunpack.c.l.b16 %v5179
        %v6774 = vunpack.c.h.b16 %v5179
        %v6775 = vunpack.c.l.b16 %v5180
        %v6776 = vunpack.c.h.b16 %v5180
        %v6777 = vunpack.c.l.b16 %v5181
        %v6778 = vunpack.c.h.b16 %v5181
        %v6779 = vunpack.c.l.b16 %v5182
        %v6780 = vunpack.c.h.b16 %v5182
        %v6781 = vunpack.c.l.b16 %v5183
        %v6782 = vunpack.c.h.b16 %v5183
        %v6783 = vunpack.c.l.b16 %v5184
        %v6784 = vunpack.c.h.b16 %v5184
        %v6785 = vunpack.c.l.b16 %v5185
        %v6786 = vunpack.c.h.b16 %v5185
        %v6787 = vunpack.c.l.b16 %v5186
        %v6788 = vunpack.c.h.b16 %v5186
        %v6789 = vunpack.c.l.b16 %v5187
        %v6790 = vunpack.c.h.b16 %v5187
        %v6791 = vunpack.c.l.b16 %v5188
        %v6792 = vunpack.c.h.b16 %v5188
        %v6793 = vunpack.c.l.b16 %v5189
        %v6794 = vunpack.c.h.b16 %v5189
        %v6795 = vunpack.c.l.b16 %v5190
        %v6796 = vunpack.c.h.b16 %v5190
        %v6797 = vunpack.c.l.b16 %v5191
        %v6798 = vunpack.c.h.b16 %v5191
        %v6799 = vunpack.c.l.b16 %v5192
        %v6800 = vunpack.c.h.b16 %v5192
        %v6801 = vunpack.c.l.b16 %v5193
        %v6802 = vunpack.c.h.b16 %v5193
        %v6803 = vunpack.c.l.b16 %v5194
        %v6804 = vunpack.c.h.b16 %v5194
        %v6805 = vunpack.c.l.b16 %v5195
        %v6806 = vunpack.c.h.b16 %v5195
        %v6807 = vunpack.c.l.b16 %v5196
        %v6808 = vunpack.c.h.b16 %v5196
        %v6809 = vunpack.c.l.b16 %v5197
        %v6810 = vunpack.c.h.b16 %v5197
        %v6811 = vunpack.c.l.b16 %v5198
        %v6812 = vunpack.c.h.b16 %v5198
        %v6813 = vunpack.c.l.b16 %v5199
        %v6814 = vunpack.c.h.b16 %v5199
        %v6815 = vunpack.c.l.b16 %v5200
        %v6816 = vunpack.c.h.b16 %v5200
        %v6817 = vunpack.c.l.b16 %v5201
        %v6818 = vunpack.c.h.b16 %v5201
        %v6819 = vunpack.c.l.b16 %v5202
        %v6820 = vunpack.c.h.b16 %v5202
        %v6821 = vunpack.c.l.b16 %v5203
        %v6822 = vunpack.c.h.b16 %v5203
        %v6823 = vunpack.c.l.b16 %v5204
        %v6824 = vunpack.c.h.b16 %v5204
        %v6825 = vunpack.c.l.b16 %v5205
        %v6826 = vunpack.c.h.b16 %v5205
        %v6827 = vunpack.c.l.b16 %v5206
        %v6828 = vunpack.c.h.b16 %v5206
        %v6829 = vunpack.c.l.b16 %v5207
        %v6830 = vunpack.c.h.b16 %v5207
        %v6831 = vunpack.c.l.b16 %v5208
        %v6832 = vunpack.c.h.b16 %v5208
        %v6833 = vunpack.c.l.b16 %v5209
        %v6834 = vunpack.c.h.b16 %v5209
        %v6835 = vunpack.c.l.b16 %v5210
        %v6836 = vunpack.c.h.b16 %v5210
        %v6837 = vunpack.c.l.b16 %v5211
        %v6838 = vunpack.c.h.b16 %v5211
        %v6839 = vunpack.c.l.b16 %v5212
        %v6840 = vunpack.c.h.b16 %v5212
        %v6841 = vunpack.c.l.b16 %v5213
        %v6842 = vunpack.c.h.b16 %v5213
        %v6843 = vunpack.c.l.b16 %v5214
        %v6844 = vunpack.c.h.b16 %v5214
        %v6845 = vunpack.c.l.b16 %v5215
        %v6846 = vunpack.c.h.b16 %v5215
        %v6847 = vunpack.c.l.b16 %v5216
        %v6848 = vunpack.c.h.b16 %v5216
        %v6849 = vunpack.c.l.b16 %v5217
        %v6850 = vunpack.c.h.b16 %v5217
        %v6851 = vunpack.c.l.b16 %v5218
        %v6852 = vunpack.c.h.b16 %v5218
        %v6853 = vunpack.c.l.b16 %v5219
        %v6854 = vunpack.c.h.b16 %v5219
        %v6855 = vunpack.c.l.b16 %v5220
        %v6856 = vunpack.c.h.b16 %v5220
        %v6857 = vunpack.c.l.b16 %v5221
        %v6858 = vunpack.c.h.b16 %v5221
        %v6859 = vunpack.c.l.b16 %v5222
        %v6860 = vunpack.c.h.b16 %v5222
        %v6861 = vunpack.c.l.b16 %v5223
        %v6862 = vunpack.c.h.b16 %v5223
        %v6863 = vunpack.c.l.b16 %v5224
        %v6864 = vunpack.c.h.b16 %v5224
        %v6865 = vunpack.c.l.b16 %v5225
        %v6866 = vunpack.c.h.b16 %v5225
        %v6867 = vunpack.c.l.b16 %v5226
        %v6868 = vunpack.c.h.b16 %v5226
        %v6869 = vunpack.c.l.b16 %v5227
        %v6870 = vunpack.c.h.b16 %v5227
        %v6871 = vunpack.c.l.b16 %v5228
        %v6872 = vunpack.c.h.b16 %v5228
        %v6873 = vunpack.c.l.b16 %v5229
        %v6874 = vunpack.c.h.b16 %v5229
        %v6875 = vunpack.c.l.b16 %v5230
        %v6876 = vunpack.c.h.b16 %v5230
        %v6877 = vunpack.c.l.b16 %v5231
        %v6878 = vunpack.c.h.b16 %v5231
        %v6879 = vunpack.c.l.b16 %v5232
        %v6880 = vunpack.c.h.b16 %v5232
        %v6881 = vunpack.c.l.b16 %v5233
        %v6882 = vunpack.c.h.b16 %v5233
        %v6883 = vunpack.c.l.b16 %v5234
        %v6884 = vunpack.c.h.b16 %v5234
        %v6885 = vunpack.c.l.b16 %v5235
        %v6886 = vunpack.c.h.b16 %v5235
        %v6887 = vunpack.c.l.b16 %v5236
        %v6888 = vunpack.c.h.b16 %v5236
        %v6889 = vunpack.c.l.b16 %v5237
        %v6890 = vunpack.c.h.b16 %v5237
        %v6891 = vunpack.c.l.b16 %v5238
        %v6892 = vunpack.c.h.b16 %v5238
        %v6893 = vunpack.c.l.b16 %v5239
        %v6894 = vunpack.c.h.b16 %v5239
        %v6895 = vunpack.c.l.b16 %v5240
        %v6896 = vunpack.c.h.b16 %v5240
        %v6897 = vunpack.c.l.b16 %v5241
        %v6898 = vunpack.c.h.b16 %v5241
        %v6899 = vunpack.c.l.b16 %v5242
        %v6900 = vunpack.c.h.b16 %v5242
        %v6901 = vunpack.c.l.b16 %v5243
        %v6902 = vunpack.c.h.b16 %v5243
        %v6903 = vunpack.c.l.b16 %v5244
        %v6904 = vunpack.c.h.b16 %v5244
        %v6905 = vunpack.c.l.b16 %v5245
        %v6906 = vunpack.c.h.b16 %v5245
        %v6907 = vunpack.c.l.b16 %v5246
        %v6908 = vunpack.c.h.b16 %v5246
        %v6909 = vunpack.c.l.b16 %v5247
        %v6910 = vunpack.c.h.b16 %v5247
        %v6911 = vunpack.c.l.b16 %v5248
        %v6912 = vunpack.c.h.b16 %v5248
        %v6913 = vunpack.c.l.b16 %v5249
        %v6914 = vunpack.c.h.b16 %v5249
        %v6915 = vunpack.c.l.b16 %v5250
        %v6916 = vunpack.c.h.b16 %v5250
        %v6917 = vunpack.c.l.b16 %v5251
        %v6918 = vunpack.c.h.b16 %v5251
        %v6919 = vunpack.c.l.b16 %v5252
        %v6920 = vunpack.c.h.b16 %v5252
        %v6921 = vunpack.c.l.b16 %v5253
        %v6922 = vunpack.c.h.b16 %v5253
        %v6923 = vunpack.c.l.b16 %v5254
        %v6924 = vunpack.c.h.b16 %v5254
        %v6925 = vunpack.c.l.b16 %v5255
        %v6926 = vunpack.c.h.b16 %v5255
        %v6927 = vunpack.c.l.b16 %v5256
        %v6928 = vunpack.c.h.b16 %v5256
        %v6929 = vunpack.c.l.b16 %v5257
        %v6930 = vunpack.c.h.b16 %v5257
        %v6931 = vunpack.c.l.b16 %v5258
        %v6932 = vunpack.c.h.b16 %v5258
        %v6933 = vunpack.c.l.b16 %v5259
        %v6934 = vunpack.c.h.b16 %v5259
        %v6935 = vunpack.c.l.b16 %v5260
        %v6936 = vunpack.c.h.b16 %v5260
        %v6937 = vunpack.c.l.b16 %v5261
        %v6938 = vunpack.c.h.b16 %v5261
        %v6939 = vunpack.c.l.b16 %v5262
        %v6940 = vunpack.c.h.b16 %v5262
        %v6941 = vunpack.c.l.b16 %v5263
        %v6942 = vunpack.c.h.b16 %v5263
        %v6943 = vunpack.c.l.b16 %v5264
        %v6944 = vunpack.c.h.b16 %v5264
        %v6945 = vunpack.c.l.b16 %v5265
        %v6946 = vunpack.c.h.b16 %v5265
        %v6947 = vunpack.c.l.b16 %v5266
        %v6948 = vunpack.c.h.b16 %v5266
        %v6949 = vunpack.c.l.b16 %v5267
        %v6950 = vunpack.c.h.b16 %v5267
        %v6951 = vunpack.c.l.b16 %v5268
        %v6952 = vunpack.c.h.b16 %v5268
        %v6953 = vunpack.c.l.b16 %v5269
        %v6954 = vunpack.c.h.b16 %v5269
        %v6955 = vunpack.c.l.b16 %v5270
        %v6956 = vunpack.c.h.b16 %v5270
        %v6957 = vunpack.c.l.b16 %v5271
        %v6958 = vunpack.c.h.b16 %v5271
        %v6959 = vunpack.c.l.b16 %v5272
        %v6960 = vunpack.c.h.b16 %v5272
        %v6961 = vunpack.c.l.b16 %v5273
        %v6962 = vunpack.c.h.b16 %v5273
        %v6963 = vunpack.c.l.b16 %v5274
        %v6964 = vunpack.c.h.b16 %v5274
        %v6965 = vunpack.c.l.b16 %v5275
        %v6966 = vunpack.c.h.b16 %v5275
        %v6967 = vunpack.c.l.b16 %v5276
        %v6968 = vunpack.c.h.b16 %v5276
        %v6969 = vunpack.c.l.b16 %v5277
        %v6970 = vunpack.c.h.b16 %v5277
        %v6971 = vunpack.c.l.b16 %v5278
        %v6972 = vunpack.c.h.b16 %v5278
        %v6973 = vunpack.c.l.b16 %v5279
        %v6974 = vunpack.c.h.b16 %v5279
        %v6975 = vunpack.c.l.b16 %v5280
        %v6976 = vunpack.c.h.b16 %v5280
        %v6977 = vunpack.c.l.b16 %v5281
        %v6978 = vunpack.c.h.b16 %v5281
        %v6979 = vunpack.c.l.b16 %v5282
        %v6980 = vunpack.c.h.b16 %v5282
        %v6981 = vunpack.c.l.b16 %v5283
        %v6982 = vunpack.c.h.b16 %v5283
        %v6983 = vunpack.c.l.b16 %v5284
        %v6984 = vunpack.c.h.b16 %v5284
        %v6985 = vunpack.c.l.b16 %v5285
        %v6986 = vunpack.c.h.b16 %v5285
        %v6987 = vunpack.c.l.b16 %v5286
        %v6988 = vunpack.c.h.b16 %v5286
        %v6989 = vunpack.c.l.b16 %v5287
        %v6990 = vunpack.c.h.b16 %v5287
        %v6991 = vunpack.c.l.b16 %v5288
        %v6992 = vunpack.c.h.b16 %v5288
        %v6993 = vunpack.c.l.b16 %v5289
        %v6994 = vunpack.c.h.b16 %v5289
        %v6995 = vunpack.c.l.b16 %v5290
        %v6996 = vunpack.c.h.b16 %v5290
        %v6997 = vunpack.c.l.b16 %v5291
        %v6998 = vunpack.c.h.b16 %v5291
        %v6999 = vunpack.c.l.b16 %v5292
        %v7000 = vunpack.c.h.b16 %v5292
        %v7001 = vunpack.c.l.b16 %v5293
        %v7002 = vunpack.c.h.b16 %v5293
        %v7003 = vunpack.c.l.b16 %v5294
        %v7004 = vunpack.c.h.b16 %v5294
        %v7005 = vunpack.c.l.b16 %v5295
        %v7006 = vunpack.c.h.b16 %v5295
        %v7007 = vunpack.c.l.b16 %v5296
        %v7008 = vunpack.c.h.b16 %v5296
        %v7009 = vunpack.c.l.b16 %v5297
        %v7010 = vunpack.c.h.b16 %v5297
        %v7011 = vunpack.c.l.b16 %v5298
        %v7012 = vunpack.c.h.b16 %v5298
        %v7013 = vunpack.c.l.b16 %v5299
        %v7014 = vunpack.c.h.b16 %v5299
        %v7015 = vunpack.c.l.b16 %v5300
        %v7016 = vunpack.c.h.b16 %v5300
        %v7017 = vunpack.c.l.b16 %v5301
        %v7018 = vunpack.c.h.b16 %v5301
        %v7019 = vunpack.c.l.b16 %v5302
        %v7020 = vunpack.c.h.b16 %v5302
        %v7021 = vunpack.c.l.b16 %v5303
        %v7022 = vunpack.c.h.b16 %v5303
        %v7023 = vunpack.c.l.b16 %v5304
        %v7024 = vunpack.c.h.b16 %v5304
        %v7025 = vunpack.c.l.b16 %v5305
        %v7026 = vunpack.c.h.b16 %v5305
        %v7027 = vunpack.c.l.b16 %v5306
        %v7028 = vunpack.c.h.b16 %v5306
        %v7029 = vunpack.c.l.b16 %v5307
        %v7030 = vunpack.c.h.b16 %v5307
        %v7031 = vunpack.c.l.b16 %v5308
        %v7032 = vunpack.c.h.b16 %v5308
        %v7033 = vunpack.c.l.b16 %v5309
        %v7034 = vunpack.c.h.b16 %v5309
        %v7035 = vunpack.c.l.b16 %v5310
        %v7036 = vunpack.c.h.b16 %v5310
        %v7037 = vunpack.c.l.b16 %v5311
        %v7038 = vunpack.c.h.b16 %v5311
        %v7039 = vunpack.c.l.b16 %v5312
        %v7040 = vunpack.c.h.b16 %v5312
        %v7041 = vunpack.c.l.b16 %v5313
        %v7042 = vunpack.c.h.b16 %v5313
        %v7043 = vunpack.c.l.b16 %v5314
        %v7044 = vunpack.c.h.b16 %v5314
        %v7045 = vunpack.c.l.b16 %v5315
        %v7046 = vunpack.c.h.b16 %v5315
        %v7047 = vunpack.c.l.b16 %v5316
        %v7048 = vunpack.c.h.b16 %v5316
        %v7049 = vunpack.c.l.b16 %v5317
        %v7050 = vunpack.c.h.b16 %v5317
        %v7051 = vunpack.c.l.b16 %v5318
        %v7052 = vunpack.c.h.b16 %v5318
        %v7053 = vunpack.c.l.b16 %v5319
        %v7054 = vunpack.c.h.b16 %v5319
        %v7055 = vunpack.c.l.b16 %v5320
        %v7056 = vunpack.c.h.b16 %v5320
        %v7057 = vunpack.c.l.b16 %v5321
        %v7058 = vunpack.c.h.b16 %v5321
        %v7059 = vunpack.c.l.b16 %v5322
        %v7060 = vunpack.c.h.b16 %v5322
        %v7061 = vunpack.c.l.b16 %v5323
        %v7062 = vunpack.c.h.b16 %v5323
        %v7063 = vunpack.c.l.b16 %v5324
        %v7064 = vunpack.c.h.b16 %v5324
        %v7065 = vunpack.c.l.b16 %v5325
        %v7066 = vunpack.c.h.b16 %v5325
        %v7067 = vunpack.c.l.b16 %v5326
        %v7068 = vunpack.c.h.b16 %v5326
        %v7069 = vunpack.c.l.b16 %v5327
        %v7070 = vunpack.c.h.b16 %v5327
        %v7071 = vunpack.c.l.b16 %v5328
        %v7072 = vunpack.c.h.b16 %v5328
        %v7073 = vunpack.c.l.b16 %v5329
        %v7074 = vunpack.c.h.b16 %v5329
        %v7075 = vunpack.c.l.b16 %v5330
        %v7076 = vunpack.c.h.b16 %v5330
        %v7077 = vunpack.c.l.b16 %v5331
        %v7078 = vunpack.c.h.b16 %v5331
        %v7079 = vunpack.c.l.b16 %v5332
        %v7080 = vunpack.c.h.b16 %v5332
        %v7081 = vunpack.c.l.b16 %v5333
        %v7082 = vunpack.c.h.b16 %v5333
        %v7083 = vunpack.c.l.b16 %v5334
        %v7084 = vunpack.c.h.b16 %v5334
        %v7085 = vpack.c.b16 %v5937, %v5933
        %v7086 = vpack.c.b16 %v5938, %v5934
        %v7087 = vpack.c.b16 %v5939, %v5935
        %v7088 = vpack.c.b16 %v5940, %v5936
        %v7089 = vpack.c.b16 %v5945, %v5941
        %v7090 = vpack.c.b16 %v5946, %v5942
        %v7091 = vpack.c.b16 %v5947, %v5943
        %v7092 = vpack.c.b16 %v5948, %v5944
        %v7093 = vpack.c.b16 %v5953, %v5949
        %v7094 = vpack.c.b16 %v5954, %v5950
        %v7095 = vpack.c.b16 %v5955, %v5951
        %v7096 = vpack.c.b16 %v5956, %v5952
        %v7097 = vpack.c.b16 %v5961, %v5957
        %v7098 = vpack.c.b16 %v5962, %v5958
        %v7099 = vpack.c.b16 %v5963, %v5959
        %v7100 = vpack.c.b16 %v5964, %v5960
        %v7101 = vpack.c.b16 %v5969, %v5965
        %v7102 = vpack.c.b16 %v5970, %v5966
        %v7103 = vpack.c.b16 %v5971, %v5967
        %v7104 = vpack.c.b16 %v5972, %v5968
        %v7105 = vpack.c.b16 %v5977, %v5973
        %v7106 = vpack.c.b16 %v5978, %v5974
        %v7107 = vpack.c.b16 %v5979, %v5975
        %v7108 = vpack.c.b16 %v5980, %v5976
        %v7109 = vpack.c.b16 %v5985, %v5981
        %v7110 = vpack.c.b16 %v5986, %v5982
        %v7111 = vpack.c.b16 %v5987, %v5983
        %v7112 = vpack.c.b16 %v5988, %v5984
        %v7113 = vpack.c.b16 %v5993, %v5989
        %v7114 = vpack.c.b16 %v5994, %v5990
        %v7115 = vpack.c.b16 %v5995, %v5991
        %v7116 = vpack.c.b16 %v5996, %v5992
        %v7117 = vpack.c.b16 %v6001, %v5997
        %v7118 = vpack.c.b16 %v6002, %v5998
        %v7119 = vpack.c.b16 %v6003, %v5999
        %v7120 = vpack.c.b16 %v6004, %v6000
        %v7121 = vpack.c.b16 %v6009, %v6005
        %v7122 = vpack.c.b16 %v6010, %v6006
        %v7123 = vpack.c.b16 %v6011, %v6007
        %v7124 = vpack.c.b16 %v6012, %v6008
        %v7125 = vpack.c.b16 %v6017, %v6013
        %v7126 = vpack.c.b16 %v6018, %v6014
        %v7127 = vpack.c.b16 %v6019, %v6015
        %v7128 = vpack.c.b16 %v6020, %v6016
        %v7129 = vpack.c.b16 %v6025, %v6021
        %v7130 = vpack.c.b16 %v6026, %v6022
        %v7131 = vpack.c.b16 %v6027, %v6023
        %v7132 = vpack.c.b16 %v6028, %v6024
        %v7133 = vpack.c.b16 %v6033, %v6029
        %v7134 = vpack.c.b16 %v6034, %v6030
        %v7135 = vpack.c.b16 %v6035, %v6031
        %v7136 = vpack.c.b16 %v6036, %v6032
        %v7137 = vpack.c.b16 %v6041, %v6037
        %v7138 = vpack.c.b16 %v6042, %v6038
        %v7139 = vpack.c.b16 %v6043, %v6039
        %v7140 = vpack.c.b16 %v6044, %v6040
        %v7141 = vpack.c.b16 %v6049, %v6045
        %v7142 = vpack.c.b16 %v6050, %v6046
        %v7143 = vpack.c.b16 %v6051, %v6047
        %v7144 = vpack.c.b16 %v6052, %v6048
        %v7145 = vpack.c.b16 %v6057, %v6053
        %v7146 = vpack.c.b16 %v6058, %v6054
        %v7147 = vpack.c.b16 %v6059, %v6055
        %v7148 = vpack.c.b16 %v6060, %v6056
        %v7149 = vpack.c.b16 %v6065, %v6061
        %v7150 = vpack.c.b16 %v6066, %v6062
        %v7151 = vpack.c.b16 %v6067, %v6063
        %v7152 = vpack.c.b16 %v6068, %v6064
        %v7153 = vpack.c.b16 %v6073, %v6069
        %v7154 = vpack.c.b16 %v6074, %v6070
        %v7155 = vpack.c.b16 %v6075, %v6071
        %v7156 = vpack.c.b16 %v6076, %v6072
        %v7157 = vpack.c.b16 %v6081, %v6077
        %v7158 = vpack.c.b16 %v6082, %v6078
        %v7159 = vpack.c.b16 %v6083, %v6079
        %v7160 = vpack.c.b16 %v6084, %v6080
        %v7161 = vpack.c.b16 %v6089, %v6085
        %v7162 = vpack.c.b16 %v6090, %v6086
        %v7163 = vpack.c.b16 %v6091, %v6087
        %v7164 = vpack.c.b16 %v6092, %v6088
        %v7165 = vpack.c.b16 %v6097, %v6093
        %v7166 = vpack.c.b16 %v6098, %v6094
        %v7167 = vpack.c.b16 %v6099, %v6095
        %v7168 = vpack.c.b16 %v6100, %v6096
        %v7169 = vpack.c.b16 %v6105, %v6101
        %v7170 = vpack.c.b16 %v6106, %v6102
        %v7171 = vpack.c.b16 %v6107, %v6103
        %v7172 = vpack.c.b16 %v6108, %v6104
        %v7173 = vpack.c.b16 %v6113, %v6109
        %v7174 = vpack.c.b16 %v6114, %v6110
        %v7175 = vpack.c.b16 %v6115, %v6111
        %v7176 = vpack.c.b16 %v6116, %v6112
        %v7177 = vpack.c.b16 %v6121, %v6117
        %v7178 = vpack.c.b16 %v6122, %v6118
        %v7179 = vpack.c.b16 %v6123, %v6119
        %v7180 = vpack.c.b16 %v6124, %v6120
        %v7181 = vpack.c.b16 %v6129, %v6125
        %v7182 = vpack.c.b16 %v6130, %v6126
        %v7183 = vpack.c.b16 %v6131, %v6127
        %v7184 = vpack.c.b16 %v6132, %v6128
        %v7185 = vpack.c.b16 %v6137, %v6133
        %v7186 = vpack.c.b16 %v6138, %v6134
        %v7187 = vpack.c.b16 %v6139, %v6135
        %v7188 = vpack.c.b16 %v6140, %v6136
        %v7189 = vpack.c.b16 %v6145, %v6141
        %v7190 = vpack.c.b16 %v6146, %v6142
        %v7191 = vpack.c.b16 %v6147, %v6143
        %v7192 = vpack.c.b16 %v6148, %v6144
        %v7193 = vpack.c.b16 %v6153, %v6149
        %v7194 = vpack.c.b16 %v6154, %v6150
        %v7195 = vpack.c.b16 %v6155, %v6151
        %v7196 = vpack.c.b16 %v6156, %v6152
        %v7197 = vpack.c.b16 %v6161, %v6157
        %v7198 = vpack.c.b16 %v6162, %v6158
        %v7199 = vpack.c.b16 %v6163, %v6159
        %v7200 = vpack.c.b16 %v6164, %v6160
        %v7201 = vpack.c.b16 %v6169, %v6165
        %v7202 = vpack.c.b16 %v6170, %v6166
        %v7203 = vpack.c.b16 %v6171, %v6167
        %v7204 = vpack.c.b16 %v6172, %v6168
        %v7205 = vpack.c.b16 %v6177, %v6173
        %v7206 = vpack.c.b16 %v6178, %v6174
        %v7207 = vpack.c.b16 %v6179, %v6175
        %v7208 = vpack.c.b16 %v6180, %v6176
        %v7209 = vpack.c.b16 %v6185, %v6181
        %v7210 = vpack.c.b16 %v6186, %v6182
        %v7211 = vpack.c.b16 %v6187, %v6183
        %v7212 = vpack.c.b16 %v6188, %v6184
        %v7213 = vpack.c.b16 %v6193, %v6189
        %v7214 = vpack.c.b16 %v6194, %v6190
        %v7215 = vpack.c.b16 %v6195, %v6191
        %v7216 = vpack.c.b16 %v6196, %v6192
        %v7217 = vpack.c.b16 %v6201, %v6197
        %v7218 = vpack.c.b16 %v6202, %v6198
        %v7219 = vpack.c.b16 %v6203, %v6199
        %v7220 = vpack.c.b16 %v6204, %v6200
        %v7221 = vpack.c.b16 %v6209, %v6205
        %v7222 = vpack.c.b16 %v6210, %v6206
        %v7223 = vpack.c.b16 %v6211, %v6207
        %v7224 = vpack.c.b16 %v6212, %v6208
        %v7225 = vpack.c.b16 %v6217, %v6213
        %v7226 = vpack.c.b16 %v6218, %v6214
        %v7227 = vpack.c.b16 %v6219, %v6215
        %v7228 = vpack.c.b16 %v6220, %v6216
        %v7229 = vpack.c.b16 %v6225, %v6221
        %v7230 = vpack.c.b16 %v6226, %v6222
        %v7231 = vpack.c.b16 %v6227, %v6223
        %v7232 = vpack.c.b16 %v6228, %v6224
        %v7233 = vpack.c.b16 %v6233, %v6229
        %v7234 = vpack.c.b16 %v6234, %v6230
        %v7235 = vpack.c.b16 %v6235, %v6231
        %v7236 = vpack.c.b16 %v6236, %v6232
        %v7237 = vpack.c.b16 %v6241, %v6237
        %v7238 = vpack.c.b16 %v6242, %v6238
        %v7239 = vpack.c.b16 %v6243, %v6239
        %v7240 = vpack.c.b16 %v6244, %v6240
        %v7241 = vpack.c.b16 %v6249, %v6245
        %v7242 = vpack.c.b16 %v6250, %v6246
        %v7243 = vpack.c.b16 %v6251, %v6247
        %v7244 = vpack.c.b16 %v6252, %v6248
        %v7245 = vpack.c.b16 %v6257, %v6253
        %v7246 = vpack.c.b16 %v6258, %v6254
        %v7247 = vpack.c.b16 %v6259, %v6255
        %v7248 = vpack.c.b16 %v6260, %v6256
        %v7249 = vpack.c.b16 %v6265, %v6261
        %v7250 = vpack.c.b16 %v6266, %v6262
        %v7251 = vpack.c.b16 %v6267, %v6263
        %v7252 = vpack.c.b16 %v6268, %v6264
        %v7253 = vpack.c.b16 %v6273, %v6269
        %v7254 = vpack.c.b16 %v6274, %v6270
        %v7255 = vpack.c.b16 %v6275, %v6271
        %v7256 = vpack.c.b16 %v6276, %v6272
        %v7257 = vpack.c.b16 %v6281, %v6277
        %v7258 = vpack.c.b16 %v6282, %v6278
        %v7259 = vpack.c.b16 %v6283, %v6279
        %v7260 = vpack.c.b16 %v6284, %v6280
        %v7261 = vpack.c.b16 %v6289, %v6285
        %v7262 = vpack.c.b16 %v6290, %v6286
        %v7263 = vpack.c.b16 %v6291, %v6287
        %v7264 = vpack.c.b16 %v6292, %v6288
        %v7265 = vpack.c.b16 %v6297, %v6293
        %v7266 = vpack.c.b16 %v6298, %v6294
        %v7267 = vpack.c.b16 %v6299, %v6295
        %v7268 = vpack.c.b16 %v6300, %v6296
        %v7269 = vpack.c.b16 %v6305, %v6301
        %v7270 = vpack.c.b16 %v6306, %v6302
        %v7271 = vpack.c.b16 %v6307, %v6303
        %v7272 = vpack.c.b16 %v6308, %v6304
        %v7273 = vpack.c.b16 %v6313, %v6309
        %v7274 = vpack.c.b16 %v6314, %v6310
        %v7275 = vpack.c.b16 %v6315, %v6311
        %v7276 = vpack.c.b16 %v6316, %v6312
        %v7277 = vpack.c.b16 %v6321, %v6317
        %v7278 = vpack.c.b16 %v6322, %v6318
        %v7279 = vpack.c.b16 %v6323, %v6319
        %v7280 = vpack.c.b16 %v6324, %v6320
        %v7281 = vpack.c.b16 %v6329, %v6325
        %v7282 = vpack.c.b16 %v6330, %v6326
        %v7283 = vpack.c.b16 %v6331, %v6327
        %v7284 = vpack.c.b16 %v6332, %v6328
        %v7285 = vpack.c.b16 %v6337, %v6333
        %v7286 = vpack.c.b16 %v6338, %v6334
        %v7287 = vpack.c.b16 %v6339, %v6335
        %v7288 = vpack.c.b16 %v6340, %v6336
        %v7289 = vpack.c.b16 %v6345, %v6341
        %v7290 = vpack.c.b16 %v6346, %v6342
        %v7291 = vpack.c.b16 %v6347, %v6343
        %v7292 = vpack.c.b16 %v6348, %v6344
        %v7293 = vpack.c.b16 %v6353, %v6349
        %v7294 = vpack.c.b16 %v6354, %v6350
        %v7295 = vpack.c.b16 %v6355, %v6351
        %v7296 = vpack.c.b16 %v6356, %v6352
        %v7297 = vpack.c.b16 %v6361, %v6357
        %v7298 = vpack.c.b16 %v6362, %v6358
        %v7299 = vpack.c.b16 %v6363, %v6359
        %v7300 = vpack.c.b16 %v6364, %v6360
        %v7301 = vpack.c.b16 %v6369, %v6365
        %v7302 = vpack.c.b16 %v6370, %v6366
        %v7303 = vpack.c.b16 %v6371, %v6367
        %v7304 = vpack.c.b16 %v6372, %v6368
        %v7305 = vpack.c.b16 %v6377, %v6373
        %v7306 = vpack.c.b16 %v6378, %v6374
        %v7307 = vpack.c.b16 %v6379, %v6375
        %v7308 = vpack.c.b16 %v6380, %v6376
        %v7309 = vpack.c.b16 %v6385, %v6381
        %v7310 = vpack.c.b16 %v6386, %v6382
        %v7311 = vpack.c.b16 %v6387, %v6383
        %v7312 = vpack.c.b16 %v6388, %v6384
        %v7313 = vpack.c.b16 %v6393, %v6389
        %v7314 = vpack.c.b16 %v6394, %v6390
        %v7315 = vpack.c.b16 %v6395, %v6391
        %v7316 = vpack.c.b16 %v6396, %v6392
        %v7317 = vpack.c.b16 %v6401, %v6397
        %v7318 = vpack.c.b16 %v6402, %v6398
        %v7319 = vpack.c.b16 %v6403, %v6399
        %v7320 = vpack.c.b16 %v6404, %v6400
        %v7321 = vpack.c.b16 %v6409, %v6405
        %v7322 = vpack.c.b16 %v6410, %v6406
        %v7323 = vpack.c.b16 %v6411, %v6407
        %v7324 = vpack.c.b16 %v6412, %v6408
        %v7325 = vpack.c.b16 %v6417, %v6413
        %v7326 = vpack.c.b16 %v6418, %v6414
        %v7327 = vpack.c.b16 %v6419, %v6415
        %v7328 = vpack.c.b16 %v6420, %v6416
        %v7329 = vpack.c.b16 %v6425, %v6421
        %v7330 = vpack.c.b16 %v6426, %v6422
        %v7331 = vpack.c.b16 %v6427, %v6423
        %v7332 = vpack.c.b16 %v6428, %v6424
        %v7333 = vpack.c.b16 %v6433, %v6429
        %v7334 = vpack.c.b16 %v6434, %v6430
        %v7335 = vpack.c.b16 %v6435, %v6431
        %v7336 = vpack.c.b16 %v6436, %v6432
        %v7337 = vpack.c.b16 %v6441, %v6437
        %v7338 = vpack.c.b16 %v6442, %v6438
        %v7339 = vpack.c.b16 %v6443, %v6439
        %v7340 = vpack.c.b16 %v6444, %v6440
        %v7341 = vpack.c.b16 %v6449, %v6445
        %v7342 = vpack.c.b16 %v6450, %v6446
        %v7343 = vpack.c.b16 %v6451, %v6447
        %v7344 = vpack.c.b16 %v6452, %v6448
        %v7345 = vpack.c.b16 %v6457, %v6453
        %v7346 = vpack.c.b16 %v6458, %v6454
        %v7347 = vpack.c.b16 %v6459, %v6455
        %v7348 = vpack.c.b16 %v6460, %v6456
        %v7349 = vpack.c.b16 %v6465, %v6461
        %v7350 = vpack.c.b16 %v6466, %v6462
        %v7351 = vpack.c.b16 %v6467, %v6463
        %v7352 = vpack.c.b16 %v6468, %v6464
        %v7353 = vpack.c.b16 %v6473, %v6469
        %v7354 = vpack.c.b16 %v6474, %v6470
        %v7355 = vpack.c.b16 %v6475, %v6471
        %v7356 = vpack.c.b16 %v6476, %v6472
        %v7357 = vpack.c.b16 %v6481, %v6477
        %v7358 = vpack.c.b16 %v6482, %v6478
        %v7359 = vpack.c.b16 %v6483, %v6479
        %v7360 = vpack.c.b16 %v6484, %v6480
        %v7361 = vpack.c.b16 %v6489, %v6485
        %v7362 = vpack.c.b16 %v6490, %v6486
        %v7363 = vpack.c.b16 %v6491, %v6487
        %v7364 = vpack.c.b16 %v6492, %v6488
        %v7365 = vpack.c.b16 %v6497, %v6493
        %v7366 = vpack.c.b16 %v6498, %v6494
        %v7367 = vpack.c.b16 %v6499, %v6495
        %v7368 = vpack.c.b16 %v6500, %v6496
        %v7369 = vpack.c.b16 %v6505, %v6501
        %v7370 = vpack.c.b16 %v6506, %v6502
        %v7371 = vpack.c.b16 %v6507, %v6503
        %v7372 = vpack.c.b16 %v6508, %v6504
        %v7373 = vpack.c.b16 %v6513, %v6509
        %v7374 = vpack.c.b16 %v6514, %v6510
        %v7375 = vpack.c.b16 %v6515, %v6511
        %v7376 = vpack.c.b16 %v6516, %v6512
        %v7377 = vpack.c.b16 %v6521, %v6517
        %v7378 = vpack.c.b16 %v6522, %v6518
        %v7379 = vpack.c.b16 %v6523, %v6519
        %v7380 = vpack.c.b16 %v6524, %v6520
        %v7381 = vpack.c.b16 %v6529, %v6525
        %v7382 = vpack.c.b16 %v6530, %v6526
        %v7383 = vpack.c.b16 %v6531, %v6527
        %v7384 = vpack.c.b16 %v6532, %v6528
        %v7385 = vpack.c.b16 %v6537, %v6533
        %v7386 = vpack.c.b16 %v6538, %v6534
        %v7387 = vpack.c.b16 %v6539, %v6535
        %v7388 = vpack.c.b16 %v6540, %v6536
        %v7389 = vpack.c.b16 %v6545, %v6541
        %v7390 = vpack.c.b16 %v6546, %v6542
        %v7391 = vpack.c.b16 %v6547, %v6543
        %v7392 = vpack.c.b16 %v6548, %v6544
        %v7393 = vpack.c.b16 %v6553, %v6549
        %v7394 = vpack.c.b16 %v6554, %v6550
        %v7395 = vpack.c.b16 %v6555, %v6551
        %v7396 = vpack.c.b16 %v6556, %v6552
        %v7397 = vpack.c.b16 %v6561, %v6557
        %v7398 = vpack.c.b16 %v6562, %v6558
        %v7399 = vpack.c.b16 %v6563, %v6559
        %v7400 = vpack.c.b16 %v6564, %v6560
        %v7401 = vpack.c.b16 %v6569, %v6565
        %v7402 = vpack.c.b16 %v6570, %v6566
        %v7403 = vpack.c.b16 %v6571, %v6567
        %v7404 = vpack.c.b16 %v6572, %v6568
        %v7405 = vpack.c.b16 %v6577, %v6573
        %v7406 = vpack.c.b16 %v6578, %v6574
        %v7407 = vpack.c.b16 %v6579, %v6575
        %v7408 = vpack.c.b16 %v6580, %v6576
        %v7409 = vpack.c.b16 %v6585, %v6581
        %v7410 = vpack.c.b16 %v6586, %v6582
        %v7411 = vpack.c.b16 %v6587, %v6583
        %v7412 = vpack.c.b16 %v6588, %v6584
        %v7413 = vpack.c.b16 %v6593, %v6589
        %v7414 = vpack.c.b16 %v6594, %v6590
        %v7415 = vpack.c.b16 %v6595, %v6591
        %v7416 = vpack.c.b16 %v6596, %v6592
        %v7417 = vpack.c.b16 %v6601, %v6597
        %v7418 = vpack.c.b16 %v6602, %v6598
        %v7419 = vpack.c.b16 %v6603, %v6599
        %v7420 = vpack.c.b16 %v6604, %v6600
        %v7421 = vpack.c.b16 %v6609, %v6605
        %v7422 = vpack.c.b16 %v6610, %v6606
        %v7423 = vpack.c.b16 %v6611, %v6607
        %v7424 = vpack.c.b16 %v6612, %v6608
        %v7425 = vpack.c.b16 %v6617, %v6613
        %v7426 = vpack.c.b16 %v6618, %v6614
        %v7427 = vpack.c.b16 %v6619, %v6615
        %v7428 = vpack.c.b16 %v6620, %v6616
        %v7429 = vpack.c.b16 %v6625, %v6621
        %v7430 = vpack.c.b16 %v6626, %v6622
        %v7431 = vpack.c.b16 %v6627, %v6623
        %v7432 = vpack.c.b16 %v6628, %v6624
        %v7433 = vpack.c.b16 %v6633, %v6629
        %v7434 = vpack.c.b16 %v6634, %v6630
        %v7435 = vpack.c.b16 %v6635, %v6631
        %v7436 = vpack.c.b16 %v6636, %v6632
        %v7437 = vpack.c.b16 %v6641, %v6637
        %v7438 = vpack.c.b16 %v6642, %v6638
        %v7439 = vpack.c.b16 %v6643, %v6639
        %v7440 = vpack.c.b16 %v6644, %v6640
        %v7441 = vpack.c.b16 %v6649, %v6645
        %v7442 = vpack.c.b16 %v6650, %v6646
        %v7443 = vpack.c.b16 %v6651, %v6647
        %v7444 = vpack.c.b16 %v6652, %v6648
        %v7445 = vpack.c.b16 %v6657, %v6653
        %v7446 = vpack.c.b16 %v6658, %v6654
        %v7447 = vpack.c.b16 %v6659, %v6655
        %v7448 = vpack.c.b16 %v6660, %v6656
        %v7449 = vpack.c.b16 %v6665, %v6661
        %v7450 = vpack.c.b16 %v6666, %v6662
        %v7451 = vpack.c.b16 %v6667, %v6663
        %v7452 = vpack.c.b16 %v6668, %v6664
        %v7453 = vpack.c.b16 %v6673, %v6669
        %v7454 = vpack.c.b16 %v6674, %v6670
        %v7455 = vpack.c.b16 %v6675, %v6671
        %v7456 = vpack.c.b16 %v6676, %v6672
        %v7457 = vpack.c.b16 %v6681, %v6677
        %v7458 = vpack.c.b16 %v6682, %v6678
        %v7459 = vpack.c.b16 %v6683, %v6679
        %v7460 = vpack.c.b16 %v6684, %v6680
        %v7461 = vpack.c.b16 %v6689, %v6685
        %v7462 = vpack.c.b16 %v6690, %v6686
        %v7463 = vpack.c.b16 %v6691, %v6687
        %v7464 = vpack.c.b16 %v6692, %v6688
        %v7465 = vpack.c.b16 %v6697, %v6693
        %v7466 = vpack.c.b16 %v6698, %v6694
        %v7467 = vpack.c.b16 %v6699, %v6695
        %v7468 = vpack.c.b16 %v6700, %v6696
        %v7469 = vpack.c.b16 %v6705, %v6701
        %v7470 = vpack.c.b16 %v6706, %v6702
        %v7471 = vpack.c.b16 %v6707, %v6703
        %v7472 = vpack.c.b16 %v6708, %v6704
        %v7473 = vpack.c.b16 %v6713, %v6709
        %v7474 = vpack.c.b16 %v6714, %v6710
        %v7475 = vpack.c.b16 %v6715, %v6711
        %v7476 = vpack.c.b16 %v6716, %v6712
        %v7477 = vpack.c.b16 %v6721, %v6717
        %v7478 = vpack.c.b16 %v6722, %v6718
        %v7479 = vpack.c.b16 %v6723, %v6719
        %v7480 = vpack.c.b16 %v6724, %v6720
        %v7481 = vpack.c.b16 %v6729, %v6725
        %v7482 = vpack.c.b16 %v6730, %v6726
        %v7483 = vpack.c.b16 %v6731, %v6727
        %v7484 = vpack.c.b16 %v6732, %v6728
        %v7485 = vpack.c.b16 %v6737, %v6733
        %v7486 = vpack.c.b16 %v6738, %v6734
        %v7487 = vpack.c.b16 %v6739, %v6735
        %v7488 = vpack.c.b16 %v6740, %v6736
        %v7489 = vpack.c.b16 %v6745, %v6741
        %v7490 = vpack.c.b16 %v6746, %v6742
        %v7491 = vpack.c.b16 %v6747, %v6743
        %v7492 = vpack.c.b16 %v6748, %v6744
        %v7493 = vpack.c.b16 %v6753, %v6749
        %v7494 = vpack.c.b16 %v6754, %v6750
        %v7495 = vpack.c.b16 %v6755, %v6751
        %v7496 = vpack.c.b16 %v6756, %v6752
        %v7497 = vpack.c.b16 %v6761, %v6757
        %v7498 = vpack.c.b16 %v6762, %v6758
        %v7499 = vpack.c.b16 %v6763, %v6759
        %v7500 = vpack.c.b16 %v6764, %v6760
        %v7501 = vpack.c.b16 %v6769, %v6765
        %v7502 = vpack.c.b16 %v6770, %v6766
        %v7503 = vpack.c.b16 %v6771, %v6767
        %v7504 = vpack.c.b16 %v6772, %v6768
        %v7505 = vpack.c.b16 %v6777, %v6773
        %v7506 = vpack.c.b16 %v6778, %v6774
        %v7507 = vpack.c.b16 %v6779, %v6775
        %v7508 = vpack.c.b16 %v6780, %v6776
        %v7509 = vpack.c.b16 %v6785, %v6781
        %v7510 = vpack.c.b16 %v6786, %v6782
        %v7511 = vpack.c.b16 %v6787, %v6783
        %v7512 = vpack.c.b16 %v6788, %v6784
        %v7513 = vpack.c.b16 %v6793, %v6789
        %v7514 = vpack.c.b16 %v6794, %v6790
        %v7515 = vpack.c.b16 %v6795, %v6791
        %v7516 = vpack.c.b16 %v6796, %v6792
        %v7517 = vpack.c.b16 %v6801, %v6797
        %v7518 = vpack.c.b16 %v6802, %v6798
        %v7519 = vpack.c.b16 %v6803, %v6799
        %v7520 = vpack.c.b16 %v6804, %v6800
        %v7521 = vpack.c.b16 %v6809, %v6805
        %v7522 = vpack.c.b16 %v6810, %v6806
        %v7523 = vpack.c.b16 %v6811, %v6807
        %v7524 = vpack.c.b16 %v6812, %v6808
        %v7525 = vpack.c.b16 %v6817, %v6813
        %v7526 = vpack.c.b16 %v6818, %v6814
        %v7527 = vpack.c.b16 %v6819, %v6815
        %v7528 = vpack.c.b16 %v6820, %v6816
        %v7529 = vpack.c.b16 %v6825, %v6821
        %v7530 = vpack.c.b16 %v6826, %v6822
        %v7531 = vpack.c.b16 %v6827, %v6823
        %v7532 = vpack.c.b16 %v6828, %v6824
        %v7533 = vpack.c.b16 %v6833, %v6829
        %v7534 = vpack.c.b16 %v6834, %v6830
        %v7535 = vpack.c.b16 %v6835, %v6831
        %v7536 = vpack.c.b16 %v6836, %v6832
        %v7537 = vpack.c.b16 %v6841, %v6837
        %v7538 = vpack.c.b16 %v6842, %v6838
        %v7539 = vpack.c.b16 %v6843, %v6839
        %v7540 = vpack.c.b16 %v6844, %v6840
        %v7541 = vpack.c.b16 %v6849, %v6845
        %v7542 = vpack.c.b16 %v6850, %v6846
        %v7543 = vpack.c.b16 %v6851, %v6847
        %v7544 = vpack.c.b16 %v6852, %v6848
        %v7545 = vpack.c.b16 %v6857, %v6853
        %v7546 = vpack.c.b16 %v6858, %v6854
        %v7547 = vpack.c.b16 %v6859, %v6855
        %v7548 = vpack.c.b16 %v6860, %v6856
        %v7549 = vpack.c.b16 %v6865, %v6861
        %v7550 = vpack.c.b16 %v6866, %v6862
        %v7551 = vpack.c.b16 %v6867, %v6863
        %v7552 = vpack.c.b16 %v6868, %v6864
        %v7553 = vpack.c.b16 %v6873, %v6869
        %v7554 = vpack.c.b16 %v6874, %v6870
        %v7555 = vpack.c.b16 %v6875, %v6871
        %v7556 = vpack.c.b16 %v6876, %v6872
        %v7557 = vpack.c.b16 %v6881, %v6877
        %v7558 = vpack.c.b16 %v6882, %v6878
        %v7559 = vpack.c.b16 %v6883, %v6879
        %v7560 = vpack.c.b16 %v6884, %v6880
        %v7561 = vpack.c.b16 %v6889, %v6885
        %v7562 = vpack.c.b16 %v6890, %v6886
        %v7563 = vpack.c.b16 %v6891, %v6887
        %v7564 = vpack.c.b16 %v6892, %v6888
        %v7565 = vpack.c.b16 %v6897, %v6893
        %v7566 = vpack.c.b16 %v6898, %v6894
        %v7567 = vpack.c.b16 %v6899, %v6895
        %v7568 = vpack.c.b16 %v6900, %v6896
        %v7569 = vpack.c.b16 %v6905, %v6901
        %v7570 = vpack.c.b16 %v6906, %v6902
        %v7571 = vpack.c.b16 %v6907, %v6903
        %v7572 = vpack.c.b16 %v6908, %v6904
        %v7573 = vpack.c.b16 %v6913, %v6909
        %v7574 = vpack.c.b16 %v6914, %v6910
        %v7575 = vpack.c.b16 %v6915, %v6911
        %v7576 = vpack.c.b16 %v6916, %v6912
        %v7577 = vpack.c.b16 %v6921, %v6917
        %v7578 = vpack.c.b16 %v6922, %v6918
        %v7579 = vpack.c.b16 %v6923, %v6919
        %v7580 = vpack.c.b16 %v6924, %v6920
        %v7581 = vpack.c.b16 %v6929, %v6925
        %v7582 = vpack.c.b16 %v6930, %v6926
        %v7583 = vpack.c.b16 %v6931, %v6927
        %v7584 = vpack.c.b16 %v6932, %v6928
        %v7585 = vpack.c.b16 %v6937, %v6933
        %v7586 = vpack.c.b16 %v6938, %v6934
        %v7587 = vpack.c.b16 %v6939, %v6935
        %v7588 = vpack.c.b16 %v6940, %v6936
        %v7589 = vpack.c.b16 %v6945, %v6941
        %v7590 = vpack.c.b16 %v6946, %v6942
        %v7591 = vpack.c.b16 %v6947, %v6943
        %v7592 = vpack.c.b16 %v6948, %v6944
        %v7593 = vpack.c.b16 %v6953, %v6949
        %v7594 = vpack.c.b16 %v6954, %v6950
        %v7595 = vpack.c.b16 %v6955, %v6951
        %v7596 = vpack.c.b16 %v6956, %v6952
        %v7597 = vpack.c.b16 %v6961, %v6957
        %v7598 = vpack.c.b16 %v6962, %v6958
        %v7599 = vpack.c.b16 %v6963, %v6959
        %v7600 = vpack.c.b16 %v6964, %v6960
        %v7601 = vpack.c.b16 %v6969, %v6965
        %v7602 = vpack.c.b16 %v6970, %v6966
        %v7603 = vpack.c.b16 %v6971, %v6967
        %v7604 = vpack.c.b16 %v6972, %v6968
        %v7605 = vpack.c.b16 %v6977, %v6973
        %v7606 = vpack.c.b16 %v6978, %v6974
        %v7607 = vpack.c.b16 %v6979, %v6975
        %v7608 = vpack.c.b16 %v6980, %v6976
        %v7609 = vpack.c.b16 %v6985, %v6981
        %v7610 = vpack.c.b16 %v6986, %v6982
        %v7611 = vpack.c.b16 %v6987, %v6983
        %v7612 = vpack.c.b16 %v6988, %v6984
        %v7613 = vpack.c.b16 %v6993, %v6989
        %v7614 = vpack.c.b16 %v6994, %v6990
        %v7615 = vpack.c.b16 %v6995, %v6991
        %v7616 = vpack.c.b16 %v6996, %v6992
        %v7617 = vpack.c.b16 %v7001, %v6997
        %v7618 = vpack.c.b16 %v7002, %v6998
        %v7619 = vpack.c.b16 %v7003, %v6999
        %v7620 = vpack.c.b16 %v7004, %v7000
        %v7621 = vpack.c.b16 %v7009, %v7005
        %v7622 = vpack.c.b16 %v7010, %v7006
        %v7623 = vpack.c.b16 %v7011, %v7007
        %v7624 = vpack.c.b16 %v7012, %v7008
        %v7625 = vpack.c.b16 %v7017, %v7013
        %v7626 = vpack.c.b16 %v7018, %v7014
        %v7627 = vpack.c.b16 %v7019, %v7015
        %v7628 = vpack.c.b16 %v7020, %v7016
        %v7629 = vpack.c.b16 %v7025, %v7021
        %v7630 = vpack.c.b16 %v7026, %v7022
        %v7631 = vpack.c.b16 %v7027, %v7023
        %v7632 = vpack.c.b16 %v7028, %v7024
        %v7633 = vpack.c.b16 %v7033, %v7029
        %v7634 = vpack.c.b16 %v7034, %v7030
        %v7635 = vpack.c.b16 %v7035, %v7031
        %v7636 = vpack.c.b16 %v7036, %v7032
        %v7637 = vpack.c.b16 %v7041, %v7037
        %v7638 = vpack.c.b16 %v7042, %v7038
        %v7639 = vpack.c.b16 %v7043, %v7039
        %v7640 = vpack.c.b16 %v7044, %v7040
        %v7641 = vpack.c.b16 %v7049, %v7045
        %v7642 = vpack.c.b16 %v7050, %v7046
        %v7643 = vpack.c.b16 %v7051, %v7047
        %v7644 = vpack.c.b16 %v7052, %v7048
        %v7645 = vpack.c.b16 %v7057, %v7053
        %v7646 = vpack.c.b16 %v7058, %v7054
        %v7647 = vpack.c.b16 %v7059, %v7055
        %v7648 = vpack.c.b16 %v7060, %v7056
        %v7649 = vpack.c.b16 %v7065, %v7061
        %v7650 = vpack.c.b16 %v7066, %v7062
        %v7651 = vpack.c.b16 %v7067, %v7063
        %v7652 = vpack.c.b16 %v7068, %v7064
        %v7653 = vpack.c.b16 %v7073, %v7069
        %v7654 = vpack.c.b16 %v7074, %v7070
        %v7655 = vpack.c.b16 %v7075, %v7071
        %v7656 = vpack.c.b16 %v7076, %v7072
        %v7657 = vpack.c.b16 %v7081, %v7077
        %v7658 = vpack.c.b16 %v7082, %v7078
        %v7659 = vpack.c.b16 %v7083, %v7079
        %v7660 = vpack.c.b16 %v7084, %v7080
        %8237 = vmatprep.subr.bf16.mxu0 %v7114
        %8238 = vmatpush1.bf16.msra.mxu0 %v7113
        %8239 = vmatprep.subr.bf16.mxu0 %v7110
        %8240 = vmatpush1.bf16.msra.mxu0 %v7109
        %8241 = vmatprep.subr.bf16.mxu0 %v7106
        %8242 = vmatpush1.bf16.msra.mxu0 %v7105
        %8243 = vmatprep.subr.bf16.mxu0 %v7102
        %8244 = vmatpush1.bf16.msra.mxu0 %v7101
        %8245 = vmatprep.subr.bf16.mxu0 %v7098
        %8246 = vmatpush1.bf16.msra.mxu0 %v7097
        %8247 = vmatprep.subr.bf16.mxu0 %v7094
        %8248 = vmatpush1.bf16.msra.mxu0 %v7093
        %8249 = vmatprep.subr.bf16.mxu0 %v7090
        %8250 = vmatpush1.bf16.msra.mxu0 %v7089
        %8251 = vmatprep.subr.bf16.mxu0 %v7086
        %8252 = vmatpush1.bf16.msra.mxu0 %v7085
        %8253 = vmatprep.subr.bf16.mxu0 %v7146
        %8254 = vmatpush2.bf16.msra.mxu0 %v7145
        %8255 = vmatprep.subr.bf16.mxu0 %v7142
        %8256 = vmatpush2.bf16.msra.mxu0 %v7141
        %8257 = vmatprep.subr.bf16.mxu0 %v7138
        %8258 = vmatpush2.bf16.msra.mxu0 %v7137
        %8259 = vmatprep.subr.bf16.mxu0 %v7134
        %8260 = vmatpush2.bf16.msra.mxu0 %v7133
        %8261 = vmatprep.subr.bf16.mxu0 %v7130
        %8262 = vmatpush2.bf16.msra.mxu0 %v7129
        %8263 = vmatprep.subr.bf16.mxu0 %v7126
        %8264 = vmatpush2.bf16.msra.mxu0 %v7125
        %8265 = vmatprep.subr.bf16.mxu0 %v7122
        %8266 = vmatpush2.bf16.msra.mxu0 %v7121
        %8267 = vmatprep.subr.bf16.mxu0 %v7118
        %8268 = vmatpush2.bf16.msra.mxu0 %v7117
        %8269 = vmatprep.mubr.bf16.mxu0 %v4742
        %8270 = vmatmul.mubr.bf16.gmra.mxu0 %v4741
        %v8271 = vpop.f32.mrf.mxu0
        %v8272 = vadd.f32 %v5340, %v8271
        %v8273 = vpop.f32.mrf.mxu0
        %v8274 = vadd.f32 %v5344, %v8273
        %v8275 = vpop.f32.mrf.mxu0
        %v8276 = vpop.f32.mrf.mxu0
        %8277 = vdwg.mxu0
        %8278 = vmatprep.subr.bf16.mxu0 %v7178
        %8279 = vmatpush1.bf16.msra.mxu0 %v7177
        %8280 = vmatprep.subr.bf16.mxu0 %v7174
        %8281 = vmatpush1.bf16.msra.mxu0 %v7173
        %8282 = vmatprep.subr.bf16.mxu0 %v7170
        %8283 = vmatpush1.bf16.msra.mxu0 %v7169
        %8284 = vmatprep.subr.bf16.mxu0 %v7166
        %8285 = vmatpush1.bf16.msra.mxu0 %v7165
        %8286 = vmatprep.subr.bf16.mxu0 %v7162
        %8287 = vmatpush1.bf16.msra.mxu0 %v7161
        %8288 = vmatprep.subr.bf16.mxu0 %v7158
        %8289 = vmatpush1.bf16.msra.mxu0 %v7157
        %8290 = vmatprep.subr.bf16.mxu0 %v7154
        %8291 = vmatpush1.bf16.msra.mxu0 %v7153
        %8292 = vmatprep.subr.bf16.mxu0 %v7150
        %8293 = vmatpush1.bf16.msra.mxu0 %v7149
        %8294 = vmatprep.subr.bf16.mxu0 %v7210
        %8295 = vmatpush2.bf16.msra.mxu0 %v7209
        %8296 = vmatprep.subr.bf16.mxu0 %v7206
        %8297 = vmatpush2.bf16.msra.mxu0 %v7205
        %8298 = vmatprep.subr.bf16.mxu0 %v7202
        %8299 = vmatpush2.bf16.msra.mxu0 %v7201
        %8300 = vmatprep.subr.bf16.mxu0 %v7198
        %8301 = vmatpush2.bf16.msra.mxu0 %v7197
        %8302 = vmatprep.subr.bf16.mxu0 %v7194
        %8303 = vmatpush2.bf16.msra.mxu0 %v7193
        %8304 = vmatprep.subr.bf16.mxu0 %v7190
        %8305 = vmatpush2.bf16.msra.mxu0 %v7189
        %8306 = vmatprep.subr.bf16.mxu0 %v7186
        %8307 = vmatpush2.bf16.msra.mxu0 %v7185
        %8308 = vmatprep.subr.bf16.mxu0 %v7182
        %8309 = vmatpush2.bf16.msra.mxu0 %v7181
        %8310 = vmatprep.mubr.bf16.mxu0 %v4744
        %8311 = vmatmul.mubr.bf16.gmra.mxu0 %v4743
        %v8312 = vpop.f32.mrf.mxu0
        %v8313 = vadd.f32 %v8272, %v8312
        %v8314 = vpop.f32.mrf.mxu0
        %v8315 = vadd.f32 %v8274, %v8314
        %v8316 = vpop.f32.mrf.mxu0
        %v8317 = vpop.f32.mrf.mxu0
        %8318 = vdwg.mxu0
        %8319 = vmatprep.subr.bf16.mxu0 %v7242
        %8320 = vmatpush1.bf16.msra.mxu0 %v7241
        %8321 = vmatprep.subr.bf16.mxu0 %v7238
        %8322 = vmatpush1.bf16.msra.mxu0 %v7237
        %8323 = vmatprep.subr.bf16.mxu0 %v7234
        %8324 = vmatpush1.bf16.msra.mxu0 %v7233
        %8325 = vmatprep.subr.bf16.mxu0 %v7230
        %8326 = vmatpush1.bf16.msra.mxu0 %v7229
        %8327 = vmatprep.subr.bf16.mxu0 %v7226
        %8328 = vmatpush1.bf16.msra.mxu0 %v7225
        %8329 = vmatprep.subr.bf16.mxu0 %v7222
        %8330 = vmatpush1.bf16.msra.mxu0 %v7221
        %8331 = vmatprep.subr.bf16.mxu0 %v7218
        %8332 = vmatpush1.bf16.msra.mxu0 %v7217
        %8333 = vmatprep.subr.bf16.mxu0 %v7214
        %8334 = vmatpush1.bf16.msra.mxu0 %v7213
        %8335 = vmatprep.subr.bf16.mxu0 %v7274
        %8336 = vmatpush2.bf16.msra.mxu0 %v7273
        %8337 = vmatprep.subr.bf16.mxu0 %v7270
        %8338 = vmatpush2.bf16.msra.mxu0 %v7269
        %8339 = vmatprep.subr.bf16.mxu0 %v7266
        %8340 = vmatpush2.bf16.msra.mxu0 %v7265
        %8341 = vmatprep.subr.bf16.mxu0 %v7262
        %8342 = vmatpush2.bf16.msra.mxu0 %v7261
        %8343 = vmatprep.subr.bf16.mxu0 %v7258
        %8344 = vmatpush2.bf16.msra.mxu0 %v7257
        %8345 = vmatprep.subr.bf16.mxu0 %v7254
        %8346 = vmatpush2.bf16.msra.mxu0 %v7253
        %8347 = vmatprep.subr.bf16.mxu0 %v7250
        %8348 = vmatpush2.bf16.msra.mxu0 %v7249
        %8349 = vmatprep.subr.bf16.mxu0 %v7246
        %8350 = vmatpush2.bf16.msra.mxu0 %v7245
        %8351 = vmatprep.mubr.bf16.mxu0 %v4746
        %8352 = vmatmul.mubr.bf16.gmra.mxu0 %v4745
        %v8353 = vpop.f32.mrf.mxu0
        %v8354 = vadd.f32 %v8313, %v8353
        %v8355 = vpop.f32.mrf.mxu0
        %v8356 = vadd.f32 %v8315, %v8355
        %v8357 = vpop.f32.mrf.mxu0
        %v8358 = vpop.f32.mrf.mxu0
        %8359 = vdwg.mxu0
        %8360 = vmatprep.subr.bf16.mxu0 %v7306
        %8361 = vmatpush1.bf16.msra.mxu0 %v7305
        %8362 = vmatprep.subr.bf16.mxu0 %v7302
        %8363 = vmatpush1.bf16.msra.mxu0 %v7301
        %8364 = vmatprep.subr.bf16.mxu0 %v7298
        %8365 = vmatpush1.bf16.msra.mxu0 %v7297
        %8366 = vmatprep.subr.bf16.mxu0 %v7294
        %8367 = vmatpush1.bf16.msra.mxu0 %v7293
        %8368 = vmatprep.subr.bf16.mxu0 %v7290
        %8369 = vmatpush1.bf16.msra.mxu0 %v7289
        %8370 = vmatprep.subr.bf16.mxu0 %v7286
        %8371 = vmatpush1.bf16.msra.mxu0 %v7285
        %8372 = vmatprep.subr.bf16.mxu0 %v7282
        %8373 = vmatpush1.bf16.msra.mxu0 %v7281
        %8374 = vmatprep.subr.bf16.mxu0 %v7278
        %8375 = vmatpush1.bf16.msra.mxu0 %v7277
        %8376 = vmatprep.subr.bf16.mxu0 %v7338
        %8377 = vmatpush2.bf16.msra.mxu0 %v7337
        %8378 = vmatprep.subr.bf16.mxu0 %v7334
        %8379 = vmatpush2.bf16.msra.mxu0 %v7333
        %8380 = vmatprep.subr.bf16.mxu0 %v7330
        %8381 = vmatpush2.bf16.msra.mxu0 %v7329
        %8382 = vmatprep.subr.bf16.mxu0 %v7326
        %8383 = vmatpush2.bf16.msra.mxu0 %v7325
        %8384 = vmatprep.subr.bf16.mxu0 %v7322
        %8385 = vmatpush2.bf16.msra.mxu0 %v7321
        %8386 = vmatprep.subr.bf16.mxu0 %v7318
        %8387 = vmatpush2.bf16.msra.mxu0 %v7317
        %8388 = vmatprep.subr.bf16.mxu0 %v7314
        %8389 = vmatpush2.bf16.msra.mxu0 %v7313
        %8390 = vmatprep.subr.bf16.mxu0 %v7310
        %8391 = vmatpush2.bf16.msra.mxu0 %v7309
        %8392 = vmatprep.mubr.bf16.mxu0 %v4748
        %8393 = vmatmul.mubr.bf16.gmra.mxu0 %v4747
        %v8394 = vpop.f32.mrf.mxu0
        %v8395 = vadd.f32 %v8354, %v8394
        %v8396 = vpop.f32.mrf.mxu0
        %v8397 = vadd.f32 %v8356, %v8396
        %v8398 = vpop.f32.mrf.mxu0
        %v8399 = vpop.f32.mrf.mxu0
        %8400 = vdwg.mxu0
        %8401 = vmatprep.subr.bf16.mxu0 %v7370
        %8402 = vmatpush1.bf16.msra.mxu0 %v7369
        %8403 = vmatprep.subr.bf16.mxu0 %v7366
        %8404 = vmatpush1.bf16.msra.mxu0 %v7365
        %8405 = vmatprep.subr.bf16.mxu0 %v7362
        %8406 = vmatpush1.bf16.msra.mxu0 %v7361
        %8407 = vmatprep.subr.bf16.mxu0 %v7358
        %8408 = vmatpush1.bf16.msra.mxu0 %v7357
        %8409 = vmatprep.subr.bf16.mxu0 %v7354
        %8410 = vmatpush1.bf16.msra.mxu0 %v7353
        %8411 = vmatprep.subr.bf16.mxu0 %v7350
        %8412 = vmatpush1.bf16.msra.mxu0 %v7349
        %8413 = vmatprep.subr.bf16.mxu0 %v7346
        %8414 = vmatpush1.bf16.msra.mxu0 %v7345
        %8415 = vmatprep.subr.bf16.mxu0 %v7342
        %8416 = vmatpush1.bf16.msra.mxu0 %v7341
        %8417 = vmatprep.subr.bf16.mxu0 %v7402
        %8418 = vmatpush2.bf16.msra.mxu0 %v7401
        %8419 = vmatprep.subr.bf16.mxu0 %v7398
        %8420 = vmatpush2.bf16.msra.mxu0 %v7397
        %8421 = vmatprep.subr.bf16.mxu0 %v7394
        %8422 = vmatpush2.bf16.msra.mxu0 %v7393
        %8423 = vmatprep.subr.bf16.mxu0 %v7390
        %8424 = vmatpush2.bf16.msra.mxu0 %v7389
        %8425 = vmatprep.subr.bf16.mxu0 %v7386
        %8426 = vmatpush2.bf16.msra.mxu0 %v7385
        %8427 = vmatprep.subr.bf16.mxu0 %v7382
        %8428 = vmatpush2.bf16.msra.mxu0 %v7381
        %8429 = vmatprep.subr.bf16.mxu0 %v7378
        %8430 = vmatpush2.bf16.msra.mxu0 %v7377
        %8431 = vmatprep.subr.bf16.mxu0 %v7374
        %8432 = vmatpush2.bf16.msra.mxu0 %v7373
        %8433 = vmatprep.mubr.bf16.mxu0 %v4750
        %8434 = vmatmul.mubr.bf16.gmra.mxu0 %v4749
        %v8435 = vpop.f32.mrf.mxu0
        %v8436 = vadd.f32 %v8395, %v8435
        %v8437 = vpop.f32.mrf.mxu0
        %v8438 = vadd.f32 %v8397, %v8437
        %v8439 = vpop.f32.mrf.mxu0
        %v8440 = vpop.f32.mrf.mxu0
        %8441 = vdwg.mxu0
        %8442 = vmatprep.subr.bf16.mxu0 %v7434
        %8443 = vmatpush1.bf16.msra.mxu0 %v7433
        %8444 = vmatprep.subr.bf16.mxu0 %v7430
        %8445 = vmatpush1.bf16.msra.mxu0 %v7429
        %8446 = vmatprep.subr.bf16.mxu0 %v7426
        %8447 = vmatpush1.bf16.msra.mxu0 %v7425
        %8448 = vmatprep.subr.bf16.mxu0 %v7422
        %8449 = vmatpush1.bf16.msra.mxu0 %v7421
        %8450 = vmatprep.subr.bf16.mxu0 %v7418
        %8451 = vmatpush1.bf16.msra.mxu0 %v7417
        %8452 = vmatprep.subr.bf16.mxu0 %v7414
        %8453 = vmatpush1.bf16.msra.mxu0 %v7413
        %8454 = vmatprep.subr.bf16.mxu0 %v7410
        %8455 = vmatpush1.bf16.msra.mxu0 %v7409
        %8456 = vmatprep.subr.bf16.mxu0 %v7406
        %8457 = vmatpush1.bf16.msra.mxu0 %v7405
        %8458 = vmatprep.subr.bf16.mxu0 %v7466
        %8459 = vmatpush2.bf16.msra.mxu0 %v7465
        %8460 = vmatprep.subr.bf16.mxu0 %v7462
        %8461 = vmatpush2.bf16.msra.mxu0 %v7461
        %8462 = vmatprep.subr.bf16.mxu0 %v7458
        %8463 = vmatpush2.bf16.msra.mxu0 %v7457
        %8464 = vmatprep.subr.bf16.mxu0 %v7454
        %8465 = vmatpush2.bf16.msra.mxu0 %v7453
        %8466 = vmatprep.subr.bf16.mxu0 %v7450
        %8467 = vmatpush2.bf16.msra.mxu0 %v7449
        %8468 = vmatprep.subr.bf16.mxu0 %v7446
        %8469 = vmatpush2.bf16.msra.mxu0 %v7445
        %8470 = vmatprep.subr.bf16.mxu0 %v7442
        %8471 = vmatpush2.bf16.msra.mxu0 %v7441
        %8472 = vmatprep.subr.bf16.mxu0 %v7438
        %8473 = vmatpush2.bf16.msra.mxu0 %v7437
        %8474 = vmatprep.mubr.bf16.mxu0 %v4752
        %8475 = vmatmul.mubr.bf16.gmra.mxu0 %v4751
        %v8476 = vpop.f32.mrf.mxu0
        %v8477 = vadd.f32 %v8436, %v8476
        %v8478 = vpop.f32.mrf.mxu0
        %v8479 = vadd.f32 %v8438, %v8478
        %v8480 = vpop.f32.mrf.mxu0
        %v8481 = vpop.f32.mrf.mxu0
        %8482 = vdwg.mxu0
        %8483 = vmatprep.subr.bf16.mxu0 %v7498
        %8484 = vmatpush1.bf16.msra.mxu0 %v7497
        %8485 = vmatprep.subr.bf16.mxu0 %v7494
        %8486 = vmatpush1.bf16.msra.mxu0 %v7493
        %8487 = vmatprep.subr.bf16.mxu0 %v7490
        %8488 = vmatpush1.bf16.msra.mxu0 %v7489
        %8489 = vmatprep.subr.bf16.mxu0 %v7486
        %8490 = vmatpush1.bf16.msra.mxu0 %v7485
        %8491 = vmatprep.subr.bf16.mxu0 %v7482
        %8492 = vmatpush1.bf16.msra.mxu0 %v7481
        %8493 = vmatprep.subr.bf16.mxu0 %v7478
        %8494 = vmatpush1.bf16.msra.mxu0 %v7477
        %8495 = vmatprep.subr.bf16.mxu0 %v7474
        %8496 = vmatpush1.bf16.msra.mxu0 %v7473
        %8497 = vmatprep.subr.bf16.mxu0 %v7470
        %8498 = vmatpush1.bf16.msra.mxu0 %v7469
        %8499 = vmatprep.subr.bf16.mxu0 %v7530
        %8500 = vmatpush2.bf16.msra.mxu0 %v7529
        %8501 = vmatprep.subr.bf16.mxu0 %v7526
        %8502 = vmatpush2.bf16.msra.mxu0 %v7525
        %8503 = vmatprep.subr.bf16.mxu0 %v7522
        %8504 = vmatpush2.bf16.msra.mxu0 %v7521
        %8505 = vmatprep.subr.bf16.mxu0 %v7518
        %8506 = vmatpush2.bf16.msra.mxu0 %v7517
        %8507 = vmatprep.subr.bf16.mxu0 %v7514
        %8508 = vmatpush2.bf16.msra.mxu0 %v7513
        %8509 = vmatprep.subr.bf16.mxu0 %v7510
        %8510 = vmatpush2.bf16.msra.mxu0 %v7509
        %8511 = vmatprep.subr.bf16.mxu0 %v7506
        %8512 = vmatpush2.bf16.msra.mxu0 %v7505
        %8513 = vmatprep.subr.bf16.mxu0 %v7502
        %8514 = vmatpush2.bf16.msra.mxu0 %v7501
        %8515 = vmatprep.mubr.bf16.mxu0 %v4754
        %8516 = vmatmul.mubr.bf16.gmra.mxu0 %v4753
        %v8517 = vpop.f32.mrf.mxu0
        %v8518 = vadd.f32 %v8477, %v8517
        %v8519 = vpop.f32.mrf.mxu0
        %v8520 = vadd.f32 %v8479, %v8519
        %v8521 = vpop.f32.mrf.mxu0
        %v8522 = vpop.f32.mrf.mxu0
        %8523 = vdwg.mxu0
        %8524 = vmatprep.subr.bf16.mxu0 %v7562
        %8525 = vmatpush1.bf16.msra.mxu0 %v7561
        %8526 = vmatprep.subr.bf16.mxu0 %v7558
        %8527 = vmatpush1.bf16.msra.mxu0 %v7557
        %8528 = vmatprep.subr.bf16.mxu0 %v7554
        %8529 = vmatpush1.bf16.msra.mxu0 %v7553
        %8530 = vmatprep.subr.bf16.mxu0 %v7550
        %8531 = vmatpush1.bf16.msra.mxu0 %v7549
        %8532 = vmatprep.subr.bf16.mxu0 %v7546
        %8533 = vmatpush1.bf16.msra.mxu0 %v7545
        %8534 = vmatprep.subr.bf16.mxu0 %v7542
        %8535 = vmatpush1.bf16.msra.mxu0 %v7541
        %8536 = vmatprep.subr.bf16.mxu0 %v7538
        %8537 = vmatpush1.bf16.msra.mxu0 %v7537
        %8538 = vmatprep.subr.bf16.mxu0 %v7534
        %8539 = vmatpush1.bf16.msra.mxu0 %v7533
        %8540 = vmatprep.subr.bf16.mxu0 %v7594
        %8541 = vmatpush2.bf16.msra.mxu0 %v7593
        %8542 = vmatprep.subr.bf16.mxu0 %v7590
        %8543 = vmatpush2.bf16.msra.mxu0 %v7589
        %8544 = vmatprep.subr.bf16.mxu0 %v7586
        %8545 = vmatpush2.bf16.msra.mxu0 %v7585
        %8546 = vmatprep.subr.bf16.mxu0 %v7582
        %8547 = vmatpush2.bf16.msra.mxu0 %v7581
        %8548 = vmatprep.subr.bf16.mxu0 %v7578
        %8549 = vmatpush2.bf16.msra.mxu0 %v7577
        %8550 = vmatprep.subr.bf16.mxu0 %v7574
        %8551 = vmatpush2.bf16.msra.mxu0 %v7573
        %8552 = vmatprep.subr.bf16.mxu0 %v7570
        %8553 = vmatpush2.bf16.msra.mxu0 %v7569
        %8554 = vmatprep.subr.bf16.mxu0 %v7566
        %8555 = vmatpush2.bf16.msra.mxu0 %v7565
        %8556 = vmatprep.mubr.bf16.mxu0 %v4756
        %8557 = vmatmul.mubr.bf16.gmra.mxu0 %v4755
        %v8558 = vpop.f32.mrf.mxu0
        %v8559 = vadd.f32 %v8518, %v8558
        %v8560 = vpop.f32.mrf.mxu0
        %v8561 = vadd.f32 %v8520, %v8560
        %v8562 = vpop.f32.mrf.mxu0
        %v8563 = vpop.f32.mrf.mxu0
        %8564 = vdwg.mxu0
        %8565 = vmatprep.subr.bf16.mxu0 %v7626
        %8566 = vmatpush1.bf16.msra.mxu0 %v7625
        %8567 = vmatprep.subr.bf16.mxu0 %v7622
        %8568 = vmatpush1.bf16.msra.mxu0 %v7621
        %8569 = vmatprep.subr.bf16.mxu0 %v7618
        %8570 = vmatpush1.bf16.msra.mxu0 %v7617
        %8571 = vmatprep.subr.bf16.mxu0 %v7614
        %8572 = vmatpush1.bf16.msra.mxu0 %v7613
        %8573 = vmatprep.subr.bf16.mxu0 %v7610
        %8574 = vmatpush1.bf16.msra.mxu0 %v7609
        %8575 = vmatprep.subr.bf16.mxu0 %v7606
        %8576 = vmatpush1.bf16.msra.mxu0 %v7605
        %8577 = vmatprep.subr.bf16.mxu0 %v7602
        %8578 = vmatpush1.bf16.msra.mxu0 %v7601
        %8579 = vmatprep.subr.bf16.mxu0 %v7598
        %8580 = vmatpush1.bf16.msra.mxu0 %v7597
        %8581 = vmatprep.subr.bf16.mxu0 %v7658
        %8582 = vmatpush2.bf16.msra.mxu0 %v7657
        %8583 = vmatprep.subr.bf16.mxu0 %v7654
        %8584 = vmatpush2.bf16.msra.mxu0 %v7653
        %8585 = vmatprep.subr.bf16.mxu0 %v7650
        %8586 = vmatpush2.bf16.msra.mxu0 %v7649
        %8587 = vmatprep.subr.bf16.mxu0 %v7646
        %8588 = vmatpush2.bf16.msra.mxu0 %v7645
        %8589 = vmatprep.subr.bf16.mxu0 %v7642
        %8590 = vmatpush2.bf16.msra.mxu0 %v7641
        %8591 = vmatprep.subr.bf16.mxu0 %v7638
        %8592 = vmatpush2.bf16.msra.mxu0 %v7637
        %8593 = vmatprep.subr.bf16.mxu0 %v7634
        %8594 = vmatpush2.bf16.msra.mxu0 %v7633
        %8595 = vmatprep.subr.bf16.mxu0 %v7630
        %8596 = vmatpush2.bf16.msra.mxu0 %v7629
        %8597 = vmatprep.mubr.bf16.mxu0 %v4758
        %8598 = vmatmul.mubr.bf16.gmra.mxu0 %v4757
        %v8599 = vpop.f32.mrf.mxu0
        %v8600 = vadd.f32 %v8559, %v8599
        %v8601 = vpop.f32.mrf.mxu0
        %v8602 = vadd.f32 %v8561, %v8601
        %v8603 = vpop.f32.mrf.mxu0
        %v8604 = vpop.f32.mrf.mxu0
        %8605 = vdwg.mxu0
        %8606 = vmatprep.subr.bf16.mxu0 %v7116
        %8607 = vmatpush1.bf16.msra.mxu0 %v7115
        %8608 = vmatprep.subr.bf16.mxu0 %v7112
        %8609 = vmatpush1.bf16.msra.mxu0 %v7111
        %8610 = vmatprep.subr.bf16.mxu0 %v7108
        %8611 = vmatpush1.bf16.msra.mxu0 %v7107
        %8612 = vmatprep.subr.bf16.mxu0 %v7104
        %8613 = vmatpush1.bf16.msra.mxu0 %v7103
        %8614 = vmatprep.subr.bf16.mxu0 %v7100
        %8615 = vmatpush1.bf16.msra.mxu0 %v7099
        %8616 = vmatprep.subr.bf16.mxu0 %v7096
        %8617 = vmatpush1.bf16.msra.mxu0 %v7095
        %8618 = vmatprep.subr.bf16.mxu0 %v7092
        %8619 = vmatpush1.bf16.msra.mxu0 %v7091
        %8620 = vmatprep.subr.bf16.mxu0 %v7088
        %8621 = vmatpush1.bf16.msra.mxu0 %v7087
        %8622 = vmatprep.subr.bf16.mxu0 %v7148
        %8623 = vmatpush2.bf16.msra.mxu0 %v7147
        %8624 = vmatprep.subr.bf16.mxu0 %v7144
        %8625 = vmatpush2.bf16.msra.mxu0 %v7143
        %8626 = vmatprep.subr.bf16.mxu0 %v7140
        %8627 = vmatpush2.bf16.msra.mxu0 %v7139
        %8628 = vmatprep.subr.bf16.mxu0 %v7136
        %8629 = vmatpush2.bf16.msra.mxu0 %v7135
        %8630 = vmatprep.subr.bf16.mxu0 %v7132
        %8631 = vmatpush2.bf16.msra.mxu0 %v7131
        %8632 = vmatprep.subr.bf16.mxu0 %v7128
        %8633 = vmatpush2.bf16.msra.mxu0 %v7127
        %8634 = vmatprep.subr.bf16.mxu0 %v7124
        %8635 = vmatpush2.bf16.msra.mxu0 %v7123
        %8636 = vmatprep.subr.bf16.mxu0 %v7120
        %8637 = vmatpush2.bf16.msra.mxu0 %v7119
        %8638 = vmatprep.mubr.bf16.mxu0 %v4742
        %8639 = vmatmul.mubr.bf16.gmra.mxu0 %v4741
        %v8640 = vpop.f32.mrf.mxu0
        %v8641 = vadd.f32 %v5348, %v8640
        %v8642 = vpop.f32.mrf.mxu0
        %v8643 = vadd.f32 %v5352, %v8642
        %v8644 = vpop.f32.mrf.mxu0
        %v8645 = vpop.f32.mrf.mxu0
        %8646 = vdwg.mxu0
        %8647 = vmatprep.subr.bf16.mxu0 %v7180
        %8648 = vmatpush1.bf16.msra.mxu0 %v7179
        %8649 = vmatprep.subr.bf16.mxu0 %v7176
        %8650 = vmatpush1.bf16.msra.mxu0 %v7175
        %8651 = vmatprep.subr.bf16.mxu0 %v7172
        %8652 = vmatpush1.bf16.msra.mxu0 %v7171
        %8653 = vmatprep.subr.bf16.mxu0 %v7168
        %8654 = vmatpush1.bf16.msra.mxu0 %v7167
        %8655 = vmatprep.subr.bf16.mxu0 %v7164
        %8656 = vmatpush1.bf16.msra.mxu0 %v7163
        %8657 = vmatprep.subr.bf16.mxu0 %v7160
        %8658 = vmatpush1.bf16.msra.mxu0 %v7159
        %8659 = vmatprep.subr.bf16.mxu0 %v7156
        %8660 = vmatpush1.bf16.msra.mxu0 %v7155
        %8661 = vmatprep.subr.bf16.mxu0 %v7152
        %8662 = vmatpush1.bf16.msra.mxu0 %v7151
        %8663 = vmatprep.subr.bf16.mxu0 %v7212
        %8664 = vmatpush2.bf16.msra.mxu0 %v7211
        %8665 = vmatprep.subr.bf16.mxu0 %v7208
        %8666 = vmatpush2.bf16.msra.mxu0 %v7207
        %8667 = vmatprep.subr.bf16.mxu0 %v7204
        %8668 = vmatpush2.bf16.msra.mxu0 %v7203
        %8669 = vmatprep.subr.bf16.mxu0 %v7200
        %8670 = vmatpush2.bf16.msra.mxu0 %v7199
        %8671 = vmatprep.subr.bf16.mxu0 %v7196
        %8672 = vmatpush2.bf16.msra.mxu0 %v7195
        %8673 = vmatprep.subr.bf16.mxu0 %v7192
        %8674 = vmatpush2.bf16.msra.mxu0 %v7191
        %8675 = vmatprep.subr.bf16.mxu0 %v7188
        %8676 = vmatpush2.bf16.msra.mxu0 %v7187
        %8677 = vmatprep.subr.bf16.mxu0 %v7184
        %8678 = vmatpush2.bf16.msra.mxu0 %v7183
        %8679 = vmatprep.mubr.bf16.mxu0 %v4744
        %8680 = vmatmul.mubr.bf16.gmra.mxu0 %v4743
        %v8681 = vpop.f32.mrf.mxu0
        %v8682 = vadd.f32 %v8641, %v8681
        %v8683 = vpop.f32.mrf.mxu0
        %v8684 = vadd.f32 %v8643, %v8683
        %v8685 = vpop.f32.mrf.mxu0
        %v8686 = vpop.f32.mrf.mxu0
        %8687 = vdwg.mxu0
        %8688 = vmatprep.subr.bf16.mxu0 %v7244
        %8689 = vmatpush1.bf16.msra.mxu0 %v7243
        %8690 = vmatprep.subr.bf16.mxu0 %v7240
        %8691 = vmatpush1.bf16.msra.mxu0 %v7239
        %8692 = vmatprep.subr.bf16.mxu0 %v7236
        %8693 = vmatpush1.bf16.msra.mxu0 %v7235
        %8694 = vmatprep.subr.bf16.mxu0 %v7232
        %8695 = vmatpush1.bf16.msra.mxu0 %v7231
        %8696 = vmatprep.subr.bf16.mxu0 %v7228
        %8697 = vmatpush1.bf16.msra.mxu0 %v7227
        %8698 = vmatprep.subr.bf16.mxu0 %v7224
        %8699 = vmatpush1.bf16.msra.mxu0 %v7223
        %8700 = vmatprep.subr.bf16.mxu0 %v7220
        %8701 = vmatpush1.bf16.msra.mxu0 %v7219
        %8702 = vmatprep.subr.bf16.mxu0 %v7216
        %8703 = vmatpush1.bf16.msra.mxu0 %v7215
        %8704 = vmatprep.subr.bf16.mxu0 %v7276
        %8705 = vmatpush2.bf16.msra.mxu0 %v7275
        %8706 = vmatprep.subr.bf16.mxu0 %v7272
        %8707 = vmatpush2.bf16.msra.mxu0 %v7271
        %8708 = vmatprep.subr.bf16.mxu0 %v7268
        %8709 = vmatpush2.bf16.msra.mxu0 %v7267
        %8710 = vmatprep.subr.bf16.mxu0 %v7264
        %8711 = vmatpush2.bf16.msra.mxu0 %v7263
        %8712 = vmatprep.subr.bf16.mxu0 %v7260
        %8713 = vmatpush2.bf16.msra.mxu0 %v7259
        %8714 = vmatprep.subr.bf16.mxu0 %v7256
        %8715 = vmatpush2.bf16.msra.mxu0 %v7255
        %8716 = vmatprep.subr.bf16.mxu0 %v7252
        %8717 = vmatpush2.bf16.msra.mxu0 %v7251
        %8718 = vmatprep.subr.bf16.mxu0 %v7248
        %8719 = vmatpush2.bf16.msra.mxu0 %v7247
        %8720 = vmatprep.mubr.bf16.mxu0 %v4746
        %8721 = vmatmul.mubr.bf16.gmra.mxu0 %v4745
        %v8722 = vpop.f32.mrf.mxu0
        %v8723 = vadd.f32 %v8682, %v8722
        %v8724 = vpop.f32.mrf.mxu0
        %v8725 = vadd.f32 %v8684, %v8724
        %v8726 = vpop.f32.mrf.mxu0
        %v8727 = vpop.f32.mrf.mxu0
        %8728 = vdwg.mxu0
        %8729 = vmatprep.subr.bf16.mxu0 %v7308
        %8730 = vmatpush1.bf16.msra.mxu0 %v7307
        %8731 = vmatprep.subr.bf16.mxu0 %v7304
        %8732 = vmatpush1.bf16.msra.mxu0 %v7303
        %8733 = vmatprep.subr.bf16.mxu0 %v7300
        %8734 = vmatpush1.bf16.msra.mxu0 %v7299
        %8735 = vmatprep.subr.bf16.mxu0 %v7296
        %8736 = vmatpush1.bf16.msra.mxu0 %v7295
        %8737 = vmatprep.subr.bf16.mxu0 %v7292
        %8738 = vmatpush1.bf16.msra.mxu0 %v7291
        %8739 = vmatprep.subr.bf16.mxu0 %v7288
        %8740 = vmatpush1.bf16.msra.mxu0 %v7287
        %8741 = vmatprep.subr.bf16.mxu0 %v7284
        %8742 = vmatpush1.bf16.msra.mxu0 %v7283
        %8743 = vmatprep.subr.bf16.mxu0 %v7280
        %8744 = vmatpush1.bf16.msra.mxu0 %v7279
        %8745 = vmatprep.subr.bf16.mxu0 %v7340
        %8746 = vmatpush2.bf16.msra.mxu0 %v7339
        %8747 = vmatprep.subr.bf16.mxu0 %v7336
        %8748 = vmatpush2.bf16.msra.mxu0 %v7335
        %8749 = vmatprep.subr.bf16.mxu0 %v7332
        %8750 = vmatpush2.bf16.msra.mxu0 %v7331
        %8751 = vmatprep.subr.bf16.mxu0 %v7328
        %8752 = vmatpush2.bf16.msra.mxu0 %v7327
        %8753 = vmatprep.subr.bf16.mxu0 %v7324
        %8754 = vmatpush2.bf16.msra.mxu0 %v7323
        %8755 = vmatprep.subr.bf16.mxu0 %v7320
        %8756 = vmatpush2.bf16.msra.mxu0 %v7319
        %8757 = vmatprep.subr.bf16.mxu0 %v7316
        %8758 = vmatpush2.bf16.msra.mxu0 %v7315
        %8759 = vmatprep.subr.bf16.mxu0 %v7312
        %8760 = vmatpush2.bf16.msra.mxu0 %v7311
        %8761 = vmatprep.mubr.bf16.mxu0 %v4748
        %8762 = vmatmul.mubr.bf16.gmra.mxu0 %v4747
        %v8763 = vpop.f32.mrf.mxu0
        %v8764 = vadd.f32 %v8723, %v8763
        %v8765 = vpop.f32.mrf.mxu0
        %v8766 = vadd.f32 %v8725, %v8765
        %v8767 = vpop.f32.mrf.mxu0
        %v8768 = vpop.f32.mrf.mxu0
        %8769 = vdwg.mxu0
        %8770 = vmatprep.subr.bf16.mxu0 %v7372
        %8771 = vmatpush1.bf16.msra.mxu0 %v7371
        %8772 = vmatprep.subr.bf16.mxu0 %v7368
        %8773 = vmatpush1.bf16.msra.mxu0 %v7367
        %8774 = vmatprep.subr.bf16.mxu0 %v7364
        %8775 = vmatpush1.bf16.msra.mxu0 %v7363
        %8776 = vmatprep.subr.bf16.mxu0 %v7360
        %8777 = vmatpush1.bf16.msra.mxu0 %v7359
        %8778 = vmatprep.subr.bf16.mxu0 %v7356
        %8779 = vmatpush1.bf16.msra.mxu0 %v7355
        %8780 = vmatprep.subr.bf16.mxu0 %v7352
        %8781 = vmatpush1.bf16.msra.mxu0 %v7351
        %8782 = vmatprep.subr.bf16.mxu0 %v7348
        %8783 = vmatpush1.bf16.msra.mxu0 %v7347
        %8784 = vmatprep.subr.bf16.mxu0 %v7344
        %8785 = vmatpush1.bf16.msra.mxu0 %v7343
        %8786 = vmatprep.subr.bf16.mxu0 %v7404
        %8787 = vmatpush2.bf16.msra.mxu0 %v7403
        %8788 = vmatprep.subr.bf16.mxu0 %v7400
        %8789 = vmatpush2.bf16.msra.mxu0 %v7399
        %8790 = vmatprep.subr.bf16.mxu0 %v7396
        %8791 = vmatpush2.bf16.msra.mxu0 %v7395
        %8792 = vmatprep.subr.bf16.mxu0 %v7392
        %8793 = vmatpush2.bf16.msra.mxu0 %v7391
        %8794 = vmatprep.subr.bf16.mxu0 %v7388
        %8795 = vmatpush2.bf16.msra.mxu0 %v7387
        %8796 = vmatprep.subr.bf16.mxu0 %v7384
        %8797 = vmatpush2.bf16.msra.mxu0 %v7383
        %8798 = vmatprep.subr.bf16.mxu0 %v7380
        %8799 = vmatpush2.bf16.msra.mxu0 %v7379
        %8800 = vmatprep.subr.bf16.mxu0 %v7376
        %8801 = vmatpush2.bf16.msra.mxu0 %v7375
        %8802 = vmatprep.mubr.bf16.mxu0 %v4750
        %8803 = vmatmul.mubr.bf16.gmra.mxu0 %v4749
        %v8804 = vpop.f32.mrf.mxu0
        %v8805 = vadd.f32 %v8764, %v8804
        %v8806 = vpop.f32.mrf.mxu0
        %v8807 = vadd.f32 %v8766, %v8806
        %v8808 = vpop.f32.mrf.mxu0
        %v8809 = vpop.f32.mrf.mxu0
        %8810 = vdwg.mxu0
        %8811 = vmatprep.subr.bf16.mxu0 %v7436
        %8812 = vmatpush1.bf16.msra.mxu0 %v7435
        %8813 = vmatprep.subr.bf16.mxu0 %v7432
        %8814 = vmatpush1.bf16.msra.mxu0 %v7431
        %8815 = vmatprep.subr.bf16.mxu0 %v7428
        %8816 = vmatpush1.bf16.msra.mxu0 %v7427
        %8817 = vmatprep.subr.bf16.mxu0 %v7424
        %8818 = vmatpush1.bf16.msra.mxu0 %v7423
        %8819 = vmatprep.subr.bf16.mxu0 %v7420
        %8820 = vmatpush1.bf16.msra.mxu0 %v7419
        %8821 = vmatprep.subr.bf16.mxu0 %v7416
        %8822 = vmatpush1.bf16.msra.mxu0 %v7415
        %8823 = vmatprep.subr.bf16.mxu0 %v7412
        %8824 = vmatpush1.bf16.msra.mxu0 %v7411
        %8825 = vmatprep.subr.bf16.mxu0 %v7408
        %8826 = vmatpush1.bf16.msra.mxu0 %v7407
        %8827 = vmatprep.subr.bf16.mxu0 %v7468
        %8828 = vmatpush2.bf16.msra.mxu0 %v7467
        %8829 = vmatprep.subr.bf16.mxu0 %v7464
        %8830 = vmatpush2.bf16.msra.mxu0 %v7463
        %8831 = vmatprep.subr.bf16.mxu0 %v7460
        %8832 = vmatpush2.bf16.msra.mxu0 %v7459
        %8833 = vmatprep.subr.bf16.mxu0 %v7456
        %8834 = vmatpush2.bf16.msra.mxu0 %v7455
        %8835 = vmatprep.subr.bf16.mxu0 %v7452
        %8836 = vmatpush2.bf16.msra.mxu0 %v7451
        %8837 = vmatprep.subr.bf16.mxu0 %v7448
        %8838 = vmatpush2.bf16.msra.mxu0 %v7447
        %8839 = vmatprep.subr.bf16.mxu0 %v7444
        %8840 = vmatpush2.bf16.msra.mxu0 %v7443
        %8841 = vmatprep.subr.bf16.mxu0 %v7440
        %8842 = vmatpush2.bf16.msra.mxu0 %v7439
        %8843 = vmatprep.mubr.bf16.mxu0 %v4752
        %8844 = vmatmul.mubr.bf16.gmra.mxu0 %v4751
        %v8845 = vpop.f32.mrf.mxu0
        %v8846 = vadd.f32 %v8805, %v8845
        %v8847 = vpop.f32.mrf.mxu0
        %v8848 = vadd.f32 %v8807, %v8847
        %v8849 = vpop.f32.mrf.mxu0
        %v8850 = vpop.f32.mrf.mxu0
        %8851 = vdwg.mxu0
        %8852 = vmatprep.subr.bf16.mxu0 %v7500
        %8853 = vmatpush1.bf16.msra.mxu0 %v7499
        %8854 = vmatprep.subr.bf16.mxu0 %v7496
        %8855 = vmatpush1.bf16.msra.mxu0 %v7495
        %8856 = vmatprep.subr.bf16.mxu0 %v7492
        %8857 = vmatpush1.bf16.msra.mxu0 %v7491
        %8858 = vmatprep.subr.bf16.mxu0 %v7488
        %8859 = vmatpush1.bf16.msra.mxu0 %v7487
        %8860 = vmatprep.subr.bf16.mxu0 %v7484
        %8861 = vmatpush1.bf16.msra.mxu0 %v7483
        %8862 = vmatprep.subr.bf16.mxu0 %v7480
        %8863 = vmatpush1.bf16.msra.mxu0 %v7479
        %8864 = vmatprep.subr.bf16.mxu0 %v7476
        %8865 = vmatpush1.bf16.msra.mxu0 %v7475
        %8866 = vmatprep.subr.bf16.mxu0 %v7472
        %8867 = vmatpush1.bf16.msra.mxu0 %v7471
        %8868 = vmatprep.subr.bf16.mxu0 %v7532
        %8869 = vmatpush2.bf16.msra.mxu0 %v7531
        %8870 = vmatprep.subr.bf16.mxu0 %v7528
        %8871 = vmatpush2.bf16.msra.mxu0 %v7527
        %8872 = vmatprep.subr.bf16.mxu0 %v7524
        %8873 = vmatpush2.bf16.msra.mxu0 %v7523
        %8874 = vmatprep.subr.bf16.mxu0 %v7520
        %8875 = vmatpush2.bf16.msra.mxu0 %v7519
        %8876 = vmatprep.subr.bf16.mxu0 %v7516
        %8877 = vmatpush2.bf16.msra.mxu0 %v7515
        %8878 = vmatprep.subr.bf16.mxu0 %v7512
        %8879 = vmatpush2.bf16.msra.mxu0 %v7511
        %8880 = vmatprep.subr.bf16.mxu0 %v7508
        %8881 = vmatpush2.bf16.msra.mxu0 %v7507
        %8882 = vmatprep.subr.bf16.mxu0 %v7504
        %8883 = vmatpush2.bf16.msra.mxu0 %v7503
        %8884 = vmatprep.mubr.bf16.mxu0 %v4754
        %8885 = vmatmul.mubr.bf16.gmra.mxu0 %v4753
        %v8886 = vpop.f32.mrf.mxu0
        %v8887 = vadd.f32 %v8846, %v8886
        %v8888 = vpop.f32.mrf.mxu0
        %v8889 = vadd.f32 %v8848, %v8888
        %v8890 = vpop.f32.mrf.mxu0
        %v8891 = vpop.f32.mrf.mxu0
        %8892 = vdwg.mxu0
        %8893 = vmatprep.subr.bf16.mxu0 %v7564
        %8894 = vmatpush1.bf16.msra.mxu0 %v7563
        %8895 = vmatprep.subr.bf16.mxu0 %v7560
        %8896 = vmatpush1.bf16.msra.mxu0 %v7559
        %8897 = vmatprep.subr.bf16.mxu0 %v7556
        %8898 = vmatpush1.bf16.msra.mxu0 %v7555
        %8899 = vmatprep.subr.bf16.mxu0 %v7552
        %8900 = vmatpush1.bf16.msra.mxu0 %v7551
        %8901 = vmatprep.subr.bf16.mxu0 %v7548
        %8902 = vmatpush1.bf16.msra.mxu0 %v7547
        %8903 = vmatprep.subr.bf16.mxu0 %v7544
        %8904 = vmatpush1.bf16.msra.mxu0 %v7543
        %8905 = vmatprep.subr.bf16.mxu0 %v7540
        %8906 = vmatpush1.bf16.msra.mxu0 %v7539
        %8907 = vmatprep.subr.bf16.mxu0 %v7536
        %8908 = vmatpush1.bf16.msra.mxu0 %v7535
        %8909 = vmatprep.subr.bf16.mxu0 %v7596
        %8910 = vmatpush2.bf16.msra.mxu0 %v7595
        %8911 = vmatprep.subr.bf16.mxu0 %v7592
        %8912 = vmatpush2.bf16.msra.mxu0 %v7591
        %8913 = vmatprep.subr.bf16.mxu0 %v7588
        %8914 = vmatpush2.bf16.msra.mxu0 %v7587
        %8915 = vmatprep.subr.bf16.mxu0 %v7584
        %8916 = vmatpush2.bf16.msra.mxu0 %v7583
        %8917 = vmatprep.subr.bf16.mxu0 %v7580
        %8918 = vmatpush2.bf16.msra.mxu0 %v7579
        %8919 = vmatprep.subr.bf16.mxu0 %v7576
        %8920 = vmatpush2.bf16.msra.mxu0 %v7575
        %8921 = vmatprep.subr.bf16.mxu0 %v7572
        %8922 = vmatpush2.bf16.msra.mxu0 %v7571
        %8923 = vmatprep.subr.bf16.mxu0 %v7568
        %8924 = vmatpush2.bf16.msra.mxu0 %v7567
        %8925 = vmatprep.mubr.bf16.mxu0 %v4756
        %8926 = vmatmul.mubr.bf16.gmra.mxu0 %v4755
        %v8927 = vpop.f32.mrf.mxu0
        %v8928 = vadd.f32 %v8887, %v8927
        %v8929 = vpop.f32.mrf.mxu0
        %v8930 = vadd.f32 %v8889, %v8929
        %v8931 = vpop.f32.mrf.mxu0
        %v8932 = vpop.f32.mrf.mxu0
        %8933 = vdwg.mxu0
        %8934 = vmatprep.subr.bf16.mxu0 %v7628
        %8935 = vmatpush1.bf16.msra.mxu0 %v7627
        %8936 = vmatprep.subr.bf16.mxu0 %v7624
        %8937 = vmatpush1.bf16.msra.mxu0 %v7623
        %8938 = vmatprep.subr.bf16.mxu0 %v7620
        %8939 = vmatpush1.bf16.msra.mxu0 %v7619
        %8940 = vmatprep.subr.bf16.mxu0 %v7616
        %8941 = vmatpush1.bf16.msra.mxu0 %v7615
        %8942 = vmatprep.subr.bf16.mxu0 %v7612
        %8943 = vmatpush1.bf16.msra.mxu0 %v7611
        %8944 = vmatprep.subr.bf16.mxu0 %v7608
        %8945 = vmatpush1.bf16.msra.mxu0 %v7607
        %8946 = vmatprep.subr.bf16.mxu0 %v7604
        %8947 = vmatpush1.bf16.msra.mxu0 %v7603
        %8948 = vmatprep.subr.bf16.mxu0 %v7600
        %8949 = vmatpush1.bf16.msra.mxu0 %v7599
        %8950 = vmatprep.subr.bf16.mxu0 %v7660
        %8951 = vmatpush2.bf16.msra.mxu0 %v7659
        %8952 = vmatprep.subr.bf16.mxu0 %v7656
        %8953 = vmatpush2.bf16.msra.mxu0 %v7655
        %8954 = vmatprep.subr.bf16.mxu0 %v7652
        %8955 = vmatpush2.bf16.msra.mxu0 %v7651
        %8956 = vmatprep.subr.bf16.mxu0 %v7648
        %8957 = vmatpush2.bf16.msra.mxu0 %v7647
        %8958 = vmatprep.subr.bf16.mxu0 %v7644
        %8959 = vmatpush2.bf16.msra.mxu0 %v7643
        %8960 = vmatprep.subr.bf16.mxu0 %v7640
        %8961 = vmatpush2.bf16.msra.mxu0 %v7639
        %8962 = vmatprep.subr.bf16.mxu0 %v7636
        %8963 = vmatpush2.bf16.msra.mxu0 %v7635
        %8964 = vmatprep.subr.bf16.mxu0 %v7632
        %8965 = vmatpush2.bf16.msra.mxu0 %v7631
        %8966 = vmatprep.mubr.bf16.mxu0 %v4758
        %8967 = vmatmul.mubr.bf16.gmra.mxu0 %v4757
        %v8968 = vpop.f32.mrf.mxu0
        %v8969 = vadd.f32 %v8928, %v8968
        %v8970 = vpop.f32.mrf.mxu0
        %v8971 = vadd.f32 %v8930, %v8970
        %v8972 = vpop.f32.mrf.mxu0
        %v8973 = vpop.f32.mrf.mxu0
        %8974 = vdwg.mxu0
        %vm8975 = vcmp.ge.f32.partialorder %v8600, 0.0
        %vm8976 = vcmp.ge.f32.partialorder %v8602, 0.0
        %vm8977 = vcmp.ge.f32.partialorder %v8969, 0.0
        %vm8978 = vcmp.ge.f32.partialorder %v8971, 0.0
        %v8979 = vmul.f32 %v8600, 0.2
        %v8980 = vmul.f32 %v8602, 0.2
        %v8981 = vmul.f32 %v8969, 0.2
        %v8982 = vmul.f32 %v8971, 0.2
        %v8983 = vsel %vm8975, %v8600, %v8979
        %v8984 = vsel %vm8976, %v8602, %v8980
        %v8985 = vsel %vm8977, %v8969, %v8981
        %v8986 = vsel %vm8978, %v8971, %v8982
        %v8987 = vld [vmem:[#allocation14] sm:$0xf]
        %v8989 = vlaneseq
        %v8990 = vshrl.u32 %v8989, 7
        %v8991 = vsub.s32 0, %v8990
        %v8992 = vrot.slane %v8987, %v8991
        %v8993 = vlaneseq
        %v8994 = vshrl.u32 %v8993, 7
        %v8995 = vsub.s32 1, %v8994
        %v8996 = vrot.slane %v8987, %v8995
        %v8997 = vlaneseq
        %v8998 = vshrl.u32 %v8997, 7
        %v8999 = vsub.s32 2, %v8998
        %v9000 = vrot.slane %v8987, %v8999
        %v9001 = vlaneseq
        %v9002 = vshrl.u32 %v9001, 7
        %v9003 = vsub.s32 3, %v9002
        %v9004 = vrot.slane %v8987, %v9003
        %v9009 = vmul.f32 %v8983, %v8992
        %v9010 = vmul.f32 %v8984, %v8996
        %v9011 = vmul.f32 %v8985, %v9000
        %v9012 = vmul.f32 %v8986, %v9004
        %v9013 = vsel %vm733, %v9009, 0.0
        %v9014 = vsel %vm733, %v9010, 0.0
        %v9015 = vadd.f32 %v9013, %v9014
        %v9016 = vsel %vm733, %v9011, 0.0
        %v9017 = vadd.f32 %v9015, %v9016
        %v9018 = vsel %vm733, %v9012, 0.0
        %v9019 = vadd.f32 %v9017, %v9018
        %9020 = vadd.xlane.f32.xlu0 %v9019
        %v9021 = vpop.xlane.xlu0 %9020
        %v9022 = vld [vmem:[#allocation2] sm:$0x1]
        %v9023 = vadd.f32 %v9021, %v9022
        %9025 = vset.pattern.permute.xlu0 0
        %9026 = vperm.xlu0 %9025, %v9023
        %v9027 = vpop.permute.xlu0 %9026
        %9029 = vst [vmem:[%s615] sm:$0x1] %v9027
        %p9030 = scmp.lt.s32.totalorder %s33, 1
        %s9031 = scalar_select %p9030, %s33, 1
        %s9032 = scalar_lea.vmem %s14, %s9031
        // Predicated region
        $region121: #{discriminator_forward.1} parent=75 // pred_check
          %p9033 = pneg %p350
        $region122: #{discriminator_forward.1} parent=75 // pred_check_branch
          %9035 = sbr.rel (%p9033) target = $region124
        $region123: #{discriminator_forward.1} parent=75 // pred_region
          _
        $region124: #{discriminator_forward.1} parent=75 // pred_fallthru
          _
      $region76: #{discriminator_forward.1} parent=5 // pred_fallthru
        _
      %p9036 = scmp.le.s32.totalorder 2, %s28
      // Predicated region
      $region125: #{discriminator_forward.1} parent=5 // pred_check
        %p9037 = pneg %p9036
      $region126: #{discriminator_forward.1} parent=5 // pred_check_branch
        %9039 = sbr.rel (%p9037) target = $region128
      $region127: #{discriminator_forward.1} parent=5 // pred_region
        %s9040 = ssub.s32 %s28, 2
        // Predicated region
        $region129: #{discriminator_forward.1} parent=127 // pred_check
          %p9041 = pneg %p356
        $region130: #{discriminator_forward.1} parent=127 // pred_check_branch
          %9043 = sbr.rel (%p9041) target = $region132
        $region131: #{discriminator_forward.1} parent=127 // pred_region
          %p9044 = scmp.lt.s32.totalorder %s34, 1
          %s9045 = scalar_select %p9044, %s34, 1
          %s9046 = scalar_lea.vmem %s14, %s9045
        $region132: #{discriminator_forward.1} parent=127 // pred_fallthru
          _
      $region128: #{discriminator_forward.1} parent=5 // pred_fallthru
        _
    $region6: #{discriminator_forward.1} parent=1 // loop_footer
      %s32 = sadd.s32 1, %s28
    $region7: #{discriminator_forward.1} parent=1 // loop_footer_branch
      %27 = sbr.rel target = $region3
    $region8: #{discriminator_forward.1} parent=1 // loop_exit
      _
    %9047 = vsyncpa [#allocation4], 1
    %s9048 = scalar_lea.sflag [#allocation4], 1
    %9049 = vsyncpa %s9048, 1
    %9050 = vsyncpa [#allocation6], 1
    %9051 = vsyncpa [#allocation9], 1
    %9052 = vsyncpa [#allocation12], 1
    %9053 = vsyncpa [#allocation15], 1
    %9054 = vsyncpa [#allocation18], 1

</llo_original>
